<compile_context>
chip_gen: v7x
topology: tpu7x:2x2x1
jax: 0.10.0
libtpu: 0.0.40
codegen_flags: <defaults>
</compile_context>

<pallas_src>
import functools

import numpy as np
import jax
import jax.numpy as jnp
from jax.experimental import pallas as pl
from jax.experimental.pallas import tpu as pltpu

_BN_EPS = 1e-5
_LANE = 128


# ---------------------------------------------------------------------------
# Config / parameters (small-shape version of BarGenerator(32, 512, 1024))
# ---------------------------------------------------------------------------
def make_config(z_dim=8, hid_chans=32, hid_feats=64, out_chans=1,
                n_step_per_bar=16, n_pitches=84):
    assert hid_feats % hid_chans == 0
    assert out_chans == 1
    hc = hid_chans
    cfg = dict(z_dim=z_dim, hid_chans=hid_chans, hid_feats=hid_feats,
               out_chans=out_chans, n_step_per_bar=n_step_per_bar,
               n_pitches=n_pitches)
    # ConvTranspose2d stack: (c_in, c_out, kh, kw, has_bn_relu); kernel == stride.
    cfg['convs'] = [
        (hc, hc, 2, 1, True),
        (hc, hc // 2, 2, 1, True),
        (hc // 2, hc // 2, 2, 1, True),
        (hc // 2, hc // 2, 1, 7, True),
        (hc // 2, out_chans, 1, 12, False),
    ]
    return cfg


def init_params(key, cfg):
    params = {}
    k = key

    def nxt():
        nonlocal k
        k, sub = jax.random.split(k)
        return sub

    z4 = 4 * cfg['z_dim']
    hf = cfg['hid_feats']
    params['lin_w'] = 0.1 * jax.random.normal(nxt(), (z4, hf), jnp.float32)
    params['lin_b'] = 0.1 * jax.random.normal(nxt(), (hf,), jnp.float32)
    params['bn0_g'] = 1.0 + 0.1 * jax.random.normal(nxt(), (hf,), jnp.float32)
    params['bn0_b'] = 0.1 * jax.random.normal(nxt(), (hf,), jnp.float32)
    for i, (cin, cout, kh, kw, has_bn) in enumerate(cfg['convs']):
        # PyTorch ConvTranspose2d weight layout: (in_channels, out_channels, kH, kW)
        params[f'ct{i}_w'] = 0.1 * jax.random.normal(nxt(), (cin, cout, kh, kw), jnp.float32)
        params[f'ct{i}_b'] = 0.1 * jax.random.normal(nxt(), (cout,), jnp.float32)
        if has_bn:
            params[f'ct{i}_g'] = 1.0 + 0.1 * jax.random.normal(nxt(), (cout,), jnp.float32)
            params[f'ct{i}_beta'] = 0.1 * jax.random.normal(nxt(), (cout,), jnp.float32)
    return params


# ---------------------------------------------------------------------------
# Host-side weight re-packing (done ONCE, outside jit / outside the kernel)
# ---------------------------------------------------------------------------
def _conv_block_matrix(w, H):
    """ConvTranspose2d with kernel==stride==(kh,1) as a block-expansion matrix.

    Input/output features are (c, h)-flattened, channel-major.
    """
    cin, cout, kh, kw = w.shape
    assert kw == 1
    Ho = H * kh
    M = np.zeros((cin * H, cout * Ho), np.float32)
    for ci in range(cin):
        for hi in range(H):
            for co in range(cout):
                for dh in range(kh):
                    M[ci * H + hi, co * Ho + hi * kh + dh] = w[ci, co, dh, 0]
    return M


def _pool_matrices(F, C, chan_of_feature, n_reduce):
    """P (F,C): per-channel mean pooling (includes 1/n); PT (C,F): broadcast back.

    chan_of_feature == -1 marks padding features (no channel -> excluded from stats,
    scale/shift broadcast back as 0).
    """
    P = np.zeros((F, C), np.float32)
    PT = np.zeros((C, F), np.float32)
    for f, c in enumerate(np.asarray(chan_of_feature)):
        if c >= 0:
            P[f, c] = 1.0 / float(n_reduce)
            PT[c, f] = 1.0
    return P, PT


def prepare_kernel_inputs(params, cfg, batch):
    """Flat list of 2-D f32 arrays consumed (in order) by the fused kernel + cost info."""
    hc, hf = cfg['hid_chans'], cfg['hid_feats']
    inputs = []
    flops = 0
    transc = 0

    def add(*arrs):
        inputs.extend(jnp.asarray(a, jnp.float32) for a in arrs)

    # Linear weight (bias dropped: cancelled by the training-mode BN1d that follows).
    add(params['lin_w'])
    flops += 2 * batch * 4 * cfg['z_dim'] * hf
    # BN1d: every feature is its own channel -> identity pooling scaled by 1/B.
    P, PT = _pool_matrices(hf, hf, np.arange(hf), batch)
    add(P, PT, np.asarray(params['bn0_g']).reshape(1, -1),
        np.asarray(params['bn0_b']).reshape(1, -1))
    transc += hf

    # Conv stages 0..2 (kernel (2,1)): block-expansion matmuls in the (B, C*H) layout.
    H = hf // hc
    for i in range(3):
        cin, cout, kh, kw, _ = cfg['convs'][i]
        M = _conv_block_matrix(np.asarray(params[f'ct{i}_w'], np.float32), H)
        flops += 2 * batch * M.shape[0] * M.shape[1]
        H = H * kh
        F = cout * H
        chan = np.arange(F) // H                         # feature = c*H + h
        P, PT = _pool_matrices(F, cout, chan, batch * H)  # BN2d reduces over B*H*W
        add(M, P, PT, np.asarray(params[f'ct{i}_g']).reshape(1, -1),
            np.asarray(params[f'ct{i}_beta']).reshape(1, -1))
        transc += cout

    # Conv stage 3 (kernel (1,7)): block matmul whose OUTPUT groups each spatial step
    # into a 128-lane-aligned lane group (cout*kw = 112 real features + zero pads), so
    # the subsequent lanes->rows switch is pure aligned full-lane block copies.
    cin3, cout3, kh3, kw3, _ = cfg['convs'][3]
    assert kh3 == 1
    w3 = np.asarray(params['ct3_w'], np.float32)
    F3 = cout3 * kw3
    G = _LANE
    assert F3 <= G
    M3 = np.zeros((cin3 * H, H * G), np.float32)
    for ci in range(cin3):
        for hh in range(H):
            for co in range(cout3):
                for dk in range(kw3):
                    M3[ci * H + hh, hh * G + co * kw3 + dk] = w3[ci, co, 0, dk]
    flops += 2 * batch * M3.shape[0] * M3.shape[1]
    # BN for stage 3 runs AFTER the switch, on the (H*B, 128) slab: lane f<112 -> chan f//kw.
    chan3 = np.full((G,), -1, np.int64)
    chan3[:F3] = np.arange(F3) // kw3
    P3, PT3 = _pool_matrices(G, cout3, chan3, batch * H * kw3)
    add(M3, P3, PT3, np.asarray(params['ct3_g']).reshape(1, -1),
        np.asarray(params['ct3_beta']).reshape(1, -1))
    transc += cout3

    # Conv stage 4 (kernel (1,12), no BN -> bias kept): lane-dense, padded 84 -> 128.
    cin4, cout4, kh4, kw4, _ = cfg['convs'][4]
    assert kh4 == 1 and cout4 == 1 and cin4 * kw3 <= G
    w4 = np.asarray(params['ct4_w'], np.float32)
    b4 = np.asarray(params['ct4_b'], np.float32)
    Wout = kw3 * kw4                                     # 84
    Nout = ((Wout + _LANE - 1) // _LANE) * _LANE         # 128 (lane-dense output slab)
    M4 = np.zeros((G, Nout), np.float32)
    for ci in range(cin4):
        for wi in range(kw3):
            for dk in range(kw4):
                M4[ci * kw3 + wi, wi * kw4 + dk] = w4[ci, 0, 0, dk]
    b4row = np.zeros((1, Nout), np.float32)
    b4row[0, :Wout] = b4[0]
    flops += 2 * (batch * H) * M4.shape[0] * M4.shape[1]
    add(M4, b4row)

    return inputs, dict(flops=int(flops), transcendentals=int(transc))


# ---------------------------------------------------------------------------
# The fused Pallas kernel
# ---------------------------------------------------------------------------
def _bar_gen_kernel(x_ref, lin_w_ref,
                    plin_ref, plinT_ref, glin_ref, blin_ref,
                    m0_ref, p0_ref, pT0_ref, g0_ref, b0_ref,
                    m1_ref, p1_ref, pT1_ref, g1_ref, b1_ref,
                    m2_ref, p2_ref, pT2_ref, g2_ref, b2_ref,
                    m3_ref, p3_ref, pT3_ref, g3_ref, b3_ref,
                    m4_ref, b4_ref,
                    out_ref, s_ref):
    def bn_relu(h, p_ref, pT_ref, g_ref, bt_ref):
        # Training-mode BatchNorm (one-pass stats) fused with ReLU.
        # Stats and broadcast-back are each ONE merged 2-row MXU push.
        s = jnp.sum(h, axis=0, keepdims=True)                      # (1, F)
        ss = jnp.sum(h * h, axis=0, keepdims=True)                 # (1, F)
        stat2 = jnp.dot(jnp.concatenate([s, ss], axis=0), p_ref[...],
                        preferred_element_type=jnp.float32)        # (2, C)
        mean_c = stat2[0:1, :]
        var_c = jnp.maximum(stat2[1:2, :] - mean_c * mean_c, 0.0)  # clamp (one-pass var)
        scale_c = g_ref[...] * jax.lax.rsqrt(var_c + _BN_EPS)      # EUP
        shift_c = bt_ref[...] - mean_c * scale_c
        sf2 = jnp.dot(jnp.concatenate([scale_c, shift_c], axis=0), pT_ref[...],
                      preferred_element_type=jnp.float32)          # (2, F)
        return jnp.maximum(h * sf2[0:1, :] + sf2[1:2, :], 0.0)

    # Linear (bias folded away by BN) + BN1d + ReLU.              h: (B, hid_feats)
    h = jnp.dot(x_ref[...], lin_w_ref[...], preferred_element_type=jnp.float32)
    h = bn_relu(h, plin_ref, plinT_ref, glin_ref, blin_ref)

    # Conv stages 0..2 as block-expansion matmuls in the (B, C*H) flattened layout.
    h = bn_relu(jnp.dot(h, m0_ref[...], preferred_element_type=jnp.float32),
                p0_ref, pT0_ref, g0_ref, b0_ref)
    h = bn_relu(jnp.dot(h, m1_ref[...], preferred_element_type=jnp.float32),
                p1_ref, pT1_ref, g1_ref, b1_ref)
    h = bn_relu(jnp.dot(h, m2_ref[...], preferred_element_type=jnp.float32),
                p2_ref, pT2_ref, g2_ref, b2_ref)

    # Conv stage 3: output lanes grouped per spatial step into padded 128-lane tiles.
    h = jnp.dot(h, m3_ref[...], preferred_element_type=jnp.float32)   # (B, n_step*128)

    # lanes -> rows layout switch: n_step unmasked, 128-lane-aligned (B,128) block copies.
    B = x_ref.shape[0]
    G = s_ref.shape[1]                       # 128
    Hs = s_ref.shape[0] // B                 # n_step
    for hh in range(Hs):
        s_ref[pl.ds(hh * B, B), :] = h[:, hh * G:(hh + 1) * G]
    t = s_ref[...]                           # (n_step*B, 128), rows = (step, batch)

    # BN+ReLU for stage 3 on the row-major slab, then final conv (+bias), lane-dense out.
    t = bn_relu(t, p3_ref, pT3_ref, g3_ref, b3_ref)
    out_ref[...] = (jnp.dot(t, m4_ref[...], preferred_element_type=jnp.float32)
                    + b4_ref[...])           # (n_step*B, 128)


def bar_generator_pallas(x, kernel_inputs, cfg, cost=None):
    B = x.shape[0]
    n_step, n_pitch = cfg['n_step_per_bar'], cfg['n_pitches']
    n_lane = ((n_pitch + _LANE - 1) // _LANE) * _LANE   # lane-dense padded output width
    args = [x.astype(jnp.float32)] + list(kernel_inputs)

    cost_estimate = None
    if cost is not None:
        bytes_accessed = sum(int(np.prod(a.shape)) * 4 for a in args) \
            + n_step * B * n_lane * 4
        cost_estimate = pl.CostEstimate(flops=cost['flops'],
                                        transcendentals=cost['transcendentals'],
                                        bytes_accessed=bytes_accessed)

    out_slab = pl.pallas_call(
        _bar_gen_kernel,
        out_shape=jax.ShapeDtypeStruct((n_step * B, n_lane), jnp.float32),
        grid=(1,),
        in_specs=[pl.BlockSpec(a.shape, lambda i: (0, 0)) for a in args],
        out_specs=pl.BlockSpec((n_step * B, n_lane), lambda i: (0, 0)),
        scratch_shapes=[pltpu.VMEM((n_step * B, _LANE), jnp.float32)],
        compiler_params=pltpu.CompilerParams(
            dimension_semantics=("arbitrary",),
            vmem_limit_bytes=32 * 1024 * 1024),
        cost_estimate=cost_estimate,
    )(*args)

    # Drop lane padding; rows are (step, batch)-ordered -> relabel to (B,1,1,step,pitch).
    out = out_slab[:, :n_pitch]
    return (out.reshape(n_step, B, n_pitch)
            .transpose(1, 0, 2)
            .reshape(B, 1, 1, n_step, n_pitch))


# ---------------------------------------------------------------------------
# Pure-JAX reference (exact PyTorch semantics, incl. all biases) for validation
# ---------------------------------------------------------------------------
def reference_forward(x, params, cfg):
    B = x.shape[0]
    h = x @ params['lin_w'] + params['lin_b']
    mean = h.mean(axis=0)
    var = ((h - mean) ** 2).mean(axis=0)
    h = (h - mean) / jnp.sqrt(var + _BN_EPS) * params['bn0_g'] + params['bn0_b']
    h = jnp.maximum(h, 0.0)

    hc = cfg['hid_chans']
    H, W = cfg['hid_feats'] // hc, 1
    h = h.reshape(B, hc, H, W)
    for i, (cin, cout, kh, kw, has_bn) in enumerate(cfg['convs']):
        w, b = params[f'ct{i}_w'], params[f'ct{i}_b']
        y = jnp.einsum('bihw,iodk->bohdwk', h, w).reshape(B, cout, H * kh, W * kw)
        y = y + b[None, :, None, None]
        H, W = H * kh, W * kw
        if has_bn:
            g, be = params[f'ct{i}_g'], params[f'ct{i}_beta']
            mean = y.mean(axis=(0, 2, 3), keepdims=True)
            var = ((y - mean) ** 2).mean(axis=(0, 2, 3), keepdims=True)
            y = (y - mean) / jnp.sqrt(var + _BN_EPS) * g[None, :, None, None] \
                + be[None, :, None, None]
            y = jnp.maximum(y, 0.0)
        h = y
    return h.reshape(B, 1, 1, cfg['n_step_per_bar'], cfg['n_pitches'])


# ---------------------------------------------------------------------------
if __name__ == "__main__":
    cfg = make_config()                     # z_dim=8 -> input dim 32; output (B,1,1,16,84)
    key = jax.random.PRNGKey(0)
    key, kx, kp = jax.random.split(key, 3)

    # B=64: fills 64 MXU rows for the Linear/conv0-2 matmuls and gives a 1024-row slab
    # after the layout switch (review: the demo's B=8 used only 3-6% of MXU rows).
    B = 64
    x = jax.random.normal(kx, (B, 4 * cfg['z_dim']), jnp.float32)
    params = init_params(kp, cfg)
    kin, cost = prepare_kernel_inputs(params, cfg, B)   # weight re-packing hoisted off hot path

    fwd = jax.jit(functools.partial(bar_generator_pallas, cfg=cfg, cost=cost))
    out = jax.block_until_ready(fwd(x, kin))

    ref = reference_forward(x, params, cfg)

    assert out.shape == (B, 1, 1, cfg['n_step_per_bar'], cfg['n_pitches']), out.shape
    assert bool(jnp.all(jnp.isfinite(out)))
    max_err = float(jnp.max(jnp.abs(out - ref)))
    assert jnp.allclose(out, ref, rtol=1e-3, atol=1e-3), f"mismatch: max abs err {max_err}"

    print("KERNEL_OK")
</pallas_src>

<mosaic_0001>
module attributes {stable_mosaic.version = 11 : i64} {
  func.func @_bar_gen_kernel(%arg0: i32, %arg1: memref<64x32xf32, #tpu.memory_space<vmem>>, %arg2: memref<32x64xf32, #tpu.memory_space<vmem>>, %arg3: memref<64x64xf32, #tpu.memory_space<vmem>>, %arg4: memref<64x64xf32, #tpu.memory_space<vmem>>, %arg5: memref<1x64xf32, #tpu.memory_space<vmem>>, %arg6: memref<1x64xf32, #tpu.memory_space<vmem>>, %arg7: memref<64x128xf32, #tpu.memory_space<vmem>>, %arg8: memref<128x32xf32, #tpu.memory_space<vmem>>, %arg9: memref<32x128xf32, #tpu.memory_space<vmem>>, %arg10: memref<1x32xf32, #tpu.memory_space<vmem>>, %arg11: memref<1x32xf32, #tpu.memory_space<vmem>>, %arg12: memref<128x128xf32, #tpu.memory_space<vmem>>, %arg13: memref<128x16xf32, #tpu.memory_space<vmem>>, %arg14: memref<16x128xf32, #tpu.memory_space<vmem>>, %arg15: memref<1x16xf32, #tpu.memory_space<vmem>>, %arg16: memref<1x16xf32, #tpu.memory_space<vmem>>, %arg17: memref<128x256xf32, #tpu.memory_space<vmem>>, %arg18: memref<256x16xf32, #tpu.memory_space<vmem>>, %arg19: memref<16x256xf32, #tpu.memory_space<vmem>>, %arg20: memref<1x16xf32, #tpu.memory_space<vmem>>, %arg21: memref<1x16xf32, #tpu.memory_space<vmem>>, %arg22: memref<256x2048xf32, #tpu.memory_space<vmem>>, %arg23: memref<128x16xf32, #tpu.memory_space<vmem>>, %arg24: memref<16x128xf32, #tpu.memory_space<vmem>>, %arg25: memref<1x16xf32, #tpu.memory_space<vmem>>, %arg26: memref<1x16xf32, #tpu.memory_space<vmem>>, %arg27: memref<128x128xf32, #tpu.memory_space<vmem>>, %arg28: memref<1x128xf32, #tpu.memory_space<vmem>>, %arg29: memref<1024x128xf32, #tpu.memory_space<vmem>>, %arg30: memref<1024x128xf32, #tpu.memory_space<vmem>>) attributes {dimension_semantics = [#tpu.dimension_semantics<arbitrary>], iteration_bounds = array<i64: 1>, scalar_prefetch = 0 : i64, scratch_operands = 1 : i64, tpu.core_type = #tpu.core_type<tc>, window_params = [{pipeline_mode = #tpu.pipeline_mode<synchronous>, transform_indices = @transform_0, window_bounds = array<i64: 64, 32>}, {pipeline_mode = #tpu.pipeline_mode<synchronous>, transform_indices = @transform_1, window_bounds = array<i64: 32, 64>}, {pipeline_mode = #tpu.pipeline_mode<synchronous>, transform_indices = @transform_2, window_bounds = array<i64: 64, 64>}, {pipeline_mode = #tpu.pipeline_mode<synchronous>, transform_indices = @transform_3, window_bounds = array<i64: 64, 64>}, {pipeline_mode = #tpu.pipeline_mode<synchronous>, transform_indices = @transform_4, window_bounds = array<i64: 1, 64>}, {pipeline_mode = #tpu.pipeline_mode<synchronous>, transform_indices = @transform_5, window_bounds = array<i64: 1, 64>}, {pipeline_mode = #tpu.pipeline_mode<synchronous>, transform_indices = @transform_6, window_bounds = array<i64: 64, 128>}, {pipeline_mode = #tpu.pipeline_mode<synchronous>, transform_indices = @transform_7, window_bounds = array<i64: 128, 32>}, {pipeline_mode = #tpu.pipeline_mode<synchronous>, transform_indices = @transform_8, window_bounds = array<i64: 32, 128>}, {pipeline_mode = #tpu.pipeline_mode<synchronous>, transform_indices = @transform_9, window_bounds = array<i64: 1, 32>}, {pipeline_mode = #tpu.pipeline_mode<synchronous>, transform_indices = @transform_10, window_bounds = array<i64: 1, 32>}, {pipeline_mode = #tpu.pipeline_mode<synchronous>, transform_indices = @transform_11, window_bounds = array<i64: 128, 128>}, {pipeline_mode = #tpu.pipeline_mode<synchronous>, transform_indices = @transform_12, window_bounds = array<i64: 128, 16>}, {pipeline_mode = #tpu.pipeline_mode<synchronous>, transform_indices = @transform_13, window_bounds = array<i64: 16, 128>}, {pipeline_mode = #tpu.pipeline_mode<synchronous>, transform_indices = @transform_14, window_bounds = array<i64: 1, 16>}, {pipeline_mode = #tpu.pipeline_mode<synchronous>, transform_indices = @transform_15, window_bounds = array<i64: 1, 16>}, {pipeline_mode = #tpu.pipeline_mode<synchronous>, transform_indices = @transform_16, window_bounds = array<i64: 128, 256>}, {pipeline_mode = #tpu.pipeline_mode<synchronous>, transform_indices = @transform_17, window_bounds = array<i64: 256, 16>}, {pipeline_mode = #tpu.pipeline_mode<synchronous>, transform_indices = @transform_18, window_bounds = array<i64: 16, 256>}, {pipeline_mode = #tpu.pipeline_mode<synchronous>, transform_indices = @transform_19, window_bounds = array<i64: 1, 16>}, {pipeline_mode = #tpu.pipeline_mode<synchronous>, transform_indices = @transform_20, window_bounds = array<i64: 1, 16>}, {pipeline_mode = #tpu.pipeline_mode<synchronous>, transform_indices = @transform_21, window_bounds = array<i64: 256, 2048>}, {pipeline_mode = #tpu.pipeline_mode<synchronous>, transform_indices = @transform_22, window_bounds = array<i64: 128, 16>}, {pipeline_mode = #tpu.pipeline_mode<synchronous>, transform_indices = @transform_23, window_bounds = array<i64: 16, 128>}, {pipeline_mode = #tpu.pipeline_mode<synchronous>, transform_indices = @transform_24, window_bounds = array<i64: 1, 16>}, {pipeline_mode = #tpu.pipeline_mode<synchronous>, transform_indices = @transform_25, window_bounds = array<i64: 1, 16>}, {pipeline_mode = #tpu.pipeline_mode<synchronous>, transform_indices = @transform_26, window_bounds = array<i64: 128, 128>}, {pipeline_mode = #tpu.pipeline_mode<synchronous>, transform_indices = @transform_27, window_bounds = array<i64: 1, 128>}, {pipeline_mode = #tpu.pipeline_mode<synchronous>, transform_indices = @transform_28, window_bounds = array<i64: 1024, 128>}]} {
    %c0 = arith.constant 0 : index
    %c0_0 = arith.constant 0 : index
    %0 = vector.load %arg1[%c0, %c0_0] : memref<64x32xf32, #tpu.memory_space<vmem>>, vector<64x32xf32>
    %c0_1 = arith.constant 0 : index
    %c0_2 = arith.constant 0 : index
    %1 = vector.load %arg2[%c0_1, %c0_2] : memref<32x64xf32, #tpu.memory_space<vmem>>, vector<32x64xf32>
    %cst = arith.constant dense<0.000000e+00> : vector<64x64xf32>
    %2 = tpu.matmul %0, %1, %cst {dimension_numbers = #tpu.dot_dimension_numbers<[1], [0], [0], [1], [0, 0, 1, 1], [], []>} : vector<64x32xf32>, vector<32x64xf32>, vector<64x64xf32> -> vector<64x64xf32>
    %cst_3 = arith.constant dense<0.000000e+00> : vector<64xf32>
    %3 = vector.multi_reduction <add>, %2, %cst_3 [0] : vector<64x64xf32> to vector<64xf32>
    %4 = vector.shape_cast %3 : vector<64xf32> to vector<1x64xf32>
    %5 = arith.mulf %2, %2 : vector<64x64xf32>
    %cst_4 = arith.constant dense<0.000000e+00> : vector<64xf32>
    %6 = vector.multi_reduction <add>, %5, %cst_4 [0] : vector<64x64xf32> to vector<64xf32>
    %7 = vector.shape_cast %6 : vector<64xf32> to vector<1x64xf32>
    %8 = tpu.concatenate %4, %7 in 0 : vector<1x64xf32>, vector<1x64xf32> -> vector<2x64xf32>
    %c0_5 = arith.constant 0 : index
    %c0_6 = arith.constant 0 : index
    %9 = vector.load %arg3[%c0_5, %c0_6] : memref<64x64xf32, #tpu.memory_space<vmem>>, vector<64x64xf32>
    %cst_7 = arith.constant dense<0.000000e+00> : vector<2x64xf32>
    %10 = tpu.matmul %8, %9, %cst_7 {dimension_numbers = #tpu.dot_dimension_numbers<[1], [0], [0], [1], [0, 0, 1, 1], [], []>} : vector<2x64xf32>, vector<64x64xf32>, vector<2x64xf32> -> vector<2x64xf32>
    %11 = vector.extract_strided_slice %10 {offsets = [0, 0], sizes = [1, 64], strides = [1, 1]} : vector<2x64xf32> to vector<1x64xf32>
    %12 = vector.extract_strided_slice %10 {offsets = [1, 0], sizes = [1, 64], strides = [1, 1]} : vector<2x64xf32> to vector<1x64xf32>
    %13 = arith.mulf %11, %11 : vector<1x64xf32>
    %14 = arith.subf %12, %13 : vector<1x64xf32>
    %cst_8 = arith.constant 0.000000e+00 : f32
    %15 = vector.broadcast %cst_8 : f32 to vector<1x64xf32>
    %16 = arith.maximumf %14, %15 : vector<1x64xf32>
    %c0_9 = arith.constant 0 : index
    %c0_10 = arith.constant 0 : index
    %17 = vector.load %arg5[%c0_9, %c0_10] : memref<1x64xf32, #tpu.memory_space<vmem>>, vector<1x64xf32>
    %cst_11 = arith.constant 9.99999974E-6 : f32
    %18 = vector.broadcast %cst_11 : f32 to vector<1x64xf32>
    %19 = arith.addf %16, %18 : vector<1x64xf32>
    %20 = math.rsqrt %19 : vector<1x64xf32>
    %21 = arith.mulf %17, %20 : vector<1x64xf32>
    %c0_12 = arith.constant 0 : index
    %c0_13 = arith.constant 0 : index
    %22 = vector.load %arg6[%c0_12, %c0_13] : memref<1x64xf32, #tpu.memory_space<vmem>>, vector<1x64xf32>
    %23 = arith.mulf %11, %21 : vector<1x64xf32>
    %24 = arith.subf %22, %23 : vector<1x64xf32>
    %25 = tpu.concatenate %21, %24 in 0 : vector<1x64xf32>, vector<1x64xf32> -> vector<2x64xf32>
    %c0_14 = arith.constant 0 : index
    %c0_15 = arith.constant 0 : index
    %26 = vector.load %arg4[%c0_14, %c0_15] : memref<64x64xf32, #tpu.memory_space<vmem>>, vector<64x64xf32>
    %cst_16 = arith.constant dense<0.000000e+00> : vector<2x64xf32>
    %27 = tpu.matmul %25, %26, %cst_16 {dimension_numbers = #tpu.dot_dimension_numbers<[1], [0], [0], [1], [0, 0, 1, 1], [], []>} : vector<2x64xf32>, vector<64x64xf32>, vector<2x64xf32> -> vector<2x64xf32>
    %28 = vector.extract_strided_slice %27 {offsets = [0, 0], sizes = [1, 64], strides = [1, 1]} : vector<2x64xf32> to vector<1x64xf32>
    %29 = vector.broadcast %28 : vector<1x64xf32> to vector<64x64xf32>
    %30 = arith.mulf %2, %29 : vector<64x64xf32>
    %31 = vector.extract_strided_slice %27 {offsets = [1, 0], sizes = [1, 64], strides = [1, 1]} : vector<2x64xf32> to vector<1x64xf32>
    %32 = vector.broadcast %31 : vector<1x64xf32> to vector<64x64xf32>
    %33 = arith.addf %30, %32 : vector<64x64xf32>
    %cst_17 = arith.constant 0.000000e+00 : f32
    %34 = vector.broadcast %cst_17 : f32 to vector<64x64xf32>
    %35 = arith.maximumf %33, %34 : vector<64x64xf32>
    %c0_18 = arith.constant 0 : index
    %c0_19 = arith.constant 0 : index
    %36 = vector.load %arg7[%c0_18, %c0_19] : memref<64x128xf32, #tpu.memory_space<vmem>>, vector<64x128xf32>
    %cst_20 = arith.constant dense<0.000000e+00> : vector<64x128xf32>
    %37 = tpu.matmul %35, %36, %cst_20 {dimension_numbers = #tpu.dot_dimension_numbers<[1], [0], [0], [1], [0, 0, 1, 1], [], []>} : vector<64x64xf32>, vector<64x128xf32>, vector<64x128xf32> -> vector<64x128xf32>
    %cst_21 = arith.constant dense<0.000000e+00> : vector<128xf32>
    %38 = vector.multi_reduction <add>, %37, %cst_21 [0] : vector<64x128xf32> to vector<128xf32>
    %39 = vector.shape_cast %38 : vector<128xf32> to vector<1x128xf32>
    %40 = arith.mulf %37, %37 : vector<64x128xf32>
    %cst_22 = arith.constant dense<0.000000e+00> : vector<128xf32>
    %41 = vector.multi_reduction <add>, %40, %cst_22 [0] : vector<64x128xf32> to vector<128xf32>
    %42 = vector.shape_cast %41 : vector<128xf32> to vector<1x128xf32>
    %43 = tpu.concatenate %39, %42 in 0 : vector<1x128xf32>, vector<1x128xf32> -> vector<2x128xf32>
    %c0_23 = arith.constant 0 : index
    %c0_24 = arith.constant 0 : index
    %44 = vector.load %arg8[%c0_23, %c0_24] : memref<128x32xf32, #tpu.memory_space<vmem>>, vector<128x32xf32>
    %cst_25 = arith.constant dense<0.000000e+00> : vector<2x32xf32>
    %45 = tpu.matmul %43, %44, %cst_25 {dimension_numbers = #tpu.dot_dimension_numbers<[1], [0], [0], [1], [0, 0, 1, 1], [], []>} : vector<2x128xf32>, vector<128x32xf32>, vector<2x32xf32> -> vector<2x32xf32>
    %46 = vector.extract_strided_slice %45 {offsets = [0, 0], sizes = [1, 32], strides = [1, 1]} : vector<2x32xf32> to vector<1x32xf32>
    %47 = vector.extract_strided_slice %45 {offsets = [1, 0], sizes = [1, 32], strides = [1, 1]} : vector<2x32xf32> to vector<1x32xf32>
    %48 = arith.mulf %46, %46 : vector<1x32xf32>
    %49 = arith.subf %47, %48 : vector<1x32xf32>
    %cst_26 = arith.constant 0.000000e+00 : f32
    %50 = vector.broadcast %cst_26 : f32 to vector<1x32xf32>
    %51 = arith.maximumf %49, %50 : vector<1x32xf32>
    %c0_27 = arith.constant 0 : index
    %c0_28 = arith.constant 0 : index
    %52 = vector.load %arg10[%c0_27, %c0_28] : memref<1x32xf32, #tpu.memory_space<vmem>>, vector<1x32xf32>
    %cst_29 = arith.constant 9.99999974E-6 : f32
    %53 = vector.broadcast %cst_29 : f32 to vector<1x32xf32>
    %54 = arith.addf %51, %53 : vector<1x32xf32>
    %55 = math.rsqrt %54 : vector<1x32xf32>
    %56 = arith.mulf %52, %55 : vector<1x32xf32>
    %c0_30 = arith.constant 0 : index
    %c0_31 = arith.constant 0 : index
    %57 = vector.load %arg11[%c0_30, %c0_31] : memref<1x32xf32, #tpu.memory_space<vmem>>, vector<1x32xf32>
    %58 = arith.mulf %46, %56 : vector<1x32xf32>
    %59 = arith.subf %57, %58 : vector<1x32xf32>
    %60 = tpu.concatenate %56, %59 in 0 : vector<1x32xf32>, vector<1x32xf32> -> vector<2x32xf32>
    %c0_32 = arith.constant 0 : index
    %c0_33 = arith.constant 0 : index
    %61 = vector.load %arg9[%c0_32, %c0_33] : memref<32x128xf32, #tpu.memory_space<vmem>>, vector<32x128xf32>
    %cst_34 = arith.constant dense<0.000000e+00> : vector<2x128xf32>
    %62 = tpu.matmul %60, %61, %cst_34 {dimension_numbers = #tpu.dot_dimension_numbers<[1], [0], [0], [1], [0, 0, 1, 1], [], []>} : vector<2x32xf32>, vector<32x128xf32>, vector<2x128xf32> -> vector<2x128xf32>
    %63 = vector.extract_strided_slice %62 {offsets = [0, 0], sizes = [1, 128], strides = [1, 1]} : vector<2x128xf32> to vector<1x128xf32>
    %64 = vector.broadcast %63 : vector<1x128xf32> to vector<64x128xf32>
    %65 = arith.mulf %37, %64 : vector<64x128xf32>
    %66 = vector.extract_strided_slice %62 {offsets = [1, 0], sizes = [1, 128], strides = [1, 1]} : vector<2x128xf32> to vector<1x128xf32>
    %67 = vector.broadcast %66 : vector<1x128xf32> to vector<64x128xf32>
    %68 = arith.addf %65, %67 : vector<64x128xf32>
    %cst_35 = arith.constant 0.000000e+00 : f32
    %69 = vector.broadcast %cst_35 : f32 to vector<64x128xf32>
    %70 = arith.maximumf %68, %69 : vector<64x128xf32>
    %c0_36 = arith.constant 0 : index
    %c0_37 = arith.constant 0 : index
    %71 = vector.load %arg12[%c0_36, %c0_37] : memref<128x128xf32, #tpu.memory_space<vmem>>, vector<128x128xf32>
    %cst_38 = arith.constant dense<0.000000e+00> : vector<64x128xf32>
    %72 = tpu.matmul %70, %71, %cst_38 {dimension_numbers = #tpu.dot_dimension_numbers<[1], [0], [0], [1], [0, 0, 1, 1], [], []>} : vector<64x128xf32>, vector<128x128xf32>, vector<64x128xf32> -> vector<64x128xf32>
    %cst_39 = arith.constant dense<0.000000e+00> : vector<128xf32>
    %73 = vector.multi_reduction <add>, %72, %cst_39 [0] : vector<64x128xf32> to vector<128xf32>
    %74 = vector.shape_cast %73 : vector<128xf32> to vector<1x128xf32>
    %75 = arith.mulf %72, %72 : vector<64x128xf32>
    %cst_40 = arith.constant dense<0.000000e+00> : vector<128xf32>
    %76 = vector.multi_reduction <add>, %75, %cst_40 [0] : vector<64x128xf32> to vector<128xf32>
    %77 = vector.shape_cast %76 : vector<128xf32> to vector<1x128xf32>
    %78 = tpu.concatenate %74, %77 in 0 : vector<1x128xf32>, vector<1x128xf32> -> vector<2x128xf32>
    %c0_41 = arith.constant 0 : index
    %c0_42 = arith.constant 0 : index
    %79 = vector.load %arg13[%c0_41, %c0_42] : memref<128x16xf32, #tpu.memory_space<vmem>>, vector<128x16xf32>
    %cst_43 = arith.constant dense<0.000000e+00> : vector<2x16xf32>
    %80 = tpu.matmul %78, %79, %cst_43 {dimension_numbers = #tpu.dot_dimension_numbers<[1], [0], [0], [1], [0, 0, 1, 1], [], []>} : vector<2x128xf32>, vector<128x16xf32>, vector<2x16xf32> -> vector<2x16xf32>
    %81 = vector.extract_strided_slice %80 {offsets = [0, 0], sizes = [1, 16], strides = [1, 1]} : vector<2x16xf32> to vector<1x16xf32>
    %82 = vector.extract_strided_slice %80 {offsets = [1, 0], sizes = [1, 16], strides = [1, 1]} : vector<2x16xf32> to vector<1x16xf32>
    %83 = arith.mulf %81, %81 : vector<1x16xf32>
    %84 = arith.subf %82, %83 : vector<1x16xf32>
    %cst_44 = arith.constant 0.000000e+00 : f32
    %85 = vector.broadcast %cst_44 : f32 to vector<1x16xf32>
    %86 = arith.maximumf %84, %85 : vector<1x16xf32>
    %c0_45 = arith.constant 0 : index
    %c0_46 = arith.constant 0 : index
    %87 = vector.load %arg15[%c0_45, %c0_46] : memref<1x16xf32, #tpu.memory_space<vmem>>, vector<1x16xf32>
    %cst_47 = arith.constant 9.99999974E-6 : f32
    %88 = vector.broadcast %cst_47 : f32 to vector<1x16xf32>
    %89 = arith.addf %86, %88 : vector<1x16xf32>
    %90 = math.rsqrt %89 : vector<1x16xf32>
    %91 = arith.mulf %87, %90 : vector<1x16xf32>
    %c0_48 = arith.constant 0 : index
    %c0_49 = arith.constant 0 : index
    %92 = vector.load %arg16[%c0_48, %c0_49] : memref<1x16xf32, #tpu.memory_space<vmem>>, vector<1x16xf32>
    %93 = arith.mulf %81, %91 : vector<1x16xf32>
    %94 = arith.subf %92, %93 : vector<1x16xf32>
    %95 = tpu.concatenate %91, %94 in 0 : vector<1x16xf32>, vector<1x16xf32> -> vector<2x16xf32>
    %c0_50 = arith.constant 0 : index
    %c0_51 = arith.constant 0 : index
    %96 = vector.load %arg14[%c0_50, %c0_51] : memref<16x128xf32, #tpu.memory_space<vmem>>, vector<16x128xf32>
    %cst_52 = arith.constant dense<0.000000e+00> : vector<2x128xf32>
    %97 = tpu.matmul %95, %96, %cst_52 {dimension_numbers = #tpu.dot_dimension_numbers<[1], [0], [0], [1], [0, 0, 1, 1], [], []>} : vector<2x16xf32>, vector<16x128xf32>, vector<2x128xf32> -> vector<2x128xf32>
    %98 = vector.extract_strided_slice %97 {offsets = [0, 0], sizes = [1, 128], strides = [1, 1]} : vector<2x128xf32> to vector<1x128xf32>
    %99 = vector.broadcast %98 : vector<1x128xf32> to vector<64x128xf32>
    %100 = arith.mulf %72, %99 : vector<64x128xf32>
    %101 = vector.extract_strided_slice %97 {offsets = [1, 0], sizes = [1, 128], strides = [1, 1]} : vector<2x128xf32> to vector<1x128xf32>
    %102 = vector.broadcast %101 : vector<1x128xf32> to vector<64x128xf32>
    %103 = arith.addf %100, %102 : vector<64x128xf32>
    %cst_53 = arith.constant 0.000000e+00 : f32
    %104 = vector.broadcast %cst_53 : f32 to vector<64x128xf32>
    %105 = arith.maximumf %103, %104 : vector<64x128xf32>
    %c0_54 = arith.constant 0 : index
    %c0_55 = arith.constant 0 : index
    %106 = vector.load %arg17[%c0_54, %c0_55] : memref<128x256xf32, #tpu.memory_space<vmem>>, vector<128x256xf32>
    %cst_56 = arith.constant dense<0.000000e+00> : vector<64x256xf32>
    %107 = tpu.matmul %105, %106, %cst_56 {dimension_numbers = #tpu.dot_dimension_numbers<[1], [0], [0], [1], [0, 0, 1, 1], [], []>} : vector<64x128xf32>, vector<128x256xf32>, vector<64x256xf32> -> vector<64x256xf32>
    %cst_57 = arith.constant dense<0.000000e+00> : vector<256xf32>
    %108 = vector.multi_reduction <add>, %107, %cst_57 [0] : vector<64x256xf32> to vector<256xf32>
    %109 = vector.shape_cast %108 : vector<256xf32> to vector<1x256xf32>
    %110 = arith.mulf %107, %107 : vector<64x256xf32>
    %cst_58 = arith.constant dense<0.000000e+00> : vector<256xf32>
    %111 = vector.multi_reduction <add>, %110, %cst_58 [0] : vector<64x256xf32> to vector<256xf32>
    %112 = vector.shape_cast %111 : vector<256xf32> to vector<1x256xf32>
    %113 = tpu.concatenate %109, %112 in 0 : vector<1x256xf32>, vector<1x256xf32> -> vector<2x256xf32>
    %c0_59 = arith.constant 0 : index
    %c0_60 = arith.constant 0 : index
    %114 = vector.load %arg18[%c0_59, %c0_60] : memref<256x16xf32, #tpu.memory_space<vmem>>, vector<256x16xf32>
    %cst_61 = arith.constant dense<0.000000e+00> : vector<2x16xf32>
    %115 = tpu.matmul %113, %114, %cst_61 {dimension_numbers = #tpu.dot_dimension_numbers<[1], [0], [0], [1], [0, 0, 1, 1], [], []>} : vector<2x256xf32>, vector<256x16xf32>, vector<2x16xf32> -> vector<2x16xf32>
    %116 = vector.extract_strided_slice %115 {offsets = [0, 0], sizes = [1, 16], strides = [1, 1]} : vector<2x16xf32> to vector<1x16xf32>
    %117 = vector.extract_strided_slice %115 {offsets = [1, 0], sizes = [1, 16], strides = [1, 1]} : vector<2x16xf32> to vector<1x16xf32>
    %118 = arith.mulf %116, %116 : vector<1x16xf32>
    %119 = arith.subf %117, %118 : vector<1x16xf32>
    %cst_62 = arith.constant 0.000000e+00 : f32
    %120 = vector.broadcast %cst_62 : f32 to vector<1x16xf32>
    %121 = arith.maximumf %119, %120 : vector<1x16xf32>
    %c0_63 = arith.constant 0 : index
    %c0_64 = arith.constant 0 : index
    %122 = vector.load %arg20[%c0_63, %c0_64] : memref<1x16xf32, #tpu.memory_space<vmem>>, vector<1x16xf32>
    %cst_65 = arith.constant 9.99999974E-6 : f32
    %123 = vector.broadcast %cst_65 : f32 to vector<1x16xf32>
    %124 = arith.addf %121, %123 : vector<1x16xf32>
    %125 = math.rsqrt %124 : vector<1x16xf32>
    %126 = arith.mulf %122, %125 : vector<1x16xf32>
    %c0_66 = arith.constant 0 : index
    %c0_67 = arith.constant 0 : index
    %127 = vector.load %arg21[%c0_66, %c0_67] : memref<1x16xf32, #tpu.memory_space<vmem>>, vector<1x16xf32>
    %128 = arith.mulf %116, %126 : vector<1x16xf32>
    %129 = arith.subf %127, %128 : vector<1x16xf32>
    %130 = tpu.concatenate %126, %129 in 0 : vector<1x16xf32>, vector<1x16xf32> -> vector<2x16xf32>
    %c0_68 = arith.constant 0 : index
    %c0_69 = arith.constant 0 : index
    %131 = vector.load %arg19[%c0_68, %c0_69] : memref<16x256xf32, #tpu.memory_space<vmem>>, vector<16x256xf32>
    %cst_70 = arith.constant dense<0.000000e+00> : vector<2x256xf32>
    %132 = tpu.matmul %130, %131, %cst_70 {dimension_numbers = #tpu.dot_dimension_numbers<[1], [0], [0], [1], [0, 0, 1, 1], [], []>} : vector<2x16xf32>, vector<16x256xf32>, vector<2x256xf32> -> vector<2x256xf32>
    %133 = vector.extract_strided_slice %132 {offsets = [0, 0], sizes = [1, 256], strides = [1, 1]} : vector<2x256xf32> to vector<1x256xf32>
    %134 = vector.broadcast %133 : vector<1x256xf32> to vector<64x256xf32>
    %135 = arith.mulf %107, %134 : vector<64x256xf32>
    %136 = vector.extract_strided_slice %132 {offsets = [1, 0], sizes = [1, 256], strides = [1, 1]} : vector<2x256xf32> to vector<1x256xf32>
    %137 = vector.broadcast %136 : vector<1x256xf32> to vector<64x256xf32>
    %138 = arith.addf %135, %137 : vector<64x256xf32>
    %cst_71 = arith.constant 0.000000e+00 : f32
    %139 = vector.broadcast %cst_71 : f32 to vector<64x256xf32>
    %140 = arith.maximumf %138, %139 : vector<64x256xf32>
    %c0_72 = arith.constant 0 : index
    %c0_73 = arith.constant 0 : index
    %141 = vector.load %arg22[%c0_72, %c0_73] : memref<256x2048xf32, #tpu.memory_space<vmem>>, vector<256x2048xf32>
    %cst_74 = arith.constant dense<0.000000e+00> : vector<64x2048xf32>
    %142 = tpu.matmul %140, %141, %cst_74 {dimension_numbers = #tpu.dot_dimension_numbers<[1], [0], [0], [1], [0, 0, 1, 1], [], []>} : vector<64x256xf32>, vector<256x2048xf32>, vector<64x2048xf32> -> vector<64x2048xf32>
    %143 = vector.extract_strided_slice %142 {offsets = [0, 0], sizes = [64, 128], strides = [1, 1]} : vector<64x2048xf32> to vector<64x128xf32>
    %c0_75 = arith.constant 0 : index
    %c0_76 = arith.constant 0 : index
    %144 = vector.load %arg30[%c0_75, %c0_76] : memref<1024x128xf32, #tpu.memory_space<vmem>>, vector<64x128xf32>
    tpu.vector_store %arg30[%c0_75, %c0_76], %143 {strides = array<i32>} : memref<1024x128xf32, #tpu.memory_space<vmem>>, vector<64x128xf32>,
    %145 = vector.extract_strided_slice %142 {offsets = [0, 128], sizes = [64, 128], strides = [1, 1]} : vector<64x2048xf32> to vector<64x128xf32>
    %c64 = arith.constant 64 : index
    %c0_77 = arith.constant 0 : index
    %146 = vector.load %arg30[%c64, %c0_77] : memref<1024x128xf32, #tpu.memory_space<vmem>>, vector<64x128xf32>
    tpu.vector_store %arg30[%c64, %c0_77], %145 {strides = array<i32>} : memref<1024x128xf32, #tpu.memory_space<vmem>>, vector<64x128xf32>,
    %147 = vector.extract_strided_slice %142 {offsets = [0, 256], sizes = [64, 128], strides = [1, 1]} : vector<64x2048xf32> to vector<64x128xf32>
    %c128 = arith.constant 128 : index
    %c0_78 = arith.constant 0 : index
    %148 = vector.load %arg30[%c128, %c0_78] : memref<1024x128xf32, #tpu.memory_space<vmem>>, vector<64x128xf32>
    tpu.vector_store %arg30[%c128, %c0_78], %147 {strides = array<i32>} : memref<1024x128xf32, #tpu.memory_space<vmem>>, vector<64x128xf32>,
    %149 = vector.extract_strided_slice %142 {offsets = [0, 384], sizes = [64, 128], strides = [1, 1]} : vector<64x2048xf32> to vector<64x128xf32>
    %c192 = arith.constant 192 : index
    %c0_79 = arith.constant 0 : index
    %150 = vector.load %arg30[%c192, %c0_79] : memref<1024x128xf32, #tpu.memory_space<vmem>>, vector<64x128xf32>
    tpu.vector_store %arg30[%c192, %c0_79], %149 {strides = array<i32>} : memref<1024x128xf32, #tpu.memory_space<vmem>>, vector<64x128xf32>,
    %151 = vector.extract_strided_slice %142 {offsets = [0, 512], sizes = [64, 128], strides = [1, 1]} : vector<64x2048xf32> to vector<64x128xf32>
    %c256 = arith.constant 256 : index
    %c0_80 = arith.constant 0 : index
    %152 = vector.load %arg30[%c256, %c0_80] : memref<1024x128xf32, #tpu.memory_space<vmem>>, vector<64x128xf32>
    tpu.vector_store %arg30[%c256, %c0_80], %151 {strides = array<i32>} : memref<1024x128xf32, #tpu.memory_space<vmem>>, vector<64x128xf32>,
    %153 = vector.extract_strided_slice %142 {offsets = [0, 640], sizes = [64, 128], strides = [1, 1]} : vector<64x2048xf32> to vector<64x128xf32>
    %c320 = arith.constant 320 : index
    %c0_81 = arith.constant 0 : index
    %154 = vector.load %arg30[%c320, %c0_81] : memref<1024x128xf32, #tpu.memory_space<vmem>>, vector<64x128xf32>
    tpu.vector_store %arg30[%c320, %c0_81], %153 {strides = array<i32>} : memref<1024x128xf32, #tpu.memory_space<vmem>>, vector<64x128xf32>,
    %155 = vector.extract_strided_slice %142 {offsets = [0, 768], sizes = [64, 128], strides = [1, 1]} : vector<64x2048xf32> to vector<64x128xf32>
    %c384 = arith.constant 384 : index
    %c0_82 = arith.constant 0 : index
    %156 = vector.load %arg30[%c384, %c0_82] : memref<1024x128xf32, #tpu.memory_space<vmem>>, vector<64x128xf32>
    tpu.vector_store %arg30[%c384, %c0_82], %155 {strides = array<i32>} : memref<1024x128xf32, #tpu.memory_space<vmem>>, vector<64x128xf32>,
    %157 = vector.extract_strided_slice %142 {offsets = [0, 896], sizes = [64, 128], strides = [1, 1]} : vector<64x2048xf32> to vector<64x128xf32>
    %c448 = arith.constant 448 : index
    %c0_83 = arith.constant 0 : index
    %158 = vector.load %arg30[%c448, %c0_83] : memref<1024x128xf32, #tpu.memory_space<vmem>>, vector<64x128xf32>
    tpu.vector_store %arg30[%c448, %c0_83], %157 {strides = array<i32>} : memref<1024x128xf32, #tpu.memory_space<vmem>>, vector<64x128xf32>,
    %159 = vector.extract_strided_slice %142 {offsets = [0, 1024], sizes = [64, 128], strides = [1, 1]} : vector<64x2048xf32> to vector<64x128xf32>
    %c512 = arith.constant 512 : index
    %c0_84 = arith.constant 0 : index
    %160 = vector.load %arg30[%c512, %c0_84] : memref<1024x128xf32, #tpu.memory_space<vmem>>, vector<64x128xf32>
    tpu.vector_store %arg30[%c512, %c0_84], %159 {strides = array<i32>} : memref<1024x128xf32, #tpu.memory_space<vmem>>, vector<64x128xf32>,
    %161 = vector.extract_strided_slice %142 {offsets = [0, 1152], sizes = [64, 128], strides = [1, 1]} : vector<64x2048xf32> to vector<64x128xf32>
    %c576 = arith.constant 576 : index
    %c0_85 = arith.constant 0 : index
    %162 = vector.load %arg30[%c576, %c0_85] : memref<1024x128xf32, #tpu.memory_space<vmem>>, vector<64x128xf32>
    tpu.vector_store %arg30[%c576, %c0_85], %161 {strides = array<i32>} : memref<1024x128xf32, #tpu.memory_space<vmem>>, vector<64x128xf32>,
    %163 = vector.extract_strided_slice %142 {offsets = [0, 1280], sizes = [64, 128], strides = [1, 1]} : vector<64x2048xf32> to vector<64x128xf32>
    %c640 = arith.constant 640 : index
    %c0_86 = arith.constant 0 : index
    %164 = vector.load %arg30[%c640, %c0_86] : memref<1024x128xf32, #tpu.memory_space<vmem>>, vector<64x128xf32>
    tpu.vector_store %arg30[%c640, %c0_86], %163 {strides = array<i32>} : memref<1024x128xf32, #tpu.memory_space<vmem>>, vector<64x128xf32>,
    %165 = vector.extract_strided_slice %142 {offsets = [0, 1408], sizes = [64, 128], strides = [1, 1]} : vector<64x2048xf32> to vector<64x128xf32>
    %c704 = arith.constant 704 : index
    %c0_87 = arith.constant 0 : index
    %166 = vector.load %arg30[%c704, %c0_87] : memref<1024x128xf32, #tpu.memory_space<vmem>>, vector<64x128xf32>
    tpu.vector_store %arg30[%c704, %c0_87], %165 {strides = array<i32>} : memref<1024x128xf32, #tpu.memory_space<vmem>>, vector<64x128xf32>,
    %167 = vector.extract_strided_slice %142 {offsets = [0, 1536], sizes = [64, 128], strides = [1, 1]} : vector<64x2048xf32> to vector<64x128xf32>
    %c768 = arith.constant 768 : index
    %c0_88 = arith.constant 0 : index
    %168 = vector.load %arg30[%c768, %c0_88] : memref<1024x128xf32, #tpu.memory_space<vmem>>, vector<64x128xf32>
    tpu.vector_store %arg30[%c768, %c0_88], %167 {strides = array<i32>} : memref<1024x128xf32, #tpu.memory_space<vmem>>, vector<64x128xf32>,
    %169 = vector.extract_strided_slice %142 {offsets = [0, 1664], sizes = [64, 128], strides = [1, 1]} : vector<64x2048xf32> to vector<64x128xf32>
    %c832 = arith.constant 832 : index
    %c0_89 = arith.constant 0 : index
    %170 = vector.load %arg30[%c832, %c0_89] : memref<1024x128xf32, #tpu.memory_space<vmem>>, vector<64x128xf32>
    tpu.vector_store %arg30[%c832, %c0_89], %169 {strides = array<i32>} : memref<1024x128xf32, #tpu.memory_space<vmem>>, vector<64x128xf32>,
    %171 = vector.extract_strided_slice %142 {offsets = [0, 1792], sizes = [64, 128], strides = [1, 1]} : vector<64x2048xf32> to vector<64x128xf32>
    %c896 = arith.constant 896 : index
    %c0_90 = arith.constant 0 : index
    %172 = vector.load %arg30[%c896, %c0_90] : memref<1024x128xf32, #tpu.memory_space<vmem>>, vector<64x128xf32>
    tpu.vector_store %arg30[%c896, %c0_90], %171 {strides = array<i32>} : memref<1024x128xf32, #tpu.memory_space<vmem>>, vector<64x128xf32>,
    %173 = vector.extract_strided_slice %142 {offsets = [0, 1920], sizes = [64, 128], strides = [1, 1]} : vector<64x2048xf32> to vector<64x128xf32>
    %c960 = arith.constant 960 : index
    %c0_91 = arith.constant 0 : index
    %174 = vector.load %arg30[%c960, %c0_91] : memref<1024x128xf32, #tpu.memory_space<vmem>>, vector<64x128xf32>
    tpu.vector_store %arg30[%c960, %c0_91], %173 {strides = array<i32>} : memref<1024x128xf32, #tpu.memory_space<vmem>>, vector<64x128xf32>,
    %c0_92 = arith.constant 0 : index
    %c0_93 = arith.constant 0 : index
    %175 = vector.load %arg30[%c0_92, %c0_93] : memref<1024x128xf32, #tpu.memory_space<vmem>>, vector<1024x128xf32>
    %cst_94 = arith.constant dense<0.000000e+00> : vector<128xf32>
    %176 = vector.multi_reduction <add>, %175, %cst_94 [0] : vector<1024x128xf32> to vector<128xf32>
    %177 = vector.shape_cast %176 : vector<128xf32> to vector<1x128xf32>
    %178 = arith.mulf %175, %175 : vector<1024x128xf32>
    %cst_95 = arith.constant dense<0.000000e+00> : vector<128xf32>
    %179 = vector.multi_reduction <add>, %178, %cst_95 [0] : vector<1024x128xf32> to vector<128xf32>
    %180 = vector.shape_cast %179 : vector<128xf32> to vector<1x128xf32>
    %181 = tpu.concatenate %177, %180 in 0 : vector<1x128xf32>, vector<1x128xf32> -> vector<2x128xf32>
    %c0_96 = arith.constant 0 : index
    %c0_97 = arith.constant 0 : index
    %182 = vector.load %arg23[%c0_96, %c0_97] : memref<128x16xf32, #tpu.memory_space<vmem>>, vector<128x16xf32>
    %cst_98 = arith.constant dense<0.000000e+00> : vector<2x16xf32>
    %183 = tpu.matmul %181, %182, %cst_98 {dimension_numbers = #tpu.dot_dimension_numbers<[1], [0], [0], [1], [0, 0, 1, 1], [], []>} : vector<2x128xf32>, vector<128x16xf32>, vector<2x16xf32> -> vector<2x16xf32>
    %184 = vector.extract_strided_slice %183 {offsets = [0, 0], sizes = [1, 16], strides = [1, 1]} : vector<2x16xf32> to vector<1x16xf32>
    %185 = vector.extract_strided_slice %183 {offsets = [1, 0], sizes = [1, 16], strides = [1, 1]} : vector<2x16xf32> to vector<1x16xf32>
    %186 = arith.mulf %184, %184 : vector<1x16xf32>
    %187 = arith.subf %185, %186 : vector<1x16xf32>
    %cst_99 = arith.constant 0.000000e+00 : f32
    %188 = vector.broadcast %cst_99 : f32 to vector<1x16xf32>
    %189 = arith.maximumf %187, %188 : vector<1x16xf32>
    %c0_100 = arith.constant 0 : index
    %c0_101 = arith.constant 0 : index
    %190 = vector.load %arg25[%c0_100, %c0_101] : memref<1x16xf32, #tpu.memory_space<vmem>>, vector<1x16xf32>
    %cst_102 = arith.constant 9.99999974E-6 : f32
    %191 = vector.broadcast %cst_102 : f32 to vector<1x16xf32>
    %192 = arith.addf %189, %191 : vector<1x16xf32>
    %193 = math.rsqrt %192 : vector<1x16xf32>
    %194 = arith.mulf %190, %193 : vector<1x16xf32>
    %c0_103 = arith.constant 0 : index
    %c0_104 = arith.constant 0 : index
    %195 = vector.load %arg26[%c0_103, %c0_104] : memref<1x16xf32, #tpu.memory_space<vmem>>, vector<1x16xf32>
    %196 = arith.mulf %184, %194 : vector<1x16xf32>
    %197 = arith.subf %195, %196 : vector<1x16xf32>
    %198 = tpu.concatenate %194, %197 in 0 : vector<1x16xf32>, vector<1x16xf32> -> vector<2x16xf32>
    %c0_105 = arith.constant 0 : index
    %c0_106 = arith.constant 0 : index
    %199 = vector.load %arg24[%c0_105, %c0_106] : memref<16x128xf32, #tpu.memory_space<vmem>>, vector<16x128xf32>
    %cst_107 = arith.constant dense<0.000000e+00> : vector<2x128xf32>
    %200 = tpu.matmul %198, %199, %cst_107 {dimension_numbers = #tpu.dot_dimension_numbers<[1], [0], [0], [1], [0, 0, 1, 1], [], []>} : vector<2x16xf32>, vector<16x128xf32>, vector<2x128xf32> -> vector<2x128xf32>
    %201 = vector.extract_strided_slice %200 {offsets = [0, 0], sizes = [1, 128], strides = [1, 1]} : vector<2x128xf32> to vector<1x128xf32>
    %202 = vector.broadcast %201 : vector<1x128xf32> to vector<1024x128xf32>
    %203 = arith.mulf %175, %202 : vector<1024x128xf32>
    %204 = vector.extract_strided_slice %200 {offsets = [1, 0], sizes = [1, 128], strides = [1, 1]} : vector<2x128xf32> to vector<1x128xf32>
    %205 = vector.broadcast %204 : vector<1x128xf32> to vector<1024x128xf32>
    %206 = arith.addf %203, %205 : vector<1024x128xf32>
    %cst_108 = arith.constant 0.000000e+00 : f32
    %207 = vector.broadcast %cst_108 : f32 to vector<1024x128xf32>
    %208 = arith.maximumf %206, %207 : vector<1024x128xf32>
    %c0_109 = arith.constant 0 : index
    %c0_110 = arith.constant 0 : index
    %209 = vector.load %arg27[%c0_109, %c0_110] : memref<128x128xf32, #tpu.memory_space<vmem>>, vector<128x128xf32>
    %cst_111 = arith.constant dense<0.000000e+00> : vector<1024x128xf32>
    %210 = tpu.matmul %208, %209, %cst_111 {dimension_numbers = #tpu.dot_dimension_numbers<[1], [0], [0], [1], [0, 0, 1, 1], [], []>} : vector<1024x128xf32>, vector<128x128xf32>, vector<1024x128xf32> -> vector<1024x128xf32>
    %c0_112 = arith.constant 0 : index
    %c0_113 = arith.constant 0 : index
    %211 = vector.load %arg28[%c0_112, %c0_113] : memref<1x128xf32, #tpu.memory_space<vmem>>, vector<1x128xf32>
    %212 = vector.broadcast %211 : vector<1x128xf32> to vector<1024x128xf32>
    %213 = arith.addf %210, %212 : vector<1024x128xf32>
    %c0_114 = arith.constant 0 : index
    %c0_115 = arith.constant 0 : index
    %214 = vector.load %arg29[%c0_114, %c0_115] : memref<1024x128xf32, #tpu.memory_space<vmem>>, vector<1024x128xf32>
    tpu.vector_store %arg29[%c0_114, %c0_115], %213 {strides = array<i32>} : memref<1024x128xf32, #tpu.memory_space<vmem>>, vector<1024x128xf32>,
    return
  }
  func.func @transform_0(%arg0: i32) -> (i32, i32) {
    %c0_i32 = arith.constant 0 : i32
    %c0_i32_0 = arith.constant 0 : i32
    %c0_i32_1 = arith.constant 0 : i32
    return %c0_i32, %c0_i32_0 : i32, i32
  }
  func.func @transform_1(%arg0: i32) -> (i32, i32) {
    %c0_i32 = arith.constant 0 : i32
    %c0_i32_0 = arith.constant 0 : i32
    %c0_i32_1 = arith.constant 0 : i32
    return %c0_i32, %c0_i32_0 : i32, i32
  }
  func.func @transform_2(%arg0: i32) -> (i32, i32) {
    %c0_i32 = arith.constant 0 : i32
    %c0_i32_0 = arith.constant 0 : i32
    %c0_i32_1 = arith.constant 0 : i32
    return %c0_i32, %c0_i32_0 : i32, i32
  }
  func.func @transform_3(%arg0: i32) -> (i32, i32) {
    %c0_i32 = arith.constant 0 : i32
    %c0_i32_0 = arith.constant 0 : i32
    %c0_i32_1 = arith.constant 0 : i32
    return %c0_i32, %c0_i32_0 : i32, i32
  }
  func.func @transform_4(%arg0: i32) -> (i32, i32) {
    %c0_i32 = arith.constant 0 : i32
    %c0_i32_0 = arith.constant 0 : i32
    %c0_i32_1 = arith.constant 0 : i32
    return %c0_i32, %c0_i32_0 : i32, i32
  }
  func.func @transform_5(%arg0: i32) -> (i32, i32) {
    %c0_i32 = arith.constant 0 : i32
    %c0_i32_0 = arith.constant 0 : i32
    %c0_i32_1 = arith.constant 0 : i32
    return %c0_i32, %c0_i32_0 : i32, i32
  }
  func.func @transform_6(%arg0: i32) -> (i32, i32) {
    %c0_i32 = arith.constant 0 : i32
    %c0_i32_0 = arith.constant 0 : i32
    %c0_i32_1 = arith.constant 0 : i32
    return %c0_i32, %c0_i32_0 : i32, i32
  }
  func.func @transform_7(%arg0: i32) -> (i32, i32) {
    %c0_i32 = arith.constant 0 : i32
    %c0_i32_0 = arith.constant 0 : i32
    %c0_i32_1 = arith.constant 0 : i32
    return %c0_i32, %c0_i32_0 : i32, i32
  }
  func.func @transform_8(%arg0: i32) -> (i32, i32) {
    %c0_i32 = arith.constant 0 : i32
    %c0_i32_0 = arith.constant 0 : i32
    %c0_i32_1 = arith.constant 0 : i32
    return %c0_i32, %c0_i32_0 : i32, i32
  }
  func.func @transform_9(%arg0: i32) -> (i32, i32) {
    %c0_i32 = arith.constant 0 : i32
    %c0_i32_0 = arith.constant 0 : i32
    %c0_i32_1 = arith.constant 0 : i32
    return %c0_i32, %c0_i32_0 : i32, i32
  }
  func.func @transform_10(%arg0: i32) -> (i32, i32) {
    %c0_i32 = arith.constant 0 : i32
    %c0_i32_0 = arith.constant 0 : i32
    %c0_i32_1 = arith.constant 0 : i32
    return %c0_i32, %c0_i32_0 : i32, i32
  }
  func.func @transform_11(%arg0: i32) -> (i32, i32) {
    %c0_i32 = arith.constant 0 : i32
    %c0_i32_0 = arith.constant 0 : i32
    %c0_i32_1 = arith.constant 0 : i32
    return %c0_i32, %c0_i32_0 : i32, i32
  }
  func.func @transform_12(%arg0: i32) -> (i32, i32) {
    %c0_i32 = arith.constant 0 : i32
    %c0_i32_0 = arith.constant 0 : i32
    %c0_i32_1 = arith.constant 0 : i32
    return %c0_i32, %c0_i32_0 : i32, i32
  }
  func.func @transform_13(%arg0: i32) -> (i32, i32) {
    %c0_i32 = arith.constant 0 : i32
    %c0_i32_0 = arith.constant 0 : i32
    %c0_i32_1 = arith.constant 0 : i32
    return %c0_i32, %c0_i32_0 : i32, i32
  }
  func.func @transform_14(%arg0: i32) -> (i32, i32) {
    %c0_i32 = arith.constant 0 : i32
    %c0_i32_0 = arith.constant 0 : i32
    %c0_i32_1 = arith.constant 0 : i32
    return %c0_i32, %c0_i32_0 : i32, i32
  }
  func.func @transform_15(%arg0: i32) -> (i32, i32) {
    %c0_i32 = arith.constant 0 : i32
    %c0_i32_0 = arith.constant 0 : i32
    %c0_i32_1 = arith.constant 0 : i32
    return %c0_i32, %c0_i32_0 : i32, i32
  }
  func.func @transform_16(%arg0: i32) -> (i32, i32) {
    %c0_i32 = arith.constant 0 : i32
    %c0_i32_0 = arith.constant 0 : i32
    %c0_i32_1 = arith.constant 0 : i32
    return %c0_i32, %c0_i32_0 : i32, i32
  }
  func.func @transform_17(%arg0: i32) -> (i32, i32) {
    %c0_i32 = arith.constant 0 : i32
    %c0_i32_0 = arith.constant 0 : i32
    %c0_i32_1 = arith.constant 0 : i32
    return %c0_i32, %c0_i32_0 : i32, i32
  }
  func.func @transform_18(%arg0: i32) -> (i32, i32) {
    %c0_i32 = arith.constant 0 : i32
    %c0_i32_0 = arith.constant 0 : i32
    %c0_i32_1 = arith.constant 0 : i32
    return %c0_i32, %c0_i32_0 : i32, i32
  }
  func.func @transform_19(%arg0: i32) -> (i32, i32) {
    %c0_i32 = arith.constant 0 : i32
    %c0_i32_0 = arith.constant 0 : i32
    %c0_i32_1 = arith.constant 0 : i32
    return %c0_i32, %c0_i32_0 : i32, i32
  }
  func.func @transform_20(%arg0: i32) -> (i32, i32) {
    %c0_i32 = arith.constant 0 : i32
    %c0_i32_0 = arith.constant 0 : i32
    %c0_i32_1 = arith.constant 0 : i32
    return %c0_i32, %c0_i32_0 : i32, i32
  }
  func.func @transform_21(%arg0: i32) -> (i32, i32) {
    %c0_i32 = arith.constant 0 : i32
    %c0_i32_0 = arith.constant 0 : i32
    %c0_i32_1 = arith.constant 0 : i32
    return %c0_i32, %c0_i32_0 : i32, i32
  }
  func.func @transform_22(%arg0: i32) -> (i32, i32) {
    %c0_i32 = arith.constant 0 : i32
    %c0_i32_0 = arith.constant 0 : i32
    %c0_i32_1 = arith.constant 0 : i32
    return %c0_i32, %c0_i32_0 : i32, i32
  }
  func.func @transform_23(%arg0: i32) -> (i32, i32) {
    %c0_i32 = arith.constant 0 : i32
    %c0_i32_0 = arith.constant 0 : i32
    %c0_i32_1 = arith.constant 0 : i32
    return %c0_i32, %c0_i32_0 : i32, i32
  }
  func.func @transform_24(%arg0: i32) -> (i32, i32) {
    %c0_i32 = arith.constant 0 : i32
    %c0_i32_0 = arith.constant 0 : i32
    %c0_i32_1 = arith.constant 0 : i32
    return %c0_i32, %c0_i32_0 : i32, i32
  }
  func.func @transform_25(%arg0: i32) -> (i32, i32) {
    %c0_i32 = arith.constant 0 : i32
    %c0_i32_0 = arith.constant 0 : i32
    %c0_i32_1 = arith.constant 0 : i32
    return %c0_i32, %c0_i32_0 : i32, i32
  }
  func.func @transform_26(%arg0: i32) -> (i32, i32) {
    %c0_i32 = arith.constant 0 : i32
    %c0_i32_0 = arith.constant 0 : i32
    %c0_i32_1 = arith.constant 0 : i32
    return %c0_i32, %c0_i32_0 : i32, i32
  }
  func.func @transform_27(%arg0: i32) -> (i32, i32) {
    %c0_i32 = arith.constant 0 : i32
    %c0_i32_0 = arith.constant 0 : i32
    %c0_i32_1 = arith.constant 0 : i32
    return %c0_i32, %c0_i32_0 : i32, i32
  }
  func.func @transform_28(%arg0: i32) -> (i32, i32) {
    %c0_i32 = arith.constant 0 : i32
    %c0_i32_0 = arith.constant 0 : i32
    %c0_i32_1 = arith.constant 0 : i32
    return %c0_i32, %c0_i32_0 : i32, i32
  }
}

</mosaic_0001>

<llo_original>
// kernel: bar_generator_pallas.1
$region0: #{bar_generator_pallas.1}
  #allocation0 [shape = 'u32[]', space=smem, size = 0x4, offset = 0x4, fixed_abs, tag = 'smem constant byte address 0x4 - core index']
  #allocation1 [shape = 'u32[144,128]{1,0:T(1,128)}', space=vmem, size = 0x12000, scoped, tag = 'internal scratch']
  #allocation2 [shape = 'f32[1024,128]{1,0:T(8,128)}', space=vmem, size = 0x80000, scoped, tag = 'scratch operand']
  %s0 = inlined_call_operand.vmem [shape: f32[64,32], index: 0, kind: input, shape index: {}]
  %s1 = inlined_call_operand.hbm [shape: f32[32,64], index: 1, kind: input, shape index: {}]
  %s2 = inlined_call_operand.hbm [shape: f32[64,64], index: 2, kind: input, shape index: {}]
  %s3 = inlined_call_operand.hbm [shape: f32[64,64], index: 3, kind: input, shape index: {}]
  %s4 = inlined_call_operand.hbm [shape: f32[1,64], index: 4, kind: input, shape index: {}]
  %s5 = inlined_call_operand.hbm [shape: f32[1,64], index: 5, kind: input, shape index: {}]
  %s6 = inlined_call_operand.hbm [shape: f32[64,128], index: 6, kind: input, shape index: {}]
  %s7 = inlined_call_operand.vmem [shape: f32[128,32], index: 7, kind: input, shape index: {}]
  %s8 = inlined_call_operand.hbm [shape: f32[32,128], index: 8, kind: input, shape index: {}]
  %s9 = inlined_call_operand.hbm [shape: f32[1,32], index: 9, kind: input, shape index: {}]
  %s10 = inlined_call_operand.hbm [shape: f32[1,32], index: 10, kind: input, shape index: {}]
  %s11 = inlined_call_operand.hbm [shape: f32[128,128], index: 11, kind: input, shape index: {}]
  %s12 = inlined_call_operand.vmem [shape: f32[128,16], index: 12, kind: input, shape index: {}]
  %s13 = inlined_call_operand.hbm [shape: f32[16,128], index: 13, kind: input, shape index: {}]
  %s14 = inlined_call_operand.hbm [shape: f32[1,16], index: 14, kind: input, shape index: {}]
  %s15 = inlined_call_operand.hbm [shape: f32[1,16], index: 15, kind: input, shape index: {}]
  %s16 = inlined_call_operand.hbm [shape: f32[128,256], index: 16, kind: input, shape index: {}]
  %s17 = inlined_call_operand.vmem [shape: f32[256,16], index: 17, kind: input, shape index: {}]
  %s18 = inlined_call_operand.hbm [shape: f32[16,256], index: 18, kind: input, shape index: {}]
  %s19 = inlined_call_operand.hbm [shape: f32[1,16], index: 19, kind: input, shape index: {}]
  %s20 = inlined_call_operand.hbm [shape: f32[1,16], index: 20, kind: input, shape index: {}]
  %s21 = inlined_call_operand.hbm [shape: f32[256,2048], index: 21, kind: input, shape index: {}]
  %s22 = inlined_call_operand.vmem [shape: f32[128,16], index: 22, kind: input, shape index: {}]
  %s23 = inlined_call_operand.hbm [shape: f32[16,128], index: 23, kind: input, shape index: {}]
  %s24 = inlined_call_operand.hbm [shape: f32[1,16], index: 24, kind: input, shape index: {}]
  %s25 = inlined_call_operand.hbm [shape: f32[1,16], index: 25, kind: input, shape index: {}]
  %s26 = inlined_call_operand.hbm [shape: f32[128,128], index: 26, kind: input, shape index: {}]
  %s27 = inlined_call_operand.hbm [shape: f32[1,128], index: 27, kind: input, shape index: {}]
  %s28 = inlined_call_operand.vmem [shape: f32[1024,128], index: 28, kind: output, shape index: {}]
  %s29 = sld [smem:[#allocation0]]
  $region214: #{bar_generator_pallas.1} parent=0
    _
  %s31 = ssub.s32 1, %s29
  %s32 = scalar_select 0, %s31, %s29
  $region1: #{bar_generator_pallas.1} parent=0
    #allocation3 [shape = 'u8[16384]{0}', space=vmem, size = 0x4000, scoped, tag = 'input window, operand 1, single buffered']
    #allocation4 [shape = 's32[1]{0}', space=sflag, size = 0x4, scoped, tag = 'scoped memory for bar_generator_pallas.1']
    #allocation5 [shape = 'u8[32768]{0}', space=vmem, size = 0x8000, scoped, tag = 'input window, operand 2, single buffered']
    #allocation6 [shape = 's32[1]{0}', space=sflag, size = 0x4, scoped, tag = 'scoped memory for bar_generator_pallas.1']
    #allocation7 [shape = 'u8[32768]{0}', space=vmem, size = 0x8000, scoped, tag = 'input window, operand 3, single buffered']
    #allocation8 [shape = 'u8[512]{0}', space=vmem, size = 0x400, scoped, tag = 'input window, operand 4, single buffered']
    #allocation9 [shape = 's32[1]{0}', space=sflag, size = 0x4, scoped, tag = 'scoped memory for bar_generator_pallas.1']
    #allocation10 [shape = 'u8[512]{0}', space=vmem, size = 0x400, scoped, tag = 'input window, operand 5, single buffered']
    #allocation11 [shape = 'u8[32768]{0}', space=vmem, size = 0x8000, scoped, tag = 'input window, operand 6, single buffered']
    #allocation12 [shape = 's32[1]{0}', space=sflag, size = 0x4, scoped, tag = 'scoped memory for bar_generator_pallas.1']
    #allocation13 [shape = 'u8[16384]{0}', space=vmem, size = 0x4000, scoped, tag = 'input window, operand 8, single buffered']
    #allocation14 [shape = 'u8[512]{0}', space=vmem, size = 0x400, scoped, tag = 'input window, operand 9, single buffered']
    #allocation15 [shape = 's32[1]{0}', space=sflag, size = 0x4, scoped, tag = 'scoped memory for bar_generator_pallas.1']
    #allocation16 [shape = 'u8[512]{0}', space=vmem, size = 0x400, scoped, tag = 'input window, operand 10, single buffered']
    #allocation17 [shape = 'u8[65536]{0}', space=vmem, size = 0x10000, scoped, tag = 'input window, operand 11, single buffered']
    #allocation18 [shape = 's32[1]{0}', space=sflag, size = 0x4, scoped, tag = 'scoped memory for bar_generator_pallas.1']
    #allocation19 [shape = 'u8[8192]{0}', space=vmem, size = 0x2000, scoped, tag = 'input window, operand 13, single buffered']
    #allocation20 [shape = 'u8[512]{0}', space=vmem, size = 0x400, scoped, tag = 'input window, operand 14, single buffered']
    #allocation21 [shape = 's32[1]{0}', space=sflag, size = 0x4, scoped, tag = 'scoped memory for bar_generator_pallas.1']
    #allocation22 [shape = 'u8[512]{0}', space=vmem, size = 0x400, scoped, tag = 'input window, operand 15, single buffered']
    #allocation23 [shape = 'u8[131072]{0}', space=vmem, size = 0x20000, scoped, tag = 'input window, operand 16, single buffered']
    #allocation24 [shape = 's32[1]{0}', space=sflag, size = 0x4, scoped, tag = 'scoped memory for bar_generator_pallas.1']
    #allocation25 [shape = 'u8[16384]{0}', space=vmem, size = 0x4000, scoped, tag = 'input window, operand 18, single buffered']
    #allocation26 [shape = 'u8[512]{0}', space=vmem, size = 0x400, scoped, tag = 'input window, operand 19, single buffered']
    #allocation27 [shape = 's32[1]{0}', space=sflag, size = 0x4, scoped, tag = 'scoped memory for bar_generator_pallas.1']
    #allocation28 [shape = 'u8[512]{0}', space=vmem, size = 0x400, scoped, tag = 'input window, operand 20, single buffered']
    #allocation29 [shape = 'u8[2097152]{0}', space=vmem, size = 0x200000, scoped, tag = 'input window, operand 21, single buffered']
    #allocation30 [shape = 's32[1]{0}', space=sflag, size = 0x4, scoped, tag = 'scoped memory for bar_generator_pallas.1']
    #allocation31 [shape = 'u8[8192]{0}', space=vmem, size = 0x2000, scoped, tag = 'input window, operand 23, single buffered']
    #allocation32 [shape = 'u8[512]{0}', space=vmem, size = 0x400, scoped, tag = 'input window, operand 24, single buffered']
    #allocation33 [shape = 's32[1]{0}', space=sflag, size = 0x4, scoped, tag = 'scoped memory for bar_generator_pallas.1']
    #allocation34 [shape = 'u8[512]{0}', space=vmem, size = 0x400, scoped, tag = 'input window, operand 25, single buffered']
    #allocation35 [shape = 'u8[65536]{0}', space=vmem, size = 0x10000, scoped, tag = 'input window, operand 26, single buffered']
    #allocation36 [shape = 's32[1]{0}', space=sflag, size = 0x4, scoped, tag = 'scoped memory for bar_generator_pallas.1']
    #allocation37 [shape = 'u8[512]{0}', space=vmem, size = 0x400, scoped, tag = 'input window, operand 27, single buffered']
    %33 = vsyncpa [#allocation4], 0
    %34 = vsyncpa [#allocation6], 0
    %35 = vsyncpa [#allocation9], 0
    %36 = vsyncpa [#allocation12], 0
    %37 = vsyncpa [#allocation15], 0
    %38 = vsyncpa [#allocation18], 0
    %39 = vsyncpa [#allocation21], 0
    %40 = vsyncpa [#allocation24], 0
    %41 = vsyncpa [#allocation27], 0
    %42 = vsyncpa [#allocation30], 0
    %43 = vsyncpa [#allocation33], 0
    %44 = vsyncpa [#allocation36], 0
    // Predicated region
    $region2: #{bar_generator_pallas.1} parent=1 // pred_check
      _
    $region3: #{bar_generator_pallas.1} parent=1 // pred_check_branch
      %46 = sbr.rel (0) target = $region5
    $region4: #{bar_generator_pallas.1} parent=1 // pred_region
      _
    $region5: #{bar_generator_pallas.1} parent=1 // pred_fallthru
      _
    // Predicated region
    $region6: #{bar_generator_pallas.1} parent=1 // pred_check
      _
    $region7: #{bar_generator_pallas.1} parent=1 // pred_check_branch
      %48 = sbr.rel (0) target = $region9
    $region8: #{bar_generator_pallas.1} parent=1 // pred_region
      %s50 = ssub.s32 512, 512
      %51 = vsyncadd [#allocation4], %s50
      %s52 = sshll.u32 [#allocation3], 4
      %s53 = int_to_ptr.vmem [resolvable:$true] %s52
      %58 = dma.hbm_to_vmem [thread:$0]  %s1, 512, %s53, [#allocation4], 128, 128, 8
    $region9: #{bar_generator_pallas.1} parent=1 // pred_fallthru
      _
    // Predicated region
    $region10: #{bar_generator_pallas.1} parent=1 // pred_check
      _
    $region11: #{bar_generator_pallas.1} parent=1 // pred_check_branch
      %60 = sbr.rel (0) target = $region13
    $region12: #{bar_generator_pallas.1} parent=1 // pred_region
      %s62 = ssub.s32 1024, 1024
      %63 = vsyncadd [#allocation6], %s62
      %s64 = sshll.u32 [#allocation5], 4
      %s65 = int_to_ptr.vmem [resolvable:$true] %s64
      %70 = dma.hbm_to_vmem [thread:$0]  %s2, 1024, %s65, [#allocation6], 128, 128, 8
    $region13: #{bar_generator_pallas.1} parent=1 // pred_fallthru
      _
    // Predicated region
    $region14: #{bar_generator_pallas.1} parent=1 // pred_check
      _
    $region15: #{bar_generator_pallas.1} parent=1 // pred_check_branch
      %72 = sbr.rel (0) target = $region17
    $region16: #{bar_generator_pallas.1} parent=1 // pred_region
      %s74 = ssub.s32 1024, 1024
      %75 = vsyncadd [#allocation6], %s74
      %s76 = sshll.u32 [#allocation7], 4
      %s77 = int_to_ptr.vmem [resolvable:$true] %s76
      %82 = dma.hbm_to_vmem [thread:$0]  %s3, 1024, %s77, [#allocation6], 128, 128, 8
    $region17: #{bar_generator_pallas.1} parent=1 // pred_fallthru
      _
    // Predicated region
    $region18: #{bar_generator_pallas.1} parent=1 // pred_check
      _
    $region19: #{bar_generator_pallas.1} parent=1 // pred_check_branch
      %84 = sbr.rel (0) target = $region21
    $region20: #{bar_generator_pallas.1} parent=1 // pred_region
      %s86 = ssub.s32 16, 16
      %87 = vsyncadd [#allocation9], %s86
      %s89 = sshll.u32 [#allocation8], 4
      %s90 = int_to_ptr.vmem [resolvable:$true] %s89
      %92 = dma.hbm_to_vmem [thread:$0]  %s4, 16, %s90, [#allocation9]
    $region21: #{bar_generator_pallas.1} parent=1 // pred_fallthru
      _
    // Predicated region
    $region22: #{bar_generator_pallas.1} parent=1 // pred_check
      _
    $region23: #{bar_generator_pallas.1} parent=1 // pred_check_branch
      %94 = sbr.rel (0) target = $region25
    $region24: #{bar_generator_pallas.1} parent=1 // pred_region
      %s96 = ssub.s32 16, 16
      %97 = vsyncadd [#allocation9], %s96
      %s99 = sshll.u32 [#allocation10], 4
      %s100 = int_to_ptr.vmem [resolvable:$true] %s99
      %102 = dma.hbm_to_vmem [thread:$0]  %s5, 16, %s100, [#allocation9]
    $region25: #{bar_generator_pallas.1} parent=1 // pred_fallthru
      _
    // Predicated region
    $region26: #{bar_generator_pallas.1} parent=1 // pred_check
      _
    $region27: #{bar_generator_pallas.1} parent=1 // pred_check_branch
      %104 = sbr.rel (0) target = $region29
    $region28: #{bar_generator_pallas.1} parent=1 // pred_region
      %s106 = ssub.s32 1024, 1024
      %107 = vsyncadd [#allocation12], %s106
      %s108 = sshll.u32 [#allocation11], 4
      %s109 = int_to_ptr.vmem [resolvable:$true] %s108
      %114 = dma.hbm_to_vmem [thread:$0]  %s6, 1024, %s109, [#allocation12], 128, 128, 8
    $region29: #{bar_generator_pallas.1} parent=1 // pred_fallthru
      _
    // Predicated region
    $region30: #{bar_generator_pallas.1} parent=1 // pred_check
      _
    $region31: #{bar_generator_pallas.1} parent=1 // pred_check_branch
      %116 = sbr.rel (0) target = $region33
    $region32: #{bar_generator_pallas.1} parent=1 // pred_region
      _
    $region33: #{bar_generator_pallas.1} parent=1 // pred_fallthru
      _
    // Predicated region
    $region34: #{bar_generator_pallas.1} parent=1 // pred_check
      _
    $region35: #{bar_generator_pallas.1} parent=1 // pred_check_branch
      %118 = sbr.rel (0) target = $region37
    $region36: #{bar_generator_pallas.1} parent=1 // pred_region
      %s120 = ssub.s32 512, 512
      %121 = vsyncadd [#allocation12], %s120
      %s122 = sshll.u32 [#allocation13], 4
      %s123 = int_to_ptr.vmem [resolvable:$true] %s122
      %128 = dma.hbm_to_vmem [thread:$0]  %s8, 512, %s123, [#allocation12], 128, 128, 8
    $region37: #{bar_generator_pallas.1} parent=1 // pred_fallthru
      _
    // Predicated region
    $region38: #{bar_generator_pallas.1} parent=1 // pred_check
      _
    $region39: #{bar_generator_pallas.1} parent=1 // pred_check_branch
      %130 = sbr.rel (0) target = $region41
    $region40: #{bar_generator_pallas.1} parent=1 // pred_region
      %s132 = ssub.s32 16, 16
      %133 = vsyncadd [#allocation15], %s132
      %s135 = sshll.u32 [#allocation14], 4
      %s136 = int_to_ptr.vmem [resolvable:$true] %s135
      %138 = dma.hbm_to_vmem [thread:$0]  %s9, 16, %s136, [#allocation15]
    $region41: #{bar_generator_pallas.1} parent=1 // pred_fallthru
      _
    // Predicated region
    $region42: #{bar_generator_pallas.1} parent=1 // pred_check
      _
    $region43: #{bar_generator_pallas.1} parent=1 // pred_check_branch
      %140 = sbr.rel (0) target = $region45
    $region44: #{bar_generator_pallas.1} parent=1 // pred_region
      %s142 = ssub.s32 16, 16
      %143 = vsyncadd [#allocation15], %s142
      %s145 = sshll.u32 [#allocation16], 4
      %s146 = int_to_ptr.vmem [resolvable:$true] %s145
      %148 = dma.hbm_to_vmem [thread:$0]  %s10, 16, %s146, [#allocation15]
    $region45: #{bar_generator_pallas.1} parent=1 // pred_fallthru
      _
    // Predicated region
    $region46: #{bar_generator_pallas.1} parent=1 // pred_check
      _
    $region47: #{bar_generator_pallas.1} parent=1 // pred_check_branch
      %150 = sbr.rel (0) target = $region49
    $region48: #{bar_generator_pallas.1} parent=1 // pred_region
      %s152 = ssub.s32 2048, 2048
      %153 = vsyncadd [#allocation18], %s152
      %s154 = sshll.u32 [#allocation17], 4
      %s155 = int_to_ptr.vmem [resolvable:$true] %s154
      %160 = dma.hbm_to_vmem [thread:$0]  %s11, 2048, %s155, [#allocation18], 128, 128, 8
    $region49: #{bar_generator_pallas.1} parent=1 // pred_fallthru
      _
    // Predicated region
    $region50: #{bar_generator_pallas.1} parent=1 // pred_check
      _
    $region51: #{bar_generator_pallas.1} parent=1 // pred_check_branch
      %162 = sbr.rel (0) target = $region53
    $region52: #{bar_generator_pallas.1} parent=1 // pred_region
      _
    $region53: #{bar_generator_pallas.1} parent=1 // pred_fallthru
      _
    // Predicated region
    $region54: #{bar_generator_pallas.1} parent=1 // pred_check
      _
    $region55: #{bar_generator_pallas.1} parent=1 // pred_check_branch
      %164 = sbr.rel (0) target = $region57
    $region56: #{bar_generator_pallas.1} parent=1 // pred_region
      %s166 = ssub.s32 256, 256
      %167 = vsyncadd [#allocation18], %s166
      %s168 = sshll.u32 [#allocation19], 4
      %s169 = int_to_ptr.vmem [resolvable:$true] %s168
      %174 = dma.hbm_to_vmem [thread:$0]  %s13, 256, %s169, [#allocation18], 128, 128, 8
    $region57: #{bar_generator_pallas.1} parent=1 // pred_fallthru
      _
    // Predicated region
    $region58: #{bar_generator_pallas.1} parent=1 // pred_check
      _
    $region59: #{bar_generator_pallas.1} parent=1 // pred_check_branch
      %176 = sbr.rel (0) target = $region61
    $region60: #{bar_generator_pallas.1} parent=1 // pred_region
      %s178 = ssub.s32 16, 16
      %179 = vsyncadd [#allocation21], %s178
      %s181 = sshll.u32 [#allocation20], 4
      %s182 = int_to_ptr.vmem [resolvable:$true] %s181
      %184 = dma.hbm_to_vmem [thread:$0]  %s14, 16, %s182, [#allocation21]
    $region61: #{bar_generator_pallas.1} parent=1 // pred_fallthru
      _
    // Predicated region
    $region62: #{bar_generator_pallas.1} parent=1 // pred_check
      _
    $region63: #{bar_generator_pallas.1} parent=1 // pred_check_branch
      %186 = sbr.rel (0) target = $region65
    $region64: #{bar_generator_pallas.1} parent=1 // pred_region
      %s188 = ssub.s32 16, 16
      %189 = vsyncadd [#allocation21], %s188
      %s191 = sshll.u32 [#allocation22], 4
      %s192 = int_to_ptr.vmem [resolvable:$true] %s191
      %194 = dma.hbm_to_vmem [thread:$0]  %s15, 16, %s192, [#allocation21]
    $region65: #{bar_generator_pallas.1} parent=1 // pred_fallthru
      _
    // Predicated region
    $region66: #{bar_generator_pallas.1} parent=1 // pred_check
      _
    $region67: #{bar_generator_pallas.1} parent=1 // pred_check_branch
      %196 = sbr.rel (0) target = $region69
    $region68: #{bar_generator_pallas.1} parent=1 // pred_region
      %s198 = ssub.s32 4096, 4096
      %199 = vsyncadd [#allocation24], %s198
      %s200 = sshll.u32 [#allocation23], 4
      %s201 = int_to_ptr.vmem [resolvable:$true] %s200
      %206 = dma.hbm_to_vmem [thread:$0]  %s16, 4096, %s201, [#allocation24], 256, 256, 16
    $region69: #{bar_generator_pallas.1} parent=1 // pred_fallthru
      _
    // Predicated region
    $region70: #{bar_generator_pallas.1} parent=1 // pred_check
      _
    $region71: #{bar_generator_pallas.1} parent=1 // pred_check_branch
      %208 = sbr.rel (0) target = $region73
    $region72: #{bar_generator_pallas.1} parent=1 // pred_region
      _
    $region73: #{bar_generator_pallas.1} parent=1 // pred_fallthru
      _
    // Predicated region
    $region74: #{bar_generator_pallas.1} parent=1 // pred_check
      _
    $region75: #{bar_generator_pallas.1} parent=1 // pred_check_branch
      %210 = sbr.rel (0) target = $region77
    $region76: #{bar_generator_pallas.1} parent=1 // pred_region
      %s212 = ssub.s32 512, 512
      %213 = vsyncadd [#allocation24], %s212
      %s214 = sshll.u32 [#allocation25], 4
      %s215 = int_to_ptr.vmem [resolvable:$true] %s214
      %220 = dma.hbm_to_vmem [thread:$0]  %s18, 512, %s215, [#allocation24], 256, 256, 16
    $region77: #{bar_generator_pallas.1} parent=1 // pred_fallthru
      _
    // Predicated region
    $region78: #{bar_generator_pallas.1} parent=1 // pred_check
      _
    $region79: #{bar_generator_pallas.1} parent=1 // pred_check_branch
      %222 = sbr.rel (0) target = $region81
    $region80: #{bar_generator_pallas.1} parent=1 // pred_region
      %s224 = ssub.s32 16, 16
      %225 = vsyncadd [#allocation27], %s224
      %s227 = sshll.u32 [#allocation26], 4
      %s228 = int_to_ptr.vmem [resolvable:$true] %s227
      %230 = dma.hbm_to_vmem [thread:$0]  %s19, 16, %s228, [#allocation27]
    $region81: #{bar_generator_pallas.1} parent=1 // pred_fallthru
      _
    // Predicated region
    $region82: #{bar_generator_pallas.1} parent=1 // pred_check
      _
    $region83: #{bar_generator_pallas.1} parent=1 // pred_check_branch
      %232 = sbr.rel (0) target = $region85
    $region84: #{bar_generator_pallas.1} parent=1 // pred_region
      %s234 = ssub.s32 16, 16
      %235 = vsyncadd [#allocation27], %s234
      %s237 = sshll.u32 [#allocation28], 4
      %s238 = int_to_ptr.vmem [resolvable:$true] %s237
      %240 = dma.hbm_to_vmem [thread:$0]  %s20, 16, %s238, [#allocation27]
    $region85: #{bar_generator_pallas.1} parent=1 // pred_fallthru
      _
    // Predicated region
    $region86: #{bar_generator_pallas.1} parent=1 // pred_check
      _
    $region87: #{bar_generator_pallas.1} parent=1 // pred_check_branch
      %242 = sbr.rel (0) target = $region89
    $region88: #{bar_generator_pallas.1} parent=1 // pred_region
      %s244 = ssub.s32 65536, 65536
      %245 = vsyncadd [#allocation30], %s244
      %s246 = sshll.u32 [#allocation29], 4
      %s247 = int_to_ptr.vmem [resolvable:$true] %s246
      %252 = dma.hbm_to_vmem [thread:$0]  %s21, 65536, %s247, [#allocation30], 2048, 2048, 128
    $region89: #{bar_generator_pallas.1} parent=1 // pred_fallthru
      _
    // Predicated region
    $region90: #{bar_generator_pallas.1} parent=1 // pred_check
      _
    $region91: #{bar_generator_pallas.1} parent=1 // pred_check_branch
      %254 = sbr.rel (0) target = $region93
    $region92: #{bar_generator_pallas.1} parent=1 // pred_region
      _
    $region93: #{bar_generator_pallas.1} parent=1 // pred_fallthru
      _
    // Predicated region
    $region94: #{bar_generator_pallas.1} parent=1 // pred_check
      _
    $region95: #{bar_generator_pallas.1} parent=1 // pred_check_branch
      %256 = sbr.rel (0) target = $region97
    $region96: #{bar_generator_pallas.1} parent=1 // pred_region
      %s258 = ssub.s32 256, 256
      %259 = vsyncadd [#allocation30], %s258
      %s260 = sshll.u32 [#allocation31], 4
      %s261 = int_to_ptr.vmem [resolvable:$true] %s260
      %266 = dma.hbm_to_vmem [thread:$0]  %s23, 256, %s261, [#allocation30], 128, 128, 8
    $region97: #{bar_generator_pallas.1} parent=1 // pred_fallthru
      _
    // Predicated region
    $region98: #{bar_generator_pallas.1} parent=1 // pred_check
      _
    $region99: #{bar_generator_pallas.1} parent=1 // pred_check_branch
      %268 = sbr.rel (0) target = $region101
    $region100: #{bar_generator_pallas.1} parent=1 // pred_region
      %s270 = ssub.s32 16, 16
      %271 = vsyncadd [#allocation33], %s270
      %s273 = sshll.u32 [#allocation32], 4
      %s274 = int_to_ptr.vmem [resolvable:$true] %s273
      %276 = dma.hbm_to_vmem [thread:$0]  %s24, 16, %s274, [#allocation33]
    $region101: #{bar_generator_pallas.1} parent=1 // pred_fallthru
      _
    // Predicated region
    $region102: #{bar_generator_pallas.1} parent=1 // pred_check
      _
    $region103: #{bar_generator_pallas.1} parent=1 // pred_check_branch
      %278 = sbr.rel (0) target = $region105
    $region104: #{bar_generator_pallas.1} parent=1 // pred_region
      %s280 = ssub.s32 16, 16
      %281 = vsyncadd [#allocation33], %s280
      %s283 = sshll.u32 [#allocation34], 4
      %s284 = int_to_ptr.vmem [resolvable:$true] %s283
      %286 = dma.hbm_to_vmem [thread:$0]  %s25, 16, %s284, [#allocation33]
    $region105: #{bar_generator_pallas.1} parent=1 // pred_fallthru
      _
    // Predicated region
    $region106: #{bar_generator_pallas.1} parent=1 // pred_check
      _
    $region107: #{bar_generator_pallas.1} parent=1 // pred_check_branch
      %288 = sbr.rel (0) target = $region109
    $region108: #{bar_generator_pallas.1} parent=1 // pred_region
      %s290 = ssub.s32 2048, 2048
      %291 = vsyncadd [#allocation36], %s290
      %s292 = sshll.u32 [#allocation35], 4
      %s293 = int_to_ptr.vmem [resolvable:$true] %s292
      %298 = dma.hbm_to_vmem [thread:$0]  %s26, 2048, %s293, [#allocation36], 128, 128, 8
    $region109: #{bar_generator_pallas.1} parent=1 // pred_fallthru
      _
    // Predicated region
    $region110: #{bar_generator_pallas.1} parent=1 // pred_check
      _
    $region111: #{bar_generator_pallas.1} parent=1 // pred_check_branch
      %300 = sbr.rel (0) target = $region113
    $region112: #{bar_generator_pallas.1} parent=1 // pred_region
      %s302 = ssub.s32 16, 16
      %303 = vsyncadd [#allocation36], %s302
      %s305 = sshll.u32 [#allocation37], 4
      %s306 = int_to_ptr.vmem [resolvable:$true] %s305
      %308 = dma.hbm_to_vmem [thread:$0]  %s27, 16, %s306, [#allocation36]
    $region113: #{bar_generator_pallas.1} parent=1 // pred_fallthru
      _
    // Predicated region
    $region114: #{bar_generator_pallas.1} parent=1 // pred_check
      _
    $region115: #{bar_generator_pallas.1} parent=1 // pred_check_branch
      %310 = sbr.rel (0) target = $region117
    $region116: #{bar_generator_pallas.1} parent=1 // pred_region
      %311 = dma.done [#allocation4], 512
    $region117: #{bar_generator_pallas.1} parent=1 // pred_fallthru
      _
    // Predicated region
    $region118: #{bar_generator_pallas.1} parent=1 // pred_check
      _
    $region119: #{bar_generator_pallas.1} parent=1 // pred_check_branch
      %313 = sbr.rel (0) target = $region121
    $region120: #{bar_generator_pallas.1} parent=1 // pred_region
      %314 = dma.done [#allocation6], 1024
    $region121: #{bar_generator_pallas.1} parent=1 // pred_fallthru
      _
    // Predicated region
    $region122: #{bar_generator_pallas.1} parent=1 // pred_check
      _
    $region123: #{bar_generator_pallas.1} parent=1 // pred_check_branch
      %316 = sbr.rel (0) target = $region125
    $region124: #{bar_generator_pallas.1} parent=1 // pred_region
      %317 = dma.done [#allocation6], 1024
    $region125: #{bar_generator_pallas.1} parent=1 // pred_fallthru
      _
    // Predicated region
    $region126: #{bar_generator_pallas.1} parent=1 // pred_check
      _
    $region127: #{bar_generator_pallas.1} parent=1 // pred_check_branch
      %319 = sbr.rel (0) target = $region129
    $region128: #{bar_generator_pallas.1} parent=1 // pred_region
      %320 = dma.done [#allocation9], 16
    $region129: #{bar_generator_pallas.1} parent=1 // pred_fallthru
      _
    // Predicated region
    $region130: #{bar_generator_pallas.1} parent=1 // pred_check
      _
    $region131: #{bar_generator_pallas.1} parent=1 // pred_check_branch
      %322 = sbr.rel (0) target = $region133
    $region132: #{bar_generator_pallas.1} parent=1 // pred_region
      %323 = dma.done [#allocation9], 16
    $region133: #{bar_generator_pallas.1} parent=1 // pred_fallthru
      _
    // Predicated region
    $region134: #{bar_generator_pallas.1} parent=1 // pred_check
      _
    $region135: #{bar_generator_pallas.1} parent=1 // pred_check_branch
      %325 = sbr.rel (0) target = $region137
    $region136: #{bar_generator_pallas.1} parent=1 // pred_region
      %326 = dma.done [#allocation12], 1024
    $region137: #{bar_generator_pallas.1} parent=1 // pred_fallthru
      _
    // Predicated region
    $region138: #{bar_generator_pallas.1} parent=1 // pred_check
      _
    $region139: #{bar_generator_pallas.1} parent=1 // pred_check_branch
      %328 = sbr.rel (0) target = $region141
    $region140: #{bar_generator_pallas.1} parent=1 // pred_region
      %329 = dma.done [#allocation12], 512
    $region141: #{bar_generator_pallas.1} parent=1 // pred_fallthru
      _
    // Predicated region
    $region142: #{bar_generator_pallas.1} parent=1 // pred_check
      _
    $region143: #{bar_generator_pallas.1} parent=1 // pred_check_branch
      %331 = sbr.rel (0) target = $region145
    $region144: #{bar_generator_pallas.1} parent=1 // pred_region
      %332 = dma.done [#allocation15], 16
    $region145: #{bar_generator_pallas.1} parent=1 // pred_fallthru
      _
    // Predicated region
    $region146: #{bar_generator_pallas.1} parent=1 // pred_check
      _
    $region147: #{bar_generator_pallas.1} parent=1 // pred_check_branch
      %334 = sbr.rel (0) target = $region149
    $region148: #{bar_generator_pallas.1} parent=1 // pred_region
      %335 = dma.done [#allocation15], 16
    $region149: #{bar_generator_pallas.1} parent=1 // pred_fallthru
      _
    // Predicated region
    $region150: #{bar_generator_pallas.1} parent=1 // pred_check
      _
    $region151: #{bar_generator_pallas.1} parent=1 // pred_check_branch
      %337 = sbr.rel (0) target = $region153
    $region152: #{bar_generator_pallas.1} parent=1 // pred_region
      %338 = dma.done [#allocation18], 2048
    $region153: #{bar_generator_pallas.1} parent=1 // pred_fallthru
      _
    // Predicated region
    $region154: #{bar_generator_pallas.1} parent=1 // pred_check
      _
    $region155: #{bar_generator_pallas.1} parent=1 // pred_check_branch
      %340 = sbr.rel (0) target = $region157
    $region156: #{bar_generator_pallas.1} parent=1 // pred_region
      %341 = dma.done [#allocation18], 256
    $region157: #{bar_generator_pallas.1} parent=1 // pred_fallthru
      _
    // Predicated region
    $region158: #{bar_generator_pallas.1} parent=1 // pred_check
      _
    $region159: #{bar_generator_pallas.1} parent=1 // pred_check_branch
      %343 = sbr.rel (0) target = $region161
    $region160: #{bar_generator_pallas.1} parent=1 // pred_region
      %344 = dma.done [#allocation21], 16
    $region161: #{bar_generator_pallas.1} parent=1 // pred_fallthru
      _
    // Predicated region
    $region162: #{bar_generator_pallas.1} parent=1 // pred_check
      _
    $region163: #{bar_generator_pallas.1} parent=1 // pred_check_branch
      %346 = sbr.rel (0) target = $region165
    $region164: #{bar_generator_pallas.1} parent=1 // pred_region
      %347 = dma.done [#allocation21], 16
    $region165: #{bar_generator_pallas.1} parent=1 // pred_fallthru
      _
    // Predicated region
    $region166: #{bar_generator_pallas.1} parent=1 // pred_check
      _
    $region167: #{bar_generator_pallas.1} parent=1 // pred_check_branch
      %349 = sbr.rel (0) target = $region169
    $region168: #{bar_generator_pallas.1} parent=1 // pred_region
      %350 = dma.done [#allocation24], 4096
    $region169: #{bar_generator_pallas.1} parent=1 // pred_fallthru
      _
    // Predicated region
    $region170: #{bar_generator_pallas.1} parent=1 // pred_check
      _
    $region171: #{bar_generator_pallas.1} parent=1 // pred_check_branch
      %352 = sbr.rel (0) target = $region173
    $region172: #{bar_generator_pallas.1} parent=1 // pred_region
      %353 = dma.done [#allocation24], 512
    $region173: #{bar_generator_pallas.1} parent=1 // pred_fallthru
      _
    // Predicated region
    $region174: #{bar_generator_pallas.1} parent=1 // pred_check
      _
    $region175: #{bar_generator_pallas.1} parent=1 // pred_check_branch
      %355 = sbr.rel (0) target = $region177
    $region176: #{bar_generator_pallas.1} parent=1 // pred_region
      %356 = dma.done [#allocation27], 16
    $region177: #{bar_generator_pallas.1} parent=1 // pred_fallthru
      _
    // Predicated region
    $region178: #{bar_generator_pallas.1} parent=1 // pred_check
      _
    $region179: #{bar_generator_pallas.1} parent=1 // pred_check_branch
      %358 = sbr.rel (0) target = $region181
    $region180: #{bar_generator_pallas.1} parent=1 // pred_region
      %359 = dma.done [#allocation27], 16
    $region181: #{bar_generator_pallas.1} parent=1 // pred_fallthru
      _
    // Predicated region
    $region182: #{bar_generator_pallas.1} parent=1 // pred_check
      _
    $region183: #{bar_generator_pallas.1} parent=1 // pred_check_branch
      %361 = sbr.rel (0) target = $region185
    $region184: #{bar_generator_pallas.1} parent=1 // pred_region
      %362 = dma.done [#allocation30], 65536
    $region185: #{bar_generator_pallas.1} parent=1 // pred_fallthru
      _
    // Predicated region
    $region186: #{bar_generator_pallas.1} parent=1 // pred_check
      _
    $region187: #{bar_generator_pallas.1} parent=1 // pred_check_branch
      %364 = sbr.rel (0) target = $region189
    $region188: #{bar_generator_pallas.1} parent=1 // pred_region
      %365 = dma.done [#allocation30], 256
    $region189: #{bar_generator_pallas.1} parent=1 // pred_fallthru
      _
    // Predicated region
    $region190: #{bar_generator_pallas.1} parent=1 // pred_check
      _
    $region191: #{bar_generator_pallas.1} parent=1 // pred_check_branch
      %367 = sbr.rel (0) target = $region193
    $region192: #{bar_generator_pallas.1} parent=1 // pred_region
      %368 = dma.done [#allocation33], 16
    $region193: #{bar_generator_pallas.1} parent=1 // pred_fallthru
      _
    // Predicated region
    $region194: #{bar_generator_pallas.1} parent=1 // pred_check
      _
    $region195: #{bar_generator_pallas.1} parent=1 // pred_check_branch
      %370 = sbr.rel (0) target = $region197
    $region196: #{bar_generator_pallas.1} parent=1 // pred_region
      %371 = dma.done [#allocation33], 16
    $region197: #{bar_generator_pallas.1} parent=1 // pred_fallthru
      _
    // Predicated region
    $region198: #{bar_generator_pallas.1} parent=1 // pred_check
      _
    $region199: #{bar_generator_pallas.1} parent=1 // pred_check_branch
      %373 = sbr.rel (0) target = $region201
    $region200: #{bar_generator_pallas.1} parent=1 // pred_region
      %374 = dma.done [#allocation36], 2048
    $region201: #{bar_generator_pallas.1} parent=1 // pred_fallthru
      _
    // Predicated region
    $region202: #{bar_generator_pallas.1} parent=1 // pred_check
      _
    $region203: #{bar_generator_pallas.1} parent=1 // pred_check_branch
      %376 = sbr.rel (0) target = $region205
    $region204: #{bar_generator_pallas.1} parent=1 // pred_region
      %377 = dma.done [#allocation36], 16
    $region205: #{bar_generator_pallas.1} parent=1 // pred_fallthru
      _
    %v378 = vld [vmem:[%s0] sm:$0xff]
    %v379 = vld [vmem:[%s0 + $0x8] sm:$0xff]
    %v380 = vld [vmem:[%s0 + $0x10] sm:$0xff]
    %v381 = vld [vmem:[%s0 + $0x18] sm:$0xff]
    %v382 = vld [vmem:[%s0 + $0x20] sm:$0xff]
    %v383 = vld [vmem:[%s0 + $0x28] sm:$0xff]
    %v384 = vld [vmem:[%s0 + $0x30] sm:$0xff]
    %v385 = vld [vmem:[%s0 + $0x38] sm:$0xff]
    %v386 = vld [vmem:[#allocation3] sm:$0xff]
    %v387 = vld [vmem:[#allocation3 + $0x8] sm:$0xff]
    %v388 = vld [vmem:[#allocation3 + $0x10] sm:$0xff]
    %v389 = vld [vmem:[#allocation3 + $0x18] sm:$0xff]
    %vm390 = vcmask 261120
    %v392 = vsel %vm390, %v378, 0
    %v395 = vsel %vm390, %v379, 0
    %v398 = vsel %vm390, %v380, 0
    %v401 = vsel %vm390, %v381, 0
    %v404 = vsel %vm390, %v382, 0
    %v407 = vsel %vm390, %v383, 0
    %v410 = vsel %vm390, %v384, 0
    %v413 = vsel %vm390, %v385, 0
    %415 = vmatprep.subr.mxu0 0.0
    %416 = vmatpush1.msra.mxu0 %v386
    %417 = vmatprep.subr.mxu0 0.0
    %418 = vmatpush1.msra.mxu0 %v387
    %419 = vmatprep.subr.mxu0 0.0
    %420 = vmatpush1.msra.mxu0 %v388
    %421 = vmatprep.subr.mxu0 0.0
    %422 = vmatpush1.msra.mxu0 %v389
    %423 = vmatprep.subr.mxu0 0.0
    %424 = vmatpush1.msra.mxu0 0.0
    %425 = vmatprep.subr.mxu0 0.0
    %426 = vmatpush1.msra.mxu0 0.0
    %427 = vmatprep.subr.mxu0 0.0
    %428 = vmatpush1.msra.mxu0 0.0
    %429 = vmatprep.subr.mxu0 0.0
    %430 = vmatpush1.msra.mxu0 0.0
    %431 = vmatprep.subr.mxu0 0.0
    %432 = vmatpush1.msra.mxu0 0.0
    %433 = vmatprep.subr.mxu0 0.0
    %434 = vmatpush1.msra.mxu0 0.0
    %435 = vmatprep.subr.mxu0 0.0
    %436 = vmatpush1.msra.mxu0 0.0
    %437 = vmatprep.subr.mxu0 0.0
    %438 = vmatpush1.msra.mxu0 0.0
    %439 = vmatprep.subr.mxu0 0.0
    %440 = vmatpush1.msra.mxu0 0.0
    %441 = vmatprep.subr.mxu0 0.0
    %442 = vmatpush1.msra.mxu0 0.0
    %443 = vmatprep.subr.mxu0 0.0
    %444 = vmatpush1.msra.mxu0 0.0
    %445 = vmatprep.subr.mxu0 0.0
    %446 = vmatpush1.msra.mxu0 0.0
    %447 = vmatprep.subr.mxu0 0.0
    %448 = vmatpush1.msra.mxu0 0.0
    %449 = vmatprep.subr.mxu0 0.0
    %450 = vmatpush1.msra.mxu0 0.0
    %451 = vmatprep.subr.mxu0 0.0
    %452 = vmatpush1.msra.mxu0 0.0
    %453 = vmatprep.subr.mxu0 0.0
    %454 = vmatpush1.msra.mxu0 0.0
    %455 = vmatprep.subr.mxu0 0.0
    %456 = vmatpush1.msra.mxu0 0.0
    %457 = vmatprep.subr.mxu0 0.0
    %458 = vmatpush1.msra.mxu0 0.0
    %459 = vmatprep.subr.mxu0 0.0
    %460 = vmatpush1.msra.mxu0 0.0
    %461 = vmatprep.subr.mxu0 0.0
    %462 = vmatpush1.msra.mxu0 0.0
    %463 = vmatprep.subr.mxu0 0.0
    %464 = vmatpush1.msra.mxu0 0.0
    %465 = vmatprep.subr.mxu0 0.0
    %466 = vmatpush1.msra.mxu0 0.0
    %467 = vmatprep.subr.mxu0 0.0
    %468 = vmatpush1.msra.mxu0 0.0
    %469 = vmatprep.subr.mxu0 0.0
    %470 = vmatpush1.msra.mxu0 0.0
    %471 = vmatprep.subr.mxu0 0.0
    %472 = vmatpush1.msra.mxu0 0.0
    %473 = vmatprep.subr.mxu0 0.0
    %474 = vmatpush1.msra.mxu0 0.0
    %475 = vmatprep.subr.mxu0 0.0
    %476 = vmatpush1.msra.mxu0 0.0
    %477 = vmatprep.subr.mxu0 0.0
    %478 = vmatpush1.msra.mxu0 0.0
    %479 = vmatprep.mubr.f32.mxu0 0.0
    %480 = vmatmul.mubr.f32.gmra.mrb[0].mxu0 %v392
    %v481 = vpop.f32.mrb[0].mxu0
    %v482 = vadd.f32 0.0, %v481
    %v483 = vpop.f32.mrb[0].mxu0
    %484 = vmatprep.mubr.f32.mxu0 0.0
    %485 = vmatmul.mubr.f32.gmra.mrb[0].mxu0 %v395
    %v486 = vpop.f32.mrb[0].mxu0
    %v487 = vadd.f32 0.0, %v486
    %v488 = vpop.f32.mrb[0].mxu0
    %489 = vmatprep.mubr.f32.mxu0 0.0
    %490 = vmatmul.mubr.f32.gmra.mrb[0].mxu0 %v398
    %v491 = vpop.f32.mrb[0].mxu0
    %v492 = vadd.f32 0.0, %v491
    %v493 = vpop.f32.mrb[0].mxu0
    %494 = vmatprep.mubr.f32.mxu0 0.0
    %495 = vmatmul.mubr.f32.gmra.mrb[0].mxu0 %v401
    %v496 = vpop.f32.mrb[0].mxu0
    %v497 = vadd.f32 0.0, %v496
    %v498 = vpop.f32.mrb[0].mxu0
    %499 = vmatprep.mubr.f32.mxu0 0.0
    %500 = vmatmul.mubr.f32.gmra.mrb[0].mxu0 %v404
    %v501 = vpop.f32.mrb[0].mxu0
    %v502 = vadd.f32 0.0, %v501
    %v503 = vpop.f32.mrb[0].mxu0
    %504 = vmatprep.mubr.f32.mxu0 0.0
    %505 = vmatmul.mubr.f32.gmra.mrb[0].mxu0 %v407
    %v506 = vpop.f32.mrb[0].mxu0
    %v507 = vadd.f32 0.0, %v506
    %v508 = vpop.f32.mrb[0].mxu0
    %509 = vmatprep.mubr.f32.mxu0 0.0
    %510 = vmatmul.mubr.f32.gmra.mrb[0].mxu0 %v410
    %v511 = vpop.f32.mrb[0].mxu0
    %v512 = vadd.f32 0.0, %v511
    %v513 = vpop.f32.mrb[0].mxu0
    %514 = vmatprep.mubr.f32.mxu0 0.0
    %515 = vmatmul.mubr.f32.gmra.mrb[0].mxu0 %v413
    %v516 = vpop.f32.mrb[0].mxu0
    %v517 = vadd.f32 0.0, %v516
    %v518 = vpop.f32.mrb[0].mxu0
    %519 = vdwg.mxu0
    %vm520 = vcmask 523264
    %v521 = vsel %vm520, %v482, 0.0
    %v522 = vsel %vm520, %v487, 0.0
    %v523 = vadd.f32 %v521, %v522
    %v524 = vsel %vm520, %v492, 0.0
    %v525 = vadd.f32 %v523, %v524
    %v526 = vsel %vm520, %v497, 0.0
    %v527 = vadd.f32 %v525, %v526
    %v528 = vsel %vm520, %v502, 0.0
    %v529 = vadd.f32 %v527, %v528
    %v530 = vsel %vm520, %v507, 0.0
    %v531 = vadd.f32 %v529, %v530
    %v532 = vsel %vm520, %v512, 0.0
    %v533 = vadd.f32 %v531, %v532
    %v534 = vsel %vm520, %v517, 0.0
    %v535 = vadd.f32 %v533, %v534
    %v536 = vrot.slane %v535, 4
    %v537 = vadd.f32 %v535, %v536
    %v538 = vrot.slane %v537, 2
    %v539 = vadd.f32 %v537, %v538
    %v540 = vrot.slane %v539, 1
    %v541 = vadd.f32 %v539, %v540
    %v542 = vmul.f32 %v482, %v482
    %v543 = vmul.f32 %v487, %v487
    %v544 = vmul.f32 %v492, %v492
    %v545 = vmul.f32 %v497, %v497
    %v546 = vmul.f32 %v502, %v502
    %v547 = vmul.f32 %v507, %v507
    %v548 = vmul.f32 %v512, %v512
    %v549 = vmul.f32 %v517, %v517
    %v550 = vsel %vm520, %v542, 0.0
    %v551 = vsel %vm520, %v543, 0.0
    %v552 = vadd.f32 %v550, %v551
    %v553 = vsel %vm520, %v544, 0.0
    %v554 = vadd.f32 %v552, %v553
    %v555 = vsel %vm520, %v545, 0.0
    %v556 = vadd.f32 %v554, %v555
    %v557 = vsel %vm520, %v546, 0.0
    %v558 = vadd.f32 %v556, %v557
    %v559 = vsel %vm520, %v547, 0.0
    %v560 = vadd.f32 %v558, %v559
    %v561 = vsel %vm520, %v548, 0.0
    %v562 = vadd.f32 %v560, %v561
    %v563 = vsel %vm520, %v549, 0.0
    %v564 = vadd.f32 %v562, %v563
    %v565 = vrot.slane %v564, 4
    %v566 = vadd.f32 %v564, %v565
    %v567 = vrot.slane %v566, 2
    %v568 = vadd.f32 %v566, %v567
    %v569 = vrot.slane %v568, 1
    %v570 = vadd.f32 %v568, %v569
    %vm571 = vcmask 1040384
    %v572 = vsel %vm571, %v541, %v570
    %v573 = vld [vmem:[#allocation5] sm:$0xff]
    %v574 = vld [vmem:[#allocation5 + $0x8] sm:$0xff]
    %v575 = vld [vmem:[#allocation5 + $0x10] sm:$0xff]
    %v576 = vld [vmem:[#allocation5 + $0x18] sm:$0xff]
    %v577 = vld [vmem:[#allocation5 + $0x20] sm:$0xff]
    %v578 = vld [vmem:[#allocation5 + $0x28] sm:$0xff]
    %v579 = vld [vmem:[#allocation5 + $0x30] sm:$0xff]
    %v580 = vld [vmem:[#allocation5 + $0x38] sm:$0xff]
    %v582 = vsel %vm520, %v572, 0
    %584 = vmatprep.subr.mxu0 0.0
    %585 = vmatpush1.msra.mxu0 %v573
    %586 = vmatprep.subr.mxu0 0.0
    %587 = vmatpush1.msra.mxu0 %v574
    %588 = vmatprep.subr.mxu0 0.0
    %589 = vmatpush1.msra.mxu0 %v575
    %590 = vmatprep.subr.mxu0 0.0
    %591 = vmatpush1.msra.mxu0 %v576
    %592 = vmatprep.subr.mxu0 0.0
    %593 = vmatpush1.msra.mxu0 %v577
    %594 = vmatprep.subr.mxu0 0.0
    %595 = vmatpush1.msra.mxu0 %v578
    %596 = vmatprep.subr.mxu0 0.0
    %597 = vmatpush1.msra.mxu0 %v579
    %598 = vmatprep.subr.mxu0 0.0
    %599 = vmatpush1.msra.mxu0 %v580
    %600 = vmatprep.subr.mxu0 0.0
    %601 = vmatpush1.msra.mxu0 0.0
    %602 = vmatprep.subr.mxu0 0.0
    %603 = vmatpush1.msra.mxu0 0.0
    %604 = vmatprep.subr.mxu0 0.0
    %605 = vmatpush1.msra.mxu0 0.0
    %606 = vmatprep.subr.mxu0 0.0
    %607 = vmatpush1.msra.mxu0 0.0
    %608 = vmatprep.subr.mxu0 0.0
    %609 = vmatpush1.msra.mxu0 0.0
    %610 = vmatprep.subr.mxu0 0.0
    %611 = vmatpush1.msra.mxu0 0.0
    %612 = vmatprep.subr.mxu0 0.0
    %613 = vmatpush1.msra.mxu0 0.0
    %614 = vmatprep.subr.mxu0 0.0
    %615 = vmatpush1.msra.mxu0 0.0
    %616 = vmatprep.subr.mxu0 0.0
    %617 = vmatpush1.msra.mxu0 0.0
    %618 = vmatprep.subr.mxu0 0.0
    %619 = vmatpush1.msra.mxu0 0.0
    %620 = vmatprep.subr.mxu0 0.0
    %621 = vmatpush1.msra.mxu0 0.0
    %622 = vmatprep.subr.mxu0 0.0
    %623 = vmatpush1.msra.mxu0 0.0
    %624 = vmatprep.subr.mxu0 0.0
    %625 = vmatpush1.msra.mxu0 0.0
    %626 = vmatprep.subr.mxu0 0.0
    %627 = vmatpush1.msra.mxu0 0.0
    %628 = vmatprep.subr.mxu0 0.0
    %629 = vmatpush1.msra.mxu0 0.0
    %630 = vmatprep.subr.mxu0 0.0
    %631 = vmatpush1.msra.mxu0 0.0
    %632 = vmatprep.subr.mxu0 0.0
    %633 = vmatpush1.msra.mxu0 0.0
    %634 = vmatprep.subr.mxu0 0.0
    %635 = vmatpush1.msra.mxu0 0.0
    %636 = vmatprep.subr.mxu0 0.0
    %637 = vmatpush1.msra.mxu0 0.0
    %638 = vmatprep.subr.mxu0 0.0
    %639 = vmatpush1.msra.mxu0 0.0
    %640 = vmatprep.subr.mxu0 0.0
    %641 = vmatpush1.msra.mxu0 0.0
    %642 = vmatprep.subr.mxu0 0.0
    %643 = vmatpush1.msra.mxu0 0.0
    %644 = vmatprep.subr.mxu0 0.0
    %645 = vmatpush1.msra.mxu0 0.0
    %646 = vmatprep.subr.mxu0 0.0
    %647 = vmatpush1.msra.mxu0 0.0
    %648 = vmatprep.mubr.f32.mxu0 0.0
    %649 = vmatmul.mubr.f32.gmra.mrb[0].mxu0 %v582
    %v650 = vpop.f32.mrb[0].mxu0
    %v651 = vadd.f32 0.0, %v650
    %v652 = vpop.f32.mrb[0].mxu0
    %653 = vdwg.mxu0
    %v654 = vmul.f32 %v651, %v651
    %v656 = vrot.slane %v654, 7
    %v658 = vsub.f32 %v651, %v656
    %v659 = vmax.f32 %v658, 0.0
    %v660 = vld [vmem:[#allocation8] sm:$0x1]
    %v661 = vadd.f32 %v659, 1e-05
    %v662 = vrsqrt.pop %v661
    %v665 = vunpack.c.l.s4 1966171168
    %v666 = vunpack.c.0.s8 %v665
    %v667 = vlaneseq
    %v668 = vshrl.u32 %v667, 7
    %v669 = vsub.s32 %v666, %v668
    %v670 = vrot.slane %v662, %v669
    %v671 = vcombine.high %v670, %v670
    %v673 = vunpack.c.l.s4 1966171168
    %v674 = vunpack.c.0.s8 %v673
    %v675 = vlaneseq
    %v676 = vshrl.u32 %v675, 7
    %v677 = vsub.s32 %v674, %v676
    %v678 = vrot.slane %v671, %v677
    %v680 = vmul.f32 %v660, %v678
    %v681 = vld [vmem:[#allocation10] sm:$0x1]
    %v682 = vmul.f32 %v651, %v680
    %v683 = vsub.f32 %v681, %v682
    %v685 = vlaneseq
    %v686 = vshrl.u32 %v685, 7
    %v687 = vsub.s32 0, %v686
    %v688 = vrot.slane %v683, %v687
    %v690 = vsel %vm571, %v680, %v688
    %v691 = vld [vmem:[#allocation7] sm:$0xff]
    %v692 = vld [vmem:[#allocation7 + $0x8] sm:$0xff]
    %v693 = vld [vmem:[#allocation7 + $0x10] sm:$0xff]
    %v694 = vld [vmem:[#allocation7 + $0x18] sm:$0xff]
    %v695 = vld [vmem:[#allocation7 + $0x20] sm:$0xff]
    %v696 = vld [vmem:[#allocation7 + $0x28] sm:$0xff]
    %v697 = vld [vmem:[#allocation7 + $0x30] sm:$0xff]
    %v698 = vld [vmem:[#allocation7 + $0x38] sm:$0xff]
    %v700 = vsel %vm520, %v690, 0
    %702 = vmatprep.subr.mxu0 0.0
    %703 = vmatpush1.msra.mxu0 %v691
    %704 = vmatprep.subr.mxu0 0.0
    %705 = vmatpush1.msra.mxu0 %v692
    %706 = vmatprep.subr.mxu0 0.0
    %707 = vmatpush1.msra.mxu0 %v693
    %708 = vmatprep.subr.mxu0 0.0
    %709 = vmatpush1.msra.mxu0 %v694
    %710 = vmatprep.subr.mxu0 0.0
    %711 = vmatpush1.msra.mxu0 %v695
    %712 = vmatprep.subr.mxu0 0.0
    %713 = vmatpush1.msra.mxu0 %v696
    %714 = vmatprep.subr.mxu0 0.0
    %715 = vmatpush1.msra.mxu0 %v697
    %716 = vmatprep.subr.mxu0 0.0
    %717 = vmatpush1.msra.mxu0 %v698
    %718 = vmatprep.subr.mxu0 0.0
    %719 = vmatpush1.msra.mxu0 0.0
    %720 = vmatprep.subr.mxu0 0.0
    %721 = vmatpush1.msra.mxu0 0.0
    %722 = vmatprep.subr.mxu0 0.0
    %723 = vmatpush1.msra.mxu0 0.0
    %724 = vmatprep.subr.mxu0 0.0
    %725 = vmatpush1.msra.mxu0 0.0
    %726 = vmatprep.subr.mxu0 0.0
    %727 = vmatpush1.msra.mxu0 0.0
    %728 = vmatprep.subr.mxu0 0.0
    %729 = vmatpush1.msra.mxu0 0.0
    %730 = vmatprep.subr.mxu0 0.0
    %731 = vmatpush1.msra.mxu0 0.0
    %732 = vmatprep.subr.mxu0 0.0
    %733 = vmatpush1.msra.mxu0 0.0
    %734 = vmatprep.subr.mxu0 0.0
    %735 = vmatpush1.msra.mxu0 0.0
    %736 = vmatprep.subr.mxu0 0.0
    %737 = vmatpush1.msra.mxu0 0.0
    %738 = vmatprep.subr.mxu0 0.0
    %739 = vmatpush1.msra.mxu0 0.0
    %740 = vmatprep.subr.mxu0 0.0
    %741 = vmatpush1.msra.mxu0 0.0
    %742 = vmatprep.subr.mxu0 0.0
    %743 = vmatpush1.msra.mxu0 0.0
    %744 = vmatprep.subr.mxu0 0.0
    %745 = vmatpush1.msra.mxu0 0.0
    %746 = vmatprep.subr.mxu0 0.0
    %747 = vmatpush1.msra.mxu0 0.0
    %748 = vmatprep.subr.mxu0 0.0
    %749 = vmatpush1.msra.mxu0 0.0
    %750 = vmatprep.subr.mxu0 0.0
    %751 = vmatpush1.msra.mxu0 0.0
    %752 = vmatprep.subr.mxu0 0.0
    %753 = vmatpush1.msra.mxu0 0.0
    %754 = vmatprep.subr.mxu0 0.0
    %755 = vmatpush1.msra.mxu0 0.0
    %756 = vmatprep.subr.mxu0 0.0
    %757 = vmatpush1.msra.mxu0 0.0
    %758 = vmatprep.subr.mxu0 0.0
    %759 = vmatpush1.msra.mxu0 0.0
    %760 = vmatprep.subr.mxu0 0.0
    %761 = vmatpush1.msra.mxu0 0.0
    %762 = vmatprep.subr.mxu0 0.0
    %763 = vmatpush1.msra.mxu0 0.0
    %764 = vmatprep.subr.mxu0 0.0
    %765 = vmatpush1.msra.mxu0 0.0
    %766 = vmatprep.mubr.f32.mxu0 0.0
    %767 = vmatmul.mubr.f32.gmra.mrb[0].mxu0 %v700
    %v768 = vpop.f32.mrb[0].mxu0
    %v769 = vadd.f32 0.0, %v768
    %v770 = vpop.f32.mrb[0].mxu0
    %771 = vdwg.mxu0
    %v772 = vlaneseq
    %v773 = vshrl.u32 %v772, 7
    %v774 = vsub.s32 0, %v773
    %v775 = vrot.slane %v769, %v774
    %v776 = vmul.f32 %v482, %v775
    %v777 = vmul.f32 %v487, %v775
    %v778 = vmul.f32 %v492, %v775
    %v779 = vmul.f32 %v497, %v775
    %v780 = vmul.f32 %v502, %v775
    %v781 = vmul.f32 %v507, %v775
    %v782 = vmul.f32 %v512, %v775
    %v783 = vmul.f32 %v517, %v775
    %v784 = vlaneseq
    %v785 = vshrl.u32 %v784, 7
    %v786 = vsub.s32 1, %v785
    %v787 = vrot.slane %v769, %v786
    %v788 = vadd.f32 %v776, %v787
    %v789 = vadd.f32 %v777, %v787
    %v790 = vadd.f32 %v778, %v787
    %v791 = vadd.f32 %v779, %v787
    %v792 = vadd.f32 %v780, %v787
    %v793 = vadd.f32 %v781, %v787
    %v794 = vadd.f32 %v782, %v787
    %v795 = vadd.f32 %v783, %v787
    %v796 = vmax.f32 %v788, 0.0
    %v797 = vmax.f32 %v789, 0.0
    %v798 = vmax.f32 %v790, 0.0
    %v799 = vmax.f32 %v791, 0.0
    %v800 = vmax.f32 %v792, 0.0
    %v801 = vmax.f32 %v793, 0.0
    %v802 = vmax.f32 %v794, 0.0
    %v803 = vmax.f32 %v795, 0.0
    %v804 = vld [vmem:[#allocation11] sm:$0xff]
    %v805 = vld [vmem:[#allocation11 + $0x8] sm:$0xff]
    %v806 = vld [vmem:[#allocation11 + $0x10] sm:$0xff]
    %v807 = vld [vmem:[#allocation11 + $0x18] sm:$0xff]
    %v808 = vld [vmem:[#allocation11 + $0x20] sm:$0xff]
    %v809 = vld [vmem:[#allocation11 + $0x28] sm:$0xff]
    %v810 = vld [vmem:[#allocation11 + $0x30] sm:$0xff]
    %v811 = vld [vmem:[#allocation11 + $0x38] sm:$0xff]
    %v813 = vsel %vm520, %v796, 0
    %v816 = vsel %vm520, %v797, 0
    %v819 = vsel %vm520, %v798, 0
    %v822 = vsel %vm520, %v799, 0
    %v825 = vsel %vm520, %v800, 0
    %v828 = vsel %vm520, %v801, 0
    %v831 = vsel %vm520, %v802, 0
    %v834 = vsel %vm520, %v803, 0
    %836 = vmatprep.subr.mxu0 0.0
    %837 = vmatpush1.msra.mxu0 %v804
    %838 = vmatprep.subr.mxu0 0.0
    %839 = vmatpush1.msra.mxu0 %v805
    %840 = vmatprep.subr.mxu0 0.0
    %841 = vmatpush1.msra.mxu0 %v806
    %842 = vmatprep.subr.mxu0 0.0
    %843 = vmatpush1.msra.mxu0 %v807
    %844 = vmatprep.subr.mxu0 0.0
    %845 = vmatpush1.msra.mxu0 %v808
    %846 = vmatprep.subr.mxu0 0.0
    %847 = vmatpush1.msra.mxu0 %v809
    %848 = vmatprep.subr.mxu0 0.0
    %849 = vmatpush1.msra.mxu0 %v810
    %850 = vmatprep.subr.mxu0 0.0
    %851 = vmatpush1.msra.mxu0 %v811
    %852 = vmatprep.subr.mxu0 0.0
    %853 = vmatpush1.msra.mxu0 0.0
    %854 = vmatprep.subr.mxu0 0.0
    %855 = vmatpush1.msra.mxu0 0.0
    %856 = vmatprep.subr.mxu0 0.0
    %857 = vmatpush1.msra.mxu0 0.0
    %858 = vmatprep.subr.mxu0 0.0
    %859 = vmatpush1.msra.mxu0 0.0
    %860 = vmatprep.subr.mxu0 0.0
    %861 = vmatpush1.msra.mxu0 0.0
    %862 = vmatprep.subr.mxu0 0.0
    %863 = vmatpush1.msra.mxu0 0.0
    %864 = vmatprep.subr.mxu0 0.0
    %865 = vmatpush1.msra.mxu0 0.0
    %866 = vmatprep.subr.mxu0 0.0
    %867 = vmatpush1.msra.mxu0 0.0
    %868 = vmatprep.subr.mxu0 0.0
    %869 = vmatpush1.msra.mxu0 0.0
    %870 = vmatprep.subr.mxu0 0.0
    %871 = vmatpush1.msra.mxu0 0.0
    %872 = vmatprep.subr.mxu0 0.0
    %873 = vmatpush1.msra.mxu0 0.0
    %874 = vmatprep.subr.mxu0 0.0
    %875 = vmatpush1.msra.mxu0 0.0
    %876 = vmatprep.subr.mxu0 0.0
    %877 = vmatpush1.msra.mxu0 0.0
    %878 = vmatprep.subr.mxu0 0.0
    %879 = vmatpush1.msra.mxu0 0.0
    %880 = vmatprep.subr.mxu0 0.0
    %881 = vmatpush1.msra.mxu0 0.0
    %882 = vmatprep.subr.mxu0 0.0
    %883 = vmatpush1.msra.mxu0 0.0
    %884 = vmatprep.subr.mxu0 0.0
    %885 = vmatpush1.msra.mxu0 0.0
    %886 = vmatprep.subr.mxu0 0.0
    %887 = vmatpush1.msra.mxu0 0.0
    %888 = vmatprep.subr.mxu0 0.0
    %889 = vmatpush1.msra.mxu0 0.0
    %890 = vmatprep.subr.mxu0 0.0
    %891 = vmatpush1.msra.mxu0 0.0
    %892 = vmatprep.subr.mxu0 0.0
    %893 = vmatpush1.msra.mxu0 0.0
    %894 = vmatprep.subr.mxu0 0.0
    %895 = vmatpush1.msra.mxu0 0.0
    %896 = vmatprep.subr.mxu0 0.0
    %897 = vmatpush1.msra.mxu0 0.0
    %898 = vmatprep.subr.mxu0 0.0
    %899 = vmatpush1.msra.mxu0 0.0
    %900 = vmatprep.mubr.f32.mxu0 0.0
    %901 = vmatmul.mubr.f32.gmra.mrb[0].mxu0 %v813
    %v902 = vpop.f32.mrb[0].mxu0
    %v903 = vadd.f32 0.0, %v902
    %v904 = vpop.f32.mrb[0].mxu0
    %905 = vmatprep.mubr.f32.mxu0 0.0
    %906 = vmatmul.mubr.f32.gmra.mrb[0].mxu0 %v816
    %v907 = vpop.f32.mrb[0].mxu0
    %v908 = vadd.f32 0.0, %v907
    %v909 = vpop.f32.mrb[0].mxu0
    %910 = vmatprep.mubr.f32.mxu0 0.0
    %911 = vmatmul.mubr.f32.gmra.mrb[0].mxu0 %v819
    %v912 = vpop.f32.mrb[0].mxu0
    %v913 = vadd.f32 0.0, %v912
    %v914 = vpop.f32.mrb[0].mxu0
    %915 = vmatprep.mubr.f32.mxu0 0.0
    %916 = vmatmul.mubr.f32.gmra.mrb[0].mxu0 %v822
    %v917 = vpop.f32.mrb[0].mxu0
    %v918 = vadd.f32 0.0, %v917
    %v919 = vpop.f32.mrb[0].mxu0
    %920 = vmatprep.mubr.f32.mxu0 0.0
    %921 = vmatmul.mubr.f32.gmra.mrb[0].mxu0 %v825
    %v922 = vpop.f32.mrb[0].mxu0
    %v923 = vadd.f32 0.0, %v922
    %v924 = vpop.f32.mrb[0].mxu0
    %925 = vmatprep.mubr.f32.mxu0 0.0
    %926 = vmatmul.mubr.f32.gmra.mrb[0].mxu0 %v828
    %v927 = vpop.f32.mrb[0].mxu0
    %v928 = vadd.f32 0.0, %v927
    %v929 = vpop.f32.mrb[0].mxu0
    %930 = vmatprep.mubr.f32.mxu0 0.0
    %931 = vmatmul.mubr.f32.gmra.mrb[0].mxu0 %v831
    %v932 = vpop.f32.mrb[0].mxu0
    %v933 = vadd.f32 0.0, %v932
    %v934 = vpop.f32.mrb[0].mxu0
    %935 = vmatprep.mubr.f32.mxu0 0.0
    %936 = vmatmul.mubr.f32.gmra.mrb[0].mxu0 %v834
    %v937 = vpop.f32.mrb[0].mxu0
    %v938 = vadd.f32 0.0, %v937
    %v939 = vpop.f32.mrb[0].mxu0
    %940 = vdwg.mxu0
    %v941 = vadd.f32 %v903, %v908
    %v942 = vadd.f32 %v941, %v913
    %v943 = vadd.f32 %v942, %v918
    %v944 = vadd.f32 %v943, %v923
    %v945 = vadd.f32 %v944, %v928
    %v946 = vadd.f32 %v945, %v933
    %v947 = vadd.f32 %v946, %v938
    %v948 = vrot.slane %v947, 4
    %v949 = vadd.f32 %v947, %v948
    %v950 = vrot.slane %v949, 2
    %v951 = vadd.f32 %v949, %v950
    %v952 = vrot.slane %v951, 1
    %v953 = vadd.f32 %v951, %v952
    %v954 = vmul.f32 %v903, %v903
    %v955 = vmul.f32 %v908, %v908
    %v956 = vmul.f32 %v913, %v913
    %v957 = vmul.f32 %v918, %v918
    %v958 = vmul.f32 %v923, %v923
    %v959 = vmul.f32 %v928, %v928
    %v960 = vmul.f32 %v933, %v933
    %v961 = vmul.f32 %v938, %v938
    %v962 = vadd.f32 %v954, %v955
    %v963 = vadd.f32 %v962, %v956
    %v964 = vadd.f32 %v963, %v957
    %v965 = vadd.f32 %v964, %v958
    %v966 = vadd.f32 %v965, %v959
    %v967 = vadd.f32 %v966, %v960
    %v968 = vadd.f32 %v967, %v961
    %v969 = vrot.slane %v968, 4
    %v970 = vadd.f32 %v968, %v969
    %v971 = vrot.slane %v970, 2
    %v972 = vadd.f32 %v970, %v971
    %v973 = vrot.slane %v972, 1
    %v974 = vadd.f32 %v972, %v973
    %v975 = vsel %vm571, %v953, %v974
    %v976 = vld [vmem:[%s7] sm:$0xff]
    %v977 = vld [vmem:[%s7 + $0x8] sm:$0xff]
    %v978 = vld [vmem:[%s7 + $0x10] sm:$0xff]
    %v979 = vld [vmem:[%s7 + $0x18] sm:$0xff]
    %v980 = vld [vmem:[%s7 + $0x20] sm:$0xff]
    %v981 = vld [vmem:[%s7 + $0x28] sm:$0xff]
    %v982 = vld [vmem:[%s7 + $0x30] sm:$0xff]
    %v983 = vld [vmem:[%s7 + $0x38] sm:$0xff]
    %v984 = vld [vmem:[%s7 + $0x40] sm:$0xff]
    %v985 = vld [vmem:[%s7 + $0x48] sm:$0xff]
    %v986 = vld [vmem:[%s7 + $0x50] sm:$0xff]
    %v987 = vld [vmem:[%s7 + $0x58] sm:$0xff]
    %v988 = vld [vmem:[%s7 + $0x60] sm:$0xff]
    %v989 = vld [vmem:[%s7 + $0x68] sm:$0xff]
    %v990 = vld [vmem:[%s7 + $0x70] sm:$0xff]
    %v991 = vld [vmem:[%s7 + $0x78] sm:$0xff]
    %992 = vmatprep.subr.mxu0 0.0
    %993 = vmatpush1.msra.mxu0 %v976
    %994 = vmatprep.subr.mxu0 0.0
    %995 = vmatpush1.msra.mxu0 %v977
    %996 = vmatprep.subr.mxu0 0.0
    %997 = vmatpush1.msra.mxu0 %v978
    %998 = vmatprep.subr.mxu0 0.0
    %999 = vmatpush1.msra.mxu0 %v979
    %1000 = vmatprep.subr.mxu0 0.0
    %1001 = vmatpush1.msra.mxu0 %v980
    %1002 = vmatprep.subr.mxu0 0.0
    %1003 = vmatpush1.msra.mxu0 %v981
    %1004 = vmatprep.subr.mxu0 0.0
    %1005 = vmatpush1.msra.mxu0 %v982
    %1006 = vmatprep.subr.mxu0 0.0
    %1007 = vmatpush1.msra.mxu0 %v983
    %1008 = vmatprep.subr.mxu0 0.0
    %1009 = vmatpush1.msra.mxu0 %v984
    %1010 = vmatprep.subr.mxu0 0.0
    %1011 = vmatpush1.msra.mxu0 %v985
    %1012 = vmatprep.subr.mxu0 0.0
    %1013 = vmatpush1.msra.mxu0 %v986
    %1014 = vmatprep.subr.mxu0 0.0
    %1015 = vmatpush1.msra.mxu0 %v987
    %1016 = vmatprep.subr.mxu0 0.0
    %1017 = vmatpush1.msra.mxu0 %v988
    %1018 = vmatprep.subr.mxu0 0.0
    %1019 = vmatpush1.msra.mxu0 %v989
    %1020 = vmatprep.subr.mxu0 0.0
    %1021 = vmatpush1.msra.mxu0 %v990
    %1022 = vmatprep.subr.mxu0 0.0
    %1023 = vmatpush1.msra.mxu0 %v991
    %1024 = vmatprep.subr.mxu0 0.0
    %1025 = vmatpush1.msra.mxu0 0.0
    %1026 = vmatprep.subr.mxu0 0.0
    %1027 = vmatpush1.msra.mxu0 0.0
    %1028 = vmatprep.subr.mxu0 0.0
    %1029 = vmatpush1.msra.mxu0 0.0
    %1030 = vmatprep.subr.mxu0 0.0
    %1031 = vmatpush1.msra.mxu0 0.0
    %1032 = vmatprep.subr.mxu0 0.0
    %1033 = vmatpush1.msra.mxu0 0.0
    %1034 = vmatprep.subr.mxu0 0.0
    %1035 = vmatpush1.msra.mxu0 0.0
    %1036 = vmatprep.subr.mxu0 0.0
    %1037 = vmatpush1.msra.mxu0 0.0
    %1038 = vmatprep.subr.mxu0 0.0
    %1039 = vmatpush1.msra.mxu0 0.0
    %1040 = vmatprep.subr.mxu0 0.0
    %1041 = vmatpush1.msra.mxu0 0.0
    %1042 = vmatprep.subr.mxu0 0.0
    %1043 = vmatpush1.msra.mxu0 0.0
    %1044 = vmatprep.subr.mxu0 0.0
    %1045 = vmatpush1.msra.mxu0 0.0
    %1046 = vmatprep.subr.mxu0 0.0
    %1047 = vmatpush1.msra.mxu0 0.0
    %1048 = vmatprep.subr.mxu0 0.0
    %1049 = vmatpush1.msra.mxu0 0.0
    %1050 = vmatprep.subr.mxu0 0.0
    %1051 = vmatpush1.msra.mxu0 0.0
    %1052 = vmatprep.subr.mxu0 0.0
    %1053 = vmatpush1.msra.mxu0 0.0
    %1054 = vmatprep.subr.mxu0 0.0
    %1055 = vmatpush1.msra.mxu0 0.0
    %1056 = vmatprep.mubr.f32.mxu0 0.0
    %1057 = vmatmul.mubr.f32.gmra.mrb[0].mxu0 %v975
    %v1058 = vpop.f32.mrb[0].mxu0
    %v1059 = vadd.f32 0.0, %v1058
    %v1060 = vpop.f32.mrb[0].mxu0
    %1061 = vdwg.mxu0
    %v1062 = vmul.f32 %v1059, %v1059
    %v1064 = vrot.slane %v1062, 7
    %v1066 = vsub.f32 %v1059, %v1064
    %v1067 = vmax.f32 %v1066, 0.0
    %v1068 = vld [vmem:[#allocation14] sm:$0x1]
    %v1069 = vadd.f32 %v1067, 1e-05
    %v1070 = vrsqrt.pop %v1069
    %v1073 = vunpack.c.l.s4 1966171168
    %v1074 = vunpack.c.0.s8 %v1073
    %v1075 = vlaneseq
    %v1076 = vshrl.u32 %v1075, 7
    %v1077 = vsub.s32 %v1074, %v1076
    %v1078 = vrot.slane %v1070, %v1077
    %v1079 = vcombine.high %v1078, %v1078
    %v1081 = vunpack.c.l.s4 1966171168
    %v1082 = vunpack.c.0.s8 %v1081
    %v1083 = vlaneseq
    %v1084 = vshrl.u32 %v1083, 7
    %v1085 = vsub.s32 %v1082, %v1084
    %v1086 = vrot.slane %v1079, %v1085
    %v1088 = vmul.f32 %v1068, %v1086
    %v1089 = vld [vmem:[#allocation16] sm:$0x1]
    %v1090 = vmul.f32 %v1059, %v1088
    %v1091 = vsub.f32 %v1089, %v1090
    %v1093 = vlaneseq
    %v1094 = vshrl.u32 %v1093, 7
    %v1095 = vsub.s32 0, %v1094
    %v1096 = vrot.slane %v1091, %v1095
    %v1098 = vsel %vm571, %v1088, %v1096
    %v1099 = vld [vmem:[#allocation13] sm:$0xff]
    %v1100 = vld [vmem:[#allocation13 + $0x8] sm:$0xff]
    %v1101 = vld [vmem:[#allocation13 + $0x10] sm:$0xff]
    %v1102 = vld [vmem:[#allocation13 + $0x18] sm:$0xff]
    %v1104 = vsel %vm390, %v1098, 0
    %1106 = vmatprep.subr.mxu0 0.0
    %1107 = vmatpush1.msra.mxu0 %v1099
    %1108 = vmatprep.subr.mxu0 0.0
    %1109 = vmatpush1.msra.mxu0 %v1100
    %1110 = vmatprep.subr.mxu0 0.0
    %1111 = vmatpush1.msra.mxu0 %v1101
    %1112 = vmatprep.subr.mxu0 0.0
    %1113 = vmatpush1.msra.mxu0 %v1102
    %1114 = vmatprep.subr.mxu0 0.0
    %1115 = vmatpush1.msra.mxu0 0.0
    %1116 = vmatprep.subr.mxu0 0.0
    %1117 = vmatpush1.msra.mxu0 0.0
    %1118 = vmatprep.subr.mxu0 0.0
    %1119 = vmatpush1.msra.mxu0 0.0
    %1120 = vmatprep.subr.mxu0 0.0
    %1121 = vmatpush1.msra.mxu0 0.0
    %1122 = vmatprep.subr.mxu0 0.0
    %1123 = vmatpush1.msra.mxu0 0.0
    %1124 = vmatprep.subr.mxu0 0.0
    %1125 = vmatpush1.msra.mxu0 0.0
    %1126 = vmatprep.subr.mxu0 0.0
    %1127 = vmatpush1.msra.mxu0 0.0
    %1128 = vmatprep.subr.mxu0 0.0
    %1129 = vmatpush1.msra.mxu0 0.0
    %1130 = vmatprep.subr.mxu0 0.0
    %1131 = vmatpush1.msra.mxu0 0.0
    %1132 = vmatprep.subr.mxu0 0.0
    %1133 = vmatpush1.msra.mxu0 0.0
    %1134 = vmatprep.subr.mxu0 0.0
    %1135 = vmatpush1.msra.mxu0 0.0
    %1136 = vmatprep.subr.mxu0 0.0
    %1137 = vmatpush1.msra.mxu0 0.0
    %1138 = vmatprep.subr.mxu0 0.0
    %1139 = vmatpush1.msra.mxu0 0.0
    %1140 = vmatprep.subr.mxu0 0.0
    %1141 = vmatpush1.msra.mxu0 0.0
    %1142 = vmatprep.subr.mxu0 0.0
    %1143 = vmatpush1.msra.mxu0 0.0
    %1144 = vmatprep.subr.mxu0 0.0
    %1145 = vmatpush1.msra.mxu0 0.0
    %1146 = vmatprep.subr.mxu0 0.0
    %1147 = vmatpush1.msra.mxu0 0.0
    %1148 = vmatprep.subr.mxu0 0.0
    %1149 = vmatpush1.msra.mxu0 0.0
    %1150 = vmatprep.subr.mxu0 0.0
    %1151 = vmatpush1.msra.mxu0 0.0
    %1152 = vmatprep.subr.mxu0 0.0
    %1153 = vmatpush1.msra.mxu0 0.0
    %1154 = vmatprep.subr.mxu0 0.0
    %1155 = vmatpush1.msra.mxu0 0.0
    %1156 = vmatprep.subr.mxu0 0.0
    %1157 = vmatpush1.msra.mxu0 0.0
    %1158 = vmatprep.subr.mxu0 0.0
    %1159 = vmatpush1.msra.mxu0 0.0
    %1160 = vmatprep.subr.mxu0 0.0
    %1161 = vmatpush1.msra.mxu0 0.0
    %1162 = vmatprep.subr.mxu0 0.0
    %1163 = vmatpush1.msra.mxu0 0.0
    %1164 = vmatprep.subr.mxu0 0.0
    %1165 = vmatpush1.msra.mxu0 0.0
    %1166 = vmatprep.subr.mxu0 0.0
    %1167 = vmatpush1.msra.mxu0 0.0
    %1168 = vmatprep.subr.mxu0 0.0
    %1169 = vmatpush1.msra.mxu0 0.0
    %1170 = vmatprep.mubr.f32.mxu0 0.0
    %1171 = vmatmul.mubr.f32.gmra.mrb[0].mxu0 %v1104
    %v1172 = vpop.f32.mrb[0].mxu0
    %v1173 = vadd.f32 0.0, %v1172
    %v1174 = vpop.f32.mrb[0].mxu0
    %1175 = vdwg.mxu0
    %v1176 = vlaneseq
    %v1177 = vshrl.u32 %v1176, 7
    %v1178 = vsub.s32 0, %v1177
    %v1179 = vrot.slane %v1173, %v1178
    %v1180 = vmul.f32 %v903, %v1179
    %v1181 = vmul.f32 %v908, %v1179
    %v1182 = vmul.f32 %v913, %v1179
    %v1183 = vmul.f32 %v918, %v1179
    %v1184 = vmul.f32 %v923, %v1179
    %v1185 = vmul.f32 %v928, %v1179
    %v1186 = vmul.f32 %v933, %v1179
    %v1187 = vmul.f32 %v938, %v1179
    %v1188 = vlaneseq
    %v1189 = vshrl.u32 %v1188, 7
    %v1190 = vsub.s32 1, %v1189
    %v1191 = vrot.slane %v1173, %v1190
    %v1192 = vadd.f32 %v1180, %v1191
    %v1193 = vadd.f32 %v1181, %v1191
    %v1194 = vadd.f32 %v1182, %v1191
    %v1195 = vadd.f32 %v1183, %v1191
    %v1196 = vadd.f32 %v1184, %v1191
    %v1197 = vadd.f32 %v1185, %v1191
    %v1198 = vadd.f32 %v1186, %v1191
    %v1199 = vadd.f32 %v1187, %v1191
    %v1200 = vmax.f32 %v1192, 0.0
    %v1201 = vmax.f32 %v1193, 0.0
    %v1202 = vmax.f32 %v1194, 0.0
    %v1203 = vmax.f32 %v1195, 0.0
    %v1204 = vmax.f32 %v1196, 0.0
    %v1205 = vmax.f32 %v1197, 0.0
    %v1206 = vmax.f32 %v1198, 0.0
    %v1207 = vmax.f32 %v1199, 0.0
    %v1208 = vld [vmem:[#allocation17] sm:$0xff]
    %v1209 = vld [vmem:[#allocation17 + $0x8] sm:$0xff]
    %v1210 = vld [vmem:[#allocation17 + $0x10] sm:$0xff]
    %v1211 = vld [vmem:[#allocation17 + $0x18] sm:$0xff]
    %v1212 = vld [vmem:[#allocation17 + $0x20] sm:$0xff]
    %v1213 = vld [vmem:[#allocation17 + $0x28] sm:$0xff]
    %v1214 = vld [vmem:[#allocation17 + $0x30] sm:$0xff]
    %v1215 = vld [vmem:[#allocation17 + $0x38] sm:$0xff]
    %v1216 = vld [vmem:[#allocation17 + $0x40] sm:$0xff]
    %v1217 = vld [vmem:[#allocation17 + $0x48] sm:$0xff]
    %v1218 = vld [vmem:[#allocation17 + $0x50] sm:$0xff]
    %v1219 = vld [vmem:[#allocation17 + $0x58] sm:$0xff]
    %v1220 = vld [vmem:[#allocation17 + $0x60] sm:$0xff]
    %v1221 = vld [vmem:[#allocation17 + $0x68] sm:$0xff]
    %v1222 = vld [vmem:[#allocation17 + $0x70] sm:$0xff]
    %v1223 = vld [vmem:[#allocation17 + $0x78] sm:$0xff]
    %1224 = vmatprep.subr.mxu0 0.0
    %1225 = vmatpush1.msra.mxu0 %v1208
    %1226 = vmatprep.subr.mxu0 0.0
    %1227 = vmatpush1.msra.mxu0 %v1209
    %1228 = vmatprep.subr.mxu0 0.0
    %1229 = vmatpush1.msra.mxu0 %v1210
    %1230 = vmatprep.subr.mxu0 0.0
    %1231 = vmatpush1.msra.mxu0 %v1211
    %1232 = vmatprep.subr.mxu0 0.0
    %1233 = vmatpush1.msra.mxu0 %v1212
    %1234 = vmatprep.subr.mxu0 0.0
    %1235 = vmatpush1.msra.mxu0 %v1213
    %1236 = vmatprep.subr.mxu0 0.0
    %1237 = vmatpush1.msra.mxu0 %v1214
    %1238 = vmatprep.subr.mxu0 0.0
    %1239 = vmatpush1.msra.mxu0 %v1215
    %1240 = vmatprep.subr.mxu0 0.0
    %1241 = vmatpush1.msra.mxu0 %v1216
    %1242 = vmatprep.subr.mxu0 0.0
    %1243 = vmatpush1.msra.mxu0 %v1217
    %1244 = vmatprep.subr.mxu0 0.0
    %1245 = vmatpush1.msra.mxu0 %v1218
    %1246 = vmatprep.subr.mxu0 0.0
    %1247 = vmatpush1.msra.mxu0 %v1219
    %1248 = vmatprep.subr.mxu0 0.0
    %1249 = vmatpush1.msra.mxu0 %v1220
    %1250 = vmatprep.subr.mxu0 0.0
    %1251 = vmatpush1.msra.mxu0 %v1221
    %1252 = vmatprep.subr.mxu0 0.0
    %1253 = vmatpush1.msra.mxu0 %v1222
    %1254 = vmatprep.subr.mxu0 0.0
    %1255 = vmatpush1.msra.mxu0 %v1223
    %1256 = vmatprep.subr.mxu0 0.0
    %1257 = vmatpush1.msra.mxu0 0.0
    %1258 = vmatprep.subr.mxu0 0.0
    %1259 = vmatpush1.msra.mxu0 0.0
    %1260 = vmatprep.subr.mxu0 0.0
    %1261 = vmatpush1.msra.mxu0 0.0
    %1262 = vmatprep.subr.mxu0 0.0
    %1263 = vmatpush1.msra.mxu0 0.0
    %1264 = vmatprep.subr.mxu0 0.0
    %1265 = vmatpush1.msra.mxu0 0.0
    %1266 = vmatprep.subr.mxu0 0.0
    %1267 = vmatpush1.msra.mxu0 0.0
    %1268 = vmatprep.subr.mxu0 0.0
    %1269 = vmatpush1.msra.mxu0 0.0
    %1270 = vmatprep.subr.mxu0 0.0
    %1271 = vmatpush1.msra.mxu0 0.0
    %1272 = vmatprep.subr.mxu0 0.0
    %1273 = vmatpush1.msra.mxu0 0.0
    %1274 = vmatprep.subr.mxu0 0.0
    %1275 = vmatpush1.msra.mxu0 0.0
    %1276 = vmatprep.subr.mxu0 0.0
    %1277 = vmatpush1.msra.mxu0 0.0
    %1278 = vmatprep.subr.mxu0 0.0
    %1279 = vmatpush1.msra.mxu0 0.0
    %1280 = vmatprep.subr.mxu0 0.0
    %1281 = vmatpush1.msra.mxu0 0.0
    %1282 = vmatprep.subr.mxu0 0.0
    %1283 = vmatpush1.msra.mxu0 0.0
    %1284 = vmatprep.subr.mxu0 0.0
    %1285 = vmatpush1.msra.mxu0 0.0
    %1286 = vmatprep.subr.mxu0 0.0
    %1287 = vmatpush1.msra.mxu0 0.0
    %1288 = vmatprep.mubr.f32.mxu0 0.0
    %1289 = vmatmul.mubr.f32.gmra.mrb[0].mxu0 %v1200
    %v1290 = vpop.f32.mrb[0].mxu0
    %v1291 = vadd.f32 0.0, %v1290
    %v1292 = vpop.f32.mrb[0].mxu0
    %1293 = vmatprep.mubr.f32.mxu0 0.0
    %1294 = vmatmul.mubr.f32.gmra.mrb[0].mxu0 %v1201
    %v1295 = vpop.f32.mrb[0].mxu0
    %v1296 = vadd.f32 0.0, %v1295
    %v1297 = vpop.f32.mrb[0].mxu0
    %1298 = vmatprep.mubr.f32.mxu0 0.0
    %1299 = vmatmul.mubr.f32.gmra.mrb[0].mxu0 %v1202
    %v1300 = vpop.f32.mrb[0].mxu0
    %v1301 = vadd.f32 0.0, %v1300
    %v1302 = vpop.f32.mrb[0].mxu0
    %1303 = vmatprep.mubr.f32.mxu0 0.0
    %1304 = vmatmul.mubr.f32.gmra.mrb[0].mxu0 %v1203
    %v1305 = vpop.f32.mrb[0].mxu0
    %v1306 = vadd.f32 0.0, %v1305
    %v1307 = vpop.f32.mrb[0].mxu0
    %1308 = vmatprep.mubr.f32.mxu0 0.0
    %1309 = vmatmul.mubr.f32.gmra.mrb[0].mxu0 %v1204
    %v1310 = vpop.f32.mrb[0].mxu0
    %v1311 = vadd.f32 0.0, %v1310
    %v1312 = vpop.f32.mrb[0].mxu0
    %1313 = vmatprep.mubr.f32.mxu0 0.0
    %1314 = vmatmul.mubr.f32.gmra.mrb[0].mxu0 %v1205
    %v1315 = vpop.f32.mrb[0].mxu0
    %v1316 = vadd.f32 0.0, %v1315
    %v1317 = vpop.f32.mrb[0].mxu0
    %1318 = vmatprep.mubr.f32.mxu0 0.0
    %1319 = vmatmul.mubr.f32.gmra.mrb[0].mxu0 %v1206
    %v1320 = vpop.f32.mrb[0].mxu0
    %v1321 = vadd.f32 0.0, %v1320
    %v1322 = vpop.f32.mrb[0].mxu0
    %1323 = vmatprep.mubr.f32.mxu0 0.0
    %1324 = vmatmul.mubr.f32.gmra.mrb[0].mxu0 %v1207
    %v1325 = vpop.f32.mrb[0].mxu0
    %v1326 = vadd.f32 0.0, %v1325
    %v1327 = vpop.f32.mrb[0].mxu0
    %1328 = vdwg.mxu0
    %v1329 = vadd.f32 %v1291, %v1296
    %v1330 = vadd.f32 %v1329, %v1301
    %v1331 = vadd.f32 %v1330, %v1306
    %v1332 = vadd.f32 %v1331, %v1311
    %v1333 = vadd.f32 %v1332, %v1316
    %v1334 = vadd.f32 %v1333, %v1321
    %v1335 = vadd.f32 %v1334, %v1326
    %v1336 = vrot.slane %v1335, 4
    %v1337 = vadd.f32 %v1335, %v1336
    %v1338 = vrot.slane %v1337, 2
    %v1339 = vadd.f32 %v1337, %v1338
    %v1340 = vrot.slane %v1339, 1
    %v1341 = vadd.f32 %v1339, %v1340
    %v1342 = vmul.f32 %v1291, %v1291
    %v1343 = vmul.f32 %v1296, %v1296
    %v1344 = vmul.f32 %v1301, %v1301
    %v1345 = vmul.f32 %v1306, %v1306
    %v1346 = vmul.f32 %v1311, %v1311
    %v1347 = vmul.f32 %v1316, %v1316
    %v1348 = vmul.f32 %v1321, %v1321
    %v1349 = vmul.f32 %v1326, %v1326
    %v1350 = vadd.f32 %v1342, %v1343
    %v1351 = vadd.f32 %v1350, %v1344
    %v1352 = vadd.f32 %v1351, %v1345
    %v1353 = vadd.f32 %v1352, %v1346
    %v1354 = vadd.f32 %v1353, %v1347
    %v1355 = vadd.f32 %v1354, %v1348
    %v1356 = vadd.f32 %v1355, %v1349
    %v1357 = vrot.slane %v1356, 4
    %v1358 = vadd.f32 %v1356, %v1357
    %v1359 = vrot.slane %v1358, 2
    %v1360 = vadd.f32 %v1358, %v1359
    %v1361 = vrot.slane %v1360, 1
    %v1362 = vadd.f32 %v1360, %v1361
    %v1363 = vsel %vm571, %v1341, %v1362
    %v1364 = vld [vmem:[%s12] sm:$0xff]
    %v1365 = vld [vmem:[%s12 + $0x8] sm:$0xff]
    %v1366 = vld [vmem:[%s12 + $0x10] sm:$0xff]
    %v1367 = vld [vmem:[%s12 + $0x18] sm:$0xff]
    %v1368 = vld [vmem:[%s12 + $0x20] sm:$0xff]
    %v1369 = vld [vmem:[%s12 + $0x28] sm:$0xff]
    %v1370 = vld [vmem:[%s12 + $0x30] sm:$0xff]
    %v1371 = vld [vmem:[%s12 + $0x38] sm:$0xff]
    %v1372 = vld [vmem:[%s12 + $0x40] sm:$0xff]
    %v1373 = vld [vmem:[%s12 + $0x48] sm:$0xff]
    %v1374 = vld [vmem:[%s12 + $0x50] sm:$0xff]
    %v1375 = vld [vmem:[%s12 + $0x58] sm:$0xff]
    %v1376 = vld [vmem:[%s12 + $0x60] sm:$0xff]
    %v1377 = vld [vmem:[%s12 + $0x68] sm:$0xff]
    %v1378 = vld [vmem:[%s12 + $0x70] sm:$0xff]
    %v1379 = vld [vmem:[%s12 + $0x78] sm:$0xff]
    %1380 = vmatprep.subr.mxu0 0.0
    %1381 = vmatpush1.msra.mxu0 %v1364
    %1382 = vmatprep.subr.mxu0 0.0
    %1383 = vmatpush1.msra.mxu0 %v1365
    %1384 = vmatprep.subr.mxu0 0.0
    %1385 = vmatpush1.msra.mxu0 %v1366
    %1386 = vmatprep.subr.mxu0 0.0
    %1387 = vmatpush1.msra.mxu0 %v1367
    %1388 = vmatprep.subr.mxu0 0.0
    %1389 = vmatpush1.msra.mxu0 %v1368
    %1390 = vmatprep.subr.mxu0 0.0
    %1391 = vmatpush1.msra.mxu0 %v1369
    %1392 = vmatprep.subr.mxu0 0.0
    %1393 = vmatpush1.msra.mxu0 %v1370
    %1394 = vmatprep.subr.mxu0 0.0
    %1395 = vmatpush1.msra.mxu0 %v1371
    %1396 = vmatprep.subr.mxu0 0.0
    %1397 = vmatpush1.msra.mxu0 %v1372
    %1398 = vmatprep.subr.mxu0 0.0
    %1399 = vmatpush1.msra.mxu0 %v1373
    %1400 = vmatprep.subr.mxu0 0.0
    %1401 = vmatpush1.msra.mxu0 %v1374
    %1402 = vmatprep.subr.mxu0 0.0
    %1403 = vmatpush1.msra.mxu0 %v1375
    %1404 = vmatprep.subr.mxu0 0.0
    %1405 = vmatpush1.msra.mxu0 %v1376
    %1406 = vmatprep.subr.mxu0 0.0
    %1407 = vmatpush1.msra.mxu0 %v1377
    %1408 = vmatprep.subr.mxu0 0.0
    %1409 = vmatpush1.msra.mxu0 %v1378
    %1410 = vmatprep.subr.mxu0 0.0
    %1411 = vmatpush1.msra.mxu0 %v1379
    %1412 = vmatprep.subr.mxu0 0.0
    %1413 = vmatpush1.msra.mxu0 0.0
    %1414 = vmatprep.subr.mxu0 0.0
    %1415 = vmatpush1.msra.mxu0 0.0
    %1416 = vmatprep.subr.mxu0 0.0
    %1417 = vmatpush1.msra.mxu0 0.0
    %1418 = vmatprep.subr.mxu0 0.0
    %1419 = vmatpush1.msra.mxu0 0.0
    %1420 = vmatprep.subr.mxu0 0.0
    %1421 = vmatpush1.msra.mxu0 0.0
    %1422 = vmatprep.subr.mxu0 0.0
    %1423 = vmatpush1.msra.mxu0 0.0
    %1424 = vmatprep.subr.mxu0 0.0
    %1425 = vmatpush1.msra.mxu0 0.0
    %1426 = vmatprep.subr.mxu0 0.0
    %1427 = vmatpush1.msra.mxu0 0.0
    %1428 = vmatprep.subr.mxu0 0.0
    %1429 = vmatpush1.msra.mxu0 0.0
    %1430 = vmatprep.subr.mxu0 0.0
    %1431 = vmatpush1.msra.mxu0 0.0
    %1432 = vmatprep.subr.mxu0 0.0
    %1433 = vmatpush1.msra.mxu0 0.0
    %1434 = vmatprep.subr.mxu0 0.0
    %1435 = vmatpush1.msra.mxu0 0.0
    %1436 = vmatprep.subr.mxu0 0.0
    %1437 = vmatpush1.msra.mxu0 0.0
    %1438 = vmatprep.subr.mxu0 0.0
    %1439 = vmatpush1.msra.mxu0 0.0
    %1440 = vmatprep.subr.mxu0 0.0
    %1441 = vmatpush1.msra.mxu0 0.0
    %1442 = vmatprep.subr.mxu0 0.0
    %1443 = vmatpush1.msra.mxu0 0.0
    %1444 = vmatprep.mubr.f32.mxu0 0.0
    %1445 = vmatmul.mubr.f32.gmra.mrb[0].mxu0 %v1363
    %v1446 = vpop.f32.mrb[0].mxu0
    %v1447 = vadd.f32 0.0, %v1446
    %v1448 = vpop.f32.mrb[0].mxu0
    %1449 = vdwg.mxu0
    %v1450 = vmul.f32 %v1447, %v1447
    %v1452 = vrot.slane %v1450, 7
    %v1454 = vsub.f32 %v1447, %v1452
    %v1455 = vmax.f32 %v1454, 0.0
    %v1456 = vld [vmem:[#allocation20] sm:$0x1]
    %v1457 = vadd.f32 %v1455, 1e-05
    %v1458 = vrsqrt.pop %v1457
    %v1461 = vunpack.c.l.s4 1966171168
    %v1462 = vunpack.c.0.s8 %v1461
    %v1463 = vlaneseq
    %v1464 = vshrl.u32 %v1463, 7
    %v1465 = vsub.s32 %v1462, %v1464
    %v1466 = vrot.slane %v1458, %v1465
    %v1467 = vcombine.high %v1466, %v1466
    %v1469 = vunpack.c.l.s4 1966171168
    %v1470 = vunpack.c.0.s8 %v1469
    %v1471 = vlaneseq
    %v1472 = vshrl.u32 %v1471, 7
    %v1473 = vsub.s32 %v1470, %v1472
    %v1474 = vrot.slane %v1467, %v1473
    %v1476 = vmul.f32 %v1456, %v1474
    %v1477 = vld [vmem:[#allocation22] sm:$0x1]
    %v1478 = vmul.f32 %v1447, %v1476
    %v1479 = vsub.f32 %v1477, %v1478
    %v1481 = vlaneseq
    %v1482 = vshrl.u32 %v1481, 7
    %v1483 = vsub.s32 0, %v1482
    %v1484 = vrot.slane %v1479, %v1483
    %v1486 = vsel %vm571, %v1476, %v1484
    %v1487 = vld [vmem:[#allocation19] sm:$0xff]
    %v1488 = vld [vmem:[#allocation19 + $0x8] sm:$0xff]
    %vm1489 = vcmask 130048
    %v1491 = vsel %vm1489, %v1486, 0
    %1493 = vmatprep.subr.mxu0 0.0
    %1494 = vmatpush1.msra.mxu0 %v1487
    %1495 = vmatprep.subr.mxu0 0.0
    %1496 = vmatpush1.msra.mxu0 %v1488
    %1497 = vmatprep.subr.mxu0 0.0
    %1498 = vmatpush1.msra.mxu0 0.0
    %1499 = vmatprep.subr.mxu0 0.0
    %1500 = vmatpush1.msra.mxu0 0.0
    %1501 = vmatprep.subr.mxu0 0.0
    %1502 = vmatpush1.msra.mxu0 0.0
    %1503 = vmatprep.subr.mxu0 0.0
    %1504 = vmatpush1.msra.mxu0 0.0
    %1505 = vmatprep.subr.mxu0 0.0
    %1506 = vmatpush1.msra.mxu0 0.0
    %1507 = vmatprep.subr.mxu0 0.0
    %1508 = vmatpush1.msra.mxu0 0.0
    %1509 = vmatprep.subr.mxu0 0.0
    %1510 = vmatpush1.msra.mxu0 0.0
    %1511 = vmatprep.subr.mxu0 0.0
    %1512 = vmatpush1.msra.mxu0 0.0
    %1513 = vmatprep.subr.mxu0 0.0
    %1514 = vmatpush1.msra.mxu0 0.0
    %1515 = vmatprep.subr.mxu0 0.0
    %1516 = vmatpush1.msra.mxu0 0.0
    %1517 = vmatprep.subr.mxu0 0.0
    %1518 = vmatpush1.msra.mxu0 0.0
    %1519 = vmatprep.subr.mxu0 0.0
    %1520 = vmatpush1.msra.mxu0 0.0
    %1521 = vmatprep.subr.mxu0 0.0
    %1522 = vmatpush1.msra.mxu0 0.0
    %1523 = vmatprep.subr.mxu0 0.0
    %1524 = vmatpush1.msra.mxu0 0.0
    %1525 = vmatprep.subr.mxu0 0.0
    %1526 = vmatpush1.msra.mxu0 0.0
    %1527 = vmatprep.subr.mxu0 0.0
    %1528 = vmatpush1.msra.mxu0 0.0
    %1529 = vmatprep.subr.mxu0 0.0
    %1530 = vmatpush1.msra.mxu0 0.0
    %1531 = vmatprep.subr.mxu0 0.0
    %1532 = vmatpush1.msra.mxu0 0.0
    %1533 = vmatprep.subr.mxu0 0.0
    %1534 = vmatpush1.msra.mxu0 0.0
    %1535 = vmatprep.subr.mxu0 0.0
    %1536 = vmatpush1.msra.mxu0 0.0
    %1537 = vmatprep.subr.mxu0 0.0
    %1538 = vmatpush1.msra.mxu0 0.0
    %1539 = vmatprep.subr.mxu0 0.0
    %1540 = vmatpush1.msra.mxu0 0.0
    %1541 = vmatprep.subr.mxu0 0.0
    %1542 = vmatpush1.msra.mxu0 0.0
    %1543 = vmatprep.subr.mxu0 0.0
    %1544 = vmatpush1.msra.mxu0 0.0
    %1545 = vmatprep.subr.mxu0 0.0
    %1546 = vmatpush1.msra.mxu0 0.0
    %1547 = vmatprep.subr.mxu0 0.0
    %1548 = vmatpush1.msra.mxu0 0.0
    %1549 = vmatprep.subr.mxu0 0.0
    %1550 = vmatpush1.msra.mxu0 0.0
    %1551 = vmatprep.subr.mxu0 0.0
    %1552 = vmatpush1.msra.mxu0 0.0
    %1553 = vmatprep.subr.mxu0 0.0
    %1554 = vmatpush1.msra.mxu0 0.0
    %1555 = vmatprep.subr.mxu0 0.0
    %1556 = vmatpush1.msra.mxu0 0.0
    %1557 = vmatprep.mubr.f32.mxu0 0.0
    %1558 = vmatmul.mubr.f32.gmra.mrb[0].mxu0 %v1491
    %v1559 = vpop.f32.mrb[0].mxu0
    %v1560 = vadd.f32 0.0, %v1559
    %v1561 = vpop.f32.mrb[0].mxu0
    %1562 = vdwg.mxu0
    %v1563 = vlaneseq
    %v1564 = vshrl.u32 %v1563, 7
    %v1565 = vsub.s32 0, %v1564
    %v1566 = vrot.slane %v1560, %v1565
    %v1567 = vmul.f32 %v1291, %v1566
    %v1568 = vmul.f32 %v1296, %v1566
    %v1569 = vmul.f32 %v1301, %v1566
    %v1570 = vmul.f32 %v1306, %v1566
    %v1571 = vmul.f32 %v1311, %v1566
    %v1572 = vmul.f32 %v1316, %v1566
    %v1573 = vmul.f32 %v1321, %v1566
    %v1574 = vmul.f32 %v1326, %v1566
    %v1575 = vlaneseq
    %v1576 = vshrl.u32 %v1575, 7
    %v1577 = vsub.s32 1, %v1576
    %v1578 = vrot.slane %v1560, %v1577
    %v1579 = vadd.f32 %v1567, %v1578
    %v1580 = vadd.f32 %v1568, %v1578
    %v1581 = vadd.f32 %v1569, %v1578
    %v1582 = vadd.f32 %v1570, %v1578
    %v1583 = vadd.f32 %v1571, %v1578
    %v1584 = vadd.f32 %v1572, %v1578
    %v1585 = vadd.f32 %v1573, %v1578
    %v1586 = vadd.f32 %v1574, %v1578
    %v1587 = vmax.f32 %v1579, 0.0
    %v1588 = vmax.f32 %v1580, 0.0
    %v1589 = vmax.f32 %v1581, 0.0
    %v1590 = vmax.f32 %v1582, 0.0
    %v1591 = vmax.f32 %v1583, 0.0
    %v1592 = vmax.f32 %v1584, 0.0
    %v1593 = vmax.f32 %v1585, 0.0
    %v1594 = vmax.f32 %v1586, 0.0
    %v1595 = vld [vmem:[#allocation23] sm:$0xff]
    %v1596 = vld [vmem:[#allocation23 + $0x8] sm:$0xff]
    %v1597 = vld [vmem:[#allocation23 + $0x10] sm:$0xff]
    %v1598 = vld [vmem:[#allocation23 + $0x18] sm:$0xff]
    %v1599 = vld [vmem:[#allocation23 + $0x20] sm:$0xff]
    %v1600 = vld [vmem:[#allocation23 + $0x28] sm:$0xff]
    %v1601 = vld [vmem:[#allocation23 + $0x30] sm:$0xff]
    %v1602 = vld [vmem:[#allocation23 + $0x38] sm:$0xff]
    %v1603 = vld [vmem:[#allocation23 + $0x40] sm:$0xff]
    %v1604 = vld [vmem:[#allocation23 + $0x48] sm:$0xff]
    %v1605 = vld [vmem:[#allocation23 + $0x50] sm:$0xff]
    %v1606 = vld [vmem:[#allocation23 + $0x58] sm:$0xff]
    %v1607 = vld [vmem:[#allocation23 + $0x60] sm:$0xff]
    %v1608 = vld [vmem:[#allocation23 + $0x68] sm:$0xff]
    %v1609 = vld [vmem:[#allocation23 + $0x70] sm:$0xff]
    %v1610 = vld [vmem:[#allocation23 + $0x78] sm:$0xff]
    %v1611 = vld [vmem:[#allocation23 + $0x80] sm:$0xff]
    %v1612 = vld [vmem:[#allocation23 + $0x88] sm:$0xff]
    %v1613 = vld [vmem:[#allocation23 + $0x90] sm:$0xff]
    %v1614 = vld [vmem:[#allocation23 + $0x98] sm:$0xff]
    %v1615 = vld [vmem:[#allocation23 + $0xa0] sm:$0xff]
    %v1616 = vld [vmem:[#allocation23 + $0xa8] sm:$0xff]
    %v1617 = vld [vmem:[#allocation23 + $0xb0] sm:$0xff]
    %v1618 = vld [vmem:[#allocation23 + $0xb8] sm:$0xff]
    %v1619 = vld [vmem:[#allocation23 + $0xc0] sm:$0xff]
    %v1620 = vld [vmem:[#allocation23 + $0xc8] sm:$0xff]
    %v1621 = vld [vmem:[#allocation23 + $0xd0] sm:$0xff]
    %v1622 = vld [vmem:[#allocation23 + $0xd8] sm:$0xff]
    %v1623 = vld [vmem:[#allocation23 + $0xe0] sm:$0xff]
    %v1624 = vld [vmem:[#allocation23 + $0xe8] sm:$0xff]
    %v1625 = vld [vmem:[#allocation23 + $0xf0] sm:$0xff]
    %v1626 = vld [vmem:[#allocation23 + $0xf8] sm:$0xff]
    %1627 = vmatprep.subr.mxu0 %v1596
    %1628 = vmatpush1.msra.mxu0 %v1595
    %1629 = vmatprep.subr.mxu0 %v1598
    %1630 = vmatpush1.msra.mxu0 %v1597
    %1631 = vmatprep.subr.mxu0 %v1600
    %1632 = vmatpush1.msra.mxu0 %v1599
    %1633 = vmatprep.subr.mxu0 %v1602
    %1634 = vmatpush1.msra.mxu0 %v1601
    %1635 = vmatprep.subr.mxu0 %v1604
    %1636 = vmatpush1.msra.mxu0 %v1603
    %1637 = vmatprep.subr.mxu0 %v1606
    %1638 = vmatpush1.msra.mxu0 %v1605
    %1639 = vmatprep.subr.mxu0 %v1608
    %1640 = vmatpush1.msra.mxu0 %v1607
    %1641 = vmatprep.subr.mxu0 %v1610
    %1642 = vmatpush1.msra.mxu0 %v1609
    %1643 = vmatprep.subr.mxu0 %v1612
    %1644 = vmatpush1.msra.mxu0 %v1611
    %1645 = vmatprep.subr.mxu0 %v1614
    %1646 = vmatpush1.msra.mxu0 %v1613
    %1647 = vmatprep.subr.mxu0 %v1616
    %1648 = vmatpush1.msra.mxu0 %v1615
    %1649 = vmatprep.subr.mxu0 %v1618
    %1650 = vmatpush1.msra.mxu0 %v1617
    %1651 = vmatprep.subr.mxu0 %v1620
    %1652 = vmatpush1.msra.mxu0 %v1619
    %1653 = vmatprep.subr.mxu0 %v1622
    %1654 = vmatpush1.msra.mxu0 %v1621
    %1655 = vmatprep.subr.mxu0 %v1624
    %1656 = vmatpush1.msra.mxu0 %v1623
    %1657 = vmatprep.subr.mxu0 %v1626
    %1658 = vmatpush1.msra.mxu0 %v1625
    %1659 = vmatprep.subr.mxu0 0.0
    %1660 = vmatpush1.msra.mxu0 0.0
    %1661 = vmatprep.subr.mxu0 0.0
    %1662 = vmatpush1.msra.mxu0 0.0
    %1663 = vmatprep.subr.mxu0 0.0
    %1664 = vmatpush1.msra.mxu0 0.0
    %1665 = vmatprep.subr.mxu0 0.0
    %1666 = vmatpush1.msra.mxu0 0.0
    %1667 = vmatprep.subr.mxu0 0.0
    %1668 = vmatpush1.msra.mxu0 0.0
    %1669 = vmatprep.subr.mxu0 0.0
    %1670 = vmatpush1.msra.mxu0 0.0
    %1671 = vmatprep.subr.mxu0 0.0
    %1672 = vmatpush1.msra.mxu0 0.0
    %1673 = vmatprep.subr.mxu0 0.0
    %1674 = vmatpush1.msra.mxu0 0.0
    %1675 = vmatprep.subr.mxu0 0.0
    %1676 = vmatpush1.msra.mxu0 0.0
    %1677 = vmatprep.subr.mxu0 0.0
    %1678 = vmatpush1.msra.mxu0 0.0
    %1679 = vmatprep.subr.mxu0 0.0
    %1680 = vmatpush1.msra.mxu0 0.0
    %1681 = vmatprep.subr.mxu0 0.0
    %1682 = vmatpush1.msra.mxu0 0.0
    %1683 = vmatprep.subr.mxu0 0.0
    %1684 = vmatpush1.msra.mxu0 0.0
    %1685 = vmatprep.subr.mxu0 0.0
    %1686 = vmatpush1.msra.mxu0 0.0
    %1687 = vmatprep.subr.mxu0 0.0
    %1688 = vmatpush1.msra.mxu0 0.0
    %1689 = vmatprep.subr.mxu0 0.0
    %1690 = vmatpush1.msra.mxu0 0.0
    %1691 = vmatprep.mubr.f32.mxu0 0.0
    %1692 = vmatmul.mubr.f32.gmra.mrb[0].mxu0 %v1587
    %v1693 = vpop.f32.mrb[0].mxu0
    %v1694 = vadd.f32 0.0, %v1693
    %v1695 = vpop.f32.mrb[0].mxu0
    %v1696 = vadd.f32 0.0, %v1695
    %1697 = vmatprep.mubr.f32.mxu0 0.0
    %1698 = vmatmul.mubr.f32.gmra.mrb[0].mxu0 %v1588
    %v1699 = vpop.f32.mrb[0].mxu0
    %v1700 = vadd.f32 0.0, %v1699
    %v1701 = vpop.f32.mrb[0].mxu0
    %v1702 = vadd.f32 0.0, %v1701
    %1703 = vmatprep.mubr.f32.mxu0 0.0
    %1704 = vmatmul.mubr.f32.gmra.mrb[0].mxu0 %v1589
    %v1705 = vpop.f32.mrb[0].mxu0
    %v1706 = vadd.f32 0.0, %v1705
    %v1707 = vpop.f32.mrb[0].mxu0
    %v1708 = vadd.f32 0.0, %v1707
    %1709 = vmatprep.mubr.f32.mxu0 0.0
    %1710 = vmatmul.mubr.f32.gmra.mrb[0].mxu0 %v1590
    %v1711 = vpop.f32.mrb[0].mxu0
    %v1712 = vadd.f32 0.0, %v1711
    %v1713 = vpop.f32.mrb[0].mxu0
    %v1714 = vadd.f32 0.0, %v1713
    %1715 = vmatprep.mubr.f32.mxu0 0.0
    %1716 = vmatmul.mubr.f32.gmra.mrb[0].mxu0 %v1591
    %v1717 = vpop.f32.mrb[0].mxu0
    %v1718 = vadd.f32 0.0, %v1717
    %v1719 = vpop.f32.mrb[0].mxu0
    %v1720 = vadd.f32 0.0, %v1719
    %1721 = vmatprep.mubr.f32.mxu0 0.0
    %1722 = vmatmul.mubr.f32.gmra.mrb[0].mxu0 %v1592
    %v1723 = vpop.f32.mrb[0].mxu0
    %v1724 = vadd.f32 0.0, %v1723
    %v1725 = vpop.f32.mrb[0].mxu0
    %v1726 = vadd.f32 0.0, %v1725
    %1727 = vmatprep.mubr.f32.mxu0 0.0
    %1728 = vmatmul.mubr.f32.gmra.mrb[0].mxu0 %v1593
    %v1729 = vpop.f32.mrb[0].mxu0
    %v1730 = vadd.f32 0.0, %v1729
    %v1731 = vpop.f32.mrb[0].mxu0
    %v1732 = vadd.f32 0.0, %v1731
    %1733 = vmatprep.mubr.f32.mxu0 0.0
    %1734 = vmatmul.mubr.f32.gmra.mrb[0].mxu0 %v1594
    %v1735 = vpop.f32.mrb[0].mxu0
    %v1736 = vadd.f32 0.0, %v1735
    %v1737 = vpop.f32.mrb[0].mxu0
    %v1738 = vadd.f32 0.0, %v1737
    %1739 = vdwg.mxu0
    %v1740 = vadd.f32 %v1694, %v1700
    %v1741 = vadd.f32 %v1740, %v1706
    %v1742 = vadd.f32 %v1741, %v1712
    %v1743 = vadd.f32 %v1742, %v1718
    %v1744 = vadd.f32 %v1743, %v1724
    %v1745 = vadd.f32 %v1744, %v1730
    %v1746 = vadd.f32 %v1745, %v1736
    %v1747 = vrot.slane %v1746, 4
    %v1748 = vadd.f32 %v1746, %v1747
    %v1749 = vrot.slane %v1748, 2
    %v1750 = vadd.f32 %v1748, %v1749
    %v1751 = vrot.slane %v1750, 1
    %v1752 = vadd.f32 %v1750, %v1751
    %v1753 = vadd.f32 %v1696, %v1702
    %v1754 = vadd.f32 %v1753, %v1708
    %v1755 = vadd.f32 %v1754, %v1714
    %v1756 = vadd.f32 %v1755, %v1720
    %v1757 = vadd.f32 %v1756, %v1726
    %v1758 = vadd.f32 %v1757, %v1732
    %v1759 = vadd.f32 %v1758, %v1738
    %v1760 = vrot.slane %v1759, 4
    %v1761 = vadd.f32 %v1759, %v1760
    %v1762 = vrot.slane %v1761, 2
    %v1763 = vadd.f32 %v1761, %v1762
    %v1764 = vrot.slane %v1763, 1
    %v1765 = vadd.f32 %v1763, %v1764
    %v1766 = vmul.f32 %v1694, %v1694
    %v1767 = vmul.f32 %v1696, %v1696
    %v1768 = vmul.f32 %v1700, %v1700
    %v1769 = vmul.f32 %v1702, %v1702
    %v1770 = vmul.f32 %v1706, %v1706
    %v1771 = vmul.f32 %v1708, %v1708
    %v1772 = vmul.f32 %v1712, %v1712
    %v1773 = vmul.f32 %v1714, %v1714
    %v1774 = vmul.f32 %v1718, %v1718
    %v1775 = vmul.f32 %v1720, %v1720
    %v1776 = vmul.f32 %v1724, %v1724
    %v1777 = vmul.f32 %v1726, %v1726
    %v1778 = vmul.f32 %v1730, %v1730
    %v1779 = vmul.f32 %v1732, %v1732
    %v1780 = vmul.f32 %v1736, %v1736
    %v1781 = vmul.f32 %v1738, %v1738
    %v1782 = vadd.f32 %v1766, %v1768
    %v1783 = vadd.f32 %v1782, %v1770
    %v1784 = vadd.f32 %v1783, %v1772
    %v1785 = vadd.f32 %v1784, %v1774
    %v1786 = vadd.f32 %v1785, %v1776
    %v1787 = vadd.f32 %v1786, %v1778
    %v1788 = vadd.f32 %v1787, %v1780
    %v1789 = vrot.slane %v1788, 4
    %v1790 = vadd.f32 %v1788, %v1789
    %v1791 = vrot.slane %v1790, 2
    %v1792 = vadd.f32 %v1790, %v1791
    %v1793 = vrot.slane %v1792, 1
    %v1794 = vadd.f32 %v1792, %v1793
    %v1795 = vadd.f32 %v1767, %v1769
    %v1796 = vadd.f32 %v1795, %v1771
    %v1797 = vadd.f32 %v1796, %v1773
    %v1798 = vadd.f32 %v1797, %v1775
    %v1799 = vadd.f32 %v1798, %v1777
    %v1800 = vadd.f32 %v1799, %v1779
    %v1801 = vadd.f32 %v1800, %v1781
    %v1802 = vrot.slane %v1801, 4
    %v1803 = vadd.f32 %v1801, %v1802
    %v1804 = vrot.slane %v1803, 2
    %v1805 = vadd.f32 %v1803, %v1804
    %v1806 = vrot.slane %v1805, 1
    %v1807 = vadd.f32 %v1805, %v1806
    %v1808 = vsel %vm571, %v1752, %v1794
    %v1809 = vsel %vm571, %v1765, %v1807
    %v1810 = vld [vmem:[%s17] sm:$0xff]
    %v1811 = vld [vmem:[%s17 + $0x8] sm:$0xff]
    %v1812 = vld [vmem:[%s17 + $0x10] sm:$0xff]
    %v1813 = vld [vmem:[%s17 + $0x18] sm:$0xff]
    %v1814 = vld [vmem:[%s17 + $0x20] sm:$0xff]
    %v1815 = vld [vmem:[%s17 + $0x28] sm:$0xff]
    %v1816 = vld [vmem:[%s17 + $0x30] sm:$0xff]
    %v1817 = vld [vmem:[%s17 + $0x38] sm:$0xff]
    %v1818 = vld [vmem:[%s17 + $0x40] sm:$0xff]
    %v1819 = vld [vmem:[%s17 + $0x48] sm:$0xff]
    %v1820 = vld [vmem:[%s17 + $0x50] sm:$0xff]
    %v1821 = vld [vmem:[%s17 + $0x58] sm:$0xff]
    %v1822 = vld [vmem:[%s17 + $0x60] sm:$0xff]
    %v1823 = vld [vmem:[%s17 + $0x68] sm:$0xff]
    %v1824 = vld [vmem:[%s17 + $0x70] sm:$0xff]
    %v1825 = vld [vmem:[%s17 + $0x78] sm:$0xff]
    %v1826 = vld [vmem:[%s17 + $0x80] sm:$0xff]
    %v1827 = vld [vmem:[%s17 + $0x88] sm:$0xff]
    %v1828 = vld [vmem:[%s17 + $0x90] sm:$0xff]
    %v1829 = vld [vmem:[%s17 + $0x98] sm:$0xff]
    %v1830 = vld [vmem:[%s17 + $0xa0] sm:$0xff]
    %v1831 = vld [vmem:[%s17 + $0xa8] sm:$0xff]
    %v1832 = vld [vmem:[%s17 + $0xb0] sm:$0xff]
    %v1833 = vld [vmem:[%s17 + $0xb8] sm:$0xff]
    %v1834 = vld [vmem:[%s17 + $0xc0] sm:$0xff]
    %v1835 = vld [vmem:[%s17 + $0xc8] sm:$0xff]
    %v1836 = vld [vmem:[%s17 + $0xd0] sm:$0xff]
    %v1837 = vld [vmem:[%s17 + $0xd8] sm:$0xff]
    %v1838 = vld [vmem:[%s17 + $0xe0] sm:$0xff]
    %v1839 = vld [vmem:[%s17 + $0xe8] sm:$0xff]
    %v1840 = vld [vmem:[%s17 + $0xf0] sm:$0xff]
    %v1841 = vld [vmem:[%s17 + $0xf8] sm:$0xff]
    %1842 = vmatprep.subr.mxu0 0.0
    %1843 = vmatpush1.msra.mxu0 %v1810
    %1844 = vmatprep.subr.mxu0 0.0
    %1845 = vmatpush1.msra.mxu0 %v1811
    %1846 = vmatprep.subr.mxu0 0.0
    %1847 = vmatpush1.msra.mxu0 %v1812
    %1848 = vmatprep.subr.mxu0 0.0
    %1849 = vmatpush1.msra.mxu0 %v1813
    %1850 = vmatprep.subr.mxu0 0.0
    %1851 = vmatpush1.msra.mxu0 %v1814
    %1852 = vmatprep.subr.mxu0 0.0
    %1853 = vmatpush1.msra.mxu0 %v1815
    %1854 = vmatprep.subr.mxu0 0.0
    %1855 = vmatpush1.msra.mxu0 %v1816
    %1856 = vmatprep.subr.mxu0 0.0
    %1857 = vmatpush1.msra.mxu0 %v1817
    %1858 = vmatprep.subr.mxu0 0.0
    %1859 = vmatpush1.msra.mxu0 %v1818
    %1860 = vmatprep.subr.mxu0 0.0
    %1861 = vmatpush1.msra.mxu0 %v1819
    %1862 = vmatprep.subr.mxu0 0.0
    %1863 = vmatpush1.msra.mxu0 %v1820
    %1864 = vmatprep.subr.mxu0 0.0
    %1865 = vmatpush1.msra.mxu0 %v1821
    %1866 = vmatprep.subr.mxu0 0.0
    %1867 = vmatpush1.msra.mxu0 %v1822
    %1868 = vmatprep.subr.mxu0 0.0
    %1869 = vmatpush1.msra.mxu0 %v1823
    %1870 = vmatprep.subr.mxu0 0.0
    %1871 = vmatpush1.msra.mxu0 %v1824
    %1872 = vmatprep.subr.mxu0 0.0
    %1873 = vmatpush1.msra.mxu0 %v1825
    %1874 = vmatprep.subr.mxu0 0.0
    %1875 = vmatpush1.msra.mxu0 %v1826
    %1876 = vmatprep.subr.mxu0 0.0
    %1877 = vmatpush1.msra.mxu0 %v1827
    %1878 = vmatprep.subr.mxu0 0.0
    %1879 = vmatpush1.msra.mxu0 %v1828
    %1880 = vmatprep.subr.mxu0 0.0
    %1881 = vmatpush1.msra.mxu0 %v1829
    %1882 = vmatprep.subr.mxu0 0.0
    %1883 = vmatpush1.msra.mxu0 %v1830
    %1884 = vmatprep.subr.mxu0 0.0
    %1885 = vmatpush1.msra.mxu0 %v1831
    %1886 = vmatprep.subr.mxu0 0.0
    %1887 = vmatpush1.msra.mxu0 %v1832
    %1888 = vmatprep.subr.mxu0 0.0
    %1889 = vmatpush1.msra.mxu0 %v1833
    %1890 = vmatprep.subr.mxu0 0.0
    %1891 = vmatpush1.msra.mxu0 %v1834
    %1892 = vmatprep.subr.mxu0 0.0
    %1893 = vmatpush1.msra.mxu0 %v1835
    %1894 = vmatprep.subr.mxu0 0.0
    %1895 = vmatpush1.msra.mxu0 %v1836
    %1896 = vmatprep.subr.mxu0 0.0
    %1897 = vmatpush1.msra.mxu0 %v1837
    %1898 = vmatprep.subr.mxu0 0.0
    %1899 = vmatpush1.msra.mxu0 %v1838
    %1900 = vmatprep.subr.mxu0 0.0
    %1901 = vmatpush1.msra.mxu0 %v1839
    %1902 = vmatprep.subr.mxu0 0.0
    %1903 = vmatpush1.msra.mxu0 %v1840
    %1904 = vmatprep.subr.mxu0 0.0
    %1905 = vmatpush1.msra.mxu0 %v1841
    %1906 = vmatprep.mubr.f32.mxu0 %v1809
    %1907 = vmatmul.mubr.f32.gmra.mrb[0].mxu0 %v1808
    %v1908 = vpop.f32.mrb[0].mxu0
    %v1909 = vadd.f32 0.0, %v1908
    %v1910 = vpop.f32.mrb[0].mxu0
    %1911 = vdwg.mxu0
    %v1912 = vmul.f32 %v1909, %v1909
    %v1914 = vrot.slane %v1912, 7
    %v1916 = vsub.f32 %v1909, %v1914
    %v1917 = vmax.f32 %v1916, 0.0
    %v1918 = vld [vmem:[#allocation26] sm:$0x1]
    %v1919 = vadd.f32 %v1917, 1e-05
    %v1920 = vrsqrt.pop %v1919
    %v1923 = vunpack.c.l.s4 1966171168
    %v1924 = vunpack.c.0.s8 %v1923
    %v1925 = vlaneseq
    %v1926 = vshrl.u32 %v1925, 7
    %v1927 = vsub.s32 %v1924, %v1926
    %v1928 = vrot.slane %v1920, %v1927
    %v1929 = vcombine.high %v1928, %v1928
    %v1931 = vunpack.c.l.s4 1966171168
    %v1932 = vunpack.c.0.s8 %v1931
    %v1933 = vlaneseq
    %v1934 = vshrl.u32 %v1933, 7
    %v1935 = vsub.s32 %v1932, %v1934
    %v1936 = vrot.slane %v1929, %v1935
    %v1938 = vmul.f32 %v1918, %v1936
    %v1939 = vld [vmem:[#allocation28] sm:$0x1]
    %v1940 = vmul.f32 %v1909, %v1938
    %v1941 = vsub.f32 %v1939, %v1940
    %v1943 = vlaneseq
    %v1944 = vshrl.u32 %v1943, 7
    %v1945 = vsub.s32 0, %v1944
    %v1946 = vrot.slane %v1941, %v1945
    %v1948 = vsel %vm571, %v1938, %v1946
    %v1949 = vld [vmem:[#allocation25] sm:$0xff]
    %v1950 = vld [vmem:[#allocation25 + $0x8] sm:$0xff]
    %v1951 = vld [vmem:[#allocation25 + $0x10] sm:$0xff]
    %v1952 = vld [vmem:[#allocation25 + $0x18] sm:$0xff]
    %v1954 = vsel %vm1489, %v1948, 0
    %1956 = vmatprep.subr.mxu0 %v1950
    %1957 = vmatpush1.msra.mxu0 %v1949
    %1958 = vmatprep.subr.mxu0 %v1952
    %1959 = vmatpush1.msra.mxu0 %v1951
    %1960 = vmatprep.subr.mxu0 0.0
    %1961 = vmatpush1.msra.mxu0 0.0
    %1962 = vmatprep.subr.mxu0 0.0
    %1963 = vmatpush1.msra.mxu0 0.0
    %1964 = vmatprep.subr.mxu0 0.0
    %1965 = vmatpush1.msra.mxu0 0.0
    %1966 = vmatprep.subr.mxu0 0.0
    %1967 = vmatpush1.msra.mxu0 0.0
    %1968 = vmatprep.subr.mxu0 0.0
    %1969 = vmatpush1.msra.mxu0 0.0
    %1970 = vmatprep.subr.mxu0 0.0
    %1971 = vmatpush1.msra.mxu0 0.0
    %1972 = vmatprep.subr.mxu0 0.0
    %1973 = vmatpush1.msra.mxu0 0.0
    %1974 = vmatprep.subr.mxu0 0.0
    %1975 = vmatpush1.msra.mxu0 0.0
    %1976 = vmatprep.subr.mxu0 0.0
    %1977 = vmatpush1.msra.mxu0 0.0
    %1978 = vmatprep.subr.mxu0 0.0
    %1979 = vmatpush1.msra.mxu0 0.0
    %1980 = vmatprep.subr.mxu0 0.0
    %1981 = vmatpush1.msra.mxu0 0.0
    %1982 = vmatprep.subr.mxu0 0.0
    %1983 = vmatpush1.msra.mxu0 0.0
    %1984 = vmatprep.subr.mxu0 0.0
    %1985 = vmatpush1.msra.mxu0 0.0
    %1986 = vmatprep.subr.mxu0 0.0
    %1987 = vmatpush1.msra.mxu0 0.0
    %1988 = vmatprep.subr.mxu0 0.0
    %1989 = vmatpush1.msra.mxu0 0.0
    %1990 = vmatprep.subr.mxu0 0.0
    %1991 = vmatpush1.msra.mxu0 0.0
    %1992 = vmatprep.subr.mxu0 0.0
    %1993 = vmatpush1.msra.mxu0 0.0
    %1994 = vmatprep.subr.mxu0 0.0
    %1995 = vmatpush1.msra.mxu0 0.0
    %1996 = vmatprep.subr.mxu0 0.0
    %1997 = vmatpush1.msra.mxu0 0.0
    %1998 = vmatprep.subr.mxu0 0.0
    %1999 = vmatpush1.msra.mxu0 0.0
    %2000 = vmatprep.subr.mxu0 0.0
    %2001 = vmatpush1.msra.mxu0 0.0
    %2002 = vmatprep.subr.mxu0 0.0
    %2003 = vmatpush1.msra.mxu0 0.0
    %2004 = vmatprep.subr.mxu0 0.0
    %2005 = vmatpush1.msra.mxu0 0.0
    %2006 = vmatprep.subr.mxu0 0.0
    %2007 = vmatpush1.msra.mxu0 0.0
    %2008 = vmatprep.subr.mxu0 0.0
    %2009 = vmatpush1.msra.mxu0 0.0
    %2010 = vmatprep.subr.mxu0 0.0
    %2011 = vmatpush1.msra.mxu0 0.0
    %2012 = vmatprep.subr.mxu0 0.0
    %2013 = vmatpush1.msra.mxu0 0.0
    %2014 = vmatprep.subr.mxu0 0.0
    %2015 = vmatpush1.msra.mxu0 0.0
    %2016 = vmatprep.subr.mxu0 0.0
    %2017 = vmatpush1.msra.mxu0 0.0
    %2018 = vmatprep.subr.mxu0 0.0
    %2019 = vmatpush1.msra.mxu0 0.0
    %2020 = vmatprep.mubr.f32.mxu0 0.0
    %2021 = vmatmul.mubr.f32.gmra.mrb[0].mxu0 %v1954
    %v2022 = vpop.f32.mrb[0].mxu0
    %v2023 = vadd.f32 0.0, %v2022
    %v2024 = vpop.f32.mrb[0].mxu0
    %v2025 = vadd.f32 0.0, %v2024
    %2026 = vdwg.mxu0
    %v2027 = vlaneseq
    %v2028 = vshrl.u32 %v2027, 7
    %v2029 = vsub.s32 0, %v2028
    %v2030 = vrot.slane %v2023, %v2029
    %v2031 = vlaneseq
    %v2032 = vshrl.u32 %v2031, 7
    %v2033 = vsub.s32 0, %v2032
    %v2034 = vrot.slane %v2025, %v2033
    %v2035 = vmul.f32 %v1694, %v2030
    %v2036 = vmul.f32 %v1696, %v2034
    %v2037 = vmul.f32 %v1700, %v2030
    %v2038 = vmul.f32 %v1702, %v2034
    %v2039 = vmul.f32 %v1706, %v2030
    %v2040 = vmul.f32 %v1708, %v2034
    %v2041 = vmul.f32 %v1712, %v2030
    %v2042 = vmul.f32 %v1714, %v2034
    %v2043 = vmul.f32 %v1718, %v2030
    %v2044 = vmul.f32 %v1720, %v2034
    %v2045 = vmul.f32 %v1724, %v2030
    %v2046 = vmul.f32 %v1726, %v2034
    %v2047 = vmul.f32 %v1730, %v2030
    %v2048 = vmul.f32 %v1732, %v2034
    %v2049 = vmul.f32 %v1736, %v2030
    %v2050 = vmul.f32 %v1738, %v2034
    %v2051 = vlaneseq
    %v2052 = vshrl.u32 %v2051, 7
    %v2053 = vsub.s32 1, %v2052
    %v2054 = vrot.slane %v2023, %v2053
    %v2055 = vlaneseq
    %v2056 = vshrl.u32 %v2055, 7
    %v2057 = vsub.s32 1, %v2056
    %v2058 = vrot.slane %v2025, %v2057
    %v2059 = vadd.f32 %v2035, %v2054
    %v2060 = vadd.f32 %v2036, %v2058
    %v2061 = vadd.f32 %v2037, %v2054
    %v2062 = vadd.f32 %v2038, %v2058
    %v2063 = vadd.f32 %v2039, %v2054
    %v2064 = vadd.f32 %v2040, %v2058
    %v2065 = vadd.f32 %v2041, %v2054
    %v2066 = vadd.f32 %v2042, %v2058
    %v2067 = vadd.f32 %v2043, %v2054
    %v2068 = vadd.f32 %v2044, %v2058
    %v2069 = vadd.f32 %v2045, %v2054
    %v2070 = vadd.f32 %v2046, %v2058
    %v2071 = vadd.f32 %v2047, %v2054
    %v2072 = vadd.f32 %v2048, %v2058
    %v2073 = vadd.f32 %v2049, %v2054
    %v2074 = vadd.f32 %v2050, %v2058
    %v2075 = vmax.f32 %v2059, 0.0
    %v2076 = vmax.f32 %v2060, 0.0
    %v2077 = vmax.f32 %v2061, 0.0
    %v2078 = vmax.f32 %v2062, 0.0
    %v2079 = vmax.f32 %v2063, 0.0
    %v2080 = vmax.f32 %v2064, 0.0
    %v2081 = vmax.f32 %v2065, 0.0
    %v2082 = vmax.f32 %v2066, 0.0
    %v2083 = vmax.f32 %v2067, 0.0
    %v2084 = vmax.f32 %v2068, 0.0
    %v2085 = vmax.f32 %v2069, 0.0
    %v2086 = vmax.f32 %v2070, 0.0
    %v2087 = vmax.f32 %v2071, 0.0
    %v2088 = vmax.f32 %v2072, 0.0
    %v2089 = vmax.f32 %v2073, 0.0
    %v2090 = vmax.f32 %v2074, 0.0
    %v2091 = vld [vmem:[#allocation29] sm:$0xff]
    %v2092 = vld [vmem:[#allocation29 + $0x8] sm:$0xff]
    %v2093 = vld [vmem:[#allocation29 + $0x10] sm:$0xff]
    %v2094 = vld [vmem:[#allocation29 + $0x18] sm:$0xff]
    %v2095 = vld [vmem:[#allocation29 + $0x20] sm:$0xff]
    %v2096 = vld [vmem:[#allocation29 + $0x28] sm:$0xff]
    %v2097 = vld [vmem:[#allocation29 + $0x30] sm:$0xff]
    %v2098 = vld [vmem:[#allocation29 + $0x38] sm:$0xff]
    %v2099 = vld [vmem:[#allocation29 + $0x40] sm:$0xff]
    %v2100 = vld [vmem:[#allocation29 + $0x48] sm:$0xff]
    %v2101 = vld [vmem:[#allocation29 + $0x50] sm:$0xff]
    %v2102 = vld [vmem:[#allocation29 + $0x58] sm:$0xff]
    %v2103 = vld [vmem:[#allocation29 + $0x60] sm:$0xff]
    %v2104 = vld [vmem:[#allocation29 + $0x68] sm:$0xff]
    %v2105 = vld [vmem:[#allocation29 + $0x70] sm:$0xff]
    %v2106 = vld [vmem:[#allocation29 + $0x78] sm:$0xff]
    %v2107 = vld [vmem:[#allocation29 + $0x80] sm:$0xff]
    %v2108 = vld [vmem:[#allocation29 + $0x88] sm:$0xff]
    %v2109 = vld [vmem:[#allocation29 + $0x90] sm:$0xff]
    %v2110 = vld [vmem:[#allocation29 + $0x98] sm:$0xff]
    %v2111 = vld [vmem:[#allocation29 + $0xa0] sm:$0xff]
    %v2112 = vld [vmem:[#allocation29 + $0xa8] sm:$0xff]
    %v2113 = vld [vmem:[#allocation29 + $0xb0] sm:$0xff]
    %v2114 = vld [vmem:[#allocation29 + $0xb8] sm:$0xff]
    %v2115 = vld [vmem:[#allocation29 + $0xc0] sm:$0xff]
    %v2116 = vld [vmem:[#allocation29 + $0xc8] sm:$0xff]
    %v2117 = vld [vmem:[#allocation29 + $0xd0] sm:$0xff]
    %v2118 = vld [vmem:[#allocation29 + $0xd8] sm:$0xff]
    %v2119 = vld [vmem:[#allocation29 + $0xe0] sm:$0xff]
    %v2120 = vld [vmem:[#allocation29 + $0xe8] sm:$0xff]
    %v2121 = vld [vmem:[#allocation29 + $0xf0] sm:$0xff]
    %v2122 = vld [vmem:[#allocation29 + $0xf8] sm:$0xff]
    %v2123 = vld [vmem:[#allocation29 + $0x100] sm:$0xff]
    %v2124 = vld [vmem:[#allocation29 + $0x108] sm:$0xff]
    %v2125 = vld [vmem:[#allocation29 + $0x110] sm:$0xff]
    %v2126 = vld [vmem:[#allocation29 + $0x118] sm:$0xff]
    %v2127 = vld [vmem:[#allocation29 + $0x120] sm:$0xff]
    %v2128 = vld [vmem:[#allocation29 + $0x128] sm:$0xff]
    %v2129 = vld [vmem:[#allocation29 + $0x130] sm:$0xff]
    %v2130 = vld [vmem:[#allocation29 + $0x138] sm:$0xff]
    %v2131 = vld [vmem:[#allocation29 + $0x140] sm:$0xff]
    %v2132 = vld [vmem:[#allocation29 + $0x148] sm:$0xff]
    %v2133 = vld [vmem:[#allocation29 + $0x150] sm:$0xff]
    %v2134 = vld [vmem:[#allocation29 + $0x158] sm:$0xff]
    %v2135 = vld [vmem:[#allocation29 + $0x160] sm:$0xff]
    %v2136 = vld [vmem:[#allocation29 + $0x168] sm:$0xff]
    %v2137 = vld [vmem:[#allocation29 + $0x170] sm:$0xff]
    %v2138 = vld [vmem:[#allocation29 + $0x178] sm:$0xff]
    %v2139 = vld [vmem:[#allocation29 + $0x180] sm:$0xff]
    %v2140 = vld [vmem:[#allocation29 + $0x188] sm:$0xff]
    %v2141 = vld [vmem:[#allocation29 + $0x190] sm:$0xff]
    %v2142 = vld [vmem:[#allocation29 + $0x198] sm:$0xff]
    %v2143 = vld [vmem:[#allocation29 + $0x1a0] sm:$0xff]
    %v2144 = vld [vmem:[#allocation29 + $0x1a8] sm:$0xff]
    %v2145 = vld [vmem:[#allocation29 + $0x1b0] sm:$0xff]
    %v2146 = vld [vmem:[#allocation29 + $0x1b8] sm:$0xff]
    %v2147 = vld [vmem:[#allocation29 + $0x1c0] sm:$0xff]
    %v2148 = vld [vmem:[#allocation29 + $0x1c8] sm:$0xff]
    %v2149 = vld [vmem:[#allocation29 + $0x1d0] sm:$0xff]
    %v2150 = vld [vmem:[#allocation29 + $0x1d8] sm:$0xff]
    %v2151 = vld [vmem:[#allocation29 + $0x1e0] sm:$0xff]
    %v2152 = vld [vmem:[#allocation29 + $0x1e8] sm:$0xff]
    %v2153 = vld [vmem:[#allocation29 + $0x1f0] sm:$0xff]
    %v2154 = vld [vmem:[#allocation29 + $0x1f8] sm:$0xff]
    %v2155 = vld [vmem:[#allocation29 + $0x200] sm:$0xff]
    %v2156 = vld [vmem:[#allocation29 + $0x208] sm:$0xff]
    %v2157 = vld [vmem:[#allocation29 + $0x210] sm:$0xff]
    %v2158 = vld [vmem:[#allocation29 + $0x218] sm:$0xff]
    %v2159 = vld [vmem:[#allocation29 + $0x220] sm:$0xff]
    %v2160 = vld [vmem:[#allocation29 + $0x228] sm:$0xff]
    %v2161 = vld [vmem:[#allocation29 + $0x230] sm:$0xff]
    %v2162 = vld [vmem:[#allocation29 + $0x238] sm:$0xff]
    %v2163 = vld [vmem:[#allocation29 + $0x240] sm:$0xff]
    %v2164 = vld [vmem:[#allocation29 + $0x248] sm:$0xff]
    %v2165 = vld [vmem:[#allocation29 + $0x250] sm:$0xff]
    %v2166 = vld [vmem:[#allocation29 + $0x258] sm:$0xff]
    %v2167 = vld [vmem:[#allocation29 + $0x260] sm:$0xff]
    %v2168 = vld [vmem:[#allocation29 + $0x268] sm:$0xff]
    %v2169 = vld [vmem:[#allocation29 + $0x270] sm:$0xff]
    %v2170 = vld [vmem:[#allocation29 + $0x278] sm:$0xff]
    %v2171 = vld [vmem:[#allocation29 + $0x280] sm:$0xff]
    %v2172 = vld [vmem:[#allocation29 + $0x288] sm:$0xff]
    %v2173 = vld [vmem:[#allocation29 + $0x290] sm:$0xff]
    %v2174 = vld [vmem:[#allocation29 + $0x298] sm:$0xff]
    %v2175 = vld [vmem:[#allocation29 + $0x2a0] sm:$0xff]
    %v2176 = vld [vmem:[#allocation29 + $0x2a8] sm:$0xff]
    %v2177 = vld [vmem:[#allocation29 + $0x2b0] sm:$0xff]
    %v2178 = vld [vmem:[#allocation29 + $0x2b8] sm:$0xff]
    %v2179 = vld [vmem:[#allocation29 + $0x2c0] sm:$0xff]
    %v2180 = vld [vmem:[#allocation29 + $0x2c8] sm:$0xff]
    %v2181 = vld [vmem:[#allocation29 + $0x2d0] sm:$0xff]
    %v2182 = vld [vmem:[#allocation29 + $0x2d8] sm:$0xff]
    %v2183 = vld [vmem:[#allocation29 + $0x2e0] sm:$0xff]
    %v2184 = vld [vmem:[#allocation29 + $0x2e8] sm:$0xff]
    %v2185 = vld [vmem:[#allocation29 + $0x2f0] sm:$0xff]
    %v2186 = vld [vmem:[#allocation29 + $0x2f8] sm:$0xff]
    %v2187 = vld [vmem:[#allocation29 + $0x300] sm:$0xff]
    %v2188 = vld [vmem:[#allocation29 + $0x308] sm:$0xff]
    %v2189 = vld [vmem:[#allocation29 + $0x310] sm:$0xff]
    %v2190 = vld [vmem:[#allocation29 + $0x318] sm:$0xff]
    %v2191 = vld [vmem:[#allocation29 + $0x320] sm:$0xff]
    %v2192 = vld [vmem:[#allocation29 + $0x328] sm:$0xff]
    %v2193 = vld [vmem:[#allocation29 + $0x330] sm:$0xff]
    %v2194 = vld [vmem:[#allocation29 + $0x338] sm:$0xff]
    %v2195 = vld [vmem:[#allocation29 + $0x340] sm:$0xff]
    %v2196 = vld [vmem:[#allocation29 + $0x348] sm:$0xff]
    %v2197 = vld [vmem:[#allocation29 + $0x350] sm:$0xff]
    %v2198 = vld [vmem:[#allocation29 + $0x358] sm:$0xff]
    %v2199 = vld [vmem:[#allocation29 + $0x360] sm:$0xff]
    %v2200 = vld [vmem:[#allocation29 + $0x368] sm:$0xff]
    %v2201 = vld [vmem:[#allocation29 + $0x370] sm:$0xff]
    %v2202 = vld [vmem:[#allocation29 + $0x378] sm:$0xff]
    %v2203 = vld [vmem:[#allocation29 + $0x380] sm:$0xff]
    %v2204 = vld [vmem:[#allocation29 + $0x388] sm:$0xff]
    %v2205 = vld [vmem:[#allocation29 + $0x390] sm:$0xff]
    %v2206 = vld [vmem:[#allocation29 + $0x398] sm:$0xff]
    %v2207 = vld [vmem:[#allocation29 + $0x3a0] sm:$0xff]
    %v2208 = vld [vmem:[#allocation29 + $0x3a8] sm:$0xff]
    %v2209 = vld [vmem:[#allocation29 + $0x3b0] sm:$0xff]
    %v2210 = vld [vmem:[#allocation29 + $0x3b8] sm:$0xff]
    %v2211 = vld [vmem:[#allocation29 + $0x3c0] sm:$0xff]
    %v2212 = vld [vmem:[#allocation29 + $0x3c8] sm:$0xff]
    %v2213 = vld [vmem:[#allocation29 + $0x3d0] sm:$0xff]
    %v2214 = vld [vmem:[#allocation29 + $0x3d8] sm:$0xff]
    %v2215 = vld [vmem:[#allocation29 + $0x3e0] sm:$0xff]
    %v2216 = vld [vmem:[#allocation29 + $0x3e8] sm:$0xff]
    %v2217 = vld [vmem:[#allocation29 + $0x3f0] sm:$0xff]
    %v2218 = vld [vmem:[#allocation29 + $0x3f8] sm:$0xff]
    %v2219 = vld [vmem:[#allocation29 + $0x400] sm:$0xff]
    %v2220 = vld [vmem:[#allocation29 + $0x408] sm:$0xff]
    %v2221 = vld [vmem:[#allocation29 + $0x410] sm:$0xff]
    %v2222 = vld [vmem:[#allocation29 + $0x418] sm:$0xff]
    %v2223 = vld [vmem:[#allocation29 + $0x420] sm:$0xff]
    %v2224 = vld [vmem:[#allocation29 + $0x428] sm:$0xff]
    %v2225 = vld [vmem:[#allocation29 + $0x430] sm:$0xff]
    %v2226 = vld [vmem:[#allocation29 + $0x438] sm:$0xff]
    %v2227 = vld [vmem:[#allocation29 + $0x440] sm:$0xff]
    %v2228 = vld [vmem:[#allocation29 + $0x448] sm:$0xff]
    %v2229 = vld [vmem:[#allocation29 + $0x450] sm:$0xff]
    %v2230 = vld [vmem:[#allocation29 + $0x458] sm:$0xff]
    %v2231 = vld [vmem:[#allocation29 + $0x460] sm:$0xff]
    %v2232 = vld [vmem:[#allocation29 + $0x468] sm:$0xff]
    %v2233 = vld [vmem:[#allocation29 + $0x470] sm:$0xff]
    %v2234 = vld [vmem:[#allocation29 + $0x478] sm:$0xff]
    %v2235 = vld [vmem:[#allocation29 + $0x480] sm:$0xff]
    %v2236 = vld [vmem:[#allocation29 + $0x488] sm:$0xff]
    %v2237 = vld [vmem:[#allocation29 + $0x490] sm:$0xff]
    %v2238 = vld [vmem:[#allocation29 + $0x498] sm:$0xff]
    %v2239 = vld [vmem:[#allocation29 + $0x4a0] sm:$0xff]
    %v2240 = vld [vmem:[#allocation29 + $0x4a8] sm:$0xff]
    %v2241 = vld [vmem:[#allocation29 + $0x4b0] sm:$0xff]
    %v2242 = vld [vmem:[#allocation29 + $0x4b8] sm:$0xff]
    %v2243 = vld [vmem:[#allocation29 + $0x4c0] sm:$0xff]
    %v2244 = vld [vmem:[#allocation29 + $0x4c8] sm:$0xff]
    %v2245 = vld [vmem:[#allocation29 + $0x4d0] sm:$0xff]
    %v2246 = vld [vmem:[#allocation29 + $0x4d8] sm:$0xff]
    %v2247 = vld [vmem:[#allocation29 + $0x4e0] sm:$0xff]
    %v2248 = vld [vmem:[#allocation29 + $0x4e8] sm:$0xff]
    %v2249 = vld [vmem:[#allocation29 + $0x4f0] sm:$0xff]
    %v2250 = vld [vmem:[#allocation29 + $0x4f8] sm:$0xff]
    %v2251 = vld [vmem:[#allocation29 + $0x500] sm:$0xff]
    %v2252 = vld [vmem:[#allocation29 + $0x508] sm:$0xff]
    %v2253 = vld [vmem:[#allocation29 + $0x510] sm:$0xff]
    %v2254 = vld [vmem:[#allocation29 + $0x518] sm:$0xff]
    %v2255 = vld [vmem:[#allocation29 + $0x520] sm:$0xff]
    %v2256 = vld [vmem:[#allocation29 + $0x528] sm:$0xff]
    %v2257 = vld [vmem:[#allocation29 + $0x530] sm:$0xff]
    %v2258 = vld [vmem:[#allocation29 + $0x538] sm:$0xff]
    %v2259 = vld [vmem:[#allocation29 + $0x540] sm:$0xff]
    %v2260 = vld [vmem:[#allocation29 + $0x548] sm:$0xff]
    %v2261 = vld [vmem:[#allocation29 + $0x550] sm:$0xff]
    %v2262 = vld [vmem:[#allocation29 + $0x558] sm:$0xff]
    %v2263 = vld [vmem:[#allocation29 + $0x560] sm:$0xff]
    %v2264 = vld [vmem:[#allocation29 + $0x568] sm:$0xff]
    %v2265 = vld [vmem:[#allocation29 + $0x570] sm:$0xff]
    %v2266 = vld [vmem:[#allocation29 + $0x578] sm:$0xff]
    %v2267 = vld [vmem:[#allocation29 + $0x580] sm:$0xff]
    %v2268 = vld [vmem:[#allocation29 + $0x588] sm:$0xff]
    %v2269 = vld [vmem:[#allocation29 + $0x590] sm:$0xff]
    %v2270 = vld [vmem:[#allocation29 + $0x598] sm:$0xff]
    %v2271 = vld [vmem:[#allocation29 + $0x5a0] sm:$0xff]
    %v2272 = vld [vmem:[#allocation29 + $0x5a8] sm:$0xff]
    %v2273 = vld [vmem:[#allocation29 + $0x5b0] sm:$0xff]
    %v2274 = vld [vmem:[#allocation29 + $0x5b8] sm:$0xff]
    %v2275 = vld [vmem:[#allocation29 + $0x5c0] sm:$0xff]
    %v2276 = vld [vmem:[#allocation29 + $0x5c8] sm:$0xff]
    %v2277 = vld [vmem:[#allocation29 + $0x5d0] sm:$0xff]
    %v2278 = vld [vmem:[#allocation29 + $0x5d8] sm:$0xff]
    %v2279 = vld [vmem:[#allocation29 + $0x5e0] sm:$0xff]
    %v2280 = vld [vmem:[#allocation29 + $0x5e8] sm:$0xff]
    %v2281 = vld [vmem:[#allocation29 + $0x5f0] sm:$0xff]
    %v2282 = vld [vmem:[#allocation29 + $0x5f8] sm:$0xff]
    %v2283 = vld [vmem:[#allocation29 + $0x600] sm:$0xff]
    %v2284 = vld [vmem:[#allocation29 + $0x608] sm:$0xff]
    %v2285 = vld [vmem:[#allocation29 + $0x610] sm:$0xff]
    %v2286 = vld [vmem:[#allocation29 + $0x618] sm:$0xff]
    %v2287 = vld [vmem:[#allocation29 + $0x620] sm:$0xff]
    %v2288 = vld [vmem:[#allocation29 + $0x628] sm:$0xff]
    %v2289 = vld [vmem:[#allocation29 + $0x630] sm:$0xff]
    %v2290 = vld [vmem:[#allocation29 + $0x638] sm:$0xff]
    %v2291 = vld [vmem:[#allocation29 + $0x640] sm:$0xff]
    %v2292 = vld [vmem:[#allocation29 + $0x648] sm:$0xff]
    %v2293 = vld [vmem:[#allocation29 + $0x650] sm:$0xff]
    %v2294 = vld [vmem:[#allocation29 + $0x658] sm:$0xff]
    %v2295 = vld [vmem:[#allocation29 + $0x660] sm:$0xff]
    %v2296 = vld [vmem:[#allocation29 + $0x668] sm:$0xff]
    %v2297 = vld [vmem:[#allocation29 + $0x670] sm:$0xff]
    %v2298 = vld [vmem:[#allocation29 + $0x678] sm:$0xff]
    %v2299 = vld [vmem:[#allocation29 + $0x680] sm:$0xff]
    %v2300 = vld [vmem:[#allocation29 + $0x688] sm:$0xff]
    %v2301 = vld [vmem:[#allocation29 + $0x690] sm:$0xff]
    %v2302 = vld [vmem:[#allocation29 + $0x698] sm:$0xff]
    %v2303 = vld [vmem:[#allocation29 + $0x6a0] sm:$0xff]
    %v2304 = vld [vmem:[#allocation29 + $0x6a8] sm:$0xff]
    %v2305 = vld [vmem:[#allocation29 + $0x6b0] sm:$0xff]
    %v2306 = vld [vmem:[#allocation29 + $0x6b8] sm:$0xff]
    %v2307 = vld [vmem:[#allocation29 + $0x6c0] sm:$0xff]
    %v2308 = vld [vmem:[#allocation29 + $0x6c8] sm:$0xff]
    %v2309 = vld [vmem:[#allocation29 + $0x6d0] sm:$0xff]
    %v2310 = vld [vmem:[#allocation29 + $0x6d8] sm:$0xff]
    %v2311 = vld [vmem:[#allocation29 + $0x6e0] sm:$0xff]
    %v2312 = vld [vmem:[#allocation29 + $0x6e8] sm:$0xff]
    %v2313 = vld [vmem:[#allocation29 + $0x6f0] sm:$0xff]
    %v2314 = vld [vmem:[#allocation29 + $0x6f8] sm:$0xff]
    %v2315 = vld [vmem:[#allocation29 + $0x700] sm:$0xff]
    %v2316 = vld [vmem:[#allocation29 + $0x708] sm:$0xff]
    %v2317 = vld [vmem:[#allocation29 + $0x710] sm:$0xff]
    %v2318 = vld [vmem:[#allocation29 + $0x718] sm:$0xff]
    %v2319 = vld [vmem:[#allocation29 + $0x720] sm:$0xff]
    %v2320 = vld [vmem:[#allocation29 + $0x728] sm:$0xff]
    %v2321 = vld [vmem:[#allocation29 + $0x730] sm:$0xff]
    %v2322 = vld [vmem:[#allocation29 + $0x738] sm:$0xff]
    %v2323 = vld [vmem:[#allocation29 + $0x740] sm:$0xff]
    %v2324 = vld [vmem:[#allocation29 + $0x748] sm:$0xff]
    %v2325 = vld [vmem:[#allocation29 + $0x750] sm:$0xff]
    %v2326 = vld [vmem:[#allocation29 + $0x758] sm:$0xff]
    %v2327 = vld [vmem:[#allocation29 + $0x760] sm:$0xff]
    %v2328 = vld [vmem:[#allocation29 + $0x768] sm:$0xff]
    %v2329 = vld [vmem:[#allocation29 + $0x770] sm:$0xff]
    %v2330 = vld [vmem:[#allocation29 + $0x778] sm:$0xff]
    %v2331 = vld [vmem:[#allocation29 + $0x780] sm:$0xff]
    %v2332 = vld [vmem:[#allocation29 + $0x788] sm:$0xff]
    %v2333 = vld [vmem:[#allocation29 + $0x790] sm:$0xff]
    %v2334 = vld [vmem:[#allocation29 + $0x798] sm:$0xff]
    %v2335 = vld [vmem:[#allocation29 + $0x7a0] sm:$0xff]
    %v2336 = vld [vmem:[#allocation29 + $0x7a8] sm:$0xff]
    %v2337 = vld [vmem:[#allocation29 + $0x7b0] sm:$0xff]
    %v2338 = vld [vmem:[#allocation29 + $0x7b8] sm:$0xff]
    %v2339 = vld [vmem:[#allocation29 + $0x7c0] sm:$0xff]
    %v2340 = vld [vmem:[#allocation29 + $0x7c8] sm:$0xff]
    %v2341 = vld [vmem:[#allocation29 + $0x7d0] sm:$0xff]
    %v2342 = vld [vmem:[#allocation29 + $0x7d8] sm:$0xff]
    %v2343 = vld [vmem:[#allocation29 + $0x7e0] sm:$0xff]
    %v2344 = vld [vmem:[#allocation29 + $0x7e8] sm:$0xff]
    %v2345 = vld [vmem:[#allocation29 + $0x7f0] sm:$0xff]
    %v2346 = vld [vmem:[#allocation29 + $0x7f8] sm:$0xff]
    %v2347 = vld [vmem:[#allocation29 + $0x800] sm:$0xff]
    %v2348 = vld [vmem:[#allocation29 + $0x808] sm:$0xff]
    %v2349 = vld [vmem:[#allocation29 + $0x810] sm:$0xff]
    %v2350 = vld [vmem:[#allocation29 + $0x818] sm:$0xff]
    %v2351 = vld [vmem:[#allocation29 + $0x820] sm:$0xff]
    %v2352 = vld [vmem:[#allocation29 + $0x828] sm:$0xff]
    %v2353 = vld [vmem:[#allocation29 + $0x830] sm:$0xff]
    %v2354 = vld [vmem:[#allocation29 + $0x838] sm:$0xff]
    %v2355 = vld [vmem:[#allocation29 + $0x840] sm:$0xff]
    %v2356 = vld [vmem:[#allocation29 + $0x848] sm:$0xff]
    %v2357 = vld [vmem:[#allocation29 + $0x850] sm:$0xff]
    %v2358 = vld [vmem:[#allocation29 + $0x858] sm:$0xff]
    %v2359 = vld [vmem:[#allocation29 + $0x860] sm:$0xff]
    %v2360 = vld [vmem:[#allocation29 + $0x868] sm:$0xff]
    %v2361 = vld [vmem:[#allocation29 + $0x870] sm:$0xff]
    %v2362 = vld [vmem:[#allocation29 + $0x878] sm:$0xff]
    %v2363 = vld [vmem:[#allocation29 + $0x880] sm:$0xff]
    %v2364 = vld [vmem:[#allocation29 + $0x888] sm:$0xff]
    %v2365 = vld [vmem:[#allocation29 + $0x890] sm:$0xff]
    %v2366 = vld [vmem:[#allocation29 + $0x898] sm:$0xff]
    %v2367 = vld [vmem:[#allocation29 + $0x8a0] sm:$0xff]
    %v2368 = vld [vmem:[#allocation29 + $0x8a8] sm:$0xff]
    %v2369 = vld [vmem:[#allocation29 + $0x8b0] sm:$0xff]
    %v2370 = vld [vmem:[#allocation29 + $0x8b8] sm:$0xff]
    %v2371 = vld [vmem:[#allocation29 + $0x8c0] sm:$0xff]
    %v2372 = vld [vmem:[#allocation29 + $0x8c8] sm:$0xff]
    %v2373 = vld [vmem:[#allocation29 + $0x8d0] sm:$0xff]
    %v2374 = vld [vmem:[#allocation29 + $0x8d8] sm:$0xff]
    %v2375 = vld [vmem:[#allocation29 + $0x8e0] sm:$0xff]
    %v2376 = vld [vmem:[#allocation29 + $0x8e8] sm:$0xff]
    %v2377 = vld [vmem:[#allocation29 + $0x8f0] sm:$0xff]
    %v2378 = vld [vmem:[#allocation29 + $0x8f8] sm:$0xff]
    %v2379 = vld [vmem:[#allocation29 + $0x900] sm:$0xff]
    %v2380 = vld [vmem:[#allocation29 + $0x908] sm:$0xff]
    %v2381 = vld [vmem:[#allocation29 + $0x910] sm:$0xff]
    %v2382 = vld [vmem:[#allocation29 + $0x918] sm:$0xff]
    %v2383 = vld [vmem:[#allocation29 + $0x920] sm:$0xff]
    %v2384 = vld [vmem:[#allocation29 + $0x928] sm:$0xff]
    %v2385 = vld [vmem:[#allocation29 + $0x930] sm:$0xff]
    %v2386 = vld [vmem:[#allocation29 + $0x938] sm:$0xff]
    %v2387 = vld [vmem:[#allocation29 + $0x940] sm:$0xff]
    %v2388 = vld [vmem:[#allocation29 + $0x948] sm:$0xff]
    %v2389 = vld [vmem:[#allocation29 + $0x950] sm:$0xff]
    %v2390 = vld [vmem:[#allocation29 + $0x958] sm:$0xff]
    %v2391 = vld [vmem:[#allocation29 + $0x960] sm:$0xff]
    %v2392 = vld [vmem:[#allocation29 + $0x968] sm:$0xff]
    %v2393 = vld [vmem:[#allocation29 + $0x970] sm:$0xff]
    %v2394 = vld [vmem:[#allocation29 + $0x978] sm:$0xff]
    %v2395 = vld [vmem:[#allocation29 + $0x980] sm:$0xff]
    %v2396 = vld [vmem:[#allocation29 + $0x988] sm:$0xff]
    %v2397 = vld [vmem:[#allocation29 + $0x990] sm:$0xff]
    %v2398 = vld [vmem:[#allocation29 + $0x998] sm:$0xff]
    %v2399 = vld [vmem:[#allocation29 + $0x9a0] sm:$0xff]
    %v2400 = vld [vmem:[#allocation29 + $0x9a8] sm:$0xff]
    %v2401 = vld [vmem:[#allocation29 + $0x9b0] sm:$0xff]
    %v2402 = vld [vmem:[#allocation29 + $0x9b8] sm:$0xff]
    %v2403 = vld [vmem:[#allocation29 + $0x9c0] sm:$0xff]
    %v2404 = vld [vmem:[#allocation29 + $0x9c8] sm:$0xff]
    %v2405 = vld [vmem:[#allocation29 + $0x9d0] sm:$0xff]
    %v2406 = vld [vmem:[#allocation29 + $0x9d8] sm:$0xff]
    %v2407 = vld [vmem:[#allocation29 + $0x9e0] sm:$0xff]
    %v2408 = vld [vmem:[#allocation29 + $0x9e8] sm:$0xff]
    %v2409 = vld [vmem:[#allocation29 + $0x9f0] sm:$0xff]
    %v2410 = vld [vmem:[#allocation29 + $0x9f8] sm:$0xff]
    %v2411 = vld [vmem:[#allocation29 + $0xa00] sm:$0xff]
    %v2412 = vld [vmem:[#allocation29 + $0xa08] sm:$0xff]
    %v2413 = vld [vmem:[#allocation29 + $0xa10] sm:$0xff]
    %v2414 = vld [vmem:[#allocation29 + $0xa18] sm:$0xff]
    %v2415 = vld [vmem:[#allocation29 + $0xa20] sm:$0xff]
    %v2416 = vld [vmem:[#allocation29 + $0xa28] sm:$0xff]
    %v2417 = vld [vmem:[#allocation29 + $0xa30] sm:$0xff]
    %v2418 = vld [vmem:[#allocation29 + $0xa38] sm:$0xff]
    %v2419 = vld [vmem:[#allocation29 + $0xa40] sm:$0xff]
    %v2420 = vld [vmem:[#allocation29 + $0xa48] sm:$0xff]
    %v2421 = vld [vmem:[#allocation29 + $0xa50] sm:$0xff]
    %v2422 = vld [vmem:[#allocation29 + $0xa58] sm:$0xff]
    %v2423 = vld [vmem:[#allocation29 + $0xa60] sm:$0xff]
    %v2424 = vld [vmem:[#allocation29 + $0xa68] sm:$0xff]
    %v2425 = vld [vmem:[#allocation29 + $0xa70] sm:$0xff]
    %v2426 = vld [vmem:[#allocation29 + $0xa78] sm:$0xff]
    %v2427 = vld [vmem:[#allocation29 + $0xa80] sm:$0xff]
    %v2428 = vld [vmem:[#allocation29 + $0xa88] sm:$0xff]
    %v2429 = vld [vmem:[#allocation29 + $0xa90] sm:$0xff]
    %v2430 = vld [vmem:[#allocation29 + $0xa98] sm:$0xff]
    %v2431 = vld [vmem:[#allocation29 + $0xaa0] sm:$0xff]
    %v2432 = vld [vmem:[#allocation29 + $0xaa8] sm:$0xff]
    %v2433 = vld [vmem:[#allocation29 + $0xab0] sm:$0xff]
    %v2434 = vld [vmem:[#allocation29 + $0xab8] sm:$0xff]
    %v2435 = vld [vmem:[#allocation29 + $0xac0] sm:$0xff]
    %v2436 = vld [vmem:[#allocation29 + $0xac8] sm:$0xff]
    %v2437 = vld [vmem:[#allocation29 + $0xad0] sm:$0xff]
    %v2438 = vld [vmem:[#allocation29 + $0xad8] sm:$0xff]
    %v2439 = vld [vmem:[#allocation29 + $0xae0] sm:$0xff]
    %v2440 = vld [vmem:[#allocation29 + $0xae8] sm:$0xff]
    %v2441 = vld [vmem:[#allocation29 + $0xaf0] sm:$0xff]
    %v2442 = vld [vmem:[#allocation29 + $0xaf8] sm:$0xff]
    %v2443 = vld [vmem:[#allocation29 + $0xb00] sm:$0xff]
    %v2444 = vld [vmem:[#allocation29 + $0xb08] sm:$0xff]
    %v2445 = vld [vmem:[#allocation29 + $0xb10] sm:$0xff]
    %v2446 = vld [vmem:[#allocation29 + $0xb18] sm:$0xff]
    %v2447 = vld [vmem:[#allocation29 + $0xb20] sm:$0xff]
    %v2448 = vld [vmem:[#allocation29 + $0xb28] sm:$0xff]
    %v2449 = vld [vmem:[#allocation29 + $0xb30] sm:$0xff]
    %v2450 = vld [vmem:[#allocation29 + $0xb38] sm:$0xff]
    %v2451 = vld [vmem:[#allocation29 + $0xb40] sm:$0xff]
    %v2452 = vld [vmem:[#allocation29 + $0xb48] sm:$0xff]
    %v2453 = vld [vmem:[#allocation29 + $0xb50] sm:$0xff]
    %v2454 = vld [vmem:[#allocation29 + $0xb58] sm:$0xff]
    %v2455 = vld [vmem:[#allocation29 + $0xb60] sm:$0xff]
    %v2456 = vld [vmem:[#allocation29 + $0xb68] sm:$0xff]
    %v2457 = vld [vmem:[#allocation29 + $0xb70] sm:$0xff]
    %v2458 = vld [vmem:[#allocation29 + $0xb78] sm:$0xff]
    %v2459 = vld [vmem:[#allocation29 + $0xb80] sm:$0xff]
    %v2460 = vld [vmem:[#allocation29 + $0xb88] sm:$0xff]
    %v2461 = vld [vmem:[#allocation29 + $0xb90] sm:$0xff]
    %v2462 = vld [vmem:[#allocation29 + $0xb98] sm:$0xff]
    %v2463 = vld [vmem:[#allocation29 + $0xba0] sm:$0xff]
    %v2464 = vld [vmem:[#allocation29 + $0xba8] sm:$0xff]
    %v2465 = vld [vmem:[#allocation29 + $0xbb0] sm:$0xff]
    %v2466 = vld [vmem:[#allocation29 + $0xbb8] sm:$0xff]
    %v2467 = vld [vmem:[#allocation29 + $0xbc0] sm:$0xff]
    %v2468 = vld [vmem:[#allocation29 + $0xbc8] sm:$0xff]
    %v2469 = vld [vmem:[#allocation29 + $0xbd0] sm:$0xff]
    %v2470 = vld [vmem:[#allocation29 + $0xbd8] sm:$0xff]
    %v2471 = vld [vmem:[#allocation29 + $0xbe0] sm:$0xff]
    %v2472 = vld [vmem:[#allocation29 + $0xbe8] sm:$0xff]
    %v2473 = vld [vmem:[#allocation29 + $0xbf0] sm:$0xff]
    %v2474 = vld [vmem:[#allocation29 + $0xbf8] sm:$0xff]
    %v2475 = vld [vmem:[#allocation29 + $0xc00] sm:$0xff]
    %v2476 = vld [vmem:[#allocation29 + $0xc08] sm:$0xff]
    %v2477 = vld [vmem:[#allocation29 + $0xc10] sm:$0xff]
    %v2478 = vld [vmem:[#allocation29 + $0xc18] sm:$0xff]
    %v2479 = vld [vmem:[#allocation29 + $0xc20] sm:$0xff]
    %v2480 = vld [vmem:[#allocation29 + $0xc28] sm:$0xff]
    %v2481 = vld [vmem:[#allocation29 + $0xc30] sm:$0xff]
    %v2482 = vld [vmem:[#allocation29 + $0xc38] sm:$0xff]
    %v2483 = vld [vmem:[#allocation29 + $0xc40] sm:$0xff]
    %v2484 = vld [vmem:[#allocation29 + $0xc48] sm:$0xff]
    %v2485 = vld [vmem:[#allocation29 + $0xc50] sm:$0xff]
    %v2486 = vld [vmem:[#allocation29 + $0xc58] sm:$0xff]
    %v2487 = vld [vmem:[#allocation29 + $0xc60] sm:$0xff]
    %v2488 = vld [vmem:[#allocation29 + $0xc68] sm:$0xff]
    %v2489 = vld [vmem:[#allocation29 + $0xc70] sm:$0xff]
    %v2490 = vld [vmem:[#allocation29 + $0xc78] sm:$0xff]
    %v2491 = vld [vmem:[#allocation29 + $0xc80] sm:$0xff]
    %v2492 = vld [vmem:[#allocation29 + $0xc88] sm:$0xff]
    %v2493 = vld [vmem:[#allocation29 + $0xc90] sm:$0xff]
    %v2494 = vld [vmem:[#allocation29 + $0xc98] sm:$0xff]
    %v2495 = vld [vmem:[#allocation29 + $0xca0] sm:$0xff]
    %v2496 = vld [vmem:[#allocation29 + $0xca8] sm:$0xff]
    %v2497 = vld [vmem:[#allocation29 + $0xcb0] sm:$0xff]
    %v2498 = vld [vmem:[#allocation29 + $0xcb8] sm:$0xff]
    %v2499 = vld [vmem:[#allocation29 + $0xcc0] sm:$0xff]
    %v2500 = vld [vmem:[#allocation29 + $0xcc8] sm:$0xff]
    %v2501 = vld [vmem:[#allocation29 + $0xcd0] sm:$0xff]
    %v2502 = vld [vmem:[#allocation29 + $0xcd8] sm:$0xff]
    %v2503 = vld [vmem:[#allocation29 + $0xce0] sm:$0xff]
    %v2504 = vld [vmem:[#allocation29 + $0xce8] sm:$0xff]
    %v2505 = vld [vmem:[#allocation29 + $0xcf0] sm:$0xff]
    %v2506 = vld [vmem:[#allocation29 + $0xcf8] sm:$0xff]
    %v2507 = vld [vmem:[#allocation29 + $0xd00] sm:$0xff]
    %v2508 = vld [vmem:[#allocation29 + $0xd08] sm:$0xff]
    %v2509 = vld [vmem:[#allocation29 + $0xd10] sm:$0xff]
    %v2510 = vld [vmem:[#allocation29 + $0xd18] sm:$0xff]
    %v2511 = vld [vmem:[#allocation29 + $0xd20] sm:$0xff]
    %v2512 = vld [vmem:[#allocation29 + $0xd28] sm:$0xff]
    %v2513 = vld [vmem:[#allocation29 + $0xd30] sm:$0xff]
    %v2514 = vld [vmem:[#allocation29 + $0xd38] sm:$0xff]
    %v2515 = vld [vmem:[#allocation29 + $0xd40] sm:$0xff]
    %v2516 = vld [vmem:[#allocation29 + $0xd48] sm:$0xff]
    %v2517 = vld [vmem:[#allocation29 + $0xd50] sm:$0xff]
    %v2518 = vld [vmem:[#allocation29 + $0xd58] sm:$0xff]
    %v2519 = vld [vmem:[#allocation29 + $0xd60] sm:$0xff]
    %v2520 = vld [vmem:[#allocation29 + $0xd68] sm:$0xff]
    %v2521 = vld [vmem:[#allocation29 + $0xd70] sm:$0xff]
    %v2522 = vld [vmem:[#allocation29 + $0xd78] sm:$0xff]
    %v2523 = vld [vmem:[#allocation29 + $0xd80] sm:$0xff]
    %v2524 = vld [vmem:[#allocation29 + $0xd88] sm:$0xff]
    %v2525 = vld [vmem:[#allocation29 + $0xd90] sm:$0xff]
    %v2526 = vld [vmem:[#allocation29 + $0xd98] sm:$0xff]
    %v2527 = vld [vmem:[#allocation29 + $0xda0] sm:$0xff]
    %v2528 = vld [vmem:[#allocation29 + $0xda8] sm:$0xff]
    %v2529 = vld [vmem:[#allocation29 + $0xdb0] sm:$0xff]
    %v2530 = vld [vmem:[#allocation29 + $0xdb8] sm:$0xff]
    %v2531 = vld [vmem:[#allocation29 + $0xdc0] sm:$0xff]
    %v2532 = vld [vmem:[#allocation29 + $0xdc8] sm:$0xff]
    %v2533 = vld [vmem:[#allocation29 + $0xdd0] sm:$0xff]
    %v2534 = vld [vmem:[#allocation29 + $0xdd8] sm:$0xff]
    %v2535 = vld [vmem:[#allocation29 + $0xde0] sm:$0xff]
    %v2536 = vld [vmem:[#allocation29 + $0xde8] sm:$0xff]
    %v2537 = vld [vmem:[#allocation29 + $0xdf0] sm:$0xff]
    %v2538 = vld [vmem:[#allocation29 + $0xdf8] sm:$0xff]
    %v2539 = vld [vmem:[#allocation29 + $0xe00] sm:$0xff]
    %v2540 = vld [vmem:[#allocation29 + $0xe08] sm:$0xff]
    %v2541 = vld [vmem:[#allocation29 + $0xe10] sm:$0xff]
    %v2542 = vld [vmem:[#allocation29 + $0xe18] sm:$0xff]
    %v2543 = vld [vmem:[#allocation29 + $0xe20] sm:$0xff]
    %v2544 = vld [vmem:[#allocation29 + $0xe28] sm:$0xff]
    %v2545 = vld [vmem:[#allocation29 + $0xe30] sm:$0xff]
    %v2546 = vld [vmem:[#allocation29 + $0xe38] sm:$0xff]
    %v2547 = vld [vmem:[#allocation29 + $0xe40] sm:$0xff]
    %v2548 = vld [vmem:[#allocation29 + $0xe48] sm:$0xff]
    %v2549 = vld [vmem:[#allocation29 + $0xe50] sm:$0xff]
    %v2550 = vld [vmem:[#allocation29 + $0xe58] sm:$0xff]
    %v2551 = vld [vmem:[#allocation29 + $0xe60] sm:$0xff]
    %v2552 = vld [vmem:[#allocation29 + $0xe68] sm:$0xff]
    %v2553 = vld [vmem:[#allocation29 + $0xe70] sm:$0xff]
    %v2554 = vld [vmem:[#allocation29 + $0xe78] sm:$0xff]
    %v2555 = vld [vmem:[#allocation29 + $0xe80] sm:$0xff]
    %v2556 = vld [vmem:[#allocation29 + $0xe88] sm:$0xff]
    %v2557 = vld [vmem:[#allocation29 + $0xe90] sm:$0xff]
    %v2558 = vld [vmem:[#allocation29 + $0xe98] sm:$0xff]
    %v2559 = vld [vmem:[#allocation29 + $0xea0] sm:$0xff]
    %v2560 = vld [vmem:[#allocation29 + $0xea8] sm:$0xff]
    %v2561 = vld [vmem:[#allocation29 + $0xeb0] sm:$0xff]
    %v2562 = vld [vmem:[#allocation29 + $0xeb8] sm:$0xff]
    %v2563 = vld [vmem:[#allocation29 + $0xec0] sm:$0xff]
    %v2564 = vld [vmem:[#allocation29 + $0xec8] sm:$0xff]
    %v2565 = vld [vmem:[#allocation29 + $0xed0] sm:$0xff]
    %v2566 = vld [vmem:[#allocation29 + $0xed8] sm:$0xff]
    %v2567 = vld [vmem:[#allocation29 + $0xee0] sm:$0xff]
    %v2568 = vld [vmem:[#allocation29 + $0xee8] sm:$0xff]
    %v2569 = vld [vmem:[#allocation29 + $0xef0] sm:$0xff]
    %v2570 = vld [vmem:[#allocation29 + $0xef8] sm:$0xff]
    %v2571 = vld [vmem:[#allocation29 + $0xf00] sm:$0xff]
    %v2572 = vld [vmem:[#allocation29 + $0xf08] sm:$0xff]
    %v2573 = vld [vmem:[#allocation29 + $0xf10] sm:$0xff]
    %v2574 = vld [vmem:[#allocation29 + $0xf18] sm:$0xff]
    %v2575 = vld [vmem:[#allocation29 + $0xf20] sm:$0xff]
    %v2576 = vld [vmem:[#allocation29 + $0xf28] sm:$0xff]
    %v2577 = vld [vmem:[#allocation29 + $0xf30] sm:$0xff]
    %v2578 = vld [vmem:[#allocation29 + $0xf38] sm:$0xff]
    %v2579 = vld [vmem:[#allocation29 + $0xf40] sm:$0xff]
    %v2580 = vld [vmem:[#allocation29 + $0xf48] sm:$0xff]
    %v2581 = vld [vmem:[#allocation29 + $0xf50] sm:$0xff]
    %v2582 = vld [vmem:[#allocation29 + $0xf58] sm:$0xff]
    %v2583 = vld [vmem:[#allocation29 + $0xf60] sm:$0xff]
    %v2584 = vld [vmem:[#allocation29 + $0xf68] sm:$0xff]
    %v2585 = vld [vmem:[#allocation29 + $0xf70] sm:$0xff]
    %v2586 = vld [vmem:[#allocation29 + $0xf78] sm:$0xff]
    %v2587 = vld [vmem:[#allocation29 + $0xf80] sm:$0xff]
    %v2588 = vld [vmem:[#allocation29 + $0xf88] sm:$0xff]
    %v2589 = vld [vmem:[#allocation29 + $0xf90] sm:$0xff]
    %v2590 = vld [vmem:[#allocation29 + $0xf98] sm:$0xff]
    %v2591 = vld [vmem:[#allocation29 + $0xfa0] sm:$0xff]
    %v2592 = vld [vmem:[#allocation29 + $0xfa8] sm:$0xff]
    %v2593 = vld [vmem:[#allocation29 + $0xfb0] sm:$0xff]
    %v2594 = vld [vmem:[#allocation29 + $0xfb8] sm:$0xff]
    %v2595 = vld [vmem:[#allocation29 + $0xfc0] sm:$0xff]
    %v2596 = vld [vmem:[#allocation29 + $0xfc8] sm:$0xff]
    %v2597 = vld [vmem:[#allocation29 + $0xfd0] sm:$0xff]
    %v2598 = vld [vmem:[#allocation29 + $0xfd8] sm:$0xff]
    %v2599 = vld [vmem:[#allocation29 + $0xfe0] sm:$0xff]
    %v2600 = vld [vmem:[#allocation29 + $0xfe8] sm:$0xff]
    %v2601 = vld [vmem:[#allocation29 + $0xff0] sm:$0xff]
    %v2602 = vld [vmem:[#allocation29 + $0xff8] sm:$0xff]
    %2603 = vmatprep.subr.mxu0 %v2092
    %2604 = vmatpush1.msra.mxu0 %v2091
    %2605 = vmatprep.subr.mxu0 %v2108
    %2606 = vmatpush1.msra.mxu0 %v2107
    %2607 = vmatprep.subr.mxu0 %v2124
    %2608 = vmatpush1.msra.mxu0 %v2123
    %2609 = vmatprep.subr.mxu0 %v2140
    %2610 = vmatpush1.msra.mxu0 %v2139
    %2611 = vmatprep.subr.mxu0 %v2156
    %2612 = vmatpush1.msra.mxu0 %v2155
    %2613 = vmatprep.subr.mxu0 %v2172
    %2614 = vmatpush1.msra.mxu0 %v2171
    %2615 = vmatprep.subr.mxu0 %v2188
    %2616 = vmatpush1.msra.mxu0 %v2187
    %2617 = vmatprep.subr.mxu0 %v2204
    %2618 = vmatpush1.msra.mxu0 %v2203
    %2619 = vmatprep.subr.mxu0 %v2220
    %2620 = vmatpush1.msra.mxu0 %v2219
    %2621 = vmatprep.subr.mxu0 %v2236
    %2622 = vmatpush1.msra.mxu0 %v2235
    %2623 = vmatprep.subr.mxu0 %v2252
    %2624 = vmatpush1.msra.mxu0 %v2251
    %2625 = vmatprep.subr.mxu0 %v2268
    %2626 = vmatpush1.msra.mxu0 %v2267
    %2627 = vmatprep.subr.mxu0 %v2284
    %2628 = vmatpush1.msra.mxu0 %v2283
    %2629 = vmatprep.subr.mxu0 %v2300
    %2630 = vmatpush1.msra.mxu0 %v2299
    %2631 = vmatprep.subr.mxu0 %v2316
    %2632 = vmatpush1.msra.mxu0 %v2315
    %2633 = vmatprep.subr.mxu0 %v2332
    %2634 = vmatpush1.msra.mxu0 %v2331
    %2635 = vmatprep.subr.mxu0 %v2348
    %2636 = vmatpush1.msra.mxu0 %v2347
    %2637 = vmatprep.subr.mxu0 %v2364
    %2638 = vmatpush1.msra.mxu0 %v2363
    %2639 = vmatprep.subr.mxu0 %v2380
    %2640 = vmatpush1.msra.mxu0 %v2379
    %2641 = vmatprep.subr.mxu0 %v2396
    %2642 = vmatpush1.msra.mxu0 %v2395
    %2643 = vmatprep.subr.mxu0 %v2412
    %2644 = vmatpush1.msra.mxu0 %v2411
    %2645 = vmatprep.subr.mxu0 %v2428
    %2646 = vmatpush1.msra.mxu0 %v2427
    %2647 = vmatprep.subr.mxu0 %v2444
    %2648 = vmatpush1.msra.mxu0 %v2443
    %2649 = vmatprep.subr.mxu0 %v2460
    %2650 = vmatpush1.msra.mxu0 %v2459
    %2651 = vmatprep.subr.mxu0 %v2476
    %2652 = vmatpush1.msra.mxu0 %v2475
    %2653 = vmatprep.subr.mxu0 %v2492
    %2654 = vmatpush1.msra.mxu0 %v2491
    %2655 = vmatprep.subr.mxu0 %v2508
    %2656 = vmatpush1.msra.mxu0 %v2507
    %2657 = vmatprep.subr.mxu0 %v2524
    %2658 = vmatpush1.msra.mxu0 %v2523
    %2659 = vmatprep.subr.mxu0 %v2540
    %2660 = vmatpush1.msra.mxu0 %v2539
    %2661 = vmatprep.subr.mxu0 %v2556
    %2662 = vmatpush1.msra.mxu0 %v2555
    %2663 = vmatprep.subr.mxu0 %v2572
    %2664 = vmatpush1.msra.mxu0 %v2571
    %2665 = vmatprep.subr.mxu0 %v2588
    %2666 = vmatpush1.msra.mxu0 %v2587
    %2667 = vmatprep.mubr.f32.mxu0 %v2076
    %2668 = vmatmul.mubr.f32.gmra.mrb[0].mxu0 %v2075
    %v2669 = vpop.f32.mrb[0].mxu0
    %v2670 = vadd.f32 0.0, %v2669
    %v2671 = vpop.f32.mrb[0].mxu0
    %v2672 = vadd.f32 0.0, %v2671
    %2673 = vmatprep.mubr.f32.mxu0 %v2078
    %2674 = vmatmul.mubr.f32.gmra.mrb[0].mxu0 %v2077
    %v2675 = vpop.f32.mrb[0].mxu0
    %v2676 = vadd.f32 0.0, %v2675
    %v2677 = vpop.f32.mrb[0].mxu0
    %v2678 = vadd.f32 0.0, %v2677
    %2679 = vmatprep.mubr.f32.mxu0 %v2080
    %2680 = vmatmul.mubr.f32.gmra.mrb[0].mxu0 %v2079
    %v2681 = vpop.f32.mrb[0].mxu0
    %v2682 = vadd.f32 0.0, %v2681
    %v2683 = vpop.f32.mrb[0].mxu0
    %v2684 = vadd.f32 0.0, %v2683
    %2685 = vmatprep.mubr.f32.mxu0 %v2082
    %2686 = vmatmul.mubr.f32.gmra.mrb[0].mxu0 %v2081
    %v2687 = vpop.f32.mrb[0].mxu0
    %v2688 = vadd.f32 0.0, %v2687
    %v2689 = vpop.f32.mrb[0].mxu0
    %v2690 = vadd.f32 0.0, %v2689
    %2691 = vmatprep.mubr.f32.mxu0 %v2084
    %2692 = vmatmul.mubr.f32.gmra.mrb[0].mxu0 %v2083
    %v2693 = vpop.f32.mrb[0].mxu0
    %v2694 = vadd.f32 0.0, %v2693
    %v2695 = vpop.f32.mrb[0].mxu0
    %v2696 = vadd.f32 0.0, %v2695
    %2697 = vmatprep.mubr.f32.mxu0 %v2086
    %2698 = vmatmul.mubr.f32.gmra.mrb[0].mxu0 %v2085
    %v2699 = vpop.f32.mrb[0].mxu0
    %v2700 = vadd.f32 0.0, %v2699
    %v2701 = vpop.f32.mrb[0].mxu0
    %v2702 = vadd.f32 0.0, %v2701
    %2703 = vmatprep.mubr.f32.mxu0 %v2088
    %2704 = vmatmul.mubr.f32.gmra.mrb[0].mxu0 %v2087
    %v2705 = vpop.f32.mrb[0].mxu0
    %v2706 = vadd.f32 0.0, %v2705
    %v2707 = vpop.f32.mrb[0].mxu0
    %v2708 = vadd.f32 0.0, %v2707
    %2709 = vmatprep.mubr.f32.mxu0 %v2090
    %2710 = vmatmul.mubr.f32.gmra.mrb[0].mxu0 %v2089
    %v2711 = vpop.f32.mrb[0].mxu0
    %v2712 = vadd.f32 0.0, %v2711
    %v2713 = vpop.f32.mrb[0].mxu0
    %v2714 = vadd.f32 0.0, %v2713
    %2715 = vdwg.mxu0
    %2716 = vmatprep.subr.mxu0 %v2094
    %2717 = vmatpush1.msra.mxu0 %v2093
    %2718 = vmatprep.subr.mxu0 %v2110
    %2719 = vmatpush1.msra.mxu0 %v2109
    %2720 = vmatprep.subr.mxu0 %v2126
    %2721 = vmatpush1.msra.mxu0 %v2125
    %2722 = vmatprep.subr.mxu0 %v2142
    %2723 = vmatpush1.msra.mxu0 %v2141
    %2724 = vmatprep.subr.mxu0 %v2158
    %2725 = vmatpush1.msra.mxu0 %v2157
    %2726 = vmatprep.subr.mxu0 %v2174
    %2727 = vmatpush1.msra.mxu0 %v2173
    %2728 = vmatprep.subr.mxu0 %v2190
    %2729 = vmatpush1.msra.mxu0 %v2189
    %2730 = vmatprep.subr.mxu0 %v2206
    %2731 = vmatpush1.msra.mxu0 %v2205
    %2732 = vmatprep.subr.mxu0 %v2222
    %2733 = vmatpush1.msra.mxu0 %v2221
    %2734 = vmatprep.subr.mxu0 %v2238
    %2735 = vmatpush1.msra.mxu0 %v2237
    %2736 = vmatprep.subr.mxu0 %v2254
    %2737 = vmatpush1.msra.mxu0 %v2253
    %2738 = vmatprep.subr.mxu0 %v2270
    %2739 = vmatpush1.msra.mxu0 %v2269
    %2740 = vmatprep.subr.mxu0 %v2286
    %2741 = vmatpush1.msra.mxu0 %v2285
    %2742 = vmatprep.subr.mxu0 %v2302
    %2743 = vmatpush1.msra.mxu0 %v2301
    %2744 = vmatprep.subr.mxu0 %v2318
    %2745 = vmatpush1.msra.mxu0 %v2317
    %2746 = vmatprep.subr.mxu0 %v2334
    %2747 = vmatpush1.msra.mxu0 %v2333
    %2748 = vmatprep.subr.mxu0 %v2350
    %2749 = vmatpush1.msra.mxu0 %v2349
    %2750 = vmatprep.subr.mxu0 %v2366
    %2751 = vmatpush1.msra.mxu0 %v2365
    %2752 = vmatprep.subr.mxu0 %v2382
    %2753 = vmatpush1.msra.mxu0 %v2381
    %2754 = vmatprep.subr.mxu0 %v2398
    %2755 = vmatpush1.msra.mxu0 %v2397
    %2756 = vmatprep.subr.mxu0 %v2414
    %2757 = vmatpush1.msra.mxu0 %v2413
    %2758 = vmatprep.subr.mxu0 %v2430
    %2759 = vmatpush1.msra.mxu0 %v2429
    %2760 = vmatprep.subr.mxu0 %v2446
    %2761 = vmatpush1.msra.mxu0 %v2445
    %2762 = vmatprep.subr.mxu0 %v2462
    %2763 = vmatpush1.msra.mxu0 %v2461
    %2764 = vmatprep.subr.mxu0 %v2478
    %2765 = vmatpush1.msra.mxu0 %v2477
    %2766 = vmatprep.subr.mxu0 %v2494
    %2767 = vmatpush1.msra.mxu0 %v2493
    %2768 = vmatprep.subr.mxu0 %v2510
    %2769 = vmatpush1.msra.mxu0 %v2509
    %2770 = vmatprep.subr.mxu0 %v2526
    %2771 = vmatpush1.msra.mxu0 %v2525
    %2772 = vmatprep.subr.mxu0 %v2542
    %2773 = vmatpush1.msra.mxu0 %v2541
    %2774 = vmatprep.subr.mxu0 %v2558
    %2775 = vmatpush1.msra.mxu0 %v2557
    %2776 = vmatprep.subr.mxu0 %v2574
    %2777 = vmatpush1.msra.mxu0 %v2573
    %2778 = vmatprep.subr.mxu0 %v2590
    %2779 = vmatpush1.msra.mxu0 %v2589
    %2780 = vmatprep.mubr.f32.mxu0 %v2076
    %2781 = vmatmul.mubr.f32.gmra.mrb[0].mxu0 %v2075
    %v2782 = vpop.f32.mrb[0].mxu0
    %v2783 = vadd.f32 0.0, %v2782
    %v2784 = vpop.f32.mrb[0].mxu0
    %v2785 = vadd.f32 0.0, %v2784
    %2786 = vmatprep.mubr.f32.mxu0 %v2078
    %2787 = vmatmul.mubr.f32.gmra.mrb[0].mxu0 %v2077
    %v2788 = vpop.f32.mrb[0].mxu0
    %v2789 = vadd.f32 0.0, %v2788
    %v2790 = vpop.f32.mrb[0].mxu0
    %v2791 = vadd.f32 0.0, %v2790
    %2792 = vmatprep.mubr.f32.mxu0 %v2080
    %2793 = vmatmul.mubr.f32.gmra.mrb[0].mxu0 %v2079
    %v2794 = vpop.f32.mrb[0].mxu0
    %v2795 = vadd.f32 0.0, %v2794
    %v2796 = vpop.f32.mrb[0].mxu0
    %v2797 = vadd.f32 0.0, %v2796
    %2798 = vmatprep.mubr.f32.mxu0 %v2082
    %2799 = vmatmul.mubr.f32.gmra.mrb[0].mxu0 %v2081
    %v2800 = vpop.f32.mrb[0].mxu0
    %v2801 = vadd.f32 0.0, %v2800
    %v2802 = vpop.f32.mrb[0].mxu0
    %v2803 = vadd.f32 0.0, %v2802
    %2804 = vmatprep.mubr.f32.mxu0 %v2084
    %2805 = vmatmul.mubr.f32.gmra.mrb[0].mxu0 %v2083
    %v2806 = vpop.f32.mrb[0].mxu0
    %v2807 = vadd.f32 0.0, %v2806
    %v2808 = vpop.f32.mrb[0].mxu0
    %v2809 = vadd.f32 0.0, %v2808
    %2810 = vmatprep.mubr.f32.mxu0 %v2086
    %2811 = vmatmul.mubr.f32.gmra.mrb[0].mxu0 %v2085
    %v2812 = vpop.f32.mrb[0].mxu0
    %v2813 = vadd.f32 0.0, %v2812
    %v2814 = vpop.f32.mrb[0].mxu0
    %v2815 = vadd.f32 0.0, %v2814
    %2816 = vmatprep.mubr.f32.mxu0 %v2088
    %2817 = vmatmul.mubr.f32.gmra.mrb[0].mxu0 %v2087
    %v2818 = vpop.f32.mrb[0].mxu0
    %v2819 = vadd.f32 0.0, %v2818
    %v2820 = vpop.f32.mrb[0].mxu0
    %v2821 = vadd.f32 0.0, %v2820
    %2822 = vmatprep.mubr.f32.mxu0 %v2090
    %2823 = vmatmul.mubr.f32.gmra.mrb[0].mxu0 %v2089
    %v2824 = vpop.f32.mrb[0].mxu0
    %v2825 = vadd.f32 0.0, %v2824
    %v2826 = vpop.f32.mrb[0].mxu0
    %v2827 = vadd.f32 0.0, %v2826
    %2828 = vdwg.mxu0
    %2829 = vmatprep.subr.mxu0 %v2096
    %2830 = vmatpush1.msra.mxu0 %v2095
    %2831 = vmatprep.subr.mxu0 %v2112
    %2832 = vmatpush1.msra.mxu0 %v2111
    %2833 = vmatprep.subr.mxu0 %v2128
    %2834 = vmatpush1.msra.mxu0 %v2127
    %2835 = vmatprep.subr.mxu0 %v2144
    %2836 = vmatpush1.msra.mxu0 %v2143
    %2837 = vmatprep.subr.mxu0 %v2160
    %2838 = vmatpush1.msra.mxu0 %v2159
    %2839 = vmatprep.subr.mxu0 %v2176
    %2840 = vmatpush1.msra.mxu0 %v2175
    %2841 = vmatprep.subr.mxu0 %v2192
    %2842 = vmatpush1.msra.mxu0 %v2191
    %2843 = vmatprep.subr.mxu0 %v2208
    %2844 = vmatpush1.msra.mxu0 %v2207
    %2845 = vmatprep.subr.mxu0 %v2224
    %2846 = vmatpush1.msra.mxu0 %v2223
    %2847 = vmatprep.subr.mxu0 %v2240
    %2848 = vmatpush1.msra.mxu0 %v2239
    %2849 = vmatprep.subr.mxu0 %v2256
    %2850 = vmatpush1.msra.mxu0 %v2255
    %2851 = vmatprep.subr.mxu0 %v2272
    %2852 = vmatpush1.msra.mxu0 %v2271
    %2853 = vmatprep.subr.mxu0 %v2288
    %2854 = vmatpush1.msra.mxu0 %v2287
    %2855 = vmatprep.subr.mxu0 %v2304
    %2856 = vmatpush1.msra.mxu0 %v2303
    %2857 = vmatprep.subr.mxu0 %v2320
    %2858 = vmatpush1.msra.mxu0 %v2319
    %2859 = vmatprep.subr.mxu0 %v2336
    %2860 = vmatpush1.msra.mxu0 %v2335
    %2861 = vmatprep.subr.mxu0 %v2352
    %2862 = vmatpush1.msra.mxu0 %v2351
    %2863 = vmatprep.subr.mxu0 %v2368
    %2864 = vmatpush1.msra.mxu0 %v2367
    %2865 = vmatprep.subr.mxu0 %v2384
    %2866 = vmatpush1.msra.mxu0 %v2383
    %2867 = vmatprep.subr.mxu0 %v2400
    %2868 = vmatpush1.msra.mxu0 %v2399
    %2869 = vmatprep.subr.mxu0 %v2416
    %2870 = vmatpush1.msra.mxu0 %v2415
    %2871 = vmatprep.subr.mxu0 %v2432
    %2872 = vmatpush1.msra.mxu0 %v2431
    %2873 = vmatprep.subr.mxu0 %v2448
    %2874 = vmatpush1.msra.mxu0 %v2447
    %2875 = vmatprep.subr.mxu0 %v2464
    %2876 = vmatpush1.msra.mxu0 %v2463
    %2877 = vmatprep.subr.mxu0 %v2480
    %2878 = vmatpush1.msra.mxu0 %v2479
    %2879 = vmatprep.subr.mxu0 %v2496
    %2880 = vmatpush1.msra.mxu0 %v2495
    %2881 = vmatprep.subr.mxu0 %v2512
    %2882 = vmatpush1.msra.mxu0 %v2511
    %2883 = vmatprep.subr.mxu0 %v2528
    %2884 = vmatpush1.msra.mxu0 %v2527
    %2885 = vmatprep.subr.mxu0 %v2544
    %2886 = vmatpush1.msra.mxu0 %v2543
    %2887 = vmatprep.subr.mxu0 %v2560
    %2888 = vmatpush1.msra.mxu0 %v2559
    %2889 = vmatprep.subr.mxu0 %v2576
    %2890 = vmatpush1.msra.mxu0 %v2575
    %2891 = vmatprep.subr.mxu0 %v2592
    %2892 = vmatpush1.msra.mxu0 %v2591
    %2893 = vmatprep.mubr.f32.mxu0 %v2076
    %2894 = vmatmul.mubr.f32.gmra.mrb[0].mxu0 %v2075
    %v2895 = vpop.f32.mrb[0].mxu0
    %v2896 = vadd.f32 0.0, %v2895
    %v2897 = vpop.f32.mrb[0].mxu0
    %v2898 = vadd.f32 0.0, %v2897
    %2899 = vmatprep.mubr.f32.mxu0 %v2078
    %2900 = vmatmul.mubr.f32.gmra.mrb[0].mxu0 %v2077
    %v2901 = vpop.f32.mrb[0].mxu0
    %v2902 = vadd.f32 0.0, %v2901
    %v2903 = vpop.f32.mrb[0].mxu0
    %v2904 = vadd.f32 0.0, %v2903
    %2905 = vmatprep.mubr.f32.mxu0 %v2080
    %2906 = vmatmul.mubr.f32.gmra.mrb[0].mxu0 %v2079
    %v2907 = vpop.f32.mrb[0].mxu0
    %v2908 = vadd.f32 0.0, %v2907
    %v2909 = vpop.f32.mrb[0].mxu0
    %v2910 = vadd.f32 0.0, %v2909
    %2911 = vmatprep.mubr.f32.mxu0 %v2082
    %2912 = vmatmul.mubr.f32.gmra.mrb[0].mxu0 %v2081
    %v2913 = vpop.f32.mrb[0].mxu0
    %v2914 = vadd.f32 0.0, %v2913
    %v2915 = vpop.f32.mrb[0].mxu0
    %v2916 = vadd.f32 0.0, %v2915
    %2917 = vmatprep.mubr.f32.mxu0 %v2084
    %2918 = vmatmul.mubr.f32.gmra.mrb[0].mxu0 %v2083
    %v2919 = vpop.f32.mrb[0].mxu0
    %v2920 = vadd.f32 0.0, %v2919
    %v2921 = vpop.f32.mrb[0].mxu0
    %v2922 = vadd.f32 0.0, %v2921
    %2923 = vmatprep.mubr.f32.mxu0 %v2086
    %2924 = vmatmul.mubr.f32.gmra.mrb[0].mxu0 %v2085
    %v2925 = vpop.f32.mrb[0].mxu0
    %v2926 = vadd.f32 0.0, %v2925
    %v2927 = vpop.f32.mrb[0].mxu0
    %v2928 = vadd.f32 0.0, %v2927
    %2929 = vmatprep.mubr.f32.mxu0 %v2088
    %2930 = vmatmul.mubr.f32.gmra.mrb[0].mxu0 %v2087
    %v2931 = vpop.f32.mrb[0].mxu0
    %v2932 = vadd.f32 0.0, %v2931
    %v2933 = vpop.f32.mrb[0].mxu0
    %v2934 = vadd.f32 0.0, %v2933
    %2935 = vmatprep.mubr.f32.mxu0 %v2090
    %2936 = vmatmul.mubr.f32.gmra.mrb[0].mxu0 %v2089
    %v2937 = vpop.f32.mrb[0].mxu0
    %v2938 = vadd.f32 0.0, %v2937
    %v2939 = vpop.f32.mrb[0].mxu0
    %v2940 = vadd.f32 0.0, %v2939
    %2941 = vdwg.mxu0
    %2942 = vmatprep.subr.mxu0 %v2098
    %2943 = vmatpush1.msra.mxu0 %v2097
    %2944 = vmatprep.subr.mxu0 %v2114
    %2945 = vmatpush1.msra.mxu0 %v2113
    %2946 = vmatprep.subr.mxu0 %v2130
    %2947 = vmatpush1.msra.mxu0 %v2129
    %2948 = vmatprep.subr.mxu0 %v2146
    %2949 = vmatpush1.msra.mxu0 %v2145
    %2950 = vmatprep.subr.mxu0 %v2162
    %2951 = vmatpush1.msra.mxu0 %v2161
    %2952 = vmatprep.subr.mxu0 %v2178
    %2953 = vmatpush1.msra.mxu0 %v2177
    %2954 = vmatprep.subr.mxu0 %v2194
    %2955 = vmatpush1.msra.mxu0 %v2193
    %2956 = vmatprep.subr.mxu0 %v2210
    %2957 = vmatpush1.msra.mxu0 %v2209
    %2958 = vmatprep.subr.mxu0 %v2226
    %2959 = vmatpush1.msra.mxu0 %v2225
    %2960 = vmatprep.subr.mxu0 %v2242
    %2961 = vmatpush1.msra.mxu0 %v2241
    %2962 = vmatprep.subr.mxu0 %v2258
    %2963 = vmatpush1.msra.mxu0 %v2257
    %2964 = vmatprep.subr.mxu0 %v2274
    %2965 = vmatpush1.msra.mxu0 %v2273
    %2966 = vmatprep.subr.mxu0 %v2290
    %2967 = vmatpush1.msra.mxu0 %v2289
    %2968 = vmatprep.subr.mxu0 %v2306
    %2969 = vmatpush1.msra.mxu0 %v2305
    %2970 = vmatprep.subr.mxu0 %v2322
    %2971 = vmatpush1.msra.mxu0 %v2321
    %2972 = vmatprep.subr.mxu0 %v2338
    %2973 = vmatpush1.msra.mxu0 %v2337
    %2974 = vmatprep.subr.mxu0 %v2354
    %2975 = vmatpush1.msra.mxu0 %v2353
    %2976 = vmatprep.subr.mxu0 %v2370
    %2977 = vmatpush1.msra.mxu0 %v2369
    %2978 = vmatprep.subr.mxu0 %v2386
    %2979 = vmatpush1.msra.mxu0 %v2385
    %2980 = vmatprep.subr.mxu0 %v2402
    %2981 = vmatpush1.msra.mxu0 %v2401
    %2982 = vmatprep.subr.mxu0 %v2418
    %2983 = vmatpush1.msra.mxu0 %v2417
    %2984 = vmatprep.subr.mxu0 %v2434
    %2985 = vmatpush1.msra.mxu0 %v2433
    %2986 = vmatprep.subr.mxu0 %v2450
    %2987 = vmatpush1.msra.mxu0 %v2449
    %2988 = vmatprep.subr.mxu0 %v2466
    %2989 = vmatpush1.msra.mxu0 %v2465
    %2990 = vmatprep.subr.mxu0 %v2482
    %2991 = vmatpush1.msra.mxu0 %v2481
    %2992 = vmatprep.subr.mxu0 %v2498
    %2993 = vmatpush1.msra.mxu0 %v2497
    %2994 = vmatprep.subr.mxu0 %v2514
    %2995 = vmatpush1.msra.mxu0 %v2513
    %2996 = vmatprep.subr.mxu0 %v2530
    %2997 = vmatpush1.msra.mxu0 %v2529
    %2998 = vmatprep.subr.mxu0 %v2546
    %2999 = vmatpush1.msra.mxu0 %v2545
    %3000 = vmatprep.subr.mxu0 %v2562
    %3001 = vmatpush1.msra.mxu0 %v2561
    %3002 = vmatprep.subr.mxu0 %v2578
    %3003 = vmatpush1.msra.mxu0 %v2577
    %3004 = vmatprep.subr.mxu0 %v2594
    %3005 = vmatpush1.msra.mxu0 %v2593
    %3006 = vmatprep.mubr.f32.mxu0 %v2076
    %3007 = vmatmul.mubr.f32.gmra.mrb[0].mxu0 %v2075
    %v3008 = vpop.f32.mrb[0].mxu0
    %v3009 = vadd.f32 0.0, %v3008
    %v3010 = vpop.f32.mrb[0].mxu0
    %v3011 = vadd.f32 0.0, %v3010
    %3012 = vmatprep.mubr.f32.mxu0 %v2078
    %3013 = vmatmul.mubr.f32.gmra.mrb[0].mxu0 %v2077
    %v3014 = vpop.f32.mrb[0].mxu0
    %v3015 = vadd.f32 0.0, %v3014
    %v3016 = vpop.f32.mrb[0].mxu0
    %v3017 = vadd.f32 0.0, %v3016
    %3018 = vmatprep.mubr.f32.mxu0 %v2080
    %3019 = vmatmul.mubr.f32.gmra.mrb[0].mxu0 %v2079
    %v3020 = vpop.f32.mrb[0].mxu0
    %v3021 = vadd.f32 0.0, %v3020
    %v3022 = vpop.f32.mrb[0].mxu0
    %v3023 = vadd.f32 0.0, %v3022
    %3024 = vmatprep.mubr.f32.mxu0 %v2082
    %3025 = vmatmul.mubr.f32.gmra.mrb[0].mxu0 %v2081
    %v3026 = vpop.f32.mrb[0].mxu0
    %v3027 = vadd.f32 0.0, %v3026
    %v3028 = vpop.f32.mrb[0].mxu0
    %v3029 = vadd.f32 0.0, %v3028
    %3030 = vmatprep.mubr.f32.mxu0 %v2084
    %3031 = vmatmul.mubr.f32.gmra.mrb[0].mxu0 %v2083
    %v3032 = vpop.f32.mrb[0].mxu0
    %v3033 = vadd.f32 0.0, %v3032
    %v3034 = vpop.f32.mrb[0].mxu0
    %v3035 = vadd.f32 0.0, %v3034
    %3036 = vmatprep.mubr.f32.mxu0 %v2086
    %3037 = vmatmul.mubr.f32.gmra.mrb[0].mxu0 %v2085
    %v3038 = vpop.f32.mrb[0].mxu0
    %v3039 = vadd.f32 0.0, %v3038
    %v3040 = vpop.f32.mrb[0].mxu0
    %v3041 = vadd.f32 0.0, %v3040
    %3042 = vmatprep.mubr.f32.mxu0 %v2088
    %3043 = vmatmul.mubr.f32.gmra.mrb[0].mxu0 %v2087
    %v3044 = vpop.f32.mrb[0].mxu0
    %v3045 = vadd.f32 0.0, %v3044
    %v3046 = vpop.f32.mrb[0].mxu0
    %v3047 = vadd.f32 0.0, %v3046
    %3048 = vmatprep.mubr.f32.mxu0 %v2090
    %3049 = vmatmul.mubr.f32.gmra.mrb[0].mxu0 %v2089
    %v3050 = vpop.f32.mrb[0].mxu0
    %v3051 = vadd.f32 0.0, %v3050
    %v3052 = vpop.f32.mrb[0].mxu0
    %v3053 = vadd.f32 0.0, %v3052
    %3054 = vdwg.mxu0
    %3055 = vmatprep.subr.mxu0 %v2100
    %3056 = vmatpush1.msra.mxu0 %v2099
    %3057 = vmatprep.subr.mxu0 %v2116
    %3058 = vmatpush1.msra.mxu0 %v2115
    %3059 = vmatprep.subr.mxu0 %v2132
    %3060 = vmatpush1.msra.mxu0 %v2131
    %3061 = vmatprep.subr.mxu0 %v2148
    %3062 = vmatpush1.msra.mxu0 %v2147
    %3063 = vmatprep.subr.mxu0 %v2164
    %3064 = vmatpush1.msra.mxu0 %v2163
    %3065 = vmatprep.subr.mxu0 %v2180
    %3066 = vmatpush1.msra.mxu0 %v2179
    %3067 = vmatprep.subr.mxu0 %v2196
    %3068 = vmatpush1.msra.mxu0 %v2195
    %3069 = vmatprep.subr.mxu0 %v2212
    %3070 = vmatpush1.msra.mxu0 %v2211
    %3071 = vmatprep.subr.mxu0 %v2228
    %3072 = vmatpush1.msra.mxu0 %v2227
    %3073 = vmatprep.subr.mxu0 %v2244
    %3074 = vmatpush1.msra.mxu0 %v2243
    %3075 = vmatprep.subr.mxu0 %v2260
    %3076 = vmatpush1.msra.mxu0 %v2259
    %3077 = vmatprep.subr.mxu0 %v2276
    %3078 = vmatpush1.msra.mxu0 %v2275
    %3079 = vmatprep.subr.mxu0 %v2292
    %3080 = vmatpush1.msra.mxu0 %v2291
    %3081 = vmatprep.subr.mxu0 %v2308
    %3082 = vmatpush1.msra.mxu0 %v2307
    %3083 = vmatprep.subr.mxu0 %v2324
    %3084 = vmatpush1.msra.mxu0 %v2323
    %3085 = vmatprep.subr.mxu0 %v2340
    %3086 = vmatpush1.msra.mxu0 %v2339
    %3087 = vmatprep.subr.mxu0 %v2356
    %3088 = vmatpush1.msra.mxu0 %v2355
    %3089 = vmatprep.subr.mxu0 %v2372
    %3090 = vmatpush1.msra.mxu0 %v2371
    %3091 = vmatprep.subr.mxu0 %v2388
    %3092 = vmatpush1.msra.mxu0 %v2387
    %3093 = vmatprep.subr.mxu0 %v2404
    %3094 = vmatpush1.msra.mxu0 %v2403
    %3095 = vmatprep.subr.mxu0 %v2420
    %3096 = vmatpush1.msra.mxu0 %v2419
    %3097 = vmatprep.subr.mxu0 %v2436
    %3098 = vmatpush1.msra.mxu0 %v2435
    %3099 = vmatprep.subr.mxu0 %v2452
    %3100 = vmatpush1.msra.mxu0 %v2451
    %3101 = vmatprep.subr.mxu0 %v2468
    %3102 = vmatpush1.msra.mxu0 %v2467
    %3103 = vmatprep.subr.mxu0 %v2484
    %3104 = vmatpush1.msra.mxu0 %v2483
    %3105 = vmatprep.subr.mxu0 %v2500
    %3106 = vmatpush1.msra.mxu0 %v2499
    %3107 = vmatprep.subr.mxu0 %v2516
    %3108 = vmatpush1.msra.mxu0 %v2515
    %3109 = vmatprep.subr.mxu0 %v2532
    %3110 = vmatpush1.msra.mxu0 %v2531
    %3111 = vmatprep.subr.mxu0 %v2548
    %3112 = vmatpush1.msra.mxu0 %v2547
    %3113 = vmatprep.subr.mxu0 %v2564
    %3114 = vmatpush1.msra.mxu0 %v2563
    %3115 = vmatprep.subr.mxu0 %v2580
    %3116 = vmatpush1.msra.mxu0 %v2579
    %3117 = vmatprep.subr.mxu0 %v2596
    %3118 = vmatpush1.msra.mxu0 %v2595
    %3119 = vmatprep.mubr.f32.mxu0 %v2076
    %3120 = vmatmul.mubr.f32.gmra.mrb[0].mxu0 %v2075
    %v3121 = vpop.f32.mrb[0].mxu0
    %v3122 = vadd.f32 0.0, %v3121
    %v3123 = vpop.f32.mrb[0].mxu0
    %v3124 = vadd.f32 0.0, %v3123
    %3125 = vmatprep.mubr.f32.mxu0 %v2078
    %3126 = vmatmul.mubr.f32.gmra.mrb[0].mxu0 %v2077
    %v3127 = vpop.f32.mrb[0].mxu0
    %v3128 = vadd.f32 0.0, %v3127
    %v3129 = vpop.f32.mrb[0].mxu0
    %v3130 = vadd.f32 0.0, %v3129
    %3131 = vmatprep.mubr.f32.mxu0 %v2080
    %3132 = vmatmul.mubr.f32.gmra.mrb[0].mxu0 %v2079
    %v3133 = vpop.f32.mrb[0].mxu0
    %v3134 = vadd.f32 0.0, %v3133
    %v3135 = vpop.f32.mrb[0].mxu0
    %v3136 = vadd.f32 0.0, %v3135
    %3137 = vmatprep.mubr.f32.mxu0 %v2082
    %3138 = vmatmul.mubr.f32.gmra.mrb[0].mxu0 %v2081
    %v3139 = vpop.f32.mrb[0].mxu0
    %v3140 = vadd.f32 0.0, %v3139
    %v3141 = vpop.f32.mrb[0].mxu0
    %v3142 = vadd.f32 0.0, %v3141
    %3143 = vmatprep.mubr.f32.mxu0 %v2084
    %3144 = vmatmul.mubr.f32.gmra.mrb[0].mxu0 %v2083
    %v3145 = vpop.f32.mrb[0].mxu0
    %v3146 = vadd.f32 0.0, %v3145
    %v3147 = vpop.f32.mrb[0].mxu0
    %v3148 = vadd.f32 0.0, %v3147
    %3149 = vmatprep.mubr.f32.mxu0 %v2086
    %3150 = vmatmul.mubr.f32.gmra.mrb[0].mxu0 %v2085
    %v3151 = vpop.f32.mrb[0].mxu0
    %v3152 = vadd.f32 0.0, %v3151
    %v3153 = vpop.f32.mrb[0].mxu0
    %v3154 = vadd.f32 0.0, %v3153
    %3155 = vmatprep.mubr.f32.mxu0 %v2088
    %3156 = vmatmul.mubr.f32.gmra.mrb[0].mxu0 %v2087
    %v3157 = vpop.f32.mrb[0].mxu0
    %v3158 = vadd.f32 0.0, %v3157
    %v3159 = vpop.f32.mrb[0].mxu0
    %v3160 = vadd.f32 0.0, %v3159
    %3161 = vmatprep.mubr.f32.mxu0 %v2090
    %3162 = vmatmul.mubr.f32.gmra.mrb[0].mxu0 %v2089
    %v3163 = vpop.f32.mrb[0].mxu0
    %v3164 = vadd.f32 0.0, %v3163
    %v3165 = vpop.f32.mrb[0].mxu0
    %v3166 = vadd.f32 0.0, %v3165
    %3167 = vdwg.mxu0
    %3168 = vmatprep.subr.mxu0 %v2102
    %3169 = vmatpush1.msra.mxu0 %v2101
    %3170 = vmatprep.subr.mxu0 %v2118
    %3171 = vmatpush1.msra.mxu0 %v2117
    %3172 = vmatprep.subr.mxu0 %v2134
    %3173 = vmatpush1.msra.mxu0 %v2133
    %3174 = vmatprep.subr.mxu0 %v2150
    %3175 = vmatpush1.msra.mxu0 %v2149
    %3176 = vmatprep.subr.mxu0 %v2166
    %3177 = vmatpush1.msra.mxu0 %v2165
    %3178 = vmatprep.subr.mxu0 %v2182
    %3179 = vmatpush1.msra.mxu0 %v2181
    %3180 = vmatprep.subr.mxu0 %v2198
    %3181 = vmatpush1.msra.mxu0 %v2197
    %3182 = vmatprep.subr.mxu0 %v2214
    %3183 = vmatpush1.msra.mxu0 %v2213
    %3184 = vmatprep.subr.mxu0 %v2230
    %3185 = vmatpush1.msra.mxu0 %v2229
    %3186 = vmatprep.subr.mxu0 %v2246
    %3187 = vmatpush1.msra.mxu0 %v2245
    %3188 = vmatprep.subr.mxu0 %v2262
    %3189 = vmatpush1.msra.mxu0 %v2261
    %3190 = vmatprep.subr.mxu0 %v2278
    %3191 = vmatpush1.msra.mxu0 %v2277
    %3192 = vmatprep.subr.mxu0 %v2294
    %3193 = vmatpush1.msra.mxu0 %v2293
    %3194 = vmatprep.subr.mxu0 %v2310
    %3195 = vmatpush1.msra.mxu0 %v2309
    %3196 = vmatprep.subr.mxu0 %v2326
    %3197 = vmatpush1.msra.mxu0 %v2325
    %3198 = vmatprep.subr.mxu0 %v2342
    %3199 = vmatpush1.msra.mxu0 %v2341
    %3200 = vmatprep.subr.mxu0 %v2358
    %3201 = vmatpush1.msra.mxu0 %v2357
    %3202 = vmatprep.subr.mxu0 %v2374
    %3203 = vmatpush1.msra.mxu0 %v2373
    %3204 = vmatprep.subr.mxu0 %v2390
    %3205 = vmatpush1.msra.mxu0 %v2389
    %3206 = vmatprep.subr.mxu0 %v2406
    %3207 = vmatpush1.msra.mxu0 %v2405
    %3208 = vmatprep.subr.mxu0 %v2422
    %3209 = vmatpush1.msra.mxu0 %v2421
    %3210 = vmatprep.subr.mxu0 %v2438
    %3211 = vmatpush1.msra.mxu0 %v2437
    %3212 = vmatprep.subr.mxu0 %v2454
    %3213 = vmatpush1.msra.mxu0 %v2453
    %3214 = vmatprep.subr.mxu0 %v2470
    %3215 = vmatpush1.msra.mxu0 %v2469
    %3216 = vmatprep.subr.mxu0 %v2486
    %3217 = vmatpush1.msra.mxu0 %v2485
    %3218 = vmatprep.subr.mxu0 %v2502
    %3219 = vmatpush1.msra.mxu0 %v2501
    %3220 = vmatprep.subr.mxu0 %v2518
    %3221 = vmatpush1.msra.mxu0 %v2517
    %3222 = vmatprep.subr.mxu0 %v2534
    %3223 = vmatpush1.msra.mxu0 %v2533
    %3224 = vmatprep.subr.mxu0 %v2550
    %3225 = vmatpush1.msra.mxu0 %v2549
    %3226 = vmatprep.subr.mxu0 %v2566
    %3227 = vmatpush1.msra.mxu0 %v2565
    %3228 = vmatprep.subr.mxu0 %v2582
    %3229 = vmatpush1.msra.mxu0 %v2581
    %3230 = vmatprep.subr.mxu0 %v2598
    %3231 = vmatpush1.msra.mxu0 %v2597
    %3232 = vmatprep.mubr.f32.mxu0 %v2076
    %3233 = vmatmul.mubr.f32.gmra.mrb[0].mxu0 %v2075
    %v3234 = vpop.f32.mrb[0].mxu0
    %v3235 = vadd.f32 0.0, %v3234
    %v3236 = vpop.f32.mrb[0].mxu0
    %v3237 = vadd.f32 0.0, %v3236
    %3238 = vmatprep.mubr.f32.mxu0 %v2078
    %3239 = vmatmul.mubr.f32.gmra.mrb[0].mxu0 %v2077
    %v3240 = vpop.f32.mrb[0].mxu0
    %v3241 = vadd.f32 0.0, %v3240
    %v3242 = vpop.f32.mrb[0].mxu0
    %v3243 = vadd.f32 0.0, %v3242
    %3244 = vmatprep.mubr.f32.mxu0 %v2080
    %3245 = vmatmul.mubr.f32.gmra.mrb[0].mxu0 %v2079
    %v3246 = vpop.f32.mrb[0].mxu0
    %v3247 = vadd.f32 0.0, %v3246
    %v3248 = vpop.f32.mrb[0].mxu0
    %v3249 = vadd.f32 0.0, %v3248
    %3250 = vmatprep.mubr.f32.mxu0 %v2082
    %3251 = vmatmul.mubr.f32.gmra.mrb[0].mxu0 %v2081
    %v3252 = vpop.f32.mrb[0].mxu0
    %v3253 = vadd.f32 0.0, %v3252
    %v3254 = vpop.f32.mrb[0].mxu0
    %v3255 = vadd.f32 0.0, %v3254
    %3256 = vmatprep.mubr.f32.mxu0 %v2084
    %3257 = vmatmul.mubr.f32.gmra.mrb[0].mxu0 %v2083
    %v3258 = vpop.f32.mrb[0].mxu0
    %v3259 = vadd.f32 0.0, %v3258
    %v3260 = vpop.f32.mrb[0].mxu0
    %v3261 = vadd.f32 0.0, %v3260
    %3262 = vmatprep.mubr.f32.mxu0 %v2086
    %3263 = vmatmul.mubr.f32.gmra.mrb[0].mxu0 %v2085
    %v3264 = vpop.f32.mrb[0].mxu0
    %v3265 = vadd.f32 0.0, %v3264
    %v3266 = vpop.f32.mrb[0].mxu0
    %v3267 = vadd.f32 0.0, %v3266
    %3268 = vmatprep.mubr.f32.mxu0 %v2088
    %3269 = vmatmul.mubr.f32.gmra.mrb[0].mxu0 %v2087
    %v3270 = vpop.f32.mrb[0].mxu0
    %v3271 = vadd.f32 0.0, %v3270
    %v3272 = vpop.f32.mrb[0].mxu0
    %v3273 = vadd.f32 0.0, %v3272
    %3274 = vmatprep.mubr.f32.mxu0 %v2090
    %3275 = vmatmul.mubr.f32.gmra.mrb[0].mxu0 %v2089
    %v3276 = vpop.f32.mrb[0].mxu0
    %v3277 = vadd.f32 0.0, %v3276
    %v3278 = vpop.f32.mrb[0].mxu0
    %v3279 = vadd.f32 0.0, %v3278
    %3280 = vdwg.mxu0
    %3281 = vmatprep.subr.mxu0 %v2104
    %3282 = vmatpush1.msra.mxu0 %v2103
    %3283 = vmatprep.subr.mxu0 %v2120
    %3284 = vmatpush1.msra.mxu0 %v2119
    %3285 = vmatprep.subr.mxu0 %v2136
    %3286 = vmatpush1.msra.mxu0 %v2135
    %3287 = vmatprep.subr.mxu0 %v2152
    %3288 = vmatpush1.msra.mxu0 %v2151
    %3289 = vmatprep.subr.mxu0 %v2168
    %3290 = vmatpush1.msra.mxu0 %v2167
    %3291 = vmatprep.subr.mxu0 %v2184
    %3292 = vmatpush1.msra.mxu0 %v2183
    %3293 = vmatprep.subr.mxu0 %v2200
    %3294 = vmatpush1.msra.mxu0 %v2199
    %3295 = vmatprep.subr.mxu0 %v2216
    %3296 = vmatpush1.msra.mxu0 %v2215
    %3297 = vmatprep.subr.mxu0 %v2232
    %3298 = vmatpush1.msra.mxu0 %v2231
    %3299 = vmatprep.subr.mxu0 %v2248
    %3300 = vmatpush1.msra.mxu0 %v2247
    %3301 = vmatprep.subr.mxu0 %v2264
    %3302 = vmatpush1.msra.mxu0 %v2263
    %3303 = vmatprep.subr.mxu0 %v2280
    %3304 = vmatpush1.msra.mxu0 %v2279
    %3305 = vmatprep.subr.mxu0 %v2296
    %3306 = vmatpush1.msra.mxu0 %v2295
    %3307 = vmatprep.subr.mxu0 %v2312
    %3308 = vmatpush1.msra.mxu0 %v2311
    %3309 = vmatprep.subr.mxu0 %v2328
    %3310 = vmatpush1.msra.mxu0 %v2327
    %3311 = vmatprep.subr.mxu0 %v2344
    %3312 = vmatpush1.msra.mxu0 %v2343
    %3313 = vmatprep.subr.mxu0 %v2360
    %3314 = vmatpush1.msra.mxu0 %v2359
    %3315 = vmatprep.subr.mxu0 %v2376
    %3316 = vmatpush1.msra.mxu0 %v2375
    %3317 = vmatprep.subr.mxu0 %v2392
    %3318 = vmatpush1.msra.mxu0 %v2391
    %3319 = vmatprep.subr.mxu0 %v2408
    %3320 = vmatpush1.msra.mxu0 %v2407
    %3321 = vmatprep.subr.mxu0 %v2424
    %3322 = vmatpush1.msra.mxu0 %v2423
    %3323 = vmatprep.subr.mxu0 %v2440
    %3324 = vmatpush1.msra.mxu0 %v2439
    %3325 = vmatprep.subr.mxu0 %v2456
    %3326 = vmatpush1.msra.mxu0 %v2455
    %3327 = vmatprep.subr.mxu0 %v2472
    %3328 = vmatpush1.msra.mxu0 %v2471
    %3329 = vmatprep.subr.mxu0 %v2488
    %3330 = vmatpush1.msra.mxu0 %v2487
    %3331 = vmatprep.subr.mxu0 %v2504
    %3332 = vmatpush1.msra.mxu0 %v2503
    %3333 = vmatprep.subr.mxu0 %v2520
    %3334 = vmatpush1.msra.mxu0 %v2519
    %3335 = vmatprep.subr.mxu0 %v2536
    %3336 = vmatpush1.msra.mxu0 %v2535
    %3337 = vmatprep.subr.mxu0 %v2552
    %3338 = vmatpush1.msra.mxu0 %v2551
    %3339 = vmatprep.subr.mxu0 %v2568
    %3340 = vmatpush1.msra.mxu0 %v2567
    %3341 = vmatprep.subr.mxu0 %v2584
    %3342 = vmatpush1.msra.mxu0 %v2583
    %3343 = vmatprep.subr.mxu0 %v2600
    %3344 = vmatpush1.msra.mxu0 %v2599
    %3345 = vmatprep.mubr.f32.mxu0 %v2076
    %3346 = vmatmul.mubr.f32.gmra.mrb[0].mxu0 %v2075
    %v3347 = vpop.f32.mrb[0].mxu0
    %v3348 = vadd.f32 0.0, %v3347
    %v3349 = vpop.f32.mrb[0].mxu0
    %v3350 = vadd.f32 0.0, %v3349
    %3351 = vmatprep.mubr.f32.mxu0 %v2078
    %3352 = vmatmul.mubr.f32.gmra.mrb[0].mxu0 %v2077
    %v3353 = vpop.f32.mrb[0].mxu0
    %v3354 = vadd.f32 0.0, %v3353
    %v3355 = vpop.f32.mrb[0].mxu0
    %v3356 = vadd.f32 0.0, %v3355
    %3357 = vmatprep.mubr.f32.mxu0 %v2080
    %3358 = vmatmul.mubr.f32.gmra.mrb[0].mxu0 %v2079
    %v3359 = vpop.f32.mrb[0].mxu0
    %v3360 = vadd.f32 0.0, %v3359
    %v3361 = vpop.f32.mrb[0].mxu0
    %v3362 = vadd.f32 0.0, %v3361
    %3363 = vmatprep.mubr.f32.mxu0 %v2082
    %3364 = vmatmul.mubr.f32.gmra.mrb[0].mxu0 %v2081
    %v3365 = vpop.f32.mrb[0].mxu0
    %v3366 = vadd.f32 0.0, %v3365
    %v3367 = vpop.f32.mrb[0].mxu0
    %v3368 = vadd.f32 0.0, %v3367
    %3369 = vmatprep.mubr.f32.mxu0 %v2084
    %3370 = vmatmul.mubr.f32.gmra.mrb[0].mxu0 %v2083
    %v3371 = vpop.f32.mrb[0].mxu0
    %v3372 = vadd.f32 0.0, %v3371
    %v3373 = vpop.f32.mrb[0].mxu0
    %v3374 = vadd.f32 0.0, %v3373
    %3375 = vmatprep.mubr.f32.mxu0 %v2086
    %3376 = vmatmul.mubr.f32.gmra.mrb[0].mxu0 %v2085
    %v3377 = vpop.f32.mrb[0].mxu0
    %v3378 = vadd.f32 0.0, %v3377
    %v3379 = vpop.f32.mrb[0].mxu0
    %v3380 = vadd.f32 0.0, %v3379
    %3381 = vmatprep.mubr.f32.mxu0 %v2088
    %3382 = vmatmul.mubr.f32.gmra.mrb[0].mxu0 %v2087
    %v3383 = vpop.f32.mrb[0].mxu0
    %v3384 = vadd.f32 0.0, %v3383
    %v3385 = vpop.f32.mrb[0].mxu0
    %v3386 = vadd.f32 0.0, %v3385
    %3387 = vmatprep.mubr.f32.mxu0 %v2090
    %3388 = vmatmul.mubr.f32.gmra.mrb[0].mxu0 %v2089
    %v3389 = vpop.f32.mrb[0].mxu0
    %v3390 = vadd.f32 0.0, %v3389
    %v3391 = vpop.f32.mrb[0].mxu0
    %v3392 = vadd.f32 0.0, %v3391
    %3393 = vdwg.mxu0
    %3394 = vmatprep.subr.mxu0 %v2106
    %3395 = vmatpush1.msra.mxu0 %v2105
    %3396 = vmatprep.subr.mxu0 %v2122
    %3397 = vmatpush1.msra.mxu0 %v2121
    %3398 = vmatprep.subr.mxu0 %v2138
    %3399 = vmatpush1.msra.mxu0 %v2137
    %3400 = vmatprep.subr.mxu0 %v2154
    %3401 = vmatpush1.msra.mxu0 %v2153
    %3402 = vmatprep.subr.mxu0 %v2170
    %3403 = vmatpush1.msra.mxu0 %v2169
    %3404 = vmatprep.subr.mxu0 %v2186
    %3405 = vmatpush1.msra.mxu0 %v2185
    %3406 = vmatprep.subr.mxu0 %v2202
    %3407 = vmatpush1.msra.mxu0 %v2201
    %3408 = vmatprep.subr.mxu0 %v2218
    %3409 = vmatpush1.msra.mxu0 %v2217
    %3410 = vmatprep.subr.mxu0 %v2234
    %3411 = vmatpush1.msra.mxu0 %v2233
    %3412 = vmatprep.subr.mxu0 %v2250
    %3413 = vmatpush1.msra.mxu0 %v2249
    %3414 = vmatprep.subr.mxu0 %v2266
    %3415 = vmatpush1.msra.mxu0 %v2265
    %3416 = vmatprep.subr.mxu0 %v2282
    %3417 = vmatpush1.msra.mxu0 %v2281
    %3418 = vmatprep.subr.mxu0 %v2298
    %3419 = vmatpush1.msra.mxu0 %v2297
    %3420 = vmatprep.subr.mxu0 %v2314
    %3421 = vmatpush1.msra.mxu0 %v2313
    %3422 = vmatprep.subr.mxu0 %v2330
    %3423 = vmatpush1.msra.mxu0 %v2329
    %3424 = vmatprep.subr.mxu0 %v2346
    %3425 = vmatpush1.msra.mxu0 %v2345
    %3426 = vmatprep.subr.mxu0 %v2362
    %3427 = vmatpush1.msra.mxu0 %v2361
    %3428 = vmatprep.subr.mxu0 %v2378
    %3429 = vmatpush1.msra.mxu0 %v2377
    %3430 = vmatprep.subr.mxu0 %v2394
    %3431 = vmatpush1.msra.mxu0 %v2393
    %3432 = vmatprep.subr.mxu0 %v2410
    %3433 = vmatpush1.msra.mxu0 %v2409
    %3434 = vmatprep.subr.mxu0 %v2426
    %3435 = vmatpush1.msra.mxu0 %v2425
    %3436 = vmatprep.subr.mxu0 %v2442
    %3437 = vmatpush1.msra.mxu0 %v2441
    %3438 = vmatprep.subr.mxu0 %v2458
    %3439 = vmatpush1.msra.mxu0 %v2457
    %3440 = vmatprep.subr.mxu0 %v2474
    %3441 = vmatpush1.msra.mxu0 %v2473
    %3442 = vmatprep.subr.mxu0 %v2490
    %3443 = vmatpush1.msra.mxu0 %v2489
    %3444 = vmatprep.subr.mxu0 %v2506
    %3445 = vmatpush1.msra.mxu0 %v2505
    %3446 = vmatprep.subr.mxu0 %v2522
    %3447 = vmatpush1.msra.mxu0 %v2521
    %3448 = vmatprep.subr.mxu0 %v2538
    %3449 = vmatpush1.msra.mxu0 %v2537
    %3450 = vmatprep.subr.mxu0 %v2554
    %3451 = vmatpush1.msra.mxu0 %v2553
    %3452 = vmatprep.subr.mxu0 %v2570
    %3453 = vmatpush1.msra.mxu0 %v2569
    %3454 = vmatprep.subr.mxu0 %v2586
    %3455 = vmatpush1.msra.mxu0 %v2585
    %3456 = vmatprep.subr.mxu0 %v2602
    %3457 = vmatpush1.msra.mxu0 %v2601
    %3458 = vmatprep.mubr.f32.mxu0 %v2076
    %3459 = vmatmul.mubr.f32.gmra.mrb[0].mxu0 %v2075
    %v3460 = vpop.f32.mrb[0].mxu0
    %v3461 = vadd.f32 0.0, %v3460
    %v3462 = vpop.f32.mrb[0].mxu0
    %v3463 = vadd.f32 0.0, %v3462
    %3464 = vmatprep.mubr.f32.mxu0 %v2078
    %3465 = vmatmul.mubr.f32.gmra.mrb[0].mxu0 %v2077
    %v3466 = vpop.f32.mrb[0].mxu0
    %v3467 = vadd.f32 0.0, %v3466
    %v3468 = vpop.f32.mrb[0].mxu0
    %v3469 = vadd.f32 0.0, %v3468
    %3470 = vmatprep.mubr.f32.mxu0 %v2080
    %3471 = vmatmul.mubr.f32.gmra.mrb[0].mxu0 %v2079
    %v3472 = vpop.f32.mrb[0].mxu0
    %v3473 = vadd.f32 0.0, %v3472
    %v3474 = vpop.f32.mrb[0].mxu0
    %v3475 = vadd.f32 0.0, %v3474
    %3476 = vmatprep.mubr.f32.mxu0 %v2082
    %3477 = vmatmul.mubr.f32.gmra.mrb[0].mxu0 %v2081
    %v3478 = vpop.f32.mrb[0].mxu0
    %v3479 = vadd.f32 0.0, %v3478
    %v3480 = vpop.f32.mrb[0].mxu0
    %v3481 = vadd.f32 0.0, %v3480
    %3482 = vmatprep.mubr.f32.mxu0 %v2084
    %3483 = vmatmul.mubr.f32.gmra.mrb[0].mxu0 %v2083
    %v3484 = vpop.f32.mrb[0].mxu0
    %v3485 = vadd.f32 0.0, %v3484
    %v3486 = vpop.f32.mrb[0].mxu0
    %v3487 = vadd.f32 0.0, %v3486
    %3488 = vmatprep.mubr.f32.mxu0 %v2086
    %3489 = vmatmul.mubr.f32.gmra.mrb[0].mxu0 %v2085
    %v3490 = vpop.f32.mrb[0].mxu0
    %v3491 = vadd.f32 0.0, %v3490
    %v3492 = vpop.f32.mrb[0].mxu0
    %v3493 = vadd.f32 0.0, %v3492
    %3494 = vmatprep.mubr.f32.mxu0 %v2088
    %3495 = vmatmul.mubr.f32.gmra.mrb[0].mxu0 %v2087
    %v3496 = vpop.f32.mrb[0].mxu0
    %v3497 = vadd.f32 0.0, %v3496
    %v3498 = vpop.f32.mrb[0].mxu0
    %v3499 = vadd.f32 0.0, %v3498
    %3500 = vmatprep.mubr.f32.mxu0 %v2090
    %3501 = vmatmul.mubr.f32.gmra.mrb[0].mxu0 %v2089
    %v3502 = vpop.f32.mrb[0].mxu0
    %v3503 = vadd.f32 0.0, %v3502
    %v3504 = vpop.f32.mrb[0].mxu0
    %v3505 = vadd.f32 0.0, %v3504
    %3506 = vdwg.mxu0
    %3507 = vst [vmem:[#allocation2] sm:$0xff] %v2670
    %3508 = vst [vmem:[#allocation2 + $0x8] sm:$0xff] %v2676
    %3509 = vst [vmem:[#allocation2 + $0x10] sm:$0xff] %v2682
    %3510 = vst [vmem:[#allocation2 + $0x18] sm:$0xff] %v2688
    %3511 = vst [vmem:[#allocation2 + $0x20] sm:$0xff] %v2694
    %3512 = vst [vmem:[#allocation2 + $0x28] sm:$0xff] %v2700
    %3513 = vst [vmem:[#allocation2 + $0x30] sm:$0xff] %v2706
    %3514 = vst [vmem:[#allocation2 + $0x38] sm:$0xff] %v2712
    %3515 = vst [vmem:[#allocation2 + $0x40] sm:$0xff] %v2672
    %3516 = vst [vmem:[#allocation2 + $0x48] sm:$0xff] %v2678
    %3517 = vst [vmem:[#allocation2 + $0x50] sm:$0xff] %v2684
    %3518 = vst [vmem:[#allocation2 + $0x58] sm:$0xff] %v2690
    %3519 = vst [vmem:[#allocation2 + $0x60] sm:$0xff] %v2696
    %3520 = vst [vmem:[#allocation2 + $0x68] sm:$0xff] %v2702
    %3521 = vst [vmem:[#allocation2 + $0x70] sm:$0xff] %v2708
    %3522 = vst [vmem:[#allocation2 + $0x78] sm:$0xff] %v2714
    %3523 = vst [vmem:[#allocation2 + $0x80] sm:$0xff] %v2783
    %3524 = vst [vmem:[#allocation2 + $0x88] sm:$0xff] %v2789
    %3525 = vst [vmem:[#allocation2 + $0x90] sm:$0xff] %v2795
    %3526 = vst [vmem:[#allocation2 + $0x98] sm:$0xff] %v2801
    %3527 = vst [vmem:[#allocation2 + $0xa0] sm:$0xff] %v2807
    %3528 = vst [vmem:[#allocation2 + $0xa8] sm:$0xff] %v2813
    %3529 = vst [vmem:[#allocation2 + $0xb0] sm:$0xff] %v2819
    %3530 = vst [vmem:[#allocation2 + $0xb8] sm:$0xff] %v2825
    %3531 = vst [vmem:[#allocation2 + $0xc0] sm:$0xff] %v2785
    %3532 = vst [vmem:[#allocation2 + $0xc8] sm:$0xff] %v2791
    %3533 = vst [vmem:[#allocation2 + $0xd0] sm:$0xff] %v2797
    %3534 = vst [vmem:[#allocation2 + $0xd8] sm:$0xff] %v2803
    %3535 = vst [vmem:[#allocation2 + $0xe0] sm:$0xff] %v2809
    %3536 = vst [vmem:[#allocation2 + $0xe8] sm:$0xff] %v2815
    %3537 = vst [vmem:[#allocation2 + $0xf0] sm:$0xff] %v2821
    %3538 = vst [vmem:[#allocation2 + $0xf8] sm:$0xff] %v2827
    %3539 = vst [vmem:[#allocation2 + $0x100] sm:$0xff] %v2896
    %3540 = vst [vmem:[#allocation2 + $0x108] sm:$0xff] %v2902
    %3541 = vst [vmem:[#allocation2 + $0x110] sm:$0xff] %v2908
    %3542 = vst [vmem:[#allocation2 + $0x118] sm:$0xff] %v2914
    %3543 = vst [vmem:[#allocation2 + $0x120] sm:$0xff] %v2920
    %3544 = vst [vmem:[#allocation2 + $0x128] sm:$0xff] %v2926
    %3545 = vst [vmem:[#allocation2 + $0x130] sm:$0xff] %v2932
    %3546 = vst [vmem:[#allocation2 + $0x138] sm:$0xff] %v2938
    %3547 = vst [vmem:[#allocation2 + $0x140] sm:$0xff] %v2898
    %3548 = vst [vmem:[#allocation2 + $0x148] sm:$0xff] %v2904
    %3549 = vst [vmem:[#allocation2 + $0x150] sm:$0xff] %v2910
    %3550 = vst [vmem:[#allocation2 + $0x158] sm:$0xff] %v2916
    %3551 = vst [vmem:[#allocation2 + $0x160] sm:$0xff] %v2922
    %3552 = vst [vmem:[#allocation2 + $0x168] sm:$0xff] %v2928
    %3553 = vst [vmem:[#allocation2 + $0x170] sm:$0xff] %v2934
    %3554 = vst [vmem:[#allocation2 + $0x178] sm:$0xff] %v2940
    %3555 = vst [vmem:[#allocation2 + $0x180] sm:$0xff] %v3009
    %3556 = vst [vmem:[#allocation2 + $0x188] sm:$0xff] %v3015
    %3557 = vst [vmem:[#allocation2 + $0x190] sm:$0xff] %v3021
    %3558 = vst [vmem:[#allocation2 + $0x198] sm:$0xff] %v3027
    %3559 = vst [vmem:[#allocation2 + $0x1a0] sm:$0xff] %v3033
    %3560 = vst [vmem:[#allocation2 + $0x1a8] sm:$0xff] %v3039
    %3561 = vst [vmem:[#allocation2 + $0x1b0] sm:$0xff] %v3045
    %3562 = vst [vmem:[#allocation2 + $0x1b8] sm:$0xff] %v3051
    %3563 = vst [vmem:[#allocation2 + $0x1c0] sm:$0xff] %v3011
    %3564 = vst [vmem:[#allocation2 + $0x1c8] sm:$0xff] %v3017
    %3565 = vst [vmem:[#allocation2 + $0x1d0] sm:$0xff] %v3023
    %3566 = vst [vmem:[#allocation2 + $0x1d8] sm:$0xff] %v3029
    %3567 = vst [vmem:[#allocation2 + $0x1e0] sm:$0xff] %v3035
    %3568 = vst [vmem:[#allocation2 + $0x1e8] sm:$0xff] %v3041
    %3569 = vst [vmem:[#allocation2 + $0x1f0] sm:$0xff] %v3047
    %3570 = vst [vmem:[#allocation2 + $0x1f8] sm:$0xff] %v3053
    %3571 = vst [vmem:[#allocation2 + $0x200] sm:$0xff] %v3122
    %3572 = vst [vmem:[#allocation2 + $0x208] sm:$0xff] %v3128
    %3573 = vst [vmem:[#allocation2 + $0x210] sm:$0xff] %v3134
    %3574 = vst [vmem:[#allocation2 + $0x218] sm:$0xff] %v3140
    %3575 = vst [vmem:[#allocation2 + $0x220] sm:$0xff] %v3146
    %3576 = vst [vmem:[#allocation2 + $0x228] sm:$0xff] %v3152
    %3577 = vst [vmem:[#allocation2 + $0x230] sm:$0xff] %v3158
    %3578 = vst [vmem:[#allocation2 + $0x238] sm:$0xff] %v3164
    %3579 = vst [vmem:[#allocation2 + $0x240] sm:$0xff] %v3124
    %3580 = vst [vmem:[#allocation2 + $0x248] sm:$0xff] %v3130
    %3581 = vst [vmem:[#allocation2 + $0x250] sm:$0xff] %v3136
    %3582 = vst [vmem:[#allocation2 + $0x258] sm:$0xff] %v3142
    %3583 = vst [vmem:[#allocation2 + $0x260] sm:$0xff] %v3148
    %3584 = vst [vmem:[#allocation2 + $0x268] sm:$0xff] %v3154
    %3585 = vst [vmem:[#allocation2 + $0x270] sm:$0xff] %v3160
    %3586 = vst [vmem:[#allocation2 + $0x278] sm:$0xff] %v3166
    %3587 = vst [vmem:[#allocation2 + $0x280] sm:$0xff] %v3235
    %3588 = vst [vmem:[#allocation2 + $0x288] sm:$0xff] %v3241
    %3589 = vst [vmem:[#allocation2 + $0x290] sm:$0xff] %v3247
    %3590 = vst [vmem:[#allocation2 + $0x298] sm:$0xff] %v3253
    %3591 = vst [vmem:[#allocation2 + $0x2a0] sm:$0xff] %v3259
    %3592 = vst [vmem:[#allocation2 + $0x2a8] sm:$0xff] %v3265
    %3593 = vst [vmem:[#allocation2 + $0x2b0] sm:$0xff] %v3271
    %3594 = vst [vmem:[#allocation2 + $0x2b8] sm:$0xff] %v3277
    %3595 = vst [vmem:[#allocation2 + $0x2c0] sm:$0xff] %v3237
    %3596 = vst [vmem:[#allocation2 + $0x2c8] sm:$0xff] %v3243
    %3597 = vst [vmem:[#allocation2 + $0x2d0] sm:$0xff] %v3249
    %3598 = vst [vmem:[#allocation2 + $0x2d8] sm:$0xff] %v3255
    %3599 = vst [vmem:[#allocation2 + $0x2e0] sm:$0xff] %v3261
    %3600 = vst [vmem:[#allocation2 + $0x2e8] sm:$0xff] %v3267
    %3601 = vst [vmem:[#allocation2 + $0x2f0] sm:$0xff] %v3273
    %3602 = vst [vmem:[#allocation2 + $0x2f8] sm:$0xff] %v3279
    %3603 = vst [vmem:[#allocation2 + $0x300] sm:$0xff] %v3348
    %3604 = vst [vmem:[#allocation2 + $0x308] sm:$0xff] %v3354
    %3605 = vst [vmem:[#allocation2 + $0x310] sm:$0xff] %v3360
    %3606 = vst [vmem:[#allocation2 + $0x318] sm:$0xff] %v3366
    %3607 = vst [vmem:[#allocation2 + $0x320] sm:$0xff] %v3372
    %3608 = vst [vmem:[#allocation2 + $0x328] sm:$0xff] %v3378
    %3609 = vst [vmem:[#allocation2 + $0x330] sm:$0xff] %v3384
    %3610 = vst [vmem:[#allocation2 + $0x338] sm:$0xff] %v3390
    %3611 = vst [vmem:[#allocation2 + $0x340] sm:$0xff] %v3350
    %3612 = vst [vmem:[#allocation2 + $0x348] sm:$0xff] %v3356
    %3613 = vst [vmem:[#allocation2 + $0x350] sm:$0xff] %v3362
    %3614 = vst [vmem:[#allocation2 + $0x358] sm:$0xff] %v3368
    %3615 = vst [vmem:[#allocation2 + $0x360] sm:$0xff] %v3374
    %3616 = vst [vmem:[#allocation2 + $0x368] sm:$0xff] %v3380
    %3617 = vst [vmem:[#allocation2 + $0x370] sm:$0xff] %v3386
    %3618 = vst [vmem:[#allocation2 + $0x378] sm:$0xff] %v3392
    %3619 = vst [vmem:[#allocation2 + $0x380] sm:$0xff] %v3461
    %3620 = vst [vmem:[#allocation2 + $0x388] sm:$0xff] %v3467
    %3621 = vst [vmem:[#allocation2 + $0x390] sm:$0xff] %v3473
    %3622 = vst [vmem:[#allocation2 + $0x398] sm:$0xff] %v3479
    %3623 = vst [vmem:[#allocation2 + $0x3a0] sm:$0xff] %v3485
    %3624 = vst [vmem:[#allocation2 + $0x3a8] sm:$0xff] %v3491
    %3625 = vst [vmem:[#allocation2 + $0x3b0] sm:$0xff] %v3497
    %3626 = vst [vmem:[#allocation2 + $0x3b8] sm:$0xff] %v3503
    %3627 = vst [vmem:[#allocation2 + $0x3c0] sm:$0xff] %v3463
    %3628 = vst [vmem:[#allocation2 + $0x3c8] sm:$0xff] %v3469
    %3629 = vst [vmem:[#allocation2 + $0x3d0] sm:$0xff] %v3475
    %3630 = vst [vmem:[#allocation2 + $0x3d8] sm:$0xff] %v3481
    %3631 = vst [vmem:[#allocation2 + $0x3e0] sm:$0xff] %v3487
    %3632 = vst [vmem:[#allocation2 + $0x3e8] sm:$0xff] %v3493
    %3633 = vst [vmem:[#allocation2 + $0x3f0] sm:$0xff] %v3499
    %3634 = vst [vmem:[#allocation2 + $0x3f8] sm:$0xff] %v3505
    %v3635 = vld [vmem:[#allocation2] sm:$0xff]
    %v3636 = vld [vmem:[#allocation2 + $0x8] sm:$0xff]
    %v3637 = vld [vmem:[#allocation2 + $0x10] sm:$0xff]
    %v3638 = vld [vmem:[#allocation2 + $0x18] sm:$0xff]
    %v3639 = vld [vmem:[#allocation2 + $0x20] sm:$0xff]
    %v3640 = vld [vmem:[#allocation2 + $0x28] sm:$0xff]
    %v3641 = vld [vmem:[#allocation2 + $0x30] sm:$0xff]
    %v3642 = vld [vmem:[#allocation2 + $0x38] sm:$0xff]
    %v3643 = vld [vmem:[#allocation2 + $0x40] sm:$0xff]
    %v3644 = vld [vmem:[#allocation2 + $0x48] sm:$0xff]
    %v3645 = vld [vmem:[#allocation2 + $0x50] sm:$0xff]
    %v3646 = vld [vmem:[#allocation2 + $0x58] sm:$0xff]
    %v3647 = vld [vmem:[#allocation2 + $0x60] sm:$0xff]
    %v3648 = vld [vmem:[#allocation2 + $0x68] sm:$0xff]
    %v3649 = vld [vmem:[#allocation2 + $0x70] sm:$0xff]
    %v3650 = vld [vmem:[#allocation2 + $0x78] sm:$0xff]
    %v3651 = vld [vmem:[#allocation2 + $0x80] sm:$0xff]
    %v3652 = vld [vmem:[#allocation2 + $0x88] sm:$0xff]
    %v3653 = vld [vmem:[#allocation2 + $0x90] sm:$0xff]
    %v3654 = vld [vmem:[#allocation2 + $0x98] sm:$0xff]
    %v3655 = vld [vmem:[#allocation2 + $0xa0] sm:$0xff]
    %v3656 = vld [vmem:[#allocation2 + $0xa8] sm:$0xff]
    %v3657 = vld [vmem:[#allocation2 + $0xb0] sm:$0xff]
    %v3658 = vld [vmem:[#allocation2 + $0xb8] sm:$0xff]
    %v3659 = vld [vmem:[#allocation2 + $0xc0] sm:$0xff]
    %v3660 = vld [vmem:[#allocation2 + $0xc8] sm:$0xff]
    %v3661 = vld [vmem:[#allocation2 + $0xd0] sm:$0xff]
    %v3662 = vld [vmem:[#allocation2 + $0xd8] sm:$0xff]
    %v3663 = vld [vmem:[#allocation2 + $0xe0] sm:$0xff]
    %v3664 = vld [vmem:[#allocation2 + $0xe8] sm:$0xff]
    %v3665 = vld [vmem:[#allocation2 + $0xf0] sm:$0xff]
    %v3666 = vld [vmem:[#allocation2 + $0xf8] sm:$0xff]
    %v3667 = vld [vmem:[#allocation2 + $0x100] sm:$0xff]
    %v3668 = vld [vmem:[#allocation2 + $0x108] sm:$0xff]
    %v3669 = vld [vmem:[#allocation2 + $0x110] sm:$0xff]
    %v3670 = vld [vmem:[#allocation2 + $0x118] sm:$0xff]
    %v3671 = vld [vmem:[#allocation2 + $0x120] sm:$0xff]
    %v3672 = vld [vmem:[#allocation2 + $0x128] sm:$0xff]
    %v3673 = vld [vmem:[#allocation2 + $0x130] sm:$0xff]
    %v3674 = vld [vmem:[#allocation2 + $0x138] sm:$0xff]
    %v3675 = vld [vmem:[#allocation2 + $0x140] sm:$0xff]
    %v3676 = vld [vmem:[#allocation2 + $0x148] sm:$0xff]
    %v3677 = vld [vmem:[#allocation2 + $0x150] sm:$0xff]
    %v3678 = vld [vmem:[#allocation2 + $0x158] sm:$0xff]
    %v3679 = vld [vmem:[#allocation2 + $0x160] sm:$0xff]
    %v3680 = vld [vmem:[#allocation2 + $0x168] sm:$0xff]
    %v3681 = vld [vmem:[#allocation2 + $0x170] sm:$0xff]
    %v3682 = vld [vmem:[#allocation2 + $0x178] sm:$0xff]
    %v3683 = vld [vmem:[#allocation2 + $0x180] sm:$0xff]
    %v3684 = vld [vmem:[#allocation2 + $0x188] sm:$0xff]
    %v3685 = vld [vmem:[#allocation2 + $0x190] sm:$0xff]
    %v3686 = vld [vmem:[#allocation2 + $0x198] sm:$0xff]
    %v3687 = vld [vmem:[#allocation2 + $0x1a0] sm:$0xff]
    %v3688 = vld [vmem:[#allocation2 + $0x1a8] sm:$0xff]
    %v3689 = vld [vmem:[#allocation2 + $0x1b0] sm:$0xff]
    %v3690 = vld [vmem:[#allocation2 + $0x1b8] sm:$0xff]
    %v3691 = vld [vmem:[#allocation2 + $0x1c0] sm:$0xff]
    %v3692 = vld [vmem:[#allocation2 + $0x1c8] sm:$0xff]
    %v3693 = vld [vmem:[#allocation2 + $0x1d0] sm:$0xff]
    %v3694 = vld [vmem:[#allocation2 + $0x1d8] sm:$0xff]
    %v3695 = vld [vmem:[#allocation2 + $0x1e0] sm:$0xff]
    %v3696 = vld [vmem:[#allocation2 + $0x1e8] sm:$0xff]
    %v3697 = vld [vmem:[#allocation2 + $0x1f0] sm:$0xff]
    %v3698 = vld [vmem:[#allocation2 + $0x1f8] sm:$0xff]
    %v3699 = vld [vmem:[#allocation2 + $0x200] sm:$0xff]
    %v3700 = vld [vmem:[#allocation2 + $0x208] sm:$0xff]
    %v3701 = vld [vmem:[#allocation2 + $0x210] sm:$0xff]
    %v3702 = vld [vmem:[#allocation2 + $0x218] sm:$0xff]
    %v3703 = vld [vmem:[#allocation2 + $0x220] sm:$0xff]
    %v3704 = vld [vmem:[#allocation2 + $0x228] sm:$0xff]
    %v3705 = vld [vmem:[#allocation2 + $0x230] sm:$0xff]
    %v3706 = vld [vmem:[#allocation2 + $0x238] sm:$0xff]
    %v3707 = vld [vmem:[#allocation2 + $0x240] sm:$0xff]
    %v3708 = vld [vmem:[#allocation2 + $0x248] sm:$0xff]
    %v3709 = vld [vmem:[#allocation2 + $0x250] sm:$0xff]
    %v3710 = vld [vmem:[#allocation2 + $0x258] sm:$0xff]
    %v3711 = vld [vmem:[#allocation2 + $0x260] sm:$0xff]
    %v3712 = vld [vmem:[#allocation2 + $0x268] sm:$0xff]
    %v3713 = vld [vmem:[#allocation2 + $0x270] sm:$0xff]
    %v3714 = vld [vmem:[#allocation2 + $0x278] sm:$0xff]
    %v3715 = vld [vmem:[#allocation2 + $0x280] sm:$0xff]
    %v3716 = vld [vmem:[#allocation2 + $0x288] sm:$0xff]
    %v3717 = vld [vmem:[#allocation2 + $0x290] sm:$0xff]
    %v3718 = vld [vmem:[#allocation2 + $0x298] sm:$0xff]
    %v3719 = vld [vmem:[#allocation2 + $0x2a0] sm:$0xff]
    %v3720 = vld [vmem:[#allocation2 + $0x2a8] sm:$0xff]
    %v3721 = vld [vmem:[#allocation2 + $0x2b0] sm:$0xff]
    %v3722 = vld [vmem:[#allocation2 + $0x2b8] sm:$0xff]
    %v3723 = vld [vmem:[#allocation2 + $0x2c0] sm:$0xff]
    %v3724 = vld [vmem:[#allocation2 + $0x2c8] sm:$0xff]
    %v3725 = vld [vmem:[#allocation2 + $0x2d0] sm:$0xff]
    %v3726 = vld [vmem:[#allocation2 + $0x2d8] sm:$0xff]
    %v3727 = vld [vmem:[#allocation2 + $0x2e0] sm:$0xff]
    %v3728 = vld [vmem:[#allocation2 + $0x2e8] sm:$0xff]
    %v3729 = vld [vmem:[#allocation2 + $0x2f0] sm:$0xff]
    %v3730 = vld [vmem:[#allocation2 + $0x2f8] sm:$0xff]
    %v3731 = vld [vmem:[#allocation2 + $0x300] sm:$0xff]
    %v3732 = vld [vmem:[#allocation2 + $0x308] sm:$0xff]
    %v3733 = vld [vmem:[#allocation2 + $0x310] sm:$0xff]
    %v3734 = vld [vmem:[#allocation2 + $0x318] sm:$0xff]
    %v3735 = vld [vmem:[#allocation2 + $0x320] sm:$0xff]
    %v3736 = vld [vmem:[#allocation2 + $0x328] sm:$0xff]
    %v3737 = vld [vmem:[#allocation2 + $0x330] sm:$0xff]
    %v3738 = vld [vmem:[#allocation2 + $0x338] sm:$0xff]
    %v3739 = vld [vmem:[#allocation2 + $0x340] sm:$0xff]
    %v3740 = vld [vmem:[#allocation2 + $0x348] sm:$0xff]
    %v3741 = vld [vmem:[#allocation2 + $0x350] sm:$0xff]
    %v3742 = vld [vmem:[#allocation2 + $0x358] sm:$0xff]
    %v3743 = vld [vmem:[#allocation2 + $0x360] sm:$0xff]
    %v3744 = vld [vmem:[#allocation2 + $0x368] sm:$0xff]
    %v3745 = vld [vmem:[#allocation2 + $0x370] sm:$0xff]
    %v3746 = vld [vmem:[#allocation2 + $0x378] sm:$0xff]
    %v3747 = vld [vmem:[#allocation2 + $0x380] sm:$0xff]
    %v3748 = vld [vmem:[#allocation2 + $0x388] sm:$0xff]
    %v3749 = vld [vmem:[#allocation2 + $0x390] sm:$0xff]
    %v3750 = vld [vmem:[#allocation2 + $0x398] sm:$0xff]
    %v3751 = vld [vmem:[#allocation2 + $0x3a0] sm:$0xff]
    %v3752 = vld [vmem:[#allocation2 + $0x3a8] sm:$0xff]
    %v3753 = vld [vmem:[#allocation2 + $0x3b0] sm:$0xff]
    %v3754 = vld [vmem:[#allocation2 + $0x3b8] sm:$0xff]
    %v3755 = vld [vmem:[#allocation2 + $0x3c0] sm:$0xff]
    %v3756 = vld [vmem:[#allocation2 + $0x3c8] sm:$0xff]
    %v3757 = vld [vmem:[#allocation2 + $0x3d0] sm:$0xff]
    %v3758 = vld [vmem:[#allocation2 + $0x3d8] sm:$0xff]
    %v3759 = vld [vmem:[#allocation2 + $0x3e0] sm:$0xff]
    %v3760 = vld [vmem:[#allocation2 + $0x3e8] sm:$0xff]
    %v3761 = vld [vmem:[#allocation2 + $0x3f0] sm:$0xff]
    %v3762 = vld [vmem:[#allocation2 + $0x3f8] sm:$0xff]
    %v3763 = vadd.f32 %v3635, %v3636
    %v3764 = vadd.f32 %v3763, %v3637
    %v3765 = vadd.f32 %v3764, %v3638
    %v3766 = vadd.f32 %v3765, %v3639
    %v3767 = vadd.f32 %v3766, %v3640
    %v3768 = vadd.f32 %v3767, %v3641
    %v3769 = vadd.f32 %v3768, %v3642
    %v3770 = vadd.f32 %v3769, %v3643
    %v3771 = vadd.f32 %v3770, %v3644
    %v3772 = vadd.f32 %v3771, %v3645
    %v3773 = vadd.f32 %v3772, %v3646
    %v3774 = vadd.f32 %v3773, %v3647
    %v3775 = vadd.f32 %v3774, %v3648
    %v3776 = vadd.f32 %v3775, %v3649
    %v3777 = vadd.f32 %v3776, %v3650
    %v3778 = vadd.f32 %v3777, %v3651
    %v3779 = vadd.f32 %v3778, %v3652
    %v3780 = vadd.f32 %v3779, %v3653
    %v3781 = vadd.f32 %v3780, %v3654
    %v3782 = vadd.f32 %v3781, %v3655
    %v3783 = vadd.f32 %v3782, %v3656
    %v3784 = vadd.f32 %v3783, %v3657
    %v3785 = vadd.f32 %v3784, %v3658
    %v3786 = vadd.f32 %v3785, %v3659
    %v3787 = vadd.f32 %v3786, %v3660
    %v3788 = vadd.f32 %v3787, %v3661
    %v3789 = vadd.f32 %v3788, %v3662
    %v3790 = vadd.f32 %v3789, %v3663
    %v3791 = vadd.f32 %v3790, %v3664
    %v3792 = vadd.f32 %v3791, %v3665
    %v3793 = vadd.f32 %v3792, %v3666
    %v3794 = vadd.f32 %v3793, %v3667
    %v3795 = vadd.f32 %v3794, %v3668
    %v3796 = vadd.f32 %v3795, %v3669
    %v3797 = vadd.f32 %v3796, %v3670
    %v3798 = vadd.f32 %v3797, %v3671
    %v3799 = vadd.f32 %v3798, %v3672
    %v3800 = vadd.f32 %v3799, %v3673
    %v3801 = vadd.f32 %v3800, %v3674
    %v3802 = vadd.f32 %v3801, %v3675
    %v3803 = vadd.f32 %v3802, %v3676
    %v3804 = vadd.f32 %v3803, %v3677
    %v3805 = vadd.f32 %v3804, %v3678
    %v3806 = vadd.f32 %v3805, %v3679
    %v3807 = vadd.f32 %v3806, %v3680
    %v3808 = vadd.f32 %v3807, %v3681
    %v3809 = vadd.f32 %v3808, %v3682
    %v3810 = vadd.f32 %v3809, %v3683
    %v3811 = vadd.f32 %v3810, %v3684
    %v3812 = vadd.f32 %v3811, %v3685
    %v3813 = vadd.f32 %v3812, %v3686
    %v3814 = vadd.f32 %v3813, %v3687
    %v3815 = vadd.f32 %v3814, %v3688
    %v3816 = vadd.f32 %v3815, %v3689
    %v3817 = vadd.f32 %v3816, %v3690
    %v3818 = vadd.f32 %v3817, %v3691
    %v3819 = vadd.f32 %v3818, %v3692
    %v3820 = vadd.f32 %v3819, %v3693
    %v3821 = vadd.f32 %v3820, %v3694
    %v3822 = vadd.f32 %v3821, %v3695
    %v3823 = vadd.f32 %v3822, %v3696
    %v3824 = vadd.f32 %v3823, %v3697
    %v3825 = vadd.f32 %v3824, %v3698
    %v3826 = vadd.f32 %v3825, %v3699
    %v3827 = vadd.f32 %v3826, %v3700
    %v3828 = vadd.f32 %v3827, %v3701
    %v3829 = vadd.f32 %v3828, %v3702
    %v3830 = vadd.f32 %v3829, %v3703
    %v3831 = vadd.f32 %v3830, %v3704
    %v3832 = vadd.f32 %v3831, %v3705
    %v3833 = vadd.f32 %v3832, %v3706
    %v3834 = vadd.f32 %v3833, %v3707
    %v3835 = vadd.f32 %v3834, %v3708
    %v3836 = vadd.f32 %v3835, %v3709
    %v3837 = vadd.f32 %v3836, %v3710
    %v3838 = vadd.f32 %v3837, %v3711
    %v3839 = vadd.f32 %v3838, %v3712
    %v3840 = vadd.f32 %v3839, %v3713
    %v3841 = vadd.f32 %v3840, %v3714
    %v3842 = vadd.f32 %v3841, %v3715
    %v3843 = vadd.f32 %v3842, %v3716
    %v3844 = vadd.f32 %v3843, %v3717
    %v3845 = vadd.f32 %v3844, %v3718
    %v3846 = vadd.f32 %v3845, %v3719
    %v3847 = vadd.f32 %v3846, %v3720
    %v3848 = vadd.f32 %v3847, %v3721
    %v3849 = vadd.f32 %v3848, %v3722
    %v3850 = vadd.f32 %v3849, %v3723
    %v3851 = vadd.f32 %v3850, %v3724
    %v3852 = vadd.f32 %v3851, %v3725
    %v3853 = vadd.f32 %v3852, %v3726
    %v3854 = vadd.f32 %v3853, %v3727
    %v3855 = vadd.f32 %v3854, %v3728
    %v3856 = vadd.f32 %v3855, %v3729
    %v3857 = vadd.f32 %v3856, %v3730
    %v3858 = vadd.f32 %v3857, %v3731
    %v3859 = vadd.f32 %v3858, %v3732
    %v3860 = vadd.f32 %v3859, %v3733
    %v3861 = vadd.f32 %v3860, %v3734
    %v3862 = vadd.f32 %v3861, %v3735
    %v3863 = vadd.f32 %v3862, %v3736
    %v3864 = vadd.f32 %v3863, %v3737
    %v3865 = vadd.f32 %v3864, %v3738
    %v3866 = vadd.f32 %v3865, %v3739
    %v3867 = vadd.f32 %v3866, %v3740
    %v3868 = vadd.f32 %v3867, %v3741
    %v3869 = vadd.f32 %v3868, %v3742
    %v3870 = vadd.f32 %v3869, %v3743
    %v3871 = vadd.f32 %v3870, %v3744
    %v3872 = vadd.f32 %v3871, %v3745
    %v3873 = vadd.f32 %v3872, %v3746
    %v3874 = vadd.f32 %v3873, %v3747
    %v3875 = vadd.f32 %v3874, %v3748
    %v3876 = vadd.f32 %v3875, %v3749
    %v3877 = vadd.f32 %v3876, %v3750
    %v3878 = vadd.f32 %v3877, %v3751
    %v3879 = vadd.f32 %v3878, %v3752
    %v3880 = vadd.f32 %v3879, %v3753
    %v3881 = vadd.f32 %v3880, %v3754
    %v3882 = vadd.f32 %v3881, %v3755
    %v3883 = vadd.f32 %v3882, %v3756
    %v3884 = vadd.f32 %v3883, %v3757
    %v3885 = vadd.f32 %v3884, %v3758
    %v3886 = vadd.f32 %v3885, %v3759
    %v3887 = vadd.f32 %v3886, %v3760
    %v3888 = vadd.f32 %v3887, %v3761
    %v3889 = vadd.f32 %v3888, %v3762
    %v3890 = vrot.slane %v3889, 4
    %v3891 = vadd.f32 %v3889, %v3890
    %v3892 = vrot.slane %v3891, 2
    %v3893 = vadd.f32 %v3891, %v3892
    %v3894 = vrot.slane %v3893, 1
    %v3895 = vadd.f32 %v3893, %v3894
    %v3896 = vmul.f32 %v3635, %v3635
    %v3897 = vmul.f32 %v3636, %v3636
    %v3898 = vmul.f32 %v3637, %v3637
    %v3899 = vmul.f32 %v3638, %v3638
    %v3900 = vmul.f32 %v3639, %v3639
    %v3901 = vmul.f32 %v3640, %v3640
    %v3902 = vmul.f32 %v3641, %v3641
    %v3903 = vmul.f32 %v3642, %v3642
    %v3904 = vmul.f32 %v3643, %v3643
    %v3905 = vmul.f32 %v3644, %v3644
    %v3906 = vmul.f32 %v3645, %v3645
    %v3907 = vmul.f32 %v3646, %v3646
    %v3908 = vmul.f32 %v3647, %v3647
    %v3909 = vmul.f32 %v3648, %v3648
    %v3910 = vmul.f32 %v3649, %v3649
    %v3911 = vmul.f32 %v3650, %v3650
    %v3912 = vmul.f32 %v3651, %v3651
    %v3913 = vmul.f32 %v3652, %v3652
    %v3914 = vmul.f32 %v3653, %v3653
    %v3915 = vmul.f32 %v3654, %v3654
    %v3916 = vmul.f32 %v3655, %v3655
    %v3917 = vmul.f32 %v3656, %v3656
    %v3918 = vmul.f32 %v3657, %v3657
    %v3919 = vmul.f32 %v3658, %v3658
    %v3920 = vmul.f32 %v3659, %v3659
    %v3921 = vmul.f32 %v3660, %v3660
    %v3922 = vmul.f32 %v3661, %v3661
    %v3923 = vmul.f32 %v3662, %v3662
    %v3924 = vmul.f32 %v3663, %v3663
    %v3925 = vmul.f32 %v3664, %v3664
    %v3926 = vmul.f32 %v3665, %v3665
    %v3927 = vmul.f32 %v3666, %v3666
    %v3928 = vmul.f32 %v3667, %v3667
    %v3929 = vmul.f32 %v3668, %v3668
    %v3930 = vmul.f32 %v3669, %v3669
    %v3931 = vmul.f32 %v3670, %v3670
    %v3932 = vmul.f32 %v3671, %v3671
    %v3933 = vmul.f32 %v3672, %v3672
    %v3934 = vmul.f32 %v3673, %v3673
    %v3935 = vmul.f32 %v3674, %v3674
    %v3936 = vmul.f32 %v3675, %v3675
    %v3937 = vmul.f32 %v3676, %v3676
    %v3938 = vmul.f32 %v3677, %v3677
    %v3939 = vmul.f32 %v3678, %v3678
    %v3940 = vmul.f32 %v3679, %v3679
    %v3941 = vmul.f32 %v3680, %v3680
    %v3942 = vmul.f32 %v3681, %v3681
    %v3943 = vmul.f32 %v3682, %v3682
    %v3944 = vmul.f32 %v3683, %v3683
    %v3945 = vmul.f32 %v3684, %v3684
    %v3946 = vmul.f32 %v3685, %v3685
    %v3947 = vmul.f32 %v3686, %v3686
    %v3948 = vmul.f32 %v3687, %v3687
    %v3949 = vmul.f32 %v3688, %v3688
    %v3950 = vmul.f32 %v3689, %v3689
    %v3951 = vmul.f32 %v3690, %v3690
    %v3952 = vmul.f32 %v3691, %v3691
    %v3953 = vmul.f32 %v3692, %v3692
    %v3954 = vmul.f32 %v3693, %v3693
    %v3955 = vmul.f32 %v3694, %v3694
    %v3956 = vmul.f32 %v3695, %v3695
    %v3957 = vmul.f32 %v3696, %v3696
    %v3958 = vmul.f32 %v3697, %v3697
    %v3959 = vmul.f32 %v3698, %v3698
    %v3960 = vmul.f32 %v3699, %v3699
    %v3961 = vmul.f32 %v3700, %v3700
    %v3962 = vmul.f32 %v3701, %v3701
    %v3963 = vmul.f32 %v3702, %v3702
    %v3964 = vmul.f32 %v3703, %v3703
    %v3965 = vmul.f32 %v3704, %v3704
    %v3966 = vmul.f32 %v3705, %v3705
    %v3967 = vmul.f32 %v3706, %v3706
    %v3968 = vmul.f32 %v3707, %v3707
    %v3969 = vmul.f32 %v3708, %v3708
    %v3970 = vmul.f32 %v3709, %v3709
    %v3971 = vmul.f32 %v3710, %v3710
    %v3972 = vmul.f32 %v3711, %v3711
    %v3973 = vmul.f32 %v3712, %v3712
    %v3974 = vmul.f32 %v3713, %v3713
    %v3975 = vmul.f32 %v3714, %v3714
    %v3976 = vmul.f32 %v3715, %v3715
    %v3977 = vmul.f32 %v3716, %v3716
    %v3978 = vmul.f32 %v3717, %v3717
    %v3979 = vmul.f32 %v3718, %v3718
    %v3980 = vmul.f32 %v3719, %v3719
    %v3981 = vmul.f32 %v3720, %v3720
    %v3982 = vmul.f32 %v3721, %v3721
    %v3983 = vmul.f32 %v3722, %v3722
    %v3984 = vmul.f32 %v3723, %v3723
    %v3985 = vmul.f32 %v3724, %v3724
    %v3986 = vmul.f32 %v3725, %v3725
    %v3987 = vmul.f32 %v3726, %v3726
    %v3988 = vmul.f32 %v3727, %v3727
    %v3989 = vmul.f32 %v3728, %v3728
    %v3990 = vmul.f32 %v3729, %v3729
    %v3991 = vmul.f32 %v3730, %v3730
    %v3992 = vmul.f32 %v3731, %v3731
    %v3993 = vmul.f32 %v3732, %v3732
    %v3994 = vmul.f32 %v3733, %v3733
    %v3995 = vmul.f32 %v3734, %v3734
    %v3996 = vmul.f32 %v3735, %v3735
    %v3997 = vmul.f32 %v3736, %v3736
    %v3998 = vmul.f32 %v3737, %v3737
    %v3999 = vmul.f32 %v3738, %v3738
    %v4000 = vmul.f32 %v3739, %v3739
    %v4001 = vmul.f32 %v3740, %v3740
    %v4002 = vmul.f32 %v3741, %v3741
    %v4003 = vmul.f32 %v3742, %v3742
    %v4004 = vmul.f32 %v3743, %v3743
    %v4005 = vmul.f32 %v3744, %v3744
    %v4006 = vmul.f32 %v3745, %v3745
    %v4007 = vmul.f32 %v3746, %v3746
    %v4008 = vmul.f32 %v3747, %v3747
    %v4009 = vmul.f32 %v3748, %v3748
    %v4010 = vmul.f32 %v3749, %v3749
    %v4011 = vmul.f32 %v3750, %v3750
    %v4012 = vmul.f32 %v3751, %v3751
    %v4013 = vmul.f32 %v3752, %v3752
    %v4014 = vmul.f32 %v3753, %v3753
    %v4015 = vmul.f32 %v3754, %v3754
    %v4016 = vmul.f32 %v3755, %v3755
    %v4017 = vmul.f32 %v3756, %v3756
    %v4018 = vmul.f32 %v3757, %v3757
    %v4019 = vmul.f32 %v3758, %v3758
    %v4020 = vmul.f32 %v3759, %v3759
    %v4021 = vmul.f32 %v3760, %v3760
    %v4022 = vmul.f32 %v3761, %v3761
    %v4023 = vmul.f32 %v3762, %v3762
    %v4024 = vadd.f32 %v3896, %v3897
    %v4025 = vadd.f32 %v4024, %v3898
    %v4026 = vadd.f32 %v4025, %v3899
    %v4027 = vadd.f32 %v4026, %v3900
    %v4028 = vadd.f32 %v4027, %v3901
    %v4029 = vadd.f32 %v4028, %v3902
    %v4030 = vadd.f32 %v4029, %v3903
    %v4031 = vadd.f32 %v4030, %v3904
    %v4032 = vadd.f32 %v4031, %v3905
    %v4033 = vadd.f32 %v4032, %v3906
    %v4034 = vadd.f32 %v4033, %v3907
    %v4035 = vadd.f32 %v4034, %v3908
    %v4036 = vadd.f32 %v4035, %v3909
    %v4037 = vadd.f32 %v4036, %v3910
    %v4038 = vadd.f32 %v4037, %v3911
    %v4039 = vadd.f32 %v4038, %v3912
    %v4040 = vadd.f32 %v4039, %v3913
    %v4041 = vadd.f32 %v4040, %v3914
    %v4042 = vadd.f32 %v4041, %v3915
    %v4043 = vadd.f32 %v4042, %v3916
    %v4044 = vadd.f32 %v4043, %v3917
    %v4045 = vadd.f32 %v4044, %v3918
    %v4046 = vadd.f32 %v4045, %v3919
    %v4047 = vadd.f32 %v4046, %v3920
    %v4048 = vadd.f32 %v4047, %v3921
    %v4049 = vadd.f32 %v4048, %v3922
    %v4050 = vadd.f32 %v4049, %v3923
    %v4051 = vadd.f32 %v4050, %v3924
    %v4052 = vadd.f32 %v4051, %v3925
    %v4053 = vadd.f32 %v4052, %v3926
    %v4054 = vadd.f32 %v4053, %v3927
    %v4055 = vadd.f32 %v4054, %v3928
    %v4056 = vadd.f32 %v4055, %v3929
    %v4057 = vadd.f32 %v4056, %v3930
    %v4058 = vadd.f32 %v4057, %v3931
    %v4059 = vadd.f32 %v4058, %v3932
    %v4060 = vadd.f32 %v4059, %v3933
    %v4061 = vadd.f32 %v4060, %v3934
    %v4062 = vadd.f32 %v4061, %v3935
    %v4063 = vadd.f32 %v4062, %v3936
    %v4064 = vadd.f32 %v4063, %v3937
    %v4065 = vadd.f32 %v4064, %v3938
    %v4066 = vadd.f32 %v4065, %v3939
    %v4067 = vadd.f32 %v4066, %v3940
    %v4068 = vadd.f32 %v4067, %v3941
    %v4069 = vadd.f32 %v4068, %v3942
    %v4070 = vadd.f32 %v4069, %v3943
    %v4071 = vadd.f32 %v4070, %v3944
    %v4072 = vadd.f32 %v4071, %v3945
    %v4073 = vadd.f32 %v4072, %v3946
    %v4074 = vadd.f32 %v4073, %v3947
    %v4075 = vadd.f32 %v4074, %v3948
    %v4076 = vadd.f32 %v4075, %v3949
    %v4077 = vadd.f32 %v4076, %v3950
    %v4078 = vadd.f32 %v4077, %v3951
    %v4079 = vadd.f32 %v4078, %v3952
    %v4080 = vadd.f32 %v4079, %v3953
    %v4081 = vadd.f32 %v4080, %v3954
    %v4082 = vadd.f32 %v4081, %v3955
    %v4083 = vadd.f32 %v4082, %v3956
    %v4084 = vadd.f32 %v4083, %v3957
    %v4085 = vadd.f32 %v4084, %v3958
    %v4086 = vadd.f32 %v4085, %v3959
    %v4087 = vadd.f32 %v4086, %v3960
    %v4088 = vadd.f32 %v4087, %v3961
    %v4089 = vadd.f32 %v4088, %v3962
    %v4090 = vadd.f32 %v4089, %v3963
    %v4091 = vadd.f32 %v4090, %v3964
    %v4092 = vadd.f32 %v4091, %v3965
    %v4093 = vadd.f32 %v4092, %v3966
    %v4094 = vadd.f32 %v4093, %v3967
    %v4095 = vadd.f32 %v4094, %v3968
    %v4096 = vadd.f32 %v4095, %v3969
    %v4097 = vadd.f32 %v4096, %v3970
    %v4098 = vadd.f32 %v4097, %v3971
    %v4099 = vadd.f32 %v4098, %v3972
    %v4100 = vadd.f32 %v4099, %v3973
    %v4101 = vadd.f32 %v4100, %v3974
    %v4102 = vadd.f32 %v4101, %v3975
    %v4103 = vadd.f32 %v4102, %v3976
    %v4104 = vadd.f32 %v4103, %v3977
    %v4105 = vadd.f32 %v4104, %v3978
    %v4106 = vadd.f32 %v4105, %v3979
    %v4107 = vadd.f32 %v4106, %v3980
    %v4108 = vadd.f32 %v4107, %v3981
    %v4109 = vadd.f32 %v4108, %v3982
    %v4110 = vadd.f32 %v4109, %v3983
    %v4111 = vadd.f32 %v4110, %v3984
    %v4112 = vadd.f32 %v4111, %v3985
    %v4113 = vadd.f32 %v4112, %v3986
    %v4114 = vadd.f32 %v4113, %v3987
    %v4115 = vadd.f32 %v4114, %v3988
    %v4116 = vadd.f32 %v4115, %v3989
    %v4117 = vadd.f32 %v4116, %v3990
    %v4118 = vadd.f32 %v4117, %v3991
    %v4119 = vadd.f32 %v4118, %v3992
    %v4120 = vadd.f32 %v4119, %v3993
    %v4121 = vadd.f32 %v4120, %v3994
    %v4122 = vadd.f32 %v4121, %v3995
    %v4123 = vadd.f32 %v4122, %v3996
    %v4124 = vadd.f32 %v4123, %v3997
    %v4125 = vadd.f32 %v4124, %v3998
    %v4126 = vadd.f32 %v4125, %v3999
    %v4127 = vadd.f32 %v4126, %v4000
    %v4128 = vadd.f32 %v4127, %v4001
    %v4129 = vadd.f32 %v4128, %v4002
    %v4130 = vadd.f32 %v4129, %v4003
    %v4131 = vadd.f32 %v4130, %v4004
    %v4132 = vadd.f32 %v4131, %v4005
    %v4133 = vadd.f32 %v4132, %v4006
    %v4134 = vadd.f32 %v4133, %v4007
    %v4135 = vadd.f32 %v4134, %v4008
    %v4136 = vadd.f32 %v4135, %v4009
    %v4137 = vadd.f32 %v4136, %v4010
    %v4138 = vadd.f32 %v4137, %v4011
    %v4139 = vadd.f32 %v4138, %v4012
    %v4140 = vadd.f32 %v4139, %v4013
    %v4141 = vadd.f32 %v4140, %v4014
    %v4142 = vadd.f32 %v4141, %v4015
    %v4143 = vadd.f32 %v4142, %v4016
    %v4144 = vadd.f32 %v4143, %v4017
    %v4145 = vadd.f32 %v4144, %v4018
    %v4146 = vadd.f32 %v4145, %v4019
    %v4147 = vadd.f32 %v4146, %v4020
    %v4148 = vadd.f32 %v4147, %v4021
    %v4149 = vadd.f32 %v4148, %v4022
    %v4150 = vadd.f32 %v4149, %v4023
    %v4151 = vrot.slane %v4150, 4
    %v4152 = vadd.f32 %v4150, %v4151
    %v4153 = vrot.slane %v4152, 2
    %v4154 = vadd.f32 %v4152, %v4153
    %v4155 = vrot.slane %v4154, 1
    %v4156 = vadd.f32 %v4154, %v4155
    %v4157 = vsel %vm571, %v3895, %v4156
    %v4158 = vld [vmem:[%s22] sm:$0xff]
    %v4159 = vld [vmem:[%s22 + $0x8] sm:$0xff]
    %v4160 = vld [vmem:[%s22 + $0x10] sm:$0xff]
    %v4161 = vld [vmem:[%s22 + $0x18] sm:$0xff]
    %v4162 = vld [vmem:[%s22 + $0x20] sm:$0xff]
    %v4163 = vld [vmem:[%s22 + $0x28] sm:$0xff]
    %v4164 = vld [vmem:[%s22 + $0x30] sm:$0xff]
    %v4165 = vld [vmem:[%s22 + $0x38] sm:$0xff]
    %v4166 = vld [vmem:[%s22 + $0x40] sm:$0xff]
    %v4167 = vld [vmem:[%s22 + $0x48] sm:$0xff]
    %v4168 = vld [vmem:[%s22 + $0x50] sm:$0xff]
    %v4169 = vld [vmem:[%s22 + $0x58] sm:$0xff]
    %v4170 = vld [vmem:[%s22 + $0x60] sm:$0xff]
    %v4171 = vld [vmem:[%s22 + $0x68] sm:$0xff]
    %v4172 = vld [vmem:[%s22 + $0x70] sm:$0xff]
    %v4173 = vld [vmem:[%s22 + $0x78] sm:$0xff]
    %4174 = vmatprep.subr.mxu0 0.0
    %4175 = vmatpush1.msra.mxu0 %v4158
    %4176 = vmatprep.subr.mxu0 0.0
    %4177 = vmatpush1.msra.mxu0 %v4159
    %4178 = vmatprep.subr.mxu0 0.0
    %4179 = vmatpush1.msra.mxu0 %v4160
    %4180 = vmatprep.subr.mxu0 0.0
    %4181 = vmatpush1.msra.mxu0 %v4161
    %4182 = vmatprep.subr.mxu0 0.0
    %4183 = vmatpush1.msra.mxu0 %v4162
    %4184 = vmatprep.subr.mxu0 0.0
    %4185 = vmatpush1.msra.mxu0 %v4163
    %4186 = vmatprep.subr.mxu0 0.0
    %4187 = vmatpush1.msra.mxu0 %v4164
    %4188 = vmatprep.subr.mxu0 0.0
    %4189 = vmatpush1.msra.mxu0 %v4165
    %4190 = vmatprep.subr.mxu0 0.0
    %4191 = vmatpush1.msra.mxu0 %v4166
    %4192 = vmatprep.subr.mxu0 0.0
    %4193 = vmatpush1.msra.mxu0 %v4167
    %4194 = vmatprep.subr.mxu0 0.0
    %4195 = vmatpush1.msra.mxu0 %v4168
    %4196 = vmatprep.subr.mxu0 0.0
    %4197 = vmatpush1.msra.mxu0 %v4169
    %4198 = vmatprep.subr.mxu0 0.0
    %4199 = vmatpush1.msra.mxu0 %v4170
    %4200 = vmatprep.subr.mxu0 0.0
    %4201 = vmatpush1.msra.mxu0 %v4171
    %4202 = vmatprep.subr.mxu0 0.0
    %4203 = vmatpush1.msra.mxu0 %v4172
    %4204 = vmatprep.subr.mxu0 0.0
    %4205 = vmatpush1.msra.mxu0 %v4173
    %4206 = vmatprep.subr.mxu0 0.0
    %4207 = vmatpush1.msra.mxu0 0.0
    %4208 = vmatprep.subr.mxu0 0.0
    %4209 = vmatpush1.msra.mxu0 0.0
    %4210 = vmatprep.subr.mxu0 0.0
    %4211 = vmatpush1.msra.mxu0 0.0
    %4212 = vmatprep.subr.mxu0 0.0
    %4213 = vmatpush1.msra.mxu0 0.0
    %4214 = vmatprep.subr.mxu0 0.0
    %4215 = vmatpush1.msra.mxu0 0.0
    %4216 = vmatprep.subr.mxu0 0.0
    %4217 = vmatpush1.msra.mxu0 0.0
    %4218 = vmatprep.subr.mxu0 0.0
    %4219 = vmatpush1.msra.mxu0 0.0
    %4220 = vmatprep.subr.mxu0 0.0
    %4221 = vmatpush1.msra.mxu0 0.0
    %4222 = vmatprep.subr.mxu0 0.0
    %4223 = vmatpush1.msra.mxu0 0.0
    %4224 = vmatprep.subr.mxu0 0.0
    %4225 = vmatpush1.msra.mxu0 0.0
    %4226 = vmatprep.subr.mxu0 0.0
    %4227 = vmatpush1.msra.mxu0 0.0
    %4228 = vmatprep.subr.mxu0 0.0
    %4229 = vmatpush1.msra.mxu0 0.0
    %4230 = vmatprep.subr.mxu0 0.0
    %4231 = vmatpush1.msra.mxu0 0.0
    %4232 = vmatprep.subr.mxu0 0.0
    %4233 = vmatpush1.msra.mxu0 0.0
    %4234 = vmatprep.subr.mxu0 0.0
    %4235 = vmatpush1.msra.mxu0 0.0
    %4236 = vmatprep.subr.mxu0 0.0
    %4237 = vmatpush1.msra.mxu0 0.0
    %4238 = vmatprep.mubr.f32.mxu0 0.0
    %4239 = vmatmul.mubr.f32.gmra.mrb[0].mxu0 %v4157
    %v4240 = vpop.f32.mrb[0].mxu0
    %v4241 = vadd.f32 0.0, %v4240
    %v4242 = vpop.f32.mrb[0].mxu0
    %4243 = vdwg.mxu0
    %v4244 = vmul.f32 %v4241, %v4241
    %v4246 = vrot.slane %v4244, 7
    %v4248 = vsub.f32 %v4241, %v4246
    %v4249 = vmax.f32 %v4248, 0.0
    %v4250 = vld [vmem:[#allocation32] sm:$0x1]
    %v4251 = vadd.f32 %v4249, 1e-05
    %v4252 = vrsqrt.pop %v4251
    %v4255 = vunpack.c.l.s4 1966171168
    %v4256 = vunpack.c.0.s8 %v4255
    %v4257 = vlaneseq
    %v4258 = vshrl.u32 %v4257, 7
    %v4259 = vsub.s32 %v4256, %v4258
    %v4260 = vrot.slane %v4252, %v4259
    %v4261 = vcombine.high %v4260, %v4260
    %v4263 = vunpack.c.l.s4 1966171168
    %v4264 = vunpack.c.0.s8 %v4263
    %v4265 = vlaneseq
    %v4266 = vshrl.u32 %v4265, 7
    %v4267 = vsub.s32 %v4264, %v4266
    %v4268 = vrot.slane %v4261, %v4267
    %v4270 = vmul.f32 %v4250, %v4268
    %v4271 = vld [vmem:[#allocation34] sm:$0x1]
    %v4272 = vmul.f32 %v4241, %v4270
    %v4273 = vsub.f32 %v4271, %v4272
    %v4275 = vlaneseq
    %v4276 = vshrl.u32 %v4275, 7
    %v4277 = vsub.s32 0, %v4276
    %v4278 = vrot.slane %v4273, %v4277
    %v4280 = vsel %vm571, %v4270, %v4278
    %v4281 = vld [vmem:[#allocation31] sm:$0xff]
    %v4282 = vld [vmem:[#allocation31 + $0x8] sm:$0xff]
    %v4284 = vsel %vm1489, %v4280, 0
    %4286 = vmatprep.subr.mxu0 0.0
    %4287 = vmatpush1.msra.mxu0 %v4281
    %4288 = vmatprep.subr.mxu0 0.0
    %4289 = vmatpush1.msra.mxu0 %v4282
    %4290 = vmatprep.subr.mxu0 0.0
    %4291 = vmatpush1.msra.mxu0 0.0
    %4292 = vmatprep.subr.mxu0 0.0
    %4293 = vmatpush1.msra.mxu0 0.0
    %4294 = vmatprep.subr.mxu0 0.0
    %4295 = vmatpush1.msra.mxu0 0.0
    %4296 = vmatprep.subr.mxu0 0.0
    %4297 = vmatpush1.msra.mxu0 0.0
    %4298 = vmatprep.subr.mxu0 0.0
    %4299 = vmatpush1.msra.mxu0 0.0
    %4300 = vmatprep.subr.mxu0 0.0
    %4301 = vmatpush1.msra.mxu0 0.0
    %4302 = vmatprep.subr.mxu0 0.0
    %4303 = vmatpush1.msra.mxu0 0.0
    %4304 = vmatprep.subr.mxu0 0.0
    %4305 = vmatpush1.msra.mxu0 0.0
    %4306 = vmatprep.subr.mxu0 0.0
    %4307 = vmatpush1.msra.mxu0 0.0
    %4308 = vmatprep.subr.mxu0 0.0
    %4309 = vmatpush1.msra.mxu0 0.0
    %4310 = vmatprep.subr.mxu0 0.0
    %4311 = vmatpush1.msra.mxu0 0.0
    %4312 = vmatprep.subr.mxu0 0.0
    %4313 = vmatpush1.msra.mxu0 0.0
    %4314 = vmatprep.subr.mxu0 0.0
    %4315 = vmatpush1.msra.mxu0 0.0
    %4316 = vmatprep.subr.mxu0 0.0
    %4317 = vmatpush1.msra.mxu0 0.0
    %4318 = vmatprep.subr.mxu0 0.0
    %4319 = vmatpush1.msra.mxu0 0.0
    %4320 = vmatprep.subr.mxu0 0.0
    %4321 = vmatpush1.msra.mxu0 0.0
    %4322 = vmatprep.subr.mxu0 0.0
    %4323 = vmatpush1.msra.mxu0 0.0
    %4324 = vmatprep.subr.mxu0 0.0
    %4325 = vmatpush1.msra.mxu0 0.0
    %4326 = vmatprep.subr.mxu0 0.0
    %4327 = vmatpush1.msra.mxu0 0.0
    %4328 = vmatprep.subr.mxu0 0.0
    %4329 = vmatpush1.msra.mxu0 0.0
    %4330 = vmatprep.subr.mxu0 0.0
    %4331 = vmatpush1.msra.mxu0 0.0
    %4332 = vmatprep.subr.mxu0 0.0
    %4333 = vmatpush1.msra.mxu0 0.0
    %4334 = vmatprep.subr.mxu0 0.0
    %4335 = vmatpush1.msra.mxu0 0.0
    %4336 = vmatprep.subr.mxu0 0.0
    %4337 = vmatpush1.msra.mxu0 0.0
    %4338 = vmatprep.subr.mxu0 0.0
    %4339 = vmatpush1.msra.mxu0 0.0
    %4340 = vmatprep.subr.mxu0 0.0
    %4341 = vmatpush1.msra.mxu0 0.0
    %4342 = vmatprep.subr.mxu0 0.0
    %4343 = vmatpush1.msra.mxu0 0.0
    %4344 = vmatprep.subr.mxu0 0.0
    %4345 = vmatpush1.msra.mxu0 0.0
    %4346 = vmatprep.subr.mxu0 0.0
    %4347 = vmatpush1.msra.mxu0 0.0
    %4348 = vmatprep.subr.mxu0 0.0
    %4349 = vmatpush1.msra.mxu0 0.0
    %4350 = vmatprep.mubr.f32.mxu0 0.0
    %4351 = vmatmul.mubr.f32.gmra.mrb[0].mxu0 %v4284
    %v4352 = vpop.f32.mrb[0].mxu0
    %v4353 = vadd.f32 0.0, %v4352
    %v4354 = vpop.f32.mrb[0].mxu0
    %4355 = vdwg.mxu0
    %v4356 = vlaneseq
    %v4357 = vshrl.u32 %v4356, 7
    %v4358 = vsub.s32 0, %v4357
    %v4359 = vrot.slane %v4353, %v4358
    %v4360 = vmul.f32 %v3635, %v4359
    %v4361 = vmul.f32 %v3636, %v4359
    %v4362 = vmul.f32 %v3637, %v4359
    %v4363 = vmul.f32 %v3638, %v4359
    %v4364 = vmul.f32 %v3639, %v4359
    %v4365 = vmul.f32 %v3640, %v4359
    %v4366 = vmul.f32 %v3641, %v4359
    %v4367 = vmul.f32 %v3642, %v4359
    %v4368 = vmul.f32 %v3643, %v4359
    %v4369 = vmul.f32 %v3644, %v4359
    %v4370 = vmul.f32 %v3645, %v4359
    %v4371 = vmul.f32 %v3646, %v4359
    %v4372 = vmul.f32 %v3647, %v4359
    %v4373 = vmul.f32 %v3648, %v4359
    %v4374 = vmul.f32 %v3649, %v4359
    %v4375 = vmul.f32 %v3650, %v4359
    %v4376 = vmul.f32 %v3651, %v4359
    %v4377 = vmul.f32 %v3652, %v4359
    %v4378 = vmul.f32 %v3653, %v4359
    %v4379 = vmul.f32 %v3654, %v4359
    %v4380 = vmul.f32 %v3655, %v4359
    %v4381 = vmul.f32 %v3656, %v4359
    %v4382 = vmul.f32 %v3657, %v4359
    %v4383 = vmul.f32 %v3658, %v4359
    %v4384 = vmul.f32 %v3659, %v4359
    %v4385 = vmul.f32 %v3660, %v4359
    %v4386 = vmul.f32 %v3661, %v4359
    %v4387 = vmul.f32 %v3662, %v4359
    %v4388 = vmul.f32 %v3663, %v4359
    %v4389 = vmul.f32 %v3664, %v4359
    %v4390 = vmul.f32 %v3665, %v4359
    %v4391 = vmul.f32 %v3666, %v4359
    %v4392 = vmul.f32 %v3667, %v4359
    %v4393 = vmul.f32 %v3668, %v4359
    %v4394 = vmul.f32 %v3669, %v4359
    %v4395 = vmul.f32 %v3670, %v4359
    %v4396 = vmul.f32 %v3671, %v4359
    %v4397 = vmul.f32 %v3672, %v4359
    %v4398 = vmul.f32 %v3673, %v4359
    %v4399 = vmul.f32 %v3674, %v4359
    %v4400 = vmul.f32 %v3675, %v4359
    %v4401 = vmul.f32 %v3676, %v4359
    %v4402 = vmul.f32 %v3677, %v4359
    %v4403 = vmul.f32 %v3678, %v4359
    %v4404 = vmul.f32 %v3679, %v4359
    %v4405 = vmul.f32 %v3680, %v4359
    %v4406 = vmul.f32 %v3681, %v4359
    %v4407 = vmul.f32 %v3682, %v4359
    %v4408 = vmul.f32 %v3683, %v4359
    %v4409 = vmul.f32 %v3684, %v4359
    %v4410 = vmul.f32 %v3685, %v4359
    %v4411 = vmul.f32 %v3686, %v4359
    %v4412 = vmul.f32 %v3687, %v4359
    %v4413 = vmul.f32 %v3688, %v4359
    %v4414 = vmul.f32 %v3689, %v4359
    %v4415 = vmul.f32 %v3690, %v4359
    %v4416 = vmul.f32 %v3691, %v4359
    %v4417 = vmul.f32 %v3692, %v4359
    %v4418 = vmul.f32 %v3693, %v4359
    %v4419 = vmul.f32 %v3694, %v4359
    %v4420 = vmul.f32 %v3695, %v4359
    %v4421 = vmul.f32 %v3696, %v4359
    %v4422 = vmul.f32 %v3697, %v4359
    %v4423 = vmul.f32 %v3698, %v4359
    %v4424 = vmul.f32 %v3699, %v4359
    %v4425 = vmul.f32 %v3700, %v4359
    %v4426 = vmul.f32 %v3701, %v4359
    %v4427 = vmul.f32 %v3702, %v4359
    %v4428 = vmul.f32 %v3703, %v4359
    %v4429 = vmul.f32 %v3704, %v4359
    %v4430 = vmul.f32 %v3705, %v4359
    %v4431 = vmul.f32 %v3706, %v4359
    %v4432 = vmul.f32 %v3707, %v4359
    %v4433 = vmul.f32 %v3708, %v4359
    %v4434 = vmul.f32 %v3709, %v4359
    %v4435 = vmul.f32 %v3710, %v4359
    %v4436 = vmul.f32 %v3711, %v4359
    %v4437 = vmul.f32 %v3712, %v4359
    %v4438 = vmul.f32 %v3713, %v4359
    %v4439 = vmul.f32 %v3714, %v4359
    %v4440 = vmul.f32 %v3715, %v4359
    %v4441 = vmul.f32 %v3716, %v4359
    %v4442 = vmul.f32 %v3717, %v4359
    %v4443 = vmul.f32 %v3718, %v4359
    %v4444 = vmul.f32 %v3719, %v4359
    %v4445 = vmul.f32 %v3720, %v4359
    %v4446 = vmul.f32 %v3721, %v4359
    %v4447 = vmul.f32 %v3722, %v4359
    %v4448 = vmul.f32 %v3723, %v4359
    %v4449 = vmul.f32 %v3724, %v4359
    %v4450 = vmul.f32 %v3725, %v4359
    %v4451 = vmul.f32 %v3726, %v4359
    %v4452 = vmul.f32 %v3727, %v4359
    %v4453 = vmul.f32 %v3728, %v4359
    %v4454 = vmul.f32 %v3729, %v4359
    %v4455 = vmul.f32 %v3730, %v4359
    %v4456 = vmul.f32 %v3731, %v4359
    %v4457 = vmul.f32 %v3732, %v4359
    %v4458 = vmul.f32 %v3733, %v4359
    %v4459 = vmul.f32 %v3734, %v4359
    %v4460 = vmul.f32 %v3735, %v4359
    %v4461 = vmul.f32 %v3736, %v4359
    %v4462 = vmul.f32 %v3737, %v4359
    %v4463 = vmul.f32 %v3738, %v4359
    %v4464 = vmul.f32 %v3739, %v4359
    %v4465 = vmul.f32 %v3740, %v4359
    %v4466 = vmul.f32 %v3741, %v4359
    %v4467 = vmul.f32 %v3742, %v4359
    %v4468 = vmul.f32 %v3743, %v4359
    %v4469 = vmul.f32 %v3744, %v4359
    %v4470 = vmul.f32 %v3745, %v4359
    %v4471 = vmul.f32 %v3746, %v4359
    %v4472 = vmul.f32 %v3747, %v4359
    %v4473 = vmul.f32 %v3748, %v4359
    %v4474 = vmul.f32 %v3749, %v4359
    %v4475 = vmul.f32 %v3750, %v4359
    %v4476 = vmul.f32 %v3751, %v4359
    %v4477 = vmul.f32 %v3752, %v4359
    %v4478 = vmul.f32 %v3753, %v4359
    %v4479 = vmul.f32 %v3754, %v4359
    %v4480 = vmul.f32 %v3755, %v4359
    %v4481 = vmul.f32 %v3756, %v4359
    %v4482 = vmul.f32 %v3757, %v4359
    %v4483 = vmul.f32 %v3758, %v4359
    %v4484 = vmul.f32 %v3759, %v4359
    %v4485 = vmul.f32 %v3760, %v4359
    %v4486 = vmul.f32 %v3761, %v4359
    %v4487 = vmul.f32 %v3762, %v4359
    %v4488 = vlaneseq
    %v4489 = vshrl.u32 %v4488, 7
    %v4490 = vsub.s32 1, %v4489
    %v4491 = vrot.slane %v4353, %v4490
    %v4492 = vadd.f32 %v4360, %v4491
    %v4493 = vadd.f32 %v4361, %v4491
    %v4494 = vadd.f32 %v4362, %v4491
    %v4495 = vadd.f32 %v4363, %v4491
    %v4496 = vadd.f32 %v4364, %v4491
    %v4497 = vadd.f32 %v4365, %v4491
    %v4498 = vadd.f32 %v4366, %v4491
    %v4499 = vadd.f32 %v4367, %v4491
    %v4500 = vadd.f32 %v4368, %v4491
    %v4501 = vadd.f32 %v4369, %v4491
    %v4502 = vadd.f32 %v4370, %v4491
    %v4503 = vadd.f32 %v4371, %v4491
    %v4504 = vadd.f32 %v4372, %v4491
    %v4505 = vadd.f32 %v4373, %v4491
    %v4506 = vadd.f32 %v4374, %v4491
    %v4507 = vadd.f32 %v4375, %v4491
    %v4508 = vadd.f32 %v4376, %v4491
    %v4509 = vadd.f32 %v4377, %v4491
    %v4510 = vadd.f32 %v4378, %v4491
    %v4511 = vadd.f32 %v4379, %v4491
    %v4512 = vadd.f32 %v4380, %v4491
    %v4513 = vadd.f32 %v4381, %v4491
    %v4514 = vadd.f32 %v4382, %v4491
    %v4515 = vadd.f32 %v4383, %v4491
    %v4516 = vadd.f32 %v4384, %v4491
    %v4517 = vadd.f32 %v4385, %v4491
    %v4518 = vadd.f32 %v4386, %v4491
    %v4519 = vadd.f32 %v4387, %v4491
    %v4520 = vadd.f32 %v4388, %v4491
    %v4521 = vadd.f32 %v4389, %v4491
    %v4522 = vadd.f32 %v4390, %v4491
    %v4523 = vadd.f32 %v4391, %v4491
    %v4524 = vadd.f32 %v4392, %v4491
    %v4525 = vadd.f32 %v4393, %v4491
    %v4526 = vadd.f32 %v4394, %v4491
    %v4527 = vadd.f32 %v4395, %v4491
    %v4528 = vadd.f32 %v4396, %v4491
    %v4529 = vadd.f32 %v4397, %v4491
    %v4530 = vadd.f32 %v4398, %v4491
    %v4531 = vadd.f32 %v4399, %v4491
    %v4532 = vadd.f32 %v4400, %v4491
    %v4533 = vadd.f32 %v4401, %v4491
    %v4534 = vadd.f32 %v4402, %v4491
    %v4535 = vadd.f32 %v4403, %v4491
    %v4536 = vadd.f32 %v4404, %v4491
    %v4537 = vadd.f32 %v4405, %v4491
    %v4538 = vadd.f32 %v4406, %v4491
    %v4539 = vadd.f32 %v4407, %v4491
    %v4540 = vadd.f32 %v4408, %v4491
    %v4541 = vadd.f32 %v4409, %v4491
    %v4542 = vadd.f32 %v4410, %v4491
    %v4543 = vadd.f32 %v4411, %v4491
    %v4544 = vadd.f32 %v4412, %v4491
    %v4545 = vadd.f32 %v4413, %v4491
    %v4546 = vadd.f32 %v4414, %v4491
    %v4547 = vadd.f32 %v4415, %v4491
    %v4548 = vadd.f32 %v4416, %v4491
    %v4549 = vadd.f32 %v4417, %v4491
    %v4550 = vadd.f32 %v4418, %v4491
    %v4551 = vadd.f32 %v4419, %v4491
    %v4552 = vadd.f32 %v4420, %v4491
    %v4553 = vadd.f32 %v4421, %v4491
    %v4554 = vadd.f32 %v4422, %v4491
    %v4555 = vadd.f32 %v4423, %v4491
    %v4556 = vadd.f32 %v4424, %v4491
    %v4557 = vadd.f32 %v4425, %v4491
    %v4558 = vadd.f32 %v4426, %v4491
    %v4559 = vadd.f32 %v4427, %v4491
    %v4560 = vadd.f32 %v4428, %v4491
    %v4561 = vadd.f32 %v4429, %v4491
    %v4562 = vadd.f32 %v4430, %v4491
    %v4563 = vadd.f32 %v4431, %v4491
    %v4564 = vadd.f32 %v4432, %v4491
    %v4565 = vadd.f32 %v4433, %v4491
    %v4566 = vadd.f32 %v4434, %v4491
    %v4567 = vadd.f32 %v4435, %v4491
    %v4568 = vadd.f32 %v4436, %v4491
    %v4569 = vadd.f32 %v4437, %v4491
    %v4570 = vadd.f32 %v4438, %v4491
    %v4571 = vadd.f32 %v4439, %v4491
    %v4572 = vadd.f32 %v4440, %v4491
    %v4573 = vadd.f32 %v4441, %v4491
    %v4574 = vadd.f32 %v4442, %v4491
    %v4575 = vadd.f32 %v4443, %v4491
    %v4576 = vadd.f32 %v4444, %v4491
    %v4577 = vadd.f32 %v4445, %v4491
    %v4578 = vadd.f32 %v4446, %v4491
    %v4579 = vadd.f32 %v4447, %v4491
    %v4580 = vadd.f32 %v4448, %v4491
    %v4581 = vadd.f32 %v4449, %v4491
    %v4582 = vadd.f32 %v4450, %v4491
    %v4583 = vadd.f32 %v4451, %v4491
    %v4584 = vadd.f32 %v4452, %v4491
    %v4585 = vadd.f32 %v4453, %v4491
    %v4586 = vadd.f32 %v4454, %v4491
    %v4587 = vadd.f32 %v4455, %v4491
    %v4588 = vadd.f32 %v4456, %v4491
    %v4589 = vadd.f32 %v4457, %v4491
    %v4590 = vadd.f32 %v4458, %v4491
    %v4591 = vadd.f32 %v4459, %v4491
    %v4592 = vadd.f32 %v4460, %v4491
    %v4593 = vadd.f32 %v4461, %v4491
    %v4594 = vadd.f32 %v4462, %v4491
    %v4595 = vadd.f32 %v4463, %v4491
    %v4596 = vadd.f32 %v4464, %v4491
    %v4597 = vadd.f32 %v4465, %v4491
    %v4598 = vadd.f32 %v4466, %v4491
    %v4599 = vadd.f32 %v4467, %v4491
    %v4600 = vadd.f32 %v4468, %v4491
    %v4601 = vadd.f32 %v4469, %v4491
    %v4602 = vadd.f32 %v4470, %v4491
    %v4603 = vadd.f32 %v4471, %v4491
    %v4604 = vadd.f32 %v4472, %v4491
    %v4605 = vadd.f32 %v4473, %v4491
    %v4606 = vadd.f32 %v4474, %v4491
    %v4607 = vadd.f32 %v4475, %v4491
    %v4608 = vadd.f32 %v4476, %v4491
    %v4609 = vadd.f32 %v4477, %v4491
    %v4610 = vadd.f32 %v4478, %v4491
    %v4611 = vadd.f32 %v4479, %v4491
    %v4612 = vadd.f32 %v4480, %v4491
    %v4613 = vadd.f32 %v4481, %v4491
    %v4614 = vadd.f32 %v4482, %v4491
    %v4615 = vadd.f32 %v4483, %v4491
    %v4616 = vadd.f32 %v4484, %v4491
    %v4617 = vadd.f32 %v4485, %v4491
    %v4618 = vadd.f32 %v4486, %v4491
    %v4619 = vadd.f32 %v4487, %v4491
    %v4620 = vmax.f32 %v4492, 0.0
    %v4621 = vmax.f32 %v4493, 0.0
    %v4622 = vmax.f32 %v4494, 0.0
    %v4623 = vmax.f32 %v4495, 0.0
    %v4624 = vmax.f32 %v4496, 0.0
    %v4625 = vmax.f32 %v4497, 0.0
    %v4626 = vmax.f32 %v4498, 0.0
    %v4627 = vmax.f32 %v4499, 0.0
    %v4628 = vmax.f32 %v4500, 0.0
    %v4629 = vmax.f32 %v4501, 0.0
    %v4630 = vmax.f32 %v4502, 0.0
    %v4631 = vmax.f32 %v4503, 0.0
    %v4632 = vmax.f32 %v4504, 0.0
    %v4633 = vmax.f32 %v4505, 0.0
    %v4634 = vmax.f32 %v4506, 0.0
    %v4635 = vmax.f32 %v4507, 0.0
    %v4636 = vmax.f32 %v4508, 0.0
    %v4637 = vmax.f32 %v4509, 0.0
    %v4638 = vmax.f32 %v4510, 0.0
    %v4639 = vmax.f32 %v4511, 0.0
    %v4640 = vmax.f32 %v4512, 0.0
    %v4641 = vmax.f32 %v4513, 0.0
    %v4642 = vmax.f32 %v4514, 0.0
    %v4643 = vmax.f32 %v4515, 0.0
    %v4644 = vmax.f32 %v4516, 0.0
    %v4645 = vmax.f32 %v4517, 0.0
    %v4646 = vmax.f32 %v4518, 0.0
    %v4647 = vmax.f32 %v4519, 0.0
    %v4648 = vmax.f32 %v4520, 0.0
    %v4649 = vmax.f32 %v4521, 0.0
    %v4650 = vmax.f32 %v4522, 0.0
    %v4651 = vmax.f32 %v4523, 0.0
    %v4652 = vmax.f32 %v4524, 0.0
    %v4653 = vmax.f32 %v4525, 0.0
    %v4654 = vmax.f32 %v4526, 0.0
    %v4655 = vmax.f32 %v4527, 0.0
    %v4656 = vmax.f32 %v4528, 0.0
    %v4657 = vmax.f32 %v4529, 0.0
    %v4658 = vmax.f32 %v4530, 0.0
    %v4659 = vmax.f32 %v4531, 0.0
    %v4660 = vmax.f32 %v4532, 0.0
    %v4661 = vmax.f32 %v4533, 0.0
    %v4662 = vmax.f32 %v4534, 0.0
    %v4663 = vmax.f32 %v4535, 0.0
    %v4664 = vmax.f32 %v4536, 0.0
    %v4665 = vmax.f32 %v4537, 0.0
    %v4666 = vmax.f32 %v4538, 0.0
    %v4667 = vmax.f32 %v4539, 0.0
    %v4668 = vmax.f32 %v4540, 0.0
    %v4669 = vmax.f32 %v4541, 0.0
    %v4670 = vmax.f32 %v4542, 0.0
    %v4671 = vmax.f32 %v4543, 0.0
    %v4672 = vmax.f32 %v4544, 0.0
    %v4673 = vmax.f32 %v4545, 0.0
    %v4674 = vmax.f32 %v4546, 0.0
    %v4675 = vmax.f32 %v4547, 0.0
    %v4676 = vmax.f32 %v4548, 0.0
    %v4677 = vmax.f32 %v4549, 0.0
    %v4678 = vmax.f32 %v4550, 0.0
    %v4679 = vmax.f32 %v4551, 0.0
    %v4680 = vmax.f32 %v4552, 0.0
    %v4681 = vmax.f32 %v4553, 0.0
    %v4682 = vmax.f32 %v4554, 0.0
    %v4683 = vmax.f32 %v4555, 0.0
    %v4684 = vmax.f32 %v4556, 0.0
    %v4685 = vmax.f32 %v4557, 0.0
    %v4686 = vmax.f32 %v4558, 0.0
    %v4687 = vmax.f32 %v4559, 0.0
    %v4688 = vmax.f32 %v4560, 0.0
    %v4689 = vmax.f32 %v4561, 0.0
    %v4690 = vmax.f32 %v4562, 0.0
    %v4691 = vmax.f32 %v4563, 0.0
    %v4692 = vmax.f32 %v4564, 0.0
    %v4693 = vmax.f32 %v4565, 0.0
    %v4694 = vmax.f32 %v4566, 0.0
    %v4695 = vmax.f32 %v4567, 0.0
    %v4696 = vmax.f32 %v4568, 0.0
    %v4697 = vmax.f32 %v4569, 0.0
    %v4698 = vmax.f32 %v4570, 0.0
    %v4699 = vmax.f32 %v4571, 0.0
    %v4700 = vmax.f32 %v4572, 0.0
    %v4701 = vmax.f32 %v4573, 0.0
    %v4702 = vmax.f32 %v4574, 0.0
    %v4703 = vmax.f32 %v4575, 0.0
    %v4704 = vmax.f32 %v4576, 0.0
    %v4705 = vmax.f32 %v4577, 0.0
    %v4706 = vmax.f32 %v4578, 0.0
    %v4707 = vmax.f32 %v4579, 0.0
    %v4708 = vmax.f32 %v4580, 0.0
    %v4709 = vmax.f32 %v4581, 0.0
    %v4710 = vmax.f32 %v4582, 0.0
    %v4711 = vmax.f32 %v4583, 0.0
    %v4712 = vmax.f32 %v4584, 0.0
    %v4713 = vmax.f32 %v4585, 0.0
    %v4714 = vmax.f32 %v4586, 0.0
    %v4715 = vmax.f32 %v4587, 0.0
    %v4716 = vmax.f32 %v4588, 0.0
    %v4717 = vmax.f32 %v4589, 0.0
    %v4718 = vmax.f32 %v4590, 0.0
    %v4719 = vmax.f32 %v4591, 0.0
    %v4720 = vmax.f32 %v4592, 0.0
    %v4721 = vmax.f32 %v4593, 0.0
    %v4722 = vmax.f32 %v4594, 0.0
    %v4723 = vmax.f32 %v4595, 0.0
    %v4724 = vmax.f32 %v4596, 0.0
    %v4725 = vmax.f32 %v4597, 0.0
    %v4726 = vmax.f32 %v4598, 0.0
    %v4727 = vmax.f32 %v4599, 0.0
    %v4728 = vmax.f32 %v4600, 0.0
    %v4729 = vmax.f32 %v4601, 0.0
    %v4730 = vmax.f32 %v4602, 0.0
    %v4731 = vmax.f32 %v4603, 0.0
    %v4732 = vmax.f32 %v4604, 0.0
    %v4733 = vmax.f32 %v4605, 0.0
    %v4734 = vmax.f32 %v4606, 0.0
    %v4735 = vmax.f32 %v4607, 0.0
    %v4736 = vmax.f32 %v4608, 0.0
    %v4737 = vmax.f32 %v4609, 0.0
    %v4738 = vmax.f32 %v4610, 0.0
    %v4739 = vmax.f32 %v4611, 0.0
    %v4740 = vmax.f32 %v4612, 0.0
    %v4741 = vmax.f32 %v4613, 0.0
    %v4742 = vmax.f32 %v4614, 0.0
    %v4743 = vmax.f32 %v4615, 0.0
    %v4744 = vmax.f32 %v4616, 0.0
    %v4745 = vmax.f32 %v4617, 0.0
    %v4746 = vmax.f32 %v4618, 0.0
    %v4747 = vmax.f32 %v4619, 0.0
    %v4748 = vld [vmem:[#allocation35] sm:$0xff]
    %v4749 = vld [vmem:[#allocation35 + $0x8] sm:$0xff]
    %v4750 = vld [vmem:[#allocation35 + $0x10] sm:$0xff]
    %v4751 = vld [vmem:[#allocation35 + $0x18] sm:$0xff]
    %v4752 = vld [vmem:[#allocation35 + $0x20] sm:$0xff]
    %v4753 = vld [vmem:[#allocation35 + $0x28] sm:$0xff]
    %v4754 = vld [vmem:[#allocation35 + $0x30] sm:$0xff]
    %v4755 = vld [vmem:[#allocation35 + $0x38] sm:$0xff]
    %v4756 = vld [vmem:[#allocation35 + $0x40] sm:$0xff]
    %v4757 = vld [vmem:[#allocation35 + $0x48] sm:$0xff]
    %v4758 = vld [vmem:[#allocation35 + $0x50] sm:$0xff]
    %v4759 = vld [vmem:[#allocation35 + $0x58] sm:$0xff]
    %v4760 = vld [vmem:[#allocation35 + $0x60] sm:$0xff]
    %v4761 = vld [vmem:[#allocation35 + $0x68] sm:$0xff]
    %v4762 = vld [vmem:[#allocation35 + $0x70] sm:$0xff]
    %v4763 = vld [vmem:[#allocation35 + $0x78] sm:$0xff]
    %v4764 = vld [vmem:[#allocation37] sm:$0x1]
    %v4766 = vlaneseq
    %v4767 = vshrl.u32 %v4766, 7
    %v4768 = vsub.s32 0, %v4767
    %v4769 = vrot.slane %v4764, %v4768
    %4771 = vmatprep.subr.mxu0 0.0
    %4772 = vmatpush1.msra.mxu0 %v4748
    %4773 = vmatprep.subr.mxu0 0.0
    %4774 = vmatpush1.msra.mxu0 %v4749
    %4775 = vmatprep.subr.mxu0 0.0
    %4776 = vmatpush1.msra.mxu0 %v4750
    %4777 = vmatprep.subr.mxu0 0.0
    %4778 = vmatpush1.msra.mxu0 %v4751
    %4779 = vmatprep.subr.mxu0 0.0
    %4780 = vmatpush1.msra.mxu0 %v4752
    %4781 = vmatprep.subr.mxu0 0.0
    %4782 = vmatpush1.msra.mxu0 %v4753
    %4783 = vmatprep.subr.mxu0 0.0
    %4784 = vmatpush1.msra.mxu0 %v4754
    %4785 = vmatprep.subr.mxu0 0.0
    %4786 = vmatpush1.msra.mxu0 %v4755
    %4787 = vmatprep.subr.mxu0 0.0
    %4788 = vmatpush1.msra.mxu0 %v4756
    %4789 = vmatprep.subr.mxu0 0.0
    %4790 = vmatpush1.msra.mxu0 %v4757
    %4791 = vmatprep.subr.mxu0 0.0
    %4792 = vmatpush1.msra.mxu0 %v4758
    %4793 = vmatprep.subr.mxu0 0.0
    %4794 = vmatpush1.msra.mxu0 %v4759
    %4795 = vmatprep.subr.mxu0 0.0
    %4796 = vmatpush1.msra.mxu0 %v4760
    %4797 = vmatprep.subr.mxu0 0.0
    %4798 = vmatpush1.msra.mxu0 %v4761
    %4799 = vmatprep.subr.mxu0 0.0
    %4800 = vmatpush1.msra.mxu0 %v4762
    %4801 = vmatprep.subr.mxu0 0.0
    %4802 = vmatpush1.msra.mxu0 %v4763
    %4803 = vmatprep.subr.mxu0 0.0
    %4804 = vmatpush1.msra.mxu0 0.0
    %4805 = vmatprep.subr.mxu0 0.0
    %4806 = vmatpush1.msra.mxu0 0.0
    %4807 = vmatprep.subr.mxu0 0.0
    %4808 = vmatpush1.msra.mxu0 0.0
    %4809 = vmatprep.subr.mxu0 0.0
    %4810 = vmatpush1.msra.mxu0 0.0
    %4811 = vmatprep.subr.mxu0 0.0
    %4812 = vmatpush1.msra.mxu0 0.0
    %4813 = vmatprep.subr.mxu0 0.0
    %4814 = vmatpush1.msra.mxu0 0.0
    %4815 = vmatprep.subr.mxu0 0.0
    %4816 = vmatpush1.msra.mxu0 0.0
    %4817 = vmatprep.subr.mxu0 0.0
    %4818 = vmatpush1.msra.mxu0 0.0
    %4819 = vmatprep.subr.mxu0 0.0
    %4820 = vmatpush1.msra.mxu0 0.0
    %4821 = vmatprep.subr.mxu0 0.0
    %4822 = vmatpush1.msra.mxu0 0.0
    %4823 = vmatprep.subr.mxu0 0.0
    %4824 = vmatpush1.msra.mxu0 0.0
    %4825 = vmatprep.subr.mxu0 0.0
    %4826 = vmatpush1.msra.mxu0 0.0
    %4827 = vmatprep.subr.mxu0 0.0
    %4828 = vmatpush1.msra.mxu0 0.0
    %4829 = vmatprep.subr.mxu0 0.0
    %4830 = vmatpush1.msra.mxu0 0.0
    %4831 = vmatprep.subr.mxu0 0.0
    %4832 = vmatpush1.msra.mxu0 0.0
    %4833 = vmatprep.subr.mxu0 0.0
    %4834 = vmatpush1.msra.mxu0 0.0
    %4835 = vmatprep.mubr.f32.mxu0 0.0
    %4836 = vmatmul.mubr.f32.gmra.mrb[0].mxu0 %v4620
    %v4837 = vpop.f32.mrb[0].mxu0
    %v4838 = vadd.f32 %v4769, %v4837
    %v4839 = vpop.f32.mrb[0].mxu0
    %4840 = vmatprep.mubr.f32.mxu0 0.0
    %4841 = vmatmul.mubr.f32.gmra.mrb[0].mxu0 %v4621
    %v4842 = vpop.f32.mrb[0].mxu0
    %v4843 = vadd.f32 %v4769, %v4842
    %v4844 = vpop.f32.mrb[0].mxu0
    %4845 = vmatprep.mubr.f32.mxu0 0.0
    %4846 = vmatmul.mubr.f32.gmra.mrb[0].mxu0 %v4622
    %v4847 = vpop.f32.mrb[0].mxu0
    %v4848 = vadd.f32 %v4769, %v4847
    %v4849 = vpop.f32.mrb[0].mxu0
    %4850 = vmatprep.mubr.f32.mxu0 0.0
    %4851 = vmatmul.mubr.f32.gmra.mrb[0].mxu0 %v4623
    %v4852 = vpop.f32.mrb[0].mxu0
    %v4853 = vadd.f32 %v4769, %v4852
    %v4854 = vpop.f32.mrb[0].mxu0
    %4855 = vmatprep.mubr.f32.mxu0 0.0
    %4856 = vmatmul.mubr.f32.gmra.mrb[0].mxu0 %v4624
    %v4857 = vpop.f32.mrb[0].mxu0
    %v4858 = vadd.f32 %v4769, %v4857
    %v4859 = vpop.f32.mrb[0].mxu0
    %4860 = vmatprep.mubr.f32.mxu0 0.0
    %4861 = vmatmul.mubr.f32.gmra.mrb[0].mxu0 %v4625
    %v4862 = vpop.f32.mrb[0].mxu0
    %v4863 = vadd.f32 %v4769, %v4862
    %v4864 = vpop.f32.mrb[0].mxu0
    %4865 = vmatprep.mubr.f32.mxu0 0.0
    %4866 = vmatmul.mubr.f32.gmra.mrb[0].mxu0 %v4626
    %v4867 = vpop.f32.mrb[0].mxu0
    %v4868 = vadd.f32 %v4769, %v4867
    %v4869 = vpop.f32.mrb[0].mxu0
    %4870 = vmatprep.mubr.f32.mxu0 0.0
    %4871 = vmatmul.mubr.f32.gmra.mrb[0].mxu0 %v4627
    %v4872 = vpop.f32.mrb[0].mxu0
    %v4873 = vadd.f32 %v4769, %v4872
    %v4874 = vpop.f32.mrb[0].mxu0
    %4875 = vmatprep.mubr.f32.mxu0 0.0
    %4876 = vmatmul.mubr.f32.gmra.mrb[0].mxu0 %v4628
    %v4877 = vpop.f32.mrb[0].mxu0
    %v4878 = vadd.f32 %v4769, %v4877
    %v4879 = vpop.f32.mrb[0].mxu0
    %4880 = vmatprep.mubr.f32.mxu0 0.0
    %4881 = vmatmul.mubr.f32.gmra.mrb[0].mxu0 %v4629
    %v4882 = vpop.f32.mrb[0].mxu0
    %v4883 = vadd.f32 %v4769, %v4882
    %v4884 = vpop.f32.mrb[0].mxu0
    %4885 = vmatprep.mubr.f32.mxu0 0.0
    %4886 = vmatmul.mubr.f32.gmra.mrb[0].mxu0 %v4630
    %v4887 = vpop.f32.mrb[0].mxu0
    %v4888 = vadd.f32 %v4769, %v4887
    %v4889 = vpop.f32.mrb[0].mxu0
    %4890 = vmatprep.mubr.f32.mxu0 0.0
    %4891 = vmatmul.mubr.f32.gmra.mrb[0].mxu0 %v4631
    %v4892 = vpop.f32.mrb[0].mxu0
    %v4893 = vadd.f32 %v4769, %v4892
    %v4894 = vpop.f32.mrb[0].mxu0
    %4895 = vmatprep.mubr.f32.mxu0 0.0
    %4896 = vmatmul.mubr.f32.gmra.mrb[0].mxu0 %v4632
    %v4897 = vpop.f32.mrb[0].mxu0
    %v4898 = vadd.f32 %v4769, %v4897
    %v4899 = vpop.f32.mrb[0].mxu0
    %4900 = vmatprep.mubr.f32.mxu0 0.0
    %4901 = vmatmul.mubr.f32.gmra.mrb[0].mxu0 %v4633
    %v4902 = vpop.f32.mrb[0].mxu0
    %v4903 = vadd.f32 %v4769, %v4902
    %v4904 = vpop.f32.mrb[0].mxu0
    %4905 = vmatprep.mubr.f32.mxu0 0.0
    %4906 = vmatmul.mubr.f32.gmra.mrb[0].mxu0 %v4634
    %v4907 = vpop.f32.mrb[0].mxu0
    %v4908 = vadd.f32 %v4769, %v4907
    %v4909 = vpop.f32.mrb[0].mxu0
    %4910 = vmatprep.mubr.f32.mxu0 0.0
    %4911 = vmatmul.mubr.f32.gmra.mrb[0].mxu0 %v4635
    %v4912 = vpop.f32.mrb[0].mxu0
    %v4913 = vadd.f32 %v4769, %v4912
    %v4914 = vpop.f32.mrb[0].mxu0
    %4915 = vmatprep.mubr.f32.mxu0 0.0
    %4916 = vmatmul.mubr.f32.gmra.mrb[0].mxu0 %v4636
    %v4917 = vpop.f32.mrb[0].mxu0
    %v4918 = vadd.f32 %v4769, %v4917
    %v4919 = vpop.f32.mrb[0].mxu0
    %4920 = vmatprep.mubr.f32.mxu0 0.0
    %4921 = vmatmul.mubr.f32.gmra.mrb[0].mxu0 %v4637
    %v4922 = vpop.f32.mrb[0].mxu0
    %v4923 = vadd.f32 %v4769, %v4922
    %v4924 = vpop.f32.mrb[0].mxu0
    %4925 = vmatprep.mubr.f32.mxu0 0.0
    %4926 = vmatmul.mubr.f32.gmra.mrb[0].mxu0 %v4638
    %v4927 = vpop.f32.mrb[0].mxu0
    %v4928 = vadd.f32 %v4769, %v4927
    %v4929 = vpop.f32.mrb[0].mxu0
    %4930 = vmatprep.mubr.f32.mxu0 0.0
    %4931 = vmatmul.mubr.f32.gmra.mrb[0].mxu0 %v4639
    %v4932 = vpop.f32.mrb[0].mxu0
    %v4933 = vadd.f32 %v4769, %v4932
    %v4934 = vpop.f32.mrb[0].mxu0
    %4935 = vmatprep.mubr.f32.mxu0 0.0
    %4936 = vmatmul.mubr.f32.gmra.mrb[0].mxu0 %v4640
    %v4937 = vpop.f32.mrb[0].mxu0
    %v4938 = vadd.f32 %v4769, %v4937
    %v4939 = vpop.f32.mrb[0].mxu0
    %4940 = vmatprep.mubr.f32.mxu0 0.0
    %4941 = vmatmul.mubr.f32.gmra.mrb[0].mxu0 %v4641
    %v4942 = vpop.f32.mrb[0].mxu0
    %v4943 = vadd.f32 %v4769, %v4942
    %v4944 = vpop.f32.mrb[0].mxu0
    %4945 = vmatprep.mubr.f32.mxu0 0.0
    %4946 = vmatmul.mubr.f32.gmra.mrb[0].mxu0 %v4642
    %v4947 = vpop.f32.mrb[0].mxu0
    %v4948 = vadd.f32 %v4769, %v4947
    %v4949 = vpop.f32.mrb[0].mxu0
    %4950 = vmatprep.mubr.f32.mxu0 0.0
    %4951 = vmatmul.mubr.f32.gmra.mrb[0].mxu0 %v4643
    %v4952 = vpop.f32.mrb[0].mxu0
    %v4953 = vadd.f32 %v4769, %v4952
    %v4954 = vpop.f32.mrb[0].mxu0
    %4955 = vmatprep.mubr.f32.mxu0 0.0
    %4956 = vmatmul.mubr.f32.gmra.mrb[0].mxu0 %v4644
    %v4957 = vpop.f32.mrb[0].mxu0
    %v4958 = vadd.f32 %v4769, %v4957
    %v4959 = vpop.f32.mrb[0].mxu0
    %4960 = vmatprep.mubr.f32.mxu0 0.0
    %4961 = vmatmul.mubr.f32.gmra.mrb[0].mxu0 %v4645
    %v4962 = vpop.f32.mrb[0].mxu0
    %v4963 = vadd.f32 %v4769, %v4962
    %v4964 = vpop.f32.mrb[0].mxu0
    %4965 = vmatprep.mubr.f32.mxu0 0.0
    %4966 = vmatmul.mubr.f32.gmra.mrb[0].mxu0 %v4646
    %v4967 = vpop.f32.mrb[0].mxu0
    %v4968 = vadd.f32 %v4769, %v4967
    %v4969 = vpop.f32.mrb[0].mxu0
    %4970 = vmatprep.mubr.f32.mxu0 0.0
    %4971 = vmatmul.mubr.f32.gmra.mrb[0].mxu0 %v4647
    %v4972 = vpop.f32.mrb[0].mxu0
    %v4973 = vadd.f32 %v4769, %v4972
    %v4974 = vpop.f32.mrb[0].mxu0
    %4975 = vmatprep.mubr.f32.mxu0 0.0
    %4976 = vmatmul.mubr.f32.gmra.mrb[0].mxu0 %v4648
    %v4977 = vpop.f32.mrb[0].mxu0
    %v4978 = vadd.f32 %v4769, %v4977
    %v4979 = vpop.f32.mrb[0].mxu0
    %4980 = vmatprep.mubr.f32.mxu0 0.0
    %4981 = vmatmul.mubr.f32.gmra.mrb[0].mxu0 %v4649
    %v4982 = vpop.f32.mrb[0].mxu0
    %v4983 = vadd.f32 %v4769, %v4982
    %v4984 = vpop.f32.mrb[0].mxu0
    %4985 = vmatprep.mubr.f32.mxu0 0.0
    %4986 = vmatmul.mubr.f32.gmra.mrb[0].mxu0 %v4650
    %v4987 = vpop.f32.mrb[0].mxu0
    %v4988 = vadd.f32 %v4769, %v4987
    %v4989 = vpop.f32.mrb[0].mxu0
    %4990 = vmatprep.mubr.f32.mxu0 0.0
    %4991 = vmatmul.mubr.f32.gmra.mrb[0].mxu0 %v4651
    %v4992 = vpop.f32.mrb[0].mxu0
    %v4993 = vadd.f32 %v4769, %v4992
    %v4994 = vpop.f32.mrb[0].mxu0
    %4995 = vmatprep.mubr.f32.mxu0 0.0
    %4996 = vmatmul.mubr.f32.gmra.mrb[0].mxu0 %v4652
    %v4997 = vpop.f32.mrb[0].mxu0
    %v4998 = vadd.f32 %v4769, %v4997
    %v4999 = vpop.f32.mrb[0].mxu0
    %5000 = vmatprep.mubr.f32.mxu0 0.0
    %5001 = vmatmul.mubr.f32.gmra.mrb[0].mxu0 %v4653
    %v5002 = vpop.f32.mrb[0].mxu0
    %v5003 = vadd.f32 %v4769, %v5002
    %v5004 = vpop.f32.mrb[0].mxu0
    %5005 = vmatprep.mubr.f32.mxu0 0.0
    %5006 = vmatmul.mubr.f32.gmra.mrb[0].mxu0 %v4654
    %v5007 = vpop.f32.mrb[0].mxu0
    %v5008 = vadd.f32 %v4769, %v5007
    %v5009 = vpop.f32.mrb[0].mxu0
    %5010 = vmatprep.mubr.f32.mxu0 0.0
    %5011 = vmatmul.mubr.f32.gmra.mrb[0].mxu0 %v4655
    %v5012 = vpop.f32.mrb[0].mxu0
    %v5013 = vadd.f32 %v4769, %v5012
    %v5014 = vpop.f32.mrb[0].mxu0
    %5015 = vmatprep.mubr.f32.mxu0 0.0
    %5016 = vmatmul.mubr.f32.gmra.mrb[0].mxu0 %v4656
    %v5017 = vpop.f32.mrb[0].mxu0
    %v5018 = vadd.f32 %v4769, %v5017
    %v5019 = vpop.f32.mrb[0].mxu0
    %5020 = vmatprep.mubr.f32.mxu0 0.0
    %5021 = vmatmul.mubr.f32.gmra.mrb[0].mxu0 %v4657
    %v5022 = vpop.f32.mrb[0].mxu0
    %v5023 = vadd.f32 %v4769, %v5022
    %v5024 = vpop.f32.mrb[0].mxu0
    %5025 = vmatprep.mubr.f32.mxu0 0.0
    %5026 = vmatmul.mubr.f32.gmra.mrb[0].mxu0 %v4658
    %v5027 = vpop.f32.mrb[0].mxu0
    %v5028 = vadd.f32 %v4769, %v5027
    %v5029 = vpop.f32.mrb[0].mxu0
    %5030 = vmatprep.mubr.f32.mxu0 0.0
    %5031 = vmatmul.mubr.f32.gmra.mrb[0].mxu0 %v4659
    %v5032 = vpop.f32.mrb[0].mxu0
    %v5033 = vadd.f32 %v4769, %v5032
    %v5034 = vpop.f32.mrb[0].mxu0
    %5035 = vmatprep.mubr.f32.mxu0 0.0
    %5036 = vmatmul.mubr.f32.gmra.mrb[0].mxu0 %v4660
    %v5037 = vpop.f32.mrb[0].mxu0
    %v5038 = vadd.f32 %v4769, %v5037
    %v5039 = vpop.f32.mrb[0].mxu0
    %5040 = vmatprep.mubr.f32.mxu0 0.0
    %5041 = vmatmul.mubr.f32.gmra.mrb[0].mxu0 %v4661
    %v5042 = vpop.f32.mrb[0].mxu0
    %v5043 = vadd.f32 %v4769, %v5042
    %v5044 = vpop.f32.mrb[0].mxu0
    %5045 = vmatprep.mubr.f32.mxu0 0.0
    %5046 = vmatmul.mubr.f32.gmra.mrb[0].mxu0 %v4662
    %v5047 = vpop.f32.mrb[0].mxu0
    %v5048 = vadd.f32 %v4769, %v5047
    %v5049 = vpop.f32.mrb[0].mxu0
    %5050 = vmatprep.mubr.f32.mxu0 0.0
    %5051 = vmatmul.mubr.f32.gmra.mrb[0].mxu0 %v4663
    %v5052 = vpop.f32.mrb[0].mxu0
    %v5053 = vadd.f32 %v4769, %v5052
    %v5054 = vpop.f32.mrb[0].mxu0
    %5055 = vmatprep.mubr.f32.mxu0 0.0
    %5056 = vmatmul.mubr.f32.gmra.mrb[0].mxu0 %v4664
    %v5057 = vpop.f32.mrb[0].mxu0
    %v5058 = vadd.f32 %v4769, %v5057
    %v5059 = vpop.f32.mrb[0].mxu0
    %5060 = vmatprep.mubr.f32.mxu0 0.0
    %5061 = vmatmul.mubr.f32.gmra.mrb[0].mxu0 %v4665
    %v5062 = vpop.f32.mrb[0].mxu0
    %v5063 = vadd.f32 %v4769, %v5062
    %v5064 = vpop.f32.mrb[0].mxu0
    %5065 = vmatprep.mubr.f32.mxu0 0.0
    %5066 = vmatmul.mubr.f32.gmra.mrb[0].mxu0 %v4666
    %v5067 = vpop.f32.mrb[0].mxu0
    %v5068 = vadd.f32 %v4769, %v5067
    %v5069 = vpop.f32.mrb[0].mxu0
    %5070 = vmatprep.mubr.f32.mxu0 0.0
    %5071 = vmatmul.mubr.f32.gmra.mrb[0].mxu0 %v4667
    %v5072 = vpop.f32.mrb[0].mxu0
    %v5073 = vadd.f32 %v4769, %v5072
    %v5074 = vpop.f32.mrb[0].mxu0
    %5075 = vmatprep.mubr.f32.mxu0 0.0
    %5076 = vmatmul.mubr.f32.gmra.mrb[0].mxu0 %v4668
    %v5077 = vpop.f32.mrb[0].mxu0
    %v5078 = vadd.f32 %v4769, %v5077
    %v5079 = vpop.f32.mrb[0].mxu0
    %5080 = vmatprep.mubr.f32.mxu0 0.0
    %5081 = vmatmul.mubr.f32.gmra.mrb[0].mxu0 %v4669
    %v5082 = vpop.f32.mrb[0].mxu0
    %v5083 = vadd.f32 %v4769, %v5082
    %v5084 = vpop.f32.mrb[0].mxu0
    %5085 = vmatprep.mubr.f32.mxu0 0.0
    %5086 = vmatmul.mubr.f32.gmra.mrb[0].mxu0 %v4670
    %v5087 = vpop.f32.mrb[0].mxu0
    %v5088 = vadd.f32 %v4769, %v5087
    %v5089 = vpop.f32.mrb[0].mxu0
    %5090 = vmatprep.mubr.f32.mxu0 0.0
    %5091 = vmatmul.mubr.f32.gmra.mrb[0].mxu0 %v4671
    %v5092 = vpop.f32.mrb[0].mxu0
    %v5093 = vadd.f32 %v4769, %v5092
    %v5094 = vpop.f32.mrb[0].mxu0
    %5095 = vmatprep.mubr.f32.mxu0 0.0
    %5096 = vmatmul.mubr.f32.gmra.mrb[0].mxu0 %v4672
    %v5097 = vpop.f32.mrb[0].mxu0
    %v5098 = vadd.f32 %v4769, %v5097
    %v5099 = vpop.f32.mrb[0].mxu0
    %5100 = vmatprep.mubr.f32.mxu0 0.0
    %5101 = vmatmul.mubr.f32.gmra.mrb[0].mxu0 %v4673
    %v5102 = vpop.f32.mrb[0].mxu0
    %v5103 = vadd.f32 %v4769, %v5102
    %v5104 = vpop.f32.mrb[0].mxu0
    %5105 = vmatprep.mubr.f32.mxu0 0.0
    %5106 = vmatmul.mubr.f32.gmra.mrb[0].mxu0 %v4674
    %v5107 = vpop.f32.mrb[0].mxu0
    %v5108 = vadd.f32 %v4769, %v5107
    %v5109 = vpop.f32.mrb[0].mxu0
    %5110 = vmatprep.mubr.f32.mxu0 0.0
    %5111 = vmatmul.mubr.f32.gmra.mrb[0].mxu0 %v4675
    %v5112 = vpop.f32.mrb[0].mxu0
    %v5113 = vadd.f32 %v4769, %v5112
    %v5114 = vpop.f32.mrb[0].mxu0
    %5115 = vmatprep.mubr.f32.mxu0 0.0
    %5116 = vmatmul.mubr.f32.gmra.mrb[0].mxu0 %v4676
    %v5117 = vpop.f32.mrb[0].mxu0
    %v5118 = vadd.f32 %v4769, %v5117
    %v5119 = vpop.f32.mrb[0].mxu0
    %5120 = vmatprep.mubr.f32.mxu0 0.0
    %5121 = vmatmul.mubr.f32.gmra.mrb[0].mxu0 %v4677
    %v5122 = vpop.f32.mrb[0].mxu0
    %v5123 = vadd.f32 %v4769, %v5122
    %v5124 = vpop.f32.mrb[0].mxu0
    %5125 = vmatprep.mubr.f32.mxu0 0.0
    %5126 = vmatmul.mubr.f32.gmra.mrb[0].mxu0 %v4678
    %v5127 = vpop.f32.mrb[0].mxu0
    %v5128 = vadd.f32 %v4769, %v5127
    %v5129 = vpop.f32.mrb[0].mxu0
    %5130 = vmatprep.mubr.f32.mxu0 0.0
    %5131 = vmatmul.mubr.f32.gmra.mrb[0].mxu0 %v4679
    %v5132 = vpop.f32.mrb[0].mxu0
    %v5133 = vadd.f32 %v4769, %v5132
    %v5134 = vpop.f32.mrb[0].mxu0
    %5135 = vmatprep.mubr.f32.mxu0 0.0
    %5136 = vmatmul.mubr.f32.gmra.mrb[0].mxu0 %v4680
    %v5137 = vpop.f32.mrb[0].mxu0
    %v5138 = vadd.f32 %v4769, %v5137
    %v5139 = vpop.f32.mrb[0].mxu0
    %5140 = vmatprep.mubr.f32.mxu0 0.0
    %5141 = vmatmul.mubr.f32.gmra.mrb[0].mxu0 %v4681
    %v5142 = vpop.f32.mrb[0].mxu0
    %v5143 = vadd.f32 %v4769, %v5142
    %v5144 = vpop.f32.mrb[0].mxu0
    %5145 = vmatprep.mubr.f32.mxu0 0.0
    %5146 = vmatmul.mubr.f32.gmra.mrb[0].mxu0 %v4682
    %v5147 = vpop.f32.mrb[0].mxu0
    %v5148 = vadd.f32 %v4769, %v5147
    %v5149 = vpop.f32.mrb[0].mxu0
    %5150 = vmatprep.mubr.f32.mxu0 0.0
    %5151 = vmatmul.mubr.f32.gmra.mrb[0].mxu0 %v4683
    %v5152 = vpop.f32.mrb[0].mxu0
    %v5153 = vadd.f32 %v4769, %v5152
    %v5154 = vpop.f32.mrb[0].mxu0
    %5155 = vmatprep.mubr.f32.mxu0 0.0
    %5156 = vmatmul.mubr.f32.gmra.mrb[0].mxu0 %v4684
    %v5157 = vpop.f32.mrb[0].mxu0
    %v5158 = vadd.f32 %v4769, %v5157
    %v5159 = vpop.f32.mrb[0].mxu0
    %5160 = vmatprep.mubr.f32.mxu0 0.0
    %5161 = vmatmul.mubr.f32.gmra.mrb[0].mxu0 %v4685
    %v5162 = vpop.f32.mrb[0].mxu0
    %v5163 = vadd.f32 %v4769, %v5162
    %v5164 = vpop.f32.mrb[0].mxu0
    %5165 = vmatprep.mubr.f32.mxu0 0.0
    %5166 = vmatmul.mubr.f32.gmra.mrb[0].mxu0 %v4686
    %v5167 = vpop.f32.mrb[0].mxu0
    %v5168 = vadd.f32 %v4769, %v5167
    %v5169 = vpop.f32.mrb[0].mxu0
    %5170 = vmatprep.mubr.f32.mxu0 0.0
    %5171 = vmatmul.mubr.f32.gmra.mrb[0].mxu0 %v4687
    %v5172 = vpop.f32.mrb[0].mxu0
    %v5173 = vadd.f32 %v4769, %v5172
    %v5174 = vpop.f32.mrb[0].mxu0
    %5175 = vmatprep.mubr.f32.mxu0 0.0
    %5176 = vmatmul.mubr.f32.gmra.mrb[0].mxu0 %v4688
    %v5177 = vpop.f32.mrb[0].mxu0
    %v5178 = vadd.f32 %v4769, %v5177
    %v5179 = vpop.f32.mrb[0].mxu0
    %5180 = vmatprep.mubr.f32.mxu0 0.0
    %5181 = vmatmul.mubr.f32.gmra.mrb[0].mxu0 %v4689
    %v5182 = vpop.f32.mrb[0].mxu0
    %v5183 = vadd.f32 %v4769, %v5182
    %v5184 = vpop.f32.mrb[0].mxu0
    %5185 = vmatprep.mubr.f32.mxu0 0.0
    %5186 = vmatmul.mubr.f32.gmra.mrb[0].mxu0 %v4690
    %v5187 = vpop.f32.mrb[0].mxu0
    %v5188 = vadd.f32 %v4769, %v5187
    %v5189 = vpop.f32.mrb[0].mxu0
    %5190 = vmatprep.mubr.f32.mxu0 0.0
    %5191 = vmatmul.mubr.f32.gmra.mrb[0].mxu0 %v4691
    %v5192 = vpop.f32.mrb[0].mxu0
    %v5193 = vadd.f32 %v4769, %v5192
    %v5194 = vpop.f32.mrb[0].mxu0
    %5195 = vmatprep.mubr.f32.mxu0 0.0
    %5196 = vmatmul.mubr.f32.gmra.mrb[0].mxu0 %v4692
    %v5197 = vpop.f32.mrb[0].mxu0
    %v5198 = vadd.f32 %v4769, %v5197
    %v5199 = vpop.f32.mrb[0].mxu0
    %5200 = vmatprep.mubr.f32.mxu0 0.0
    %5201 = vmatmul.mubr.f32.gmra.mrb[0].mxu0 %v4693
    %v5202 = vpop.f32.mrb[0].mxu0
    %v5203 = vadd.f32 %v4769, %v5202
    %v5204 = vpop.f32.mrb[0].mxu0
    %5205 = vmatprep.mubr.f32.mxu0 0.0
    %5206 = vmatmul.mubr.f32.gmra.mrb[0].mxu0 %v4694
    %v5207 = vpop.f32.mrb[0].mxu0
    %v5208 = vadd.f32 %v4769, %v5207
    %v5209 = vpop.f32.mrb[0].mxu0
    %5210 = vmatprep.mubr.f32.mxu0 0.0
    %5211 = vmatmul.mubr.f32.gmra.mrb[0].mxu0 %v4695
    %v5212 = vpop.f32.mrb[0].mxu0
    %v5213 = vadd.f32 %v4769, %v5212
    %v5214 = vpop.f32.mrb[0].mxu0
    %5215 = vmatprep.mubr.f32.mxu0 0.0
    %5216 = vmatmul.mubr.f32.gmra.mrb[0].mxu0 %v4696
    %v5217 = vpop.f32.mrb[0].mxu0
    %v5218 = vadd.f32 %v4769, %v5217
    %v5219 = vpop.f32.mrb[0].mxu0
    %5220 = vmatprep.mubr.f32.mxu0 0.0
    %5221 = vmatmul.mubr.f32.gmra.mrb[0].mxu0 %v4697
    %v5222 = vpop.f32.mrb[0].mxu0
    %v5223 = vadd.f32 %v4769, %v5222
    %v5224 = vpop.f32.mrb[0].mxu0
    %5225 = vmatprep.mubr.f32.mxu0 0.0
    %5226 = vmatmul.mubr.f32.gmra.mrb[0].mxu0 %v4698
    %v5227 = vpop.f32.mrb[0].mxu0
    %v5228 = vadd.f32 %v4769, %v5227
    %v5229 = vpop.f32.mrb[0].mxu0
    %5230 = vmatprep.mubr.f32.mxu0 0.0
    %5231 = vmatmul.mubr.f32.gmra.mrb[0].mxu0 %v4699
    %v5232 = vpop.f32.mrb[0].mxu0
    %v5233 = vadd.f32 %v4769, %v5232
    %v5234 = vpop.f32.mrb[0].mxu0
    %5235 = vmatprep.mubr.f32.mxu0 0.0
    %5236 = vmatmul.mubr.f32.gmra.mrb[0].mxu0 %v4700
    %v5237 = vpop.f32.mrb[0].mxu0
    %v5238 = vadd.f32 %v4769, %v5237
    %v5239 = vpop.f32.mrb[0].mxu0
    %5240 = vmatprep.mubr.f32.mxu0 0.0
    %5241 = vmatmul.mubr.f32.gmra.mrb[0].mxu0 %v4701
    %v5242 = vpop.f32.mrb[0].mxu0
    %v5243 = vadd.f32 %v4769, %v5242
    %v5244 = vpop.f32.mrb[0].mxu0
    %5245 = vmatprep.mubr.f32.mxu0 0.0
    %5246 = vmatmul.mubr.f32.gmra.mrb[0].mxu0 %v4702
    %v5247 = vpop.f32.mrb[0].mxu0
    %v5248 = vadd.f32 %v4769, %v5247
    %v5249 = vpop.f32.mrb[0].mxu0
    %5250 = vmatprep.mubr.f32.mxu0 0.0
    %5251 = vmatmul.mubr.f32.gmra.mrb[0].mxu0 %v4703
    %v5252 = vpop.f32.mrb[0].mxu0
    %v5253 = vadd.f32 %v4769, %v5252
    %v5254 = vpop.f32.mrb[0].mxu0
    %5255 = vmatprep.mubr.f32.mxu0 0.0
    %5256 = vmatmul.mubr.f32.gmra.mrb[0].mxu0 %v4704
    %v5257 = vpop.f32.mrb[0].mxu0
    %v5258 = vadd.f32 %v4769, %v5257
    %v5259 = vpop.f32.mrb[0].mxu0
    %5260 = vmatprep.mubr.f32.mxu0 0.0
    %5261 = vmatmul.mubr.f32.gmra.mrb[0].mxu0 %v4705
    %v5262 = vpop.f32.mrb[0].mxu0
    %v5263 = vadd.f32 %v4769, %v5262
    %v5264 = vpop.f32.mrb[0].mxu0
    %5265 = vmatprep.mubr.f32.mxu0 0.0
    %5266 = vmatmul.mubr.f32.gmra.mrb[0].mxu0 %v4706
    %v5267 = vpop.f32.mrb[0].mxu0
    %v5268 = vadd.f32 %v4769, %v5267
    %v5269 = vpop.f32.mrb[0].mxu0
    %5270 = vmatprep.mubr.f32.mxu0 0.0
    %5271 = vmatmul.mubr.f32.gmra.mrb[0].mxu0 %v4707
    %v5272 = vpop.f32.mrb[0].mxu0
    %v5273 = vadd.f32 %v4769, %v5272
    %v5274 = vpop.f32.mrb[0].mxu0
    %5275 = vmatprep.mubr.f32.mxu0 0.0
    %5276 = vmatmul.mubr.f32.gmra.mrb[0].mxu0 %v4708
    %v5277 = vpop.f32.mrb[0].mxu0
    %v5278 = vadd.f32 %v4769, %v5277
    %v5279 = vpop.f32.mrb[0].mxu0
    %5280 = vmatprep.mubr.f32.mxu0 0.0
    %5281 = vmatmul.mubr.f32.gmra.mrb[0].mxu0 %v4709
    %v5282 = vpop.f32.mrb[0].mxu0
    %v5283 = vadd.f32 %v4769, %v5282
    %v5284 = vpop.f32.mrb[0].mxu0
    %5285 = vmatprep.mubr.f32.mxu0 0.0
    %5286 = vmatmul.mubr.f32.gmra.mrb[0].mxu0 %v4710
    %v5287 = vpop.f32.mrb[0].mxu0
    %v5288 = vadd.f32 %v4769, %v5287
    %v5289 = vpop.f32.mrb[0].mxu0
    %5290 = vmatprep.mubr.f32.mxu0 0.0
    %5291 = vmatmul.mubr.f32.gmra.mrb[0].mxu0 %v4711
    %v5292 = vpop.f32.mrb[0].mxu0
    %v5293 = vadd.f32 %v4769, %v5292
    %v5294 = vpop.f32.mrb[0].mxu0
    %5295 = vmatprep.mubr.f32.mxu0 0.0
    %5296 = vmatmul.mubr.f32.gmra.mrb[0].mxu0 %v4712
    %v5297 = vpop.f32.mrb[0].mxu0
    %v5298 = vadd.f32 %v4769, %v5297
    %v5299 = vpop.f32.mrb[0].mxu0
    %5300 = vmatprep.mubr.f32.mxu0 0.0
    %5301 = vmatmul.mubr.f32.gmra.mrb[0].mxu0 %v4713
    %v5302 = vpop.f32.mrb[0].mxu0
    %v5303 = vadd.f32 %v4769, %v5302
    %v5304 = vpop.f32.mrb[0].mxu0
    %5305 = vmatprep.mubr.f32.mxu0 0.0
    %5306 = vmatmul.mubr.f32.gmra.mrb[0].mxu0 %v4714
    %v5307 = vpop.f32.mrb[0].mxu0
    %v5308 = vadd.f32 %v4769, %v5307
    %v5309 = vpop.f32.mrb[0].mxu0
    %5310 = vmatprep.mubr.f32.mxu0 0.0
    %5311 = vmatmul.mubr.f32.gmra.mrb[0].mxu0 %v4715
    %v5312 = vpop.f32.mrb[0].mxu0
    %v5313 = vadd.f32 %v4769, %v5312
    %v5314 = vpop.f32.mrb[0].mxu0
    %5315 = vmatprep.mubr.f32.mxu0 0.0
    %5316 = vmatmul.mubr.f32.gmra.mrb[0].mxu0 %v4716
    %v5317 = vpop.f32.mrb[0].mxu0
    %v5318 = vadd.f32 %v4769, %v5317
    %v5319 = vpop.f32.mrb[0].mxu0
    %5320 = vmatprep.mubr.f32.mxu0 0.0
    %5321 = vmatmul.mubr.f32.gmra.mrb[0].mxu0 %v4717
    %v5322 = vpop.f32.mrb[0].mxu0
    %v5323 = vadd.f32 %v4769, %v5322
    %v5324 = vpop.f32.mrb[0].mxu0
    %5325 = vmatprep.mubr.f32.mxu0 0.0
    %5326 = vmatmul.mubr.f32.gmra.mrb[0].mxu0 %v4718
    %v5327 = vpop.f32.mrb[0].mxu0
    %v5328 = vadd.f32 %v4769, %v5327
    %v5329 = vpop.f32.mrb[0].mxu0
    %5330 = vmatprep.mubr.f32.mxu0 0.0
    %5331 = vmatmul.mubr.f32.gmra.mrb[0].mxu0 %v4719
    %v5332 = vpop.f32.mrb[0].mxu0
    %v5333 = vadd.f32 %v4769, %v5332
    %v5334 = vpop.f32.mrb[0].mxu0
    %5335 = vmatprep.mubr.f32.mxu0 0.0
    %5336 = vmatmul.mubr.f32.gmra.mrb[0].mxu0 %v4720
    %v5337 = vpop.f32.mrb[0].mxu0
    %v5338 = vadd.f32 %v4769, %v5337
    %v5339 = vpop.f32.mrb[0].mxu0
    %5340 = vmatprep.mubr.f32.mxu0 0.0
    %5341 = vmatmul.mubr.f32.gmra.mrb[0].mxu0 %v4721
    %v5342 = vpop.f32.mrb[0].mxu0
    %v5343 = vadd.f32 %v4769, %v5342
    %v5344 = vpop.f32.mrb[0].mxu0
    %5345 = vmatprep.mubr.f32.mxu0 0.0
    %5346 = vmatmul.mubr.f32.gmra.mrb[0].mxu0 %v4722
    %v5347 = vpop.f32.mrb[0].mxu0
    %v5348 = vadd.f32 %v4769, %v5347
    %v5349 = vpop.f32.mrb[0].mxu0
    %5350 = vmatprep.mubr.f32.mxu0 0.0
    %5351 = vmatmul.mubr.f32.gmra.mrb[0].mxu0 %v4723
    %v5352 = vpop.f32.mrb[0].mxu0
    %v5353 = vadd.f32 %v4769, %v5352
    %v5354 = vpop.f32.mrb[0].mxu0
    %5355 = vmatprep.mubr.f32.mxu0 0.0
    %5356 = vmatmul.mubr.f32.gmra.mrb[0].mxu0 %v4724
    %v5357 = vpop.f32.mrb[0].mxu0
    %v5358 = vadd.f32 %v4769, %v5357
    %v5359 = vpop.f32.mrb[0].mxu0
    %5360 = vmatprep.mubr.f32.mxu0 0.0
    %5361 = vmatmul.mubr.f32.gmra.mrb[0].mxu0 %v4725
    %v5362 = vpop.f32.mrb[0].mxu0
    %v5363 = vadd.f32 %v4769, %v5362
    %v5364 = vpop.f32.mrb[0].mxu0
    %5365 = vmatprep.mubr.f32.mxu0 0.0
    %5366 = vmatmul.mubr.f32.gmra.mrb[0].mxu0 %v4726
    %v5367 = vpop.f32.mrb[0].mxu0
    %v5368 = vadd.f32 %v4769, %v5367
    %v5369 = vpop.f32.mrb[0].mxu0
    %5370 = vmatprep.mubr.f32.mxu0 0.0
    %5371 = vmatmul.mubr.f32.gmra.mrb[0].mxu0 %v4727
    %v5372 = vpop.f32.mrb[0].mxu0
    %v5373 = vadd.f32 %v4769, %v5372
    %v5374 = vpop.f32.mrb[0].mxu0
    %5375 = vmatprep.mubr.f32.mxu0 0.0
    %5376 = vmatmul.mubr.f32.gmra.mrb[0].mxu0 %v4728
    %v5377 = vpop.f32.mrb[0].mxu0
    %v5378 = vadd.f32 %v4769, %v5377
    %v5379 = vpop.f32.mrb[0].mxu0
    %5380 = vmatprep.mubr.f32.mxu0 0.0
    %5381 = vmatmul.mubr.f32.gmra.mrb[0].mxu0 %v4729
    %v5382 = vpop.f32.mrb[0].mxu0
    %v5383 = vadd.f32 %v4769, %v5382
    %v5384 = vpop.f32.mrb[0].mxu0
    %5385 = vmatprep.mubr.f32.mxu0 0.0
    %5386 = vmatmul.mubr.f32.gmra.mrb[0].mxu0 %v4730
    %v5387 = vpop.f32.mrb[0].mxu0
    %v5388 = vadd.f32 %v4769, %v5387
    %v5389 = vpop.f32.mrb[0].mxu0
    %5390 = vmatprep.mubr.f32.mxu0 0.0
    %5391 = vmatmul.mubr.f32.gmra.mrb[0].mxu0 %v4731
    %v5392 = vpop.f32.mrb[0].mxu0
    %v5393 = vadd.f32 %v4769, %v5392
    %v5394 = vpop.f32.mrb[0].mxu0
    %5395 = vmatprep.mubr.f32.mxu0 0.0
    %5396 = vmatmul.mubr.f32.gmra.mrb[0].mxu0 %v4732
    %v5397 = vpop.f32.mrb[0].mxu0
    %v5398 = vadd.f32 %v4769, %v5397
    %v5399 = vpop.f32.mrb[0].mxu0
    %5400 = vmatprep.mubr.f32.mxu0 0.0
    %5401 = vmatmul.mubr.f32.gmra.mrb[0].mxu0 %v4733
    %v5402 = vpop.f32.mrb[0].mxu0
    %v5403 = vadd.f32 %v4769, %v5402
    %v5404 = vpop.f32.mrb[0].mxu0
    %5405 = vmatprep.mubr.f32.mxu0 0.0
    %5406 = vmatmul.mubr.f32.gmra.mrb[0].mxu0 %v4734
    %v5407 = vpop.f32.mrb[0].mxu0
    %v5408 = vadd.f32 %v4769, %v5407
    %v5409 = vpop.f32.mrb[0].mxu0
    %5410 = vmatprep.mubr.f32.mxu0 0.0
    %5411 = vmatmul.mubr.f32.gmra.mrb[0].mxu0 %v4735
    %v5412 = vpop.f32.mrb[0].mxu0
    %v5413 = vadd.f32 %v4769, %v5412
    %v5414 = vpop.f32.mrb[0].mxu0
    %5415 = vmatprep.mubr.f32.mxu0 0.0
    %5416 = vmatmul.mubr.f32.gmra.mrb[0].mxu0 %v4736
    %v5417 = vpop.f32.mrb[0].mxu0
    %v5418 = vadd.f32 %v4769, %v5417
    %v5419 = vpop.f32.mrb[0].mxu0
    %5420 = vmatprep.mubr.f32.mxu0 0.0
    %5421 = vmatmul.mubr.f32.gmra.mrb[0].mxu0 %v4737
    %v5422 = vpop.f32.mrb[0].mxu0
    %v5423 = vadd.f32 %v4769, %v5422
    %v5424 = vpop.f32.mrb[0].mxu0
    %5425 = vmatprep.mubr.f32.mxu0 0.0
    %5426 = vmatmul.mubr.f32.gmra.mrb[0].mxu0 %v4738
    %v5427 = vpop.f32.mrb[0].mxu0
    %v5428 = vadd.f32 %v4769, %v5427
    %v5429 = vpop.f32.mrb[0].mxu0
    %5430 = vmatprep.mubr.f32.mxu0 0.0
    %5431 = vmatmul.mubr.f32.gmra.mrb[0].mxu0 %v4739
    %v5432 = vpop.f32.mrb[0].mxu0
    %v5433 = vadd.f32 %v4769, %v5432
    %v5434 = vpop.f32.mrb[0].mxu0
    %5435 = vmatprep.mubr.f32.mxu0 0.0
    %5436 = vmatmul.mubr.f32.gmra.mrb[0].mxu0 %v4740
    %v5437 = vpop.f32.mrb[0].mxu0
    %v5438 = vadd.f32 %v4769, %v5437
    %v5439 = vpop.f32.mrb[0].mxu0
    %5440 = vmatprep.mubr.f32.mxu0 0.0
    %5441 = vmatmul.mubr.f32.gmra.mrb[0].mxu0 %v4741
    %v5442 = vpop.f32.mrb[0].mxu0
    %v5443 = vadd.f32 %v4769, %v5442
    %v5444 = vpop.f32.mrb[0].mxu0
    %5445 = vmatprep.mubr.f32.mxu0 0.0
    %5446 = vmatmul.mubr.f32.gmra.mrb[0].mxu0 %v4742
    %v5447 = vpop.f32.mrb[0].mxu0
    %v5448 = vadd.f32 %v4769, %v5447
    %v5449 = vpop.f32.mrb[0].mxu0
    %5450 = vmatprep.mubr.f32.mxu0 0.0
    %5451 = vmatmul.mubr.f32.gmra.mrb[0].mxu0 %v4743
    %v5452 = vpop.f32.mrb[0].mxu0
    %v5453 = vadd.f32 %v4769, %v5452
    %v5454 = vpop.f32.mrb[0].mxu0
    %5455 = vmatprep.mubr.f32.mxu0 0.0
    %5456 = vmatmul.mubr.f32.gmra.mrb[0].mxu0 %v4744
    %v5457 = vpop.f32.mrb[0].mxu0
    %v5458 = vadd.f32 %v4769, %v5457
    %v5459 = vpop.f32.mrb[0].mxu0
    %5460 = vmatprep.mubr.f32.mxu0 0.0
    %5461 = vmatmul.mubr.f32.gmra.mrb[0].mxu0 %v4745
    %v5462 = vpop.f32.mrb[0].mxu0
    %v5463 = vadd.f32 %v4769, %v5462
    %v5464 = vpop.f32.mrb[0].mxu0
    %5465 = vmatprep.mubr.f32.mxu0 0.0
    %5466 = vmatmul.mubr.f32.gmra.mrb[0].mxu0 %v4746
    %v5467 = vpop.f32.mrb[0].mxu0
    %v5468 = vadd.f32 %v4769, %v5467
    %v5469 = vpop.f32.mrb[0].mxu0
    %5470 = vmatprep.mubr.f32.mxu0 0.0
    %5471 = vmatmul.mubr.f32.gmra.mrb[0].mxu0 %v4747
    %v5472 = vpop.f32.mrb[0].mxu0
    %v5473 = vadd.f32 %v4769, %v5472
    %v5474 = vpop.f32.mrb[0].mxu0
    %5475 = vdwg.mxu0
    %5476 = vst [vmem:[%s28] sm:$0xff] %v4838
    %5477 = vst [vmem:[%s28 + $0x8] sm:$0xff] %v4843
    %5478 = vst [vmem:[%s28 + $0x10] sm:$0xff] %v4848
    %5479 = vst [vmem:[%s28 + $0x18] sm:$0xff] %v4853
    %5480 = vst [vmem:[%s28 + $0x20] sm:$0xff] %v4858
    %5481 = vst [vmem:[%s28 + $0x28] sm:$0xff] %v4863
    %5482 = vst [vmem:[%s28 + $0x30] sm:$0xff] %v4868
    %5483 = vst [vmem:[%s28 + $0x38] sm:$0xff] %v4873
    %5484 = vst [vmem:[%s28 + $0x40] sm:$0xff] %v4878
    %5485 = vst [vmem:[%s28 + $0x48] sm:$0xff] %v4883
    %5486 = vst [vmem:[%s28 + $0x50] sm:$0xff] %v4888
    %5487 = vst [vmem:[%s28 + $0x58] sm:$0xff] %v4893
    %5488 = vst [vmem:[%s28 + $0x60] sm:$0xff] %v4898
    %5489 = vst [vmem:[%s28 + $0x68] sm:$0xff] %v4903
    %5490 = vst [vmem:[%s28 + $0x70] sm:$0xff] %v4908
    %5491 = vst [vmem:[%s28 + $0x78] sm:$0xff] %v4913
    %5492 = vst [vmem:[%s28 + $0x80] sm:$0xff] %v4918
    %5493 = vst [vmem:[%s28 + $0x88] sm:$0xff] %v4923
    %5494 = vst [vmem:[%s28 + $0x90] sm:$0xff] %v4928
    %5495 = vst [vmem:[%s28 + $0x98] sm:$0xff] %v4933
    %5496 = vst [vmem:[%s28 + $0xa0] sm:$0xff] %v4938
    %5497 = vst [vmem:[%s28 + $0xa8] sm:$0xff] %v4943
    %5498 = vst [vmem:[%s28 + $0xb0] sm:$0xff] %v4948
    %5499 = vst [vmem:[%s28 + $0xb8] sm:$0xff] %v4953
    %5500 = vst [vmem:[%s28 + $0xc0] sm:$0xff] %v4958
    %5501 = vst [vmem:[%s28 + $0xc8] sm:$0xff] %v4963
    %5502 = vst [vmem:[%s28 + $0xd0] sm:$0xff] %v4968
    %5503 = vst [vmem:[%s28 + $0xd8] sm:$0xff] %v4973
    %5504 = vst [vmem:[%s28 + $0xe0] sm:$0xff] %v4978
    %5505 = vst [vmem:[%s28 + $0xe8] sm:$0xff] %v4983
    %5506 = vst [vmem:[%s28 + $0xf0] sm:$0xff] %v4988
    %5507 = vst [vmem:[%s28 + $0xf8] sm:$0xff] %v4993
    %5508 = vst [vmem:[%s28 + $0x100] sm:$0xff] %v4998
    %5509 = vst [vmem:[%s28 + $0x108] sm:$0xff] %v5003
    %5510 = vst [vmem:[%s28 + $0x110] sm:$0xff] %v5008
    %5511 = vst [vmem:[%s28 + $0x118] sm:$0xff] %v5013
    %5512 = vst [vmem:[%s28 + $0x120] sm:$0xff] %v5018
    %5513 = vst [vmem:[%s28 + $0x128] sm:$0xff] %v5023
    %5514 = vst [vmem:[%s28 + $0x130] sm:$0xff] %v5028
    %5515 = vst [vmem:[%s28 + $0x138] sm:$0xff] %v5033
    %5516 = vst [vmem:[%s28 + $0x140] sm:$0xff] %v5038
    %5517 = vst [vmem:[%s28 + $0x148] sm:$0xff] %v5043
    %5518 = vst [vmem:[%s28 + $0x150] sm:$0xff] %v5048
    %5519 = vst [vmem:[%s28 + $0x158] sm:$0xff] %v5053
    %5520 = vst [vmem:[%s28 + $0x160] sm:$0xff] %v5058
    %5521 = vst [vmem:[%s28 + $0x168] sm:$0xff] %v5063
    %5522 = vst [vmem:[%s28 + $0x170] sm:$0xff] %v5068
    %5523 = vst [vmem:[%s28 + $0x178] sm:$0xff] %v5073
    %5524 = vst [vmem:[%s28 + $0x180] sm:$0xff] %v5078
    %5525 = vst [vmem:[%s28 + $0x188] sm:$0xff] %v5083
    %5526 = vst [vmem:[%s28 + $0x190] sm:$0xff] %v5088
    %5527 = vst [vmem:[%s28 + $0x198] sm:$0xff] %v5093
    %5528 = vst [vmem:[%s28 + $0x1a0] sm:$0xff] %v5098
    %5529 = vst [vmem:[%s28 + $0x1a8] sm:$0xff] %v5103
    %5530 = vst [vmem:[%s28 + $0x1b0] sm:$0xff] %v5108
    %5531 = vst [vmem:[%s28 + $0x1b8] sm:$0xff] %v5113
    %5532 = vst [vmem:[%s28 + $0x1c0] sm:$0xff] %v5118
    %5533 = vst [vmem:[%s28 + $0x1c8] sm:$0xff] %v5123
    %5534 = vst [vmem:[%s28 + $0x1d0] sm:$0xff] %v5128
    %5535 = vst [vmem:[%s28 + $0x1d8] sm:$0xff] %v5133
    %5536 = vst [vmem:[%s28 + $0x1e0] sm:$0xff] %v5138
    %5537 = vst [vmem:[%s28 + $0x1e8] sm:$0xff] %v5143
    %5538 = vst [vmem:[%s28 + $0x1f0] sm:$0xff] %v5148
    %5539 = vst [vmem:[%s28 + $0x1f8] sm:$0xff] %v5153
    %5540 = vst [vmem:[%s28 + $0x200] sm:$0xff] %v5158
    %5541 = vst [vmem:[%s28 + $0x208] sm:$0xff] %v5163
    %5542 = vst [vmem:[%s28 + $0x210] sm:$0xff] %v5168
    %5543 = vst [vmem:[%s28 + $0x218] sm:$0xff] %v5173
    %5544 = vst [vmem:[%s28 + $0x220] sm:$0xff] %v5178
    %5545 = vst [vmem:[%s28 + $0x228] sm:$0xff] %v5183
    %5546 = vst [vmem:[%s28 + $0x230] sm:$0xff] %v5188
    %5547 = vst [vmem:[%s28 + $0x238] sm:$0xff] %v5193
    %5548 = vst [vmem:[%s28 + $0x240] sm:$0xff] %v5198
    %5549 = vst [vmem:[%s28 + $0x248] sm:$0xff] %v5203
    %5550 = vst [vmem:[%s28 + $0x250] sm:$0xff] %v5208
    %5551 = vst [vmem:[%s28 + $0x258] sm:$0xff] %v5213
    %5552 = vst [vmem:[%s28 + $0x260] sm:$0xff] %v5218
    %5553 = vst [vmem:[%s28 + $0x268] sm:$0xff] %v5223
    %5554 = vst [vmem:[%s28 + $0x270] sm:$0xff] %v5228
    %5555 = vst [vmem:[%s28 + $0x278] sm:$0xff] %v5233
    %5556 = vst [vmem:[%s28 + $0x280] sm:$0xff] %v5238
    %5557 = vst [vmem:[%s28 + $0x288] sm:$0xff] %v5243
    %5558 = vst [vmem:[%s28 + $0x290] sm:$0xff] %v5248
    %5559 = vst [vmem:[%s28 + $0x298] sm:$0xff] %v5253
    %5560 = vst [vmem:[%s28 + $0x2a0] sm:$0xff] %v5258
    %5561 = vst [vmem:[%s28 + $0x2a8] sm:$0xff] %v5263
    %5562 = vst [vmem:[%s28 + $0x2b0] sm:$0xff] %v5268
    %5563 = vst [vmem:[%s28 + $0x2b8] sm:$0xff] %v5273
    %5564 = vst [vmem:[%s28 + $0x2c0] sm:$0xff] %v5278
    %5565 = vst [vmem:[%s28 + $0x2c8] sm:$0xff] %v5283
    %5566 = vst [vmem:[%s28 + $0x2d0] sm:$0xff] %v5288
    %5567 = vst [vmem:[%s28 + $0x2d8] sm:$0xff] %v5293
    %5568 = vst [vmem:[%s28 + $0x2e0] sm:$0xff] %v5298
    %5569 = vst [vmem:[%s28 + $0x2e8] sm:$0xff] %v5303
    %5570 = vst [vmem:[%s28 + $0x2f0] sm:$0xff] %v5308
    %5571 = vst [vmem:[%s28 + $0x2f8] sm:$0xff] %v5313
    %5572 = vst [vmem:[%s28 + $0x300] sm:$0xff] %v5318
    %5573 = vst [vmem:[%s28 + $0x308] sm:$0xff] %v5323
    %5574 = vst [vmem:[%s28 + $0x310] sm:$0xff] %v5328
    %5575 = vst [vmem:[%s28 + $0x318] sm:$0xff] %v5333
    %5576 = vst [vmem:[%s28 + $0x320] sm:$0xff] %v5338
    %5577 = vst [vmem:[%s28 + $0x328] sm:$0xff] %v5343
    %5578 = vst [vmem:[%s28 + $0x330] sm:$0xff] %v5348
    %5579 = vst [vmem:[%s28 + $0x338] sm:$0xff] %v5353
    %5580 = vst [vmem:[%s28 + $0x340] sm:$0xff] %v5358
    %5581 = vst [vmem:[%s28 + $0x348] sm:$0xff] %v5363
    %5582 = vst [vmem:[%s28 + $0x350] sm:$0xff] %v5368
    %5583 = vst [vmem:[%s28 + $0x358] sm:$0xff] %v5373
    %5584 = vst [vmem:[%s28 + $0x360] sm:$0xff] %v5378
    %5585 = vst [vmem:[%s28 + $0x368] sm:$0xff] %v5383
    %5586 = vst [vmem:[%s28 + $0x370] sm:$0xff] %v5388
    %5587 = vst [vmem:[%s28 + $0x378] sm:$0xff] %v5393
    %5588 = vst [vmem:[%s28 + $0x380] sm:$0xff] %v5398
    %5589 = vst [vmem:[%s28 + $0x388] sm:$0xff] %v5403
    %5590 = vst [vmem:[%s28 + $0x390] sm:$0xff] %v5408
    %5591 = vst [vmem:[%s28 + $0x398] sm:$0xff] %v5413
    %5592 = vst [vmem:[%s28 + $0x3a0] sm:$0xff] %v5418
    %5593 = vst [vmem:[%s28 + $0x3a8] sm:$0xff] %v5423
    %5594 = vst [vmem:[%s28 + $0x3b0] sm:$0xff] %v5428
    %5595 = vst [vmem:[%s28 + $0x3b8] sm:$0xff] %v5433
    %5596 = vst [vmem:[%s28 + $0x3c0] sm:$0xff] %v5438
    %5597 = vst [vmem:[%s28 + $0x3c8] sm:$0xff] %v5443
    %5598 = vst [vmem:[%s28 + $0x3d0] sm:$0xff] %v5448
    %5599 = vst [vmem:[%s28 + $0x3d8] sm:$0xff] %v5453
    %5600 = vst [vmem:[%s28 + $0x3e0] sm:$0xff] %v5458
    %5601 = vst [vmem:[%s28 + $0x3e8] sm:$0xff] %v5463
    %5602 = vst [vmem:[%s28 + $0x3f0] sm:$0xff] %v5468
    %5603 = vst [vmem:[%s28 + $0x3f8] sm:$0xff] %v5473
    // Predicated region
    $region206: #{bar_generator_pallas.1} parent=1 // pred_check
      _
    $region207: #{bar_generator_pallas.1} parent=1 // pred_check_branch
      %5605 = sbr.rel (0) target = $region209
    $region208: #{bar_generator_pallas.1} parent=1 // pred_region
      _
    $region209: #{bar_generator_pallas.1} parent=1 // pred_fallthru
      _
    // Predicated region
    $region210: #{bar_generator_pallas.1} parent=1 // pred_check
      _
    $region211: #{bar_generator_pallas.1} parent=1 // pred_check_branch
      %5607 = sbr.rel (0) target = $region213
    $region212: #{bar_generator_pallas.1} parent=1 // pred_region
      _
    $region213: #{bar_generator_pallas.1} parent=1 // pred_fallthru
      _
    %5608 = vsyncpa [#allocation4], 1
    %5609 = vsyncpa [#allocation6], 1
    %5610 = vsyncpa [#allocation9], 1
    %5611 = vsyncpa [#allocation12], 1
    %5612 = vsyncpa [#allocation15], 1
    %5613 = vsyncpa [#allocation18], 1
    %5614 = vsyncpa [#allocation21], 1
    %5615 = vsyncpa [#allocation24], 1
    %5616 = vsyncpa [#allocation27], 1
    %5617 = vsyncpa [#allocation30], 1
    %5618 = vsyncpa [#allocation33], 1
    %5619 = vsyncpa [#allocation36], 1

</llo_original>
